<compile_context>
chip_gen: v6e
topology: v6e:2x2x1
jax: 0.10.0
libtpu: 0.0.40
codegen_flags: <defaults>
</compile_context>

<pallas_src>
import functools

import jax
import jax.numpy as jnp
from jax.experimental import pallas as pl
from jax.experimental.pallas import tpu as pltpu


# ----------------------------------------------------------------------------
# Kernels
# ----------------------------------------------------------------------------
def _prefix_kernel(x_ref, w1, b1, w2, b2, w3, b3, w4, b4, h_ref):
    """fc1..fc4 with ReLU, fused; all weights VMEM-resident.
    bf16 MXU matmuls, f32 accumulation + f32 bias."""
    h = x_ref[...]
    for w_ref, b_ref in ((w1, b1), (w2, b2), (w3, b3), (w4, b4)):
        y = jnp.dot(h, w_ref[...], preferred_element_type=jnp.float32) + b_ref[...]
        h = jnp.maximum(y, 0.0).astype(h_ref.dtype)
    h_ref[...] = h


def _fused_kernel(x_ref, w1, b1, w2, b2, w3, b3, w4, b4, w5, b5, o_ref):
    """Whole decoder in one invocation (small num_points: every weight fits in
    VMEM, so a single launch avoids the h4 HBM round-trip and a second call)."""
    h = x_ref[...]
    for w_ref, b_ref in ((w1, b1), (w2, b2), (w3, b3), (w4, b4)):
        y = jnp.dot(h, w_ref[...], preferred_element_type=jnp.float32) + b_ref[...]
        h = jnp.maximum(y, 0.0).astype(x_ref.dtype)
    y = jnp.dot(h, w5[...], preferred_element_type=jnp.float32) + b5[...]
    o_ref[...] = jnp.tanh(y).astype(o_ref.dtype)


def _fc5_kernel(h_ref, w5_ref, b5_ref, o_ref):
    """One lane-dense N-tile of fc5: tanh(h4 @ W5_tile + b5_tile)."""
    y = jnp.dot(h_ref[...], w5_ref[...], preferred_element_type=jnp.float32)
    o_ref[...] = jnp.tanh(y + b5_ref[...]).astype(o_ref.dtype)


# ----------------------------------------------------------------------------
# One-time parameter preparation (call OUTSIDE jit / once per set of weights)
# ----------------------------------------------------------------------------
def prepare_decoder_params(params, num_points, *, weight_dtype=jnp.bfloat16,
                           target_tn=2048, fuse_threshold=2048):
    """Casts weights to bf16, reshapes biases to [1, out] (kept f32), and
    zero-pads W5/b5 to the tile grid.  Returns (prepared_pytree, static_meta)."""
    out_dim = num_points * 3
    (w1, b1), (w2, b2), (w3, b3), (w4, b4), (w5, b5) = params
    K = w5.shape[0]
    n128 = -(-out_dim // 128) * 128  # lane-dense (multiple of 128)

    fuse = n128 <= fuse_threshold
    if fuse:
        tn, n_pad = n128, n128
    else:
        n_tiles = max(2, -(-n128 // target_tn))
        if n_tiles % 2:          # even tile count -> v7x's two TCs split evenly
            n_tiles += 1
        tn = -(-n128 // (n_tiles * 128)) * 128
        n_pad = n_tiles * tn     # n_pad >= n128 >= out_dim (padded cols stay 0)

    prefix = []
    for w, b in ((w1, b1), (w2, b2), (w3, b3), (w4, b4)):
        prefix.append(jnp.asarray(w, weight_dtype))
        prefix.append(jnp.asarray(b, jnp.float32).reshape(1, -1))

    w5p = jnp.zeros((K, n_pad), weight_dtype).at[:, :out_dim].set(
        jnp.asarray(w5, weight_dtype))
    b5p = jnp.zeros((1, n_pad), jnp.float32).at[:, :out_dim].set(
        jnp.asarray(b5, jnp.float32).reshape(1, -1))

    prepared = {"prefix": tuple(prefix), "w5": w5p, "b5": b5p}
    meta = {"num_points": num_points, "tn": tn, "fuse": fuse}
    return prepared, meta


# ----------------------------------------------------------------------------
# Forward (jit this with `meta` bound as static kwargs)
# ----------------------------------------------------------------------------
def decoder_forward(x, prepared, *, num_points, tn, fuse,
                    weight_dtype=jnp.bfloat16, batch_pad=8):
    B, se = x.shape
    out_dim = num_points * 3
    prefix = prepared["prefix"]
    w5p, b5p = prepared["w5"], prepared["b5"]
    K, n_pad = w5p.shape

    # Sublane-friendly batch: memory-bound kernel, so extra zero rows are free
    # and give unmasked vector stores. Sliced off at the end.
    Bp = -(-max(B, batch_pad) // batch_pad) * batch_pad
    xb = x.astype(weight_dtype)
    if Bp != B:
        xb = jnp.zeros((Bp, se), weight_dtype).at[:B].set(xb)

    prefix_weight_bytes = sum(int(a.size) * a.dtype.itemsize for a in prefix)
    prefix_flops = 2 * Bp * sum(int(prefix[i].shape[0]) * int(prefix[i].shape[1])
                                for i in range(0, 8, 2))
    fc5_flops = 2 * Bp * K * n_pad
    fc5_bytes = (int(w5p.size) * w5p.dtype.itemsize + int(b5p.size) * 4
                 + Bp * K * 2 + Bp * n_pad * 4)

    if fuse:
        # Single launch, every weight VMEM-resident (out_dim padded <= 2048).
        out = pl.pallas_call(
            _fused_kernel,
            out_shape=jax.ShapeDtypeStruct((Bp, n_pad), jnp.float32),
            cost_estimate=pl.CostEstimate(
                flops=prefix_flops + fc5_flops,
                transcendentals=Bp * n_pad,
                bytes_accessed=prefix_weight_bytes + fc5_bytes + Bp * se * 2),
        )(xb, *prefix, w5p, b5p)
    else:
        # Stage 1: fc1..fc4 (small, fully resident, run once) -> h4 [Bp, K]
        h4 = pl.pallas_call(
            _prefix_kernel,
            out_shape=jax.ShapeDtypeStruct((Bp, K), weight_dtype),
            cost_estimate=pl.CostEstimate(
                flops=prefix_flops,
                transcendentals=0,
                bytes_accessed=prefix_weight_bytes + Bp * se * 2 + Bp * K * 2),
        )(xb, *prefix)

        # Stage 2: fc5 streamed over an even, lane-dense N grid ("parallel"
        # so v7x's two TensorCores split it; no cross-iteration state).
        n_tiles = n_pad // tn
        out = pl.pallas_call(
            _fc5_kernel,
            out_shape=jax.ShapeDtypeStruct((Bp, n_pad), jnp.float32),
            grid=(n_tiles,),
            in_specs=[
                pl.BlockSpec((Bp, K), lambda n: (0, 0)),   # h4 resident
                pl.BlockSpec((K, tn), lambda n: (0, n)),   # W5 tile stream
                pl.BlockSpec((1, tn), lambda n: (0, n)),   # b5 tile stream
            ],
            out_specs=pl.BlockSpec((Bp, tn), lambda n: (0, n)),
            compiler_params=pltpu.CompilerParams(
                dimension_semantics=("parallel",)),
            cost_estimate=pl.CostEstimate(
                flops=fc5_flops,
                transcendentals=Bp * n_pad,
                bytes_accessed=fc5_bytes),
        )(h4, w5p, b5p)

    return out[:B, :out_dim].reshape(B, num_points, 3)


# ----------------------------------------------------------------------------
# Parameter init + reference (for correctness checking)
# ----------------------------------------------------------------------------
def init_decoder_params(key, size_encoder, num_points):
    """Deterministic init matching nn.Linear default (U[-1/sqrt(fan_in), +]),
    weights stored as [in_features, out_features]."""
    dims = [size_encoder, 512, 512, 1024, 1024, num_points * 3]
    params = []
    for i in range(5):
        fan_in, fan_out = dims[i], dims[i + 1]
        key, kw, kb = jax.random.split(key, 3)
        bound = 1.0 / (fan_in ** 0.5)
        w = jax.random.uniform(kw, (fan_in, fan_out), jnp.float32, -bound, bound)
        b = jax.random.uniform(kb, (fan_out,), jnp.float32, -bound, bound)
        params.append((w, b))
    return params


def decoder_ref(x, params, weight_dtype=jnp.bfloat16):
    """Pure-JAX reference mirroring the kernel's dtype handling exactly.
    (Validates the kernel mechanics; bf16 vs full-f32 PyTorch differs slightly.)"""
    h = x.astype(weight_dtype)
    for i, (w, b) in enumerate(params):
        y = jnp.dot(h, w.astype(weight_dtype),
                    preferred_element_type=jnp.float32) + b.astype(jnp.float32)
        h = jnp.maximum(y, 0.0).astype(weight_dtype) if i < 4 else jnp.tanh(y)
    return h


# ----------------------------------------------------------------------------
if __name__ == "__main__":
    key = jax.random.PRNGKey(0)
    batch = 2
    size_encoder = 128

    # num_points=64  -> fused single-call path (out_dim padded to 256)
    # num_points=1024 -> streamed fc5 path (n_pad=3072, 2 tiles of 1536)
    for num_points in (64, 1024):
        key, kp, kx = jax.random.split(key, 3)
        params = init_decoder_params(kp, size_encoder, num_points)
        x = jax.random.normal(kx, (batch, size_encoder), jnp.float32)

        prepared, meta = prepare_decoder_params(params, num_points)
        fwd = jax.jit(functools.partial(decoder_forward, **meta))
        y = jax.block_until_ready(fwd(x, prepared))

        assert y.shape == (batch, num_points, 3), y.shape
        y_ref = decoder_ref(x, params).reshape(batch, num_points, 3)
        err = float(jnp.max(jnp.abs(y - y_ref)))
        assert err < 2e-3, f"num_points={num_points}: max err vs reference {err}"

    print("KERNEL_OK")
</pallas_src>

<mosaic_0001>
module attributes {stable_mosaic.version = 11 : i64} {
  func.func @_fused_kernel(%arg0: memref<8x128xbf16, #tpu.memory_space<vmem>>, %arg1: memref<128x512xbf16, #tpu.memory_space<vmem>>, %arg2: memref<1x512xf32, #tpu.memory_space<vmem>>, %arg3: memref<512x512xbf16, #tpu.memory_space<vmem>>, %arg4: memref<1x512xf32, #tpu.memory_space<vmem>>, %arg5: memref<512x1024xbf16, #tpu.memory_space<vmem>>, %arg6: memref<1x1024xf32, #tpu.memory_space<vmem>>, %arg7: memref<1024x1024xbf16, #tpu.memory_space<vmem>>, %arg8: memref<1x1024xf32, #tpu.memory_space<vmem>>, %arg9: memref<1024x256xbf16, #tpu.memory_space<vmem>>, %arg10: memref<1x256xf32, #tpu.memory_space<vmem>>, %arg11: memref<8x256xf32, #tpu.memory_space<vmem>>) attributes {dimension_semantics = [], scalar_prefetch = 0 : i64, scratch_operands = 0 : i64, tpu.core_type = #tpu.core_type<tc>} {
    %c0 = arith.constant 0 : index
    %c0_0 = arith.constant 0 : index
    %0 = vector.load %arg0[%c0, %c0_0] : memref<8x128xbf16, #tpu.memory_space<vmem>>, vector<8x128xbf16>
    %c0_1 = arith.constant 0 : index
    %c0_2 = arith.constant 0 : index
    %1 = vector.load %arg1[%c0_1, %c0_2] : memref<128x512xbf16, #tpu.memory_space<vmem>>, vector<128x512xbf16>
    %cst = arith.constant dense<0.000000e+00> : vector<8x512xf32>
    %2 = tpu.matmul %0, %1, %cst {dimension_numbers = #tpu.dot_dimension_numbers<[1], [0], [0], [1], [0, 0, 1, 1], [], []>} : vector<8x128xbf16>, vector<128x512xbf16>, vector<8x512xf32> -> vector<8x512xf32>
    %c0_3 = arith.constant 0 : index
    %c0_4 = arith.constant 0 : index
    %3 = vector.load %arg2[%c0_3, %c0_4] : memref<1x512xf32, #tpu.memory_space<vmem>>, vector<1x512xf32>
    %4 = vector.broadcast %3 : vector<1x512xf32> to vector<8x512xf32>
    %5 = arith.addf %2, %4 : vector<8x512xf32>
    %cst_5 = arith.constant 0.000000e+00 : f32
    %6 = vector.broadcast %cst_5 : f32 to vector<8x512xf32>
    %7 = arith.maximumf %5, %6 : vector<8x512xf32>
    %8 = arith.truncf %7 : vector<8x512xf32> to vector<8x512xbf16>
    %c0_6 = arith.constant 0 : index
    %c0_7 = arith.constant 0 : index
    %9 = vector.load %arg3[%c0_6, %c0_7] : memref<512x512xbf16, #tpu.memory_space<vmem>>, vector<512x512xbf16>
    %cst_8 = arith.constant dense<0.000000e+00> : vector<8x512xf32>
    %10 = tpu.matmul %8, %9, %cst_8 {dimension_numbers = #tpu.dot_dimension_numbers<[1], [0], [0], [1], [0, 0, 1, 1], [], []>} : vector<8x512xbf16>, vector<512x512xbf16>, vector<8x512xf32> -> vector<8x512xf32>
    %c0_9 = arith.constant 0 : index
    %c0_10 = arith.constant 0 : index
    %11 = vector.load %arg4[%c0_9, %c0_10] : memref<1x512xf32, #tpu.memory_space<vmem>>, vector<1x512xf32>
    %12 = vector.broadcast %11 : vector<1x512xf32> to vector<8x512xf32>
    %13 = arith.addf %10, %12 : vector<8x512xf32>
    %cst_11 = arith.constant 0.000000e+00 : f32
    %14 = vector.broadcast %cst_11 : f32 to vector<8x512xf32>
    %15 = arith.maximumf %13, %14 : vector<8x512xf32>
    %16 = arith.truncf %15 : vector<8x512xf32> to vector<8x512xbf16>
    %c0_12 = arith.constant 0 : index
    %c0_13 = arith.constant 0 : index
    %17 = vector.load %arg5[%c0_12, %c0_13] : memref<512x1024xbf16, #tpu.memory_space<vmem>>, vector<512x1024xbf16>
    %cst_14 = arith.constant dense<0.000000e+00> : vector<8x1024xf32>
    %18 = tpu.matmul %16, %17, %cst_14 {dimension_numbers = #tpu.dot_dimension_numbers<[1], [0], [0], [1], [0, 0, 1, 1], [], []>} : vector<8x512xbf16>, vector<512x1024xbf16>, vector<8x1024xf32> -> vector<8x1024xf32>
    %c0_15 = arith.constant 0 : index
    %c0_16 = arith.constant 0 : index
    %19 = vector.load %arg6[%c0_15, %c0_16] : memref<1x1024xf32, #tpu.memory_space<vmem>>, vector<1x1024xf32>
    %20 = vector.broadcast %19 : vector<1x1024xf32> to vector<8x1024xf32>
    %21 = arith.addf %18, %20 : vector<8x1024xf32>
    %cst_17 = arith.constant 0.000000e+00 : f32
    %22 = vector.broadcast %cst_17 : f32 to vector<8x1024xf32>
    %23 = arith.maximumf %21, %22 : vector<8x1024xf32>
    %24 = arith.truncf %23 : vector<8x1024xf32> to vector<8x1024xbf16>
    %c0_18 = arith.constant 0 : index
    %c0_19 = arith.constant 0 : index
    %25 = vector.load %arg7[%c0_18, %c0_19] : memref<1024x1024xbf16, #tpu.memory_space<vmem>>, vector<1024x1024xbf16>
    %cst_20 = arith.constant dense<0.000000e+00> : vector<8x1024xf32>
    %26 = tpu.matmul %24, %25, %cst_20 {dimension_numbers = #tpu.dot_dimension_numbers<[1], [0], [0], [1], [0, 0, 1, 1], [], []>} : vector<8x1024xbf16>, vector<1024x1024xbf16>, vector<8x1024xf32> -> vector<8x1024xf32>
    %c0_21 = arith.constant 0 : index
    %c0_22 = arith.constant 0 : index
    %27 = vector.load %arg8[%c0_21, %c0_22] : memref<1x1024xf32, #tpu.memory_space<vmem>>, vector<1x1024xf32>
    %28 = vector.broadcast %27 : vector<1x1024xf32> to vector<8x1024xf32>
    %29 = arith.addf %26, %28 : vector<8x1024xf32>
    %cst_23 = arith.constant 0.000000e+00 : f32
    %30 = vector.broadcast %cst_23 : f32 to vector<8x1024xf32>
    %31 = arith.maximumf %29, %30 : vector<8x1024xf32>
    %32 = arith.truncf %31 : vector<8x1024xf32> to vector<8x1024xbf16>
    %c0_24 = arith.constant 0 : index
    %c0_25 = arith.constant 0 : index
    %33 = vector.load %arg9[%c0_24, %c0_25] : memref<1024x256xbf16, #tpu.memory_space<vmem>>, vector<1024x256xbf16>
    %cst_26 = arith.constant dense<0.000000e+00> : vector<8x256xf32>
    %34 = tpu.matmul %32, %33, %cst_26 {dimension_numbers = #tpu.dot_dimension_numbers<[1], [0], [0], [1], [0, 0, 1, 1], [], []>} : vector<8x1024xbf16>, vector<1024x256xbf16>, vector<8x256xf32> -> vector<8x256xf32>
    %c0_27 = arith.constant 0 : index
    %c0_28 = arith.constant 0 : index
    %35 = vector.load %arg10[%c0_27, %c0_28] : memref<1x256xf32, #tpu.memory_space<vmem>>, vector<1x256xf32>
    %36 = vector.broadcast %35 : vector<1x256xf32> to vector<8x256xf32>
    %37 = arith.addf %34, %36 : vector<8x256xf32>
    %38 = math.tanh %37 : vector<8x256xf32>
    %c0_29 = arith.constant 0 : index
    %c0_30 = arith.constant 0 : index
    %39 = vector.load %arg11[%c0_29, %c0_30] : memref<8x256xf32, #tpu.memory_space<vmem>>, vector<8x256xf32>
    tpu.vector_store %arg11[%c0_29, %c0_30], %38 {strides = array<i32>} : memref<8x256xf32, #tpu.memory_space<vmem>>, vector<8x256xf32>,
    return
  }
}

</mosaic_0001>

<llo_original>
// kernel: decoder_forward.1
$region0: #{decoder_forward.1}
  #allocation0 [shape = 'u32[]', space=smem, size = 0x4, offset = 0x4, fixed_abs, tag = 'smem constant byte address 0x4 - core index']
  #allocation1 [shape = 'u32[144,128]{1,0:T(1,128)}', space=vmem, size = 0x12000, scoped, tag = 'internal scratch']
  %s0 = inlined_call_operand.vmem [shape: bf16[8,128], index: 0, kind: input, shape index: {}]
  %s1 = inlined_call_operand.hbm [shape: bf16[128,512], index: 1, kind: input, shape index: {}]
  %s2 = inlined_call_operand.hbm [shape: f32[1,512], index: 2, kind: input, shape index: {}]
  %s3 = inlined_call_operand.hbm [shape: bf16[512,512], index: 3, kind: input, shape index: {}]
  %s4 = inlined_call_operand.hbm [shape: f32[1,512], index: 4, kind: input, shape index: {}]
  %s5 = inlined_call_operand.hbm [shape: bf16[512,1024], index: 5, kind: input, shape index: {}]
  %s6 = inlined_call_operand.hbm [shape: f32[1,1024], index: 6, kind: input, shape index: {}]
  %s7 = inlined_call_operand.hbm [shape: bf16[1024,1024], index: 7, kind: input, shape index: {}]
  %s8 = inlined_call_operand.hbm [shape: f32[1,1024], index: 8, kind: input, shape index: {}]
  %s9 = inlined_call_operand.hbm [shape: bf16[1024,256], index: 9, kind: input, shape index: {}]
  %s10 = inlined_call_operand.hbm [shape: f32[1,256], index: 10, kind: input, shape index: {}]
  %s11 = inlined_call_operand.vmem [shape: f32[8,256], index: 11, kind: output, shape index: {}]
  %s12 = sld [smem:[#allocation0]]
  $region94: #{decoder_forward.1} parent=0
    _
  %s14 = ssub.s32 1, %s12
  %s15 = scalar_select 0, %s14, %s12
  $region1: #{decoder_forward.1} parent=0
    #allocation2 [shape = 'u8[131072]{0}', space=vmem, size = 0x20000, scoped, tag = 'input window, operand 1, single buffered']
    #allocation3 [shape = 's32[1]{0}', space=sflag, size = 0x4, scoped, tag = 'scoped memory for decoder_forward.1']
    #allocation4 [shape = 'u8[2048]{0}', space=vmem, size = 0x800, scoped, tag = 'input window, operand 2, single buffered']
    #allocation5 [shape = 's32[1]{0}', space=sflag, size = 0x4, scoped, tag = 'scoped memory for decoder_forward.1']
    #allocation6 [shape = 'u8[524288]{0}', space=vmem, size = 0x80000, scoped, tag = 'input window, operand 3, single buffered']
    #allocation7 [shape = 'u8[2048]{0}', space=vmem, size = 0x800, scoped, tag = 'input window, operand 4, single buffered']
    #allocation8 [shape = 's32[1]{0}', space=sflag, size = 0x4, scoped, tag = 'scoped memory for decoder_forward.1']
    #allocation9 [shape = 'u8[1048576]{0}', space=vmem, size = 0x100000, scoped, tag = 'input window, operand 5, single buffered']
    #allocation10 [shape = 'u8[4096]{0}', space=vmem, size = 0x1000, scoped, tag = 'input window, operand 6, single buffered']
    #allocation11 [shape = 's32[1]{0}', space=sflag, size = 0x4, scoped, tag = 'scoped memory for decoder_forward.1']
    #allocation12 [shape = 'u8[2097152]{0}', space=vmem, size = 0x200000, scoped, tag = 'input window, operand 7, single buffered']
    #allocation13 [shape = 'u8[4096]{0}', space=vmem, size = 0x1000, scoped, tag = 'input window, operand 8, single buffered']
    #allocation14 [shape = 's32[1]{0}', space=sflag, size = 0x4, scoped, tag = 'scoped memory for decoder_forward.1']
    #allocation15 [shape = 'u8[524288]{0}', space=vmem, size = 0x80000, scoped, tag = 'input window, operand 9, single buffered']
    #allocation16 [shape = 'u8[1024]{0}', space=vmem, size = 0x400, scoped, tag = 'input window, operand 10, single buffered']
    #allocation17 [shape = 's32[1]{0}', space=sflag, size = 0x4, scoped, tag = 'scoped memory for decoder_forward.1']
    %16 = vsyncpa [#allocation3], 0
    %17 = vsyncpa [#allocation5], 0
    %18 = vsyncpa [#allocation8], 0
    %19 = vsyncpa [#allocation11], 0
    %20 = vsyncpa [#allocation14], 0
    %21 = vsyncpa [#allocation17], 0
    // Predicated region
    $region2: #{decoder_forward.1} parent=1 // pred_check
      _
    $region3: #{decoder_forward.1} parent=1 // pred_check_branch
      %23 = sbr.rel (0) target = $region5
    $region4: #{decoder_forward.1} parent=1 // pred_region
      _
    $region5: #{decoder_forward.1} parent=1 // pred_fallthru
      _
    // Predicated region
    $region6: #{decoder_forward.1} parent=1 // pred_check
      _
    $region7: #{decoder_forward.1} parent=1 // pred_check_branch
      %25 = sbr.rel (0) target = $region9
    $region8: #{decoder_forward.1} parent=1 // pred_region
      %s27 = ssub.s32 4096, 4096
      %28 = vsyncadd [#allocation3], %s27
      %s29 = sshll.u32 [#allocation2], 4
      %s30 = int_to_ptr.vmem [resolvable:$true] %s29
      %35 = dma.hbm_to_vmem [thread:$0]  %s1, 4096, %s30, [#allocation3], 256, 256, 16
    $region9: #{decoder_forward.1} parent=1 // pred_fallthru
      _
    // Predicated region
    $region10: #{decoder_forward.1} parent=1 // pred_check
      _
    $region11: #{decoder_forward.1} parent=1 // pred_check_branch
      %37 = sbr.rel (0) target = $region13
    $region12: #{decoder_forward.1} parent=1 // pred_region
      %s39 = ssub.s32 64, 64
      %40 = vsyncadd [#allocation5], %s39
      %s42 = sshll.u32 [#allocation4], 4
      %s43 = int_to_ptr.vmem [resolvable:$true] %s42
      %45 = dma.hbm_to_vmem [thread:$0]  %s2, 64, %s43, [#allocation5]
    $region13: #{decoder_forward.1} parent=1 // pred_fallthru
      _
    // Predicated region
    $region14: #{decoder_forward.1} parent=1 // pred_check
      _
    $region15: #{decoder_forward.1} parent=1 // pred_check_branch
      %47 = sbr.rel (0) target = $region17
    $region16: #{decoder_forward.1} parent=1 // pred_region
      %s49 = ssub.s32 16384, 16384
      %50 = vsyncadd [#allocation5], %s49
      %s51 = sshll.u32 [#allocation6], 4
      %s52 = int_to_ptr.vmem [resolvable:$true] %s51
      %57 = dma.hbm_to_vmem [thread:$0]  %s3, 16384, %s52, [#allocation5], 256, 256, 16
    $region17: #{decoder_forward.1} parent=1 // pred_fallthru
      _
    // Predicated region
    $region18: #{decoder_forward.1} parent=1 // pred_check
      _
    $region19: #{decoder_forward.1} parent=1 // pred_check_branch
      %59 = sbr.rel (0) target = $region21
    $region20: #{decoder_forward.1} parent=1 // pred_region
      %s61 = ssub.s32 64, 64
      %62 = vsyncadd [#allocation8], %s61
      %s64 = sshll.u32 [#allocation7], 4
      %s65 = int_to_ptr.vmem [resolvable:$true] %s64
      %67 = dma.hbm_to_vmem [thread:$0]  %s4, 64, %s65, [#allocation8]
    $region21: #{decoder_forward.1} parent=1 // pred_fallthru
      _
    // Predicated region
    $region22: #{decoder_forward.1} parent=1 // pred_check
      _
    $region23: #{decoder_forward.1} parent=1 // pred_check_branch
      %69 = sbr.rel (0) target = $region25
    $region24: #{decoder_forward.1} parent=1 // pred_region
      %s71 = ssub.s32 32768, 32768
      %72 = vsyncadd [#allocation8], %s71
      %s73 = sshll.u32 [#allocation9], 4
      %s74 = int_to_ptr.vmem [resolvable:$true] %s73
      %79 = dma.hbm_to_vmem [thread:$0]  %s5, 32768, %s74, [#allocation8], 512, 512, 32
    $region25: #{decoder_forward.1} parent=1 // pred_fallthru
      _
    // Predicated region
    $region26: #{decoder_forward.1} parent=1 // pred_check
      _
    $region27: #{decoder_forward.1} parent=1 // pred_check_branch
      %81 = sbr.rel (0) target = $region29
    $region28: #{decoder_forward.1} parent=1 // pred_region
      %s83 = ssub.s32 128, 128
      %84 = vsyncadd [#allocation11], %s83
      %s86 = sshll.u32 [#allocation10], 4
      %s87 = int_to_ptr.vmem [resolvable:$true] %s86
      %89 = dma.hbm_to_vmem [thread:$0]  %s6, 128, %s87, [#allocation11]
    $region29: #{decoder_forward.1} parent=1 // pred_fallthru
      _
    // Predicated region
    $region30: #{decoder_forward.1} parent=1 // pred_check
      _
    $region31: #{decoder_forward.1} parent=1 // pred_check_branch
      %91 = sbr.rel (0) target = $region33
    $region32: #{decoder_forward.1} parent=1 // pred_region
      %s93 = ssub.s32 65536, 65536
      %94 = vsyncadd [#allocation11], %s93
      %s95 = sshll.u32 [#allocation12], 4
      %s96 = int_to_ptr.vmem [resolvable:$true] %s95
      %101 = dma.hbm_to_vmem [thread:$0]  %s7, 65536, %s96, [#allocation11], 512, 512, 32
    $region33: #{decoder_forward.1} parent=1 // pred_fallthru
      _
    // Predicated region
    $region34: #{decoder_forward.1} parent=1 // pred_check
      _
    $region35: #{decoder_forward.1} parent=1 // pred_check_branch
      %103 = sbr.rel (0) target = $region37
    $region36: #{decoder_forward.1} parent=1 // pred_region
      %s105 = ssub.s32 128, 128
      %106 = vsyncadd [#allocation14], %s105
      %s108 = sshll.u32 [#allocation13], 4
      %s109 = int_to_ptr.vmem [resolvable:$true] %s108
      %111 = dma.hbm_to_vmem [thread:$0]  %s8, 128, %s109, [#allocation14]
    $region37: #{decoder_forward.1} parent=1 // pred_fallthru
      _
    // Predicated region
    $region38: #{decoder_forward.1} parent=1 // pred_check
      _
    $region39: #{decoder_forward.1} parent=1 // pred_check_branch
      %113 = sbr.rel (0) target = $region41
    $region40: #{decoder_forward.1} parent=1 // pred_region
      %s115 = ssub.s32 16384, 16384
      %116 = vsyncadd [#allocation14], %s115
      %s117 = sshll.u32 [#allocation15], 4
      %s118 = int_to_ptr.vmem [resolvable:$true] %s117
      %123 = dma.hbm_to_vmem [thread:$0]  %s9, 16384, %s118, [#allocation14], 128, 128, 8
    $region41: #{decoder_forward.1} parent=1 // pred_fallthru
      _
    // Predicated region
    $region42: #{decoder_forward.1} parent=1 // pred_check
      _
    $region43: #{decoder_forward.1} parent=1 // pred_check_branch
      %125 = sbr.rel (0) target = $region45
    $region44: #{decoder_forward.1} parent=1 // pred_region
      %s127 = ssub.s32 32, 32
      %128 = vsyncadd [#allocation17], %s127
      %s130 = sshll.u32 [#allocation16], 4
      %s131 = int_to_ptr.vmem [resolvable:$true] %s130
      %133 = dma.hbm_to_vmem [thread:$0]  %s10, 32, %s131, [#allocation17]
    $region45: #{decoder_forward.1} parent=1 // pred_fallthru
      _
    // Predicated region
    $region46: #{decoder_forward.1} parent=1 // pred_check
      _
    $region47: #{decoder_forward.1} parent=1 // pred_check_branch
      %135 = sbr.rel (0) target = $region49
    $region48: #{decoder_forward.1} parent=1 // pred_region
      %136 = dma.done [#allocation3], 4096
    $region49: #{decoder_forward.1} parent=1 // pred_fallthru
      _
    // Predicated region
    $region50: #{decoder_forward.1} parent=1 // pred_check
      _
    $region51: #{decoder_forward.1} parent=1 // pred_check_branch
      %138 = sbr.rel (0) target = $region53
    $region52: #{decoder_forward.1} parent=1 // pred_region
      %139 = dma.done [#allocation5], 64
    $region53: #{decoder_forward.1} parent=1 // pred_fallthru
      _
    // Predicated region
    $region54: #{decoder_forward.1} parent=1 // pred_check
      _
    $region55: #{decoder_forward.1} parent=1 // pred_check_branch
      %141 = sbr.rel (0) target = $region57
    $region56: #{decoder_forward.1} parent=1 // pred_region
      %142 = dma.done [#allocation5], 16384
    $region57: #{decoder_forward.1} parent=1 // pred_fallthru
      _
    // Predicated region
    $region58: #{decoder_forward.1} parent=1 // pred_check
      _
    $region59: #{decoder_forward.1} parent=1 // pred_check_branch
      %144 = sbr.rel (0) target = $region61
    $region60: #{decoder_forward.1} parent=1 // pred_region
      %145 = dma.done [#allocation8], 64
    $region61: #{decoder_forward.1} parent=1 // pred_fallthru
      _
    // Predicated region
    $region62: #{decoder_forward.1} parent=1 // pred_check
      _
    $region63: #{decoder_forward.1} parent=1 // pred_check_branch
      %147 = sbr.rel (0) target = $region65
    $region64: #{decoder_forward.1} parent=1 // pred_region
      %148 = dma.done [#allocation8], 32768
    $region65: #{decoder_forward.1} parent=1 // pred_fallthru
      _
    // Predicated region
    $region66: #{decoder_forward.1} parent=1 // pred_check
      _
    $region67: #{decoder_forward.1} parent=1 // pred_check_branch
      %150 = sbr.rel (0) target = $region69
    $region68: #{decoder_forward.1} parent=1 // pred_region
      %151 = dma.done [#allocation11], 128
    $region69: #{decoder_forward.1} parent=1 // pred_fallthru
      _
    // Predicated region
    $region70: #{decoder_forward.1} parent=1 // pred_check
      _
    $region71: #{decoder_forward.1} parent=1 // pred_check_branch
      %153 = sbr.rel (0) target = $region73
    $region72: #{decoder_forward.1} parent=1 // pred_region
      %154 = dma.done [#allocation11], 65536
    $region73: #{decoder_forward.1} parent=1 // pred_fallthru
      _
    // Predicated region
    $region74: #{decoder_forward.1} parent=1 // pred_check
      _
    $region75: #{decoder_forward.1} parent=1 // pred_check_branch
      %156 = sbr.rel (0) target = $region77
    $region76: #{decoder_forward.1} parent=1 // pred_region
      %157 = dma.done [#allocation14], 128
    $region77: #{decoder_forward.1} parent=1 // pred_fallthru
      _
    // Predicated region
    $region78: #{decoder_forward.1} parent=1 // pred_check
      _
    $region79: #{decoder_forward.1} parent=1 // pred_check_branch
      %159 = sbr.rel (0) target = $region81
    $region80: #{decoder_forward.1} parent=1 // pred_region
      %160 = dma.done [#allocation14], 16384
    $region81: #{decoder_forward.1} parent=1 // pred_fallthru
      _
    // Predicated region
    $region82: #{decoder_forward.1} parent=1 // pred_check
      _
    $region83: #{decoder_forward.1} parent=1 // pred_check_branch
      %162 = sbr.rel (0) target = $region85
    $region84: #{decoder_forward.1} parent=1 // pred_region
      %163 = dma.done [#allocation17], 32
    $region85: #{decoder_forward.1} parent=1 // pred_fallthru
      _
    %v165 = vld [vmem:[%s0] sm:$0xf]
    %v166 = vld [vmem:[#allocation2] sm:$0xff]
    %v167 = vld [vmem:[#allocation2 + $0x8] sm:$0xff]
    %v168 = vld [vmem:[#allocation2 + $0x10] sm:$0xff]
    %v169 = vld [vmem:[#allocation2 + $0x18] sm:$0xff]
    %v170 = vld [vmem:[#allocation2 + $0x20] sm:$0xff]
    %v171 = vld [vmem:[#allocation2 + $0x28] sm:$0xff]
    %v172 = vld [vmem:[#allocation2 + $0x30] sm:$0xff]
    %v173 = vld [vmem:[#allocation2 + $0x38] sm:$0xff]
    %v174 = vld [vmem:[#allocation2 + $0x40] sm:$0xff]
    %v175 = vld [vmem:[#allocation2 + $0x48] sm:$0xff]
    %v176 = vld [vmem:[#allocation2 + $0x50] sm:$0xff]
    %v177 = vld [vmem:[#allocation2 + $0x58] sm:$0xff]
    %v178 = vld [vmem:[#allocation2 + $0x60] sm:$0xff]
    %v179 = vld [vmem:[#allocation2 + $0x68] sm:$0xff]
    %v180 = vld [vmem:[#allocation2 + $0x70] sm:$0xff]
    %v181 = vld [vmem:[#allocation2 + $0x78] sm:$0xff]
    %v182 = vld [vmem:[#allocation2 + $0x80] sm:$0xff]
    %v183 = vld [vmem:[#allocation2 + $0x88] sm:$0xff]
    %v184 = vld [vmem:[#allocation2 + $0x90] sm:$0xff]
    %v185 = vld [vmem:[#allocation2 + $0x98] sm:$0xff]
    %v186 = vld [vmem:[#allocation2 + $0xa0] sm:$0xff]
    %v187 = vld [vmem:[#allocation2 + $0xa8] sm:$0xff]
    %v188 = vld [vmem:[#allocation2 + $0xb0] sm:$0xff]
    %v189 = vld [vmem:[#allocation2 + $0xb8] sm:$0xff]
    %v190 = vld [vmem:[#allocation2 + $0xc0] sm:$0xff]
    %v191 = vld [vmem:[#allocation2 + $0xc8] sm:$0xff]
    %v192 = vld [vmem:[#allocation2 + $0xd0] sm:$0xff]
    %v193 = vld [vmem:[#allocation2 + $0xd8] sm:$0xff]
    %v194 = vld [vmem:[#allocation2 + $0xe0] sm:$0xff]
    %v195 = vld [vmem:[#allocation2 + $0xe8] sm:$0xff]
    %v196 = vld [vmem:[#allocation2 + $0xf0] sm:$0xff]
    %v197 = vld [vmem:[#allocation2 + $0xf8] sm:$0xff]
    %v198 = vld [vmem:[#allocation4] sm:$0xf]
    %v200 = vlaneseq
    %v201 = vshrl.u32 %v200, 7
    %v202 = vsub.s32 0, %v201
    %v203 = vrot.slane %v198, %v202
    %v204 = vlaneseq
    %v205 = vshrl.u32 %v204, 7
    %v206 = vsub.s32 1, %v205
    %v207 = vrot.slane %v198, %v206
    %v208 = vlaneseq
    %v209 = vshrl.u32 %v208, 7
    %v210 = vsub.s32 2, %v209
    %v211 = vrot.slane %v198, %v210
    %v212 = vlaneseq
    %v213 = vshrl.u32 %v212, 7
    %v214 = vsub.s32 3, %v213
    %v215 = vrot.slane %v198, %v214
    %v252 = vunpack.c.l.b16 %v166
    %v253 = vunpack.c.h.b16 %v166
    %v254 = vunpack.c.l.b16 %v167
    %v255 = vunpack.c.h.b16 %v167
    %v256 = vunpack.c.l.b16 %v168
    %v257 = vunpack.c.h.b16 %v168
    %v258 = vunpack.c.l.b16 %v169
    %v259 = vunpack.c.h.b16 %v169
    %v260 = vunpack.c.l.b16 %v170
    %v261 = vunpack.c.h.b16 %v170
    %v262 = vunpack.c.l.b16 %v171
    %v263 = vunpack.c.h.b16 %v171
    %v264 = vunpack.c.l.b16 %v172
    %v265 = vunpack.c.h.b16 %v172
    %v266 = vunpack.c.l.b16 %v173
    %v267 = vunpack.c.h.b16 %v173
    %v268 = vunpack.c.l.b16 %v174
    %v269 = vunpack.c.h.b16 %v174
    %v270 = vunpack.c.l.b16 %v175
    %v271 = vunpack.c.h.b16 %v175
    %v272 = vunpack.c.l.b16 %v176
    %v273 = vunpack.c.h.b16 %v176
    %v274 = vunpack.c.l.b16 %v177
    %v275 = vunpack.c.h.b16 %v177
    %v276 = vunpack.c.l.b16 %v178
    %v277 = vunpack.c.h.b16 %v178
    %v278 = vunpack.c.l.b16 %v179
    %v279 = vunpack.c.h.b16 %v179
    %v280 = vunpack.c.l.b16 %v180
    %v281 = vunpack.c.h.b16 %v180
    %v282 = vunpack.c.l.b16 %v181
    %v283 = vunpack.c.h.b16 %v181
    %v284 = vunpack.c.l.b16 %v182
    %v285 = vunpack.c.h.b16 %v182
    %v286 = vunpack.c.l.b16 %v183
    %v287 = vunpack.c.h.b16 %v183
    %v288 = vunpack.c.l.b16 %v184
    %v289 = vunpack.c.h.b16 %v184
    %v290 = vunpack.c.l.b16 %v185
    %v291 = vunpack.c.h.b16 %v185
    %v292 = vunpack.c.l.b16 %v186
    %v293 = vunpack.c.h.b16 %v186
    %v294 = vunpack.c.l.b16 %v187
    %v295 = vunpack.c.h.b16 %v187
    %v296 = vunpack.c.l.b16 %v188
    %v297 = vunpack.c.h.b16 %v188
    %v298 = vunpack.c.l.b16 %v189
    %v299 = vunpack.c.h.b16 %v189
    %v300 = vunpack.c.l.b16 %v190
    %v301 = vunpack.c.h.b16 %v190
    %v302 = vunpack.c.l.b16 %v191
    %v303 = vunpack.c.h.b16 %v191
    %v304 = vunpack.c.l.b16 %v192
    %v305 = vunpack.c.h.b16 %v192
    %v306 = vunpack.c.l.b16 %v193
    %v307 = vunpack.c.h.b16 %v193
    %v308 = vunpack.c.l.b16 %v194
    %v309 = vunpack.c.h.b16 %v194
    %v310 = vunpack.c.l.b16 %v195
    %v311 = vunpack.c.h.b16 %v195
    %v312 = vunpack.c.l.b16 %v196
    %v313 = vunpack.c.h.b16 %v196
    %v314 = vunpack.c.l.b16 %v197
    %v315 = vunpack.c.h.b16 %v197
    %v316 = vpack.c.b16 %v256, %v252
    %v317 = vpack.c.b16 %v257, %v253
    %v318 = vpack.c.b16 %v258, %v254
    %v319 = vpack.c.b16 %v259, %v255
    %v320 = vpack.c.b16 %v264, %v260
    %v321 = vpack.c.b16 %v265, %v261
    %v322 = vpack.c.b16 %v266, %v262
    %v323 = vpack.c.b16 %v267, %v263
    %v324 = vpack.c.b16 %v272, %v268
    %v325 = vpack.c.b16 %v273, %v269
    %v326 = vpack.c.b16 %v274, %v270
    %v327 = vpack.c.b16 %v275, %v271
    %v328 = vpack.c.b16 %v280, %v276
    %v329 = vpack.c.b16 %v281, %v277
    %v330 = vpack.c.b16 %v282, %v278
    %v331 = vpack.c.b16 %v283, %v279
    %v332 = vpack.c.b16 %v288, %v284
    %v333 = vpack.c.b16 %v289, %v285
    %v334 = vpack.c.b16 %v290, %v286
    %v335 = vpack.c.b16 %v291, %v287
    %v336 = vpack.c.b16 %v296, %v292
    %v337 = vpack.c.b16 %v297, %v293
    %v338 = vpack.c.b16 %v298, %v294
    %v339 = vpack.c.b16 %v299, %v295
    %v340 = vpack.c.b16 %v304, %v300
    %v341 = vpack.c.b16 %v305, %v301
    %v342 = vpack.c.b16 %v306, %v302
    %v343 = vpack.c.b16 %v307, %v303
    %v344 = vpack.c.b16 %v312, %v308
    %v345 = vpack.c.b16 %v313, %v309
    %v346 = vpack.c.b16 %v314, %v310
    %v347 = vpack.c.b16 %v315, %v311
    %380 = vmatprep.subr.bf16.mxu0 %v345
    %381 = vmatpush1.bf16.msra.mxu0 %v344
    %382 = vmatprep.subr.bf16.mxu0 %v341
    %383 = vmatpush1.bf16.msra.mxu0 %v340
    %384 = vmatprep.subr.bf16.mxu0 %v337
    %385 = vmatpush1.bf16.msra.mxu0 %v336
    %386 = vmatprep.subr.bf16.mxu0 %v333
    %387 = vmatpush1.bf16.msra.mxu0 %v332
    %388 = vmatprep.subr.bf16.mxu0 %v329
    %389 = vmatpush1.bf16.msra.mxu0 %v328
    %390 = vmatprep.subr.bf16.mxu0 %v325
    %391 = vmatpush1.bf16.msra.mxu0 %v324
    %392 = vmatprep.subr.bf16.mxu0 %v321
    %393 = vmatpush1.bf16.msra.mxu0 %v320
    %394 = vmatprep.subr.bf16.mxu0 %v317
    %395 = vmatpush1.bf16.msra.mxu0 %v316
    %396 = vmatprep.subr.bf16.mxu0 0
    %397 = vmatpush2.bf16.msra.mxu0 0
    %398 = vmatprep.subr.bf16.mxu0 0
    %399 = vmatpush2.bf16.msra.mxu0 0
    %400 = vmatprep.subr.bf16.mxu0 0
    %401 = vmatpush2.bf16.msra.mxu0 0
    %402 = vmatprep.subr.bf16.mxu0 0
    %403 = vmatpush2.bf16.msra.mxu0 0
    %404 = vmatprep.subr.bf16.mxu0 0
    %405 = vmatpush2.bf16.msra.mxu0 0
    %406 = vmatprep.subr.bf16.mxu0 0
    %407 = vmatpush2.bf16.msra.mxu0 0
    %408 = vmatprep.subr.bf16.mxu0 0
    %409 = vmatpush2.bf16.msra.mxu0 0
    %410 = vmatprep.subr.bf16.mxu0 0
    %411 = vmatpush2.bf16.msra.mxu0 0
    %412 = vmatprep.mubr.bf16.mxu0 0
    %413 = vmatmul.mubr.bf16.gmra.mxu0 %v165
    %v414 = vpop.f32.mrf.mxu0
    %v415 = vadd.f32 %v203, %v414
    %v416 = vpop.f32.mrf.mxu0
    %v417 = vadd.f32 %v207, %v416
    %v418 = vpop.f32.mrf.mxu0
    %v419 = vpop.f32.mrf.mxu0
    %420 = vdwg.mxu0
    %421 = vmatprep.subr.bf16.mxu0 %v347
    %422 = vmatpush1.bf16.msra.mxu0 %v346
    %423 = vmatprep.subr.bf16.mxu0 %v343
    %424 = vmatpush1.bf16.msra.mxu0 %v342
    %425 = vmatprep.subr.bf16.mxu0 %v339
    %426 = vmatpush1.bf16.msra.mxu0 %v338
    %427 = vmatprep.subr.bf16.mxu0 %v335
    %428 = vmatpush1.bf16.msra.mxu0 %v334
    %429 = vmatprep.subr.bf16.mxu0 %v331
    %430 = vmatpush1.bf16.msra.mxu0 %v330
    %431 = vmatprep.subr.bf16.mxu0 %v327
    %432 = vmatpush1.bf16.msra.mxu0 %v326
    %433 = vmatprep.subr.bf16.mxu0 %v323
    %434 = vmatpush1.bf16.msra.mxu0 %v322
    %435 = vmatprep.subr.bf16.mxu0 %v319
    %436 = vmatpush1.bf16.msra.mxu0 %v318
    %437 = vmatprep.subr.bf16.mxu0 0
    %438 = vmatpush2.bf16.msra.mxu0 0
    %439 = vmatprep.subr.bf16.mxu0 0
    %440 = vmatpush2.bf16.msra.mxu0 0
    %441 = vmatprep.subr.bf16.mxu0 0
    %442 = vmatpush2.bf16.msra.mxu0 0
    %443 = vmatprep.subr.bf16.mxu0 0
    %444 = vmatpush2.bf16.msra.mxu0 0
    %445 = vmatprep.subr.bf16.mxu0 0
    %446 = vmatpush2.bf16.msra.mxu0 0
    %447 = vmatprep.subr.bf16.mxu0 0
    %448 = vmatpush2.bf16.msra.mxu0 0
    %449 = vmatprep.subr.bf16.mxu0 0
    %450 = vmatpush2.bf16.msra.mxu0 0
    %451 = vmatprep.subr.bf16.mxu0 0
    %452 = vmatpush2.bf16.msra.mxu0 0
    %453 = vmatprep.mubr.bf16.mxu0 0
    %454 = vmatmul.mubr.bf16.gmra.mxu0 %v165
    %v455 = vpop.f32.mrf.mxu0
    %v456 = vadd.f32 %v211, %v455
    %v457 = vpop.f32.mrf.mxu0
    %v458 = vadd.f32 %v215, %v457
    %v459 = vpop.f32.mrf.mxu0
    %v460 = vpop.f32.mrf.mxu0
    %461 = vdwg.mxu0
    %v462 = vmax.f32 %v415, 0.0
    %v463 = vmax.f32 %v417, 0.0
    %v464 = vmax.f32 %v456, 0.0
    %v465 = vmax.f32 %v458, 0.0
    %v466 = vpack.c.bf16 %v462, %v462
    %v467 = vpack.c.bf16 %v463, %v463
    %v468 = vpack.c.bf16 %v464, %v464
    %v469 = vpack.c.bf16 %v465, %v465
    %v470 = vld [vmem:[#allocation6] sm:$0xff]
    %v471 = vld [vmem:[#allocation6 + $0x8] sm:$0xff]
    %v472 = vld [vmem:[#allocation6 + $0x10] sm:$0xff]
    %v473 = vld [vmem:[#allocation6 + $0x18] sm:$0xff]
    %v474 = vld [vmem:[#allocation6 + $0x20] sm:$0xff]
    %v475 = vld [vmem:[#allocation6 + $0x28] sm:$0xff]
    %v476 = vld [vmem:[#allocation6 + $0x30] sm:$0xff]
    %v477 = vld [vmem:[#allocation6 + $0x38] sm:$0xff]
    %v478 = vld [vmem:[#allocation6 + $0x40] sm:$0xff]
    %v479 = vld [vmem:[#allocation6 + $0x48] sm:$0xff]
    %v480 = vld [vmem:[#allocation6 + $0x50] sm:$0xff]
    %v481 = vld [vmem:[#allocation6 + $0x58] sm:$0xff]
    %v482 = vld [vmem:[#allocation6 + $0x60] sm:$0xff]
    %v483 = vld [vmem:[#allocation6 + $0x68] sm:$0xff]
    %v484 = vld [vmem:[#allocation6 + $0x70] sm:$0xff]
    %v485 = vld [vmem:[#allocation6 + $0x78] sm:$0xff]
    %v486 = vld [vmem:[#allocation6 + $0x80] sm:$0xff]
    %v487 = vld [vmem:[#allocation6 + $0x88] sm:$0xff]
    %v488 = vld [vmem:[#allocation6 + $0x90] sm:$0xff]
    %v489 = vld [vmem:[#allocation6 + $0x98] sm:$0xff]
    %v490 = vld [vmem:[#allocation6 + $0xa0] sm:$0xff]
    %v491 = vld [vmem:[#allocation6 + $0xa8] sm:$0xff]
    %v492 = vld [vmem:[#allocation6 + $0xb0] sm:$0xff]
    %v493 = vld [vmem:[#allocation6 + $0xb8] sm:$0xff]
    %v494 = vld [vmem:[#allocation6 + $0xc0] sm:$0xff]
    %v495 = vld [vmem:[#allocation6 + $0xc8] sm:$0xff]
    %v496 = vld [vmem:[#allocation6 + $0xd0] sm:$0xff]
    %v497 = vld [vmem:[#allocation6 + $0xd8] sm:$0xff]
    %v498 = vld [vmem:[#allocation6 + $0xe0] sm:$0xff]
    %v499 = vld [vmem:[#allocation6 + $0xe8] sm:$0xff]
    %v500 = vld [vmem:[#allocation6 + $0xf0] sm:$0xff]
    %v501 = vld [vmem:[#allocation6 + $0xf8] sm:$0xff]
    %v502 = vld [vmem:[#allocation6 + $0x100] sm:$0xff]
    %v503 = vld [vmem:[#allocation6 + $0x108] sm:$0xff]
    %v504 = vld [vmem:[#allocation6 + $0x110] sm:$0xff]
    %v505 = vld [vmem:[#allocation6 + $0x118] sm:$0xff]
    %v506 = vld [vmem:[#allocation6 + $0x120] sm:$0xff]
    %v507 = vld [vmem:[#allocation6 + $0x128] sm:$0xff]
    %v508 = vld [vmem:[#allocation6 + $0x130] sm:$0xff]
    %v509 = vld [vmem:[#allocation6 + $0x138] sm:$0xff]
    %v510 = vld [vmem:[#allocation6 + $0x140] sm:$0xff]
    %v511 = vld [vmem:[#allocation6 + $0x148] sm:$0xff]
    %v512 = vld [vmem:[#allocation6 + $0x150] sm:$0xff]
    %v513 = vld [vmem:[#allocation6 + $0x158] sm:$0xff]
    %v514 = vld [vmem:[#allocation6 + $0x160] sm:$0xff]
    %v515 = vld [vmem:[#allocation6 + $0x168] sm:$0xff]
    %v516 = vld [vmem:[#allocation6 + $0x170] sm:$0xff]
    %v517 = vld [vmem:[#allocation6 + $0x178] sm:$0xff]
    %v518 = vld [vmem:[#allocation6 + $0x180] sm:$0xff]
    %v519 = vld [vmem:[#allocation6 + $0x188] sm:$0xff]
    %v520 = vld [vmem:[#allocation6 + $0x190] sm:$0xff]
    %v521 = vld [vmem:[#allocation6 + $0x198] sm:$0xff]
    %v522 = vld [vmem:[#allocation6 + $0x1a0] sm:$0xff]
    %v523 = vld [vmem:[#allocation6 + $0x1a8] sm:$0xff]
    %v524 = vld [vmem:[#allocation6 + $0x1b0] sm:$0xff]
    %v525 = vld [vmem:[#allocation6 + $0x1b8] sm:$0xff]
    %v526 = vld [vmem:[#allocation6 + $0x1c0] sm:$0xff]
    %v527 = vld [vmem:[#allocation6 + $0x1c8] sm:$0xff]
    %v528 = vld [vmem:[#allocation6 + $0x1d0] sm:$0xff]
    %v529 = vld [vmem:[#allocation6 + $0x1d8] sm:$0xff]
    %v530 = vld [vmem:[#allocation6 + $0x1e0] sm:$0xff]
    %v531 = vld [vmem:[#allocation6 + $0x1e8] sm:$0xff]
    %v532 = vld [vmem:[#allocation6 + $0x1f0] sm:$0xff]
    %v533 = vld [vmem:[#allocation6 + $0x1f8] sm:$0xff]
    %v534 = vld [vmem:[#allocation6 + $0x200] sm:$0xff]
    %v535 = vld [vmem:[#allocation6 + $0x208] sm:$0xff]
    %v536 = vld [vmem:[#allocation6 + $0x210] sm:$0xff]
    %v537 = vld [vmem:[#allocation6 + $0x218] sm:$0xff]
    %v538 = vld [vmem:[#allocation6 + $0x220] sm:$0xff]
    %v539 = vld [vmem:[#allocation6 + $0x228] sm:$0xff]
    %v540 = vld [vmem:[#allocation6 + $0x230] sm:$0xff]
    %v541 = vld [vmem:[#allocation6 + $0x238] sm:$0xff]
    %v542 = vld [vmem:[#allocation6 + $0x240] sm:$0xff]
    %v543 = vld [vmem:[#allocation6 + $0x248] sm:$0xff]
    %v544 = vld [vmem:[#allocation6 + $0x250] sm:$0xff]
    %v545 = vld [vmem:[#allocation6 + $0x258] sm:$0xff]
    %v546 = vld [vmem:[#allocation6 + $0x260] sm:$0xff]
    %v547 = vld [vmem:[#allocation6 + $0x268] sm:$0xff]
    %v548 = vld [vmem:[#allocation6 + $0x270] sm:$0xff]
    %v549 = vld [vmem:[#allocation6 + $0x278] sm:$0xff]
    %v550 = vld [vmem:[#allocation6 + $0x280] sm:$0xff]
    %v551 = vld [vmem:[#allocation6 + $0x288] sm:$0xff]
    %v552 = vld [vmem:[#allocation6 + $0x290] sm:$0xff]
    %v553 = vld [vmem:[#allocation6 + $0x298] sm:$0xff]
    %v554 = vld [vmem:[#allocation6 + $0x2a0] sm:$0xff]
    %v555 = vld [vmem:[#allocation6 + $0x2a8] sm:$0xff]
    %v556 = vld [vmem:[#allocation6 + $0x2b0] sm:$0xff]
    %v557 = vld [vmem:[#allocation6 + $0x2b8] sm:$0xff]
    %v558 = vld [vmem:[#allocation6 + $0x2c0] sm:$0xff]
    %v559 = vld [vmem:[#allocation6 + $0x2c8] sm:$0xff]
    %v560 = vld [vmem:[#allocation6 + $0x2d0] sm:$0xff]
    %v561 = vld [vmem:[#allocation6 + $0x2d8] sm:$0xff]
    %v562 = vld [vmem:[#allocation6 + $0x2e0] sm:$0xff]
    %v563 = vld [vmem:[#allocation6 + $0x2e8] sm:$0xff]
    %v564 = vld [vmem:[#allocation6 + $0x2f0] sm:$0xff]
    %v565 = vld [vmem:[#allocation6 + $0x2f8] sm:$0xff]
    %v566 = vld [vmem:[#allocation6 + $0x300] sm:$0xff]
    %v567 = vld [vmem:[#allocation6 + $0x308] sm:$0xff]
    %v568 = vld [vmem:[#allocation6 + $0x310] sm:$0xff]
    %v569 = vld [vmem:[#allocation6 + $0x318] sm:$0xff]
    %v570 = vld [vmem:[#allocation6 + $0x320] sm:$0xff]
    %v571 = vld [vmem:[#allocation6 + $0x328] sm:$0xff]
    %v572 = vld [vmem:[#allocation6 + $0x330] sm:$0xff]
    %v573 = vld [vmem:[#allocation6 + $0x338] sm:$0xff]
    %v574 = vld [vmem:[#allocation6 + $0x340] sm:$0xff]
    %v575 = vld [vmem:[#allocation6 + $0x348] sm:$0xff]
    %v576 = vld [vmem:[#allocation6 + $0x350] sm:$0xff]
    %v577 = vld [vmem:[#allocation6 + $0x358] sm:$0xff]
    %v578 = vld [vmem:[#allocation6 + $0x360] sm:$0xff]
    %v579 = vld [vmem:[#allocation6 + $0x368] sm:$0xff]
    %v580 = vld [vmem:[#allocation6 + $0x370] sm:$0xff]
    %v581 = vld [vmem:[#allocation6 + $0x378] sm:$0xff]
    %v582 = vld [vmem:[#allocation6 + $0x380] sm:$0xff]
    %v583 = vld [vmem:[#allocation6 + $0x388] sm:$0xff]
    %v584 = vld [vmem:[#allocation6 + $0x390] sm:$0xff]
    %v585 = vld [vmem:[#allocation6 + $0x398] sm:$0xff]
    %v586 = vld [vmem:[#allocation6 + $0x3a0] sm:$0xff]
    %v587 = vld [vmem:[#allocation6 + $0x3a8] sm:$0xff]
    %v588 = vld [vmem:[#allocation6 + $0x3b0] sm:$0xff]
    %v589 = vld [vmem:[#allocation6 + $0x3b8] sm:$0xff]
    %v590 = vld [vmem:[#allocation6 + $0x3c0] sm:$0xff]
    %v591 = vld [vmem:[#allocation6 + $0x3c8] sm:$0xff]
    %v592 = vld [vmem:[#allocation6 + $0x3d0] sm:$0xff]
    %v593 = vld [vmem:[#allocation6 + $0x3d8] sm:$0xff]
    %v594 = vld [vmem:[#allocation6 + $0x3e0] sm:$0xff]
    %v595 = vld [vmem:[#allocation6 + $0x3e8] sm:$0xff]
    %v596 = vld [vmem:[#allocation6 + $0x3f0] sm:$0xff]
    %v597 = vld [vmem:[#allocation6 + $0x3f8] sm:$0xff]
    %v598 = vld [vmem:[#allocation7] sm:$0xf]
    %v600 = vlaneseq
    %v601 = vshrl.u32 %v600, 7
    %v602 = vsub.s32 0, %v601
    %v603 = vrot.slane %v598, %v602
    %v604 = vlaneseq
    %v605 = vshrl.u32 %v604, 7
    %v606 = vsub.s32 1, %v605
    %v607 = vrot.slane %v598, %v606
    %v608 = vlaneseq
    %v609 = vshrl.u32 %v608, 7
    %v610 = vsub.s32 2, %v609
    %v611 = vrot.slane %v598, %v610
    %v612 = vlaneseq
    %v613 = vshrl.u32 %v612, 7
    %v614 = vsub.s32 3, %v613
    %v615 = vrot.slane %v598, %v614
    %v748 = vunpack.c.l.b16 %v470
    %v749 = vunpack.c.h.b16 %v470
    %v750 = vunpack.c.l.b16 %v471
    %v751 = vunpack.c.h.b16 %v471
    %v752 = vunpack.c.l.b16 %v472
    %v753 = vunpack.c.h.b16 %v472
    %v754 = vunpack.c.l.b16 %v473
    %v755 = vunpack.c.h.b16 %v473
    %v756 = vunpack.c.l.b16 %v474
    %v757 = vunpack.c.h.b16 %v474
    %v758 = vunpack.c.l.b16 %v475
    %v759 = vunpack.c.h.b16 %v475
    %v760 = vunpack.c.l.b16 %v476
    %v761 = vunpack.c.h.b16 %v476
    %v762 = vunpack.c.l.b16 %v477
    %v763 = vunpack.c.h.b16 %v477
    %v764 = vunpack.c.l.b16 %v478
    %v765 = vunpack.c.h.b16 %v478
    %v766 = vunpack.c.l.b16 %v479
    %v767 = vunpack.c.h.b16 %v479
    %v768 = vunpack.c.l.b16 %v480
    %v769 = vunpack.c.h.b16 %v480
    %v770 = vunpack.c.l.b16 %v481
    %v771 = vunpack.c.h.b16 %v481
    %v772 = vunpack.c.l.b16 %v482
    %v773 = vunpack.c.h.b16 %v482
    %v774 = vunpack.c.l.b16 %v483
    %v775 = vunpack.c.h.b16 %v483
    %v776 = vunpack.c.l.b16 %v484
    %v777 = vunpack.c.h.b16 %v484
    %v778 = vunpack.c.l.b16 %v485
    %v779 = vunpack.c.h.b16 %v485
    %v780 = vunpack.c.l.b16 %v486
    %v781 = vunpack.c.h.b16 %v486
    %v782 = vunpack.c.l.b16 %v487
    %v783 = vunpack.c.h.b16 %v487
    %v784 = vunpack.c.l.b16 %v488
    %v785 = vunpack.c.h.b16 %v488
    %v786 = vunpack.c.l.b16 %v489
    %v787 = vunpack.c.h.b16 %v489
    %v788 = vunpack.c.l.b16 %v490
    %v789 = vunpack.c.h.b16 %v490
    %v790 = vunpack.c.l.b16 %v491
    %v791 = vunpack.c.h.b16 %v491
    %v792 = vunpack.c.l.b16 %v492
    %v793 = vunpack.c.h.b16 %v492
    %v794 = vunpack.c.l.b16 %v493
    %v795 = vunpack.c.h.b16 %v493
    %v796 = vunpack.c.l.b16 %v494
    %v797 = vunpack.c.h.b16 %v494
    %v798 = vunpack.c.l.b16 %v495
    %v799 = vunpack.c.h.b16 %v495
    %v800 = vunpack.c.l.b16 %v496
    %v801 = vunpack.c.h.b16 %v496
    %v802 = vunpack.c.l.b16 %v497
    %v803 = vunpack.c.h.b16 %v497
    %v804 = vunpack.c.l.b16 %v498
    %v805 = vunpack.c.h.b16 %v498
    %v806 = vunpack.c.l.b16 %v499
    %v807 = vunpack.c.h.b16 %v499
    %v808 = vunpack.c.l.b16 %v500
    %v809 = vunpack.c.h.b16 %v500
    %v810 = vunpack.c.l.b16 %v501
    %v811 = vunpack.c.h.b16 %v501
    %v812 = vunpack.c.l.b16 %v502
    %v813 = vunpack.c.h.b16 %v502
    %v814 = vunpack.c.l.b16 %v503
    %v815 = vunpack.c.h.b16 %v503
    %v816 = vunpack.c.l.b16 %v504
    %v817 = vunpack.c.h.b16 %v504
    %v818 = vunpack.c.l.b16 %v505
    %v819 = vunpack.c.h.b16 %v505
    %v820 = vunpack.c.l.b16 %v506
    %v821 = vunpack.c.h.b16 %v506
    %v822 = vunpack.c.l.b16 %v507
    %v823 = vunpack.c.h.b16 %v507
    %v824 = vunpack.c.l.b16 %v508
    %v825 = vunpack.c.h.b16 %v508
    %v826 = vunpack.c.l.b16 %v509
    %v827 = vunpack.c.h.b16 %v509
    %v828 = vunpack.c.l.b16 %v510
    %v829 = vunpack.c.h.b16 %v510
    %v830 = vunpack.c.l.b16 %v511
    %v831 = vunpack.c.h.b16 %v511
    %v832 = vunpack.c.l.b16 %v512
    %v833 = vunpack.c.h.b16 %v512
    %v834 = vunpack.c.l.b16 %v513
    %v835 = vunpack.c.h.b16 %v513
    %v836 = vunpack.c.l.b16 %v514
    %v837 = vunpack.c.h.b16 %v514
    %v838 = vunpack.c.l.b16 %v515
    %v839 = vunpack.c.h.b16 %v515
    %v840 = vunpack.c.l.b16 %v516
    %v841 = vunpack.c.h.b16 %v516
    %v842 = vunpack.c.l.b16 %v517
    %v843 = vunpack.c.h.b16 %v517
    %v844 = vunpack.c.l.b16 %v518
    %v845 = vunpack.c.h.b16 %v518
    %v846 = vunpack.c.l.b16 %v519
    %v847 = vunpack.c.h.b16 %v519
    %v848 = vunpack.c.l.b16 %v520
    %v849 = vunpack.c.h.b16 %v520
    %v850 = vunpack.c.l.b16 %v521
    %v851 = vunpack.c.h.b16 %v521
    %v852 = vunpack.c.l.b16 %v522
    %v853 = vunpack.c.h.b16 %v522
    %v854 = vunpack.c.l.b16 %v523
    %v855 = vunpack.c.h.b16 %v523
    %v856 = vunpack.c.l.b16 %v524
    %v857 = vunpack.c.h.b16 %v524
    %v858 = vunpack.c.l.b16 %v525
    %v859 = vunpack.c.h.b16 %v525
    %v860 = vunpack.c.l.b16 %v526
    %v861 = vunpack.c.h.b16 %v526
    %v862 = vunpack.c.l.b16 %v527
    %v863 = vunpack.c.h.b16 %v527
    %v864 = vunpack.c.l.b16 %v528
    %v865 = vunpack.c.h.b16 %v528
    %v866 = vunpack.c.l.b16 %v529
    %v867 = vunpack.c.h.b16 %v529
    %v868 = vunpack.c.l.b16 %v530
    %v869 = vunpack.c.h.b16 %v530
    %v870 = vunpack.c.l.b16 %v531
    %v871 = vunpack.c.h.b16 %v531
    %v872 = vunpack.c.l.b16 %v532
    %v873 = vunpack.c.h.b16 %v532
    %v874 = vunpack.c.l.b16 %v533
    %v875 = vunpack.c.h.b16 %v533
    %v876 = vunpack.c.l.b16 %v534
    %v877 = vunpack.c.h.b16 %v534
    %v878 = vunpack.c.l.b16 %v535
    %v879 = vunpack.c.h.b16 %v535
    %v880 = vunpack.c.l.b16 %v536
    %v881 = vunpack.c.h.b16 %v536
    %v882 = vunpack.c.l.b16 %v537
    %v883 = vunpack.c.h.b16 %v537
    %v884 = vunpack.c.l.b16 %v538
    %v885 = vunpack.c.h.b16 %v538
    %v886 = vunpack.c.l.b16 %v539
    %v887 = vunpack.c.h.b16 %v539
    %v888 = vunpack.c.l.b16 %v540
    %v889 = vunpack.c.h.b16 %v540
    %v890 = vunpack.c.l.b16 %v541
    %v891 = vunpack.c.h.b16 %v541
    %v892 = vunpack.c.l.b16 %v542
    %v893 = vunpack.c.h.b16 %v542
    %v894 = vunpack.c.l.b16 %v543
    %v895 = vunpack.c.h.b16 %v543
    %v896 = vunpack.c.l.b16 %v544
    %v897 = vunpack.c.h.b16 %v544
    %v898 = vunpack.c.l.b16 %v545
    %v899 = vunpack.c.h.b16 %v545
    %v900 = vunpack.c.l.b16 %v546
    %v901 = vunpack.c.h.b16 %v546
    %v902 = vunpack.c.l.b16 %v547
    %v903 = vunpack.c.h.b16 %v547
    %v904 = vunpack.c.l.b16 %v548
    %v905 = vunpack.c.h.b16 %v548
    %v906 = vunpack.c.l.b16 %v549
    %v907 = vunpack.c.h.b16 %v549
    %v908 = vunpack.c.l.b16 %v550
    %v909 = vunpack.c.h.b16 %v550
    %v910 = vunpack.c.l.b16 %v551
    %v911 = vunpack.c.h.b16 %v551
    %v912 = vunpack.c.l.b16 %v552
    %v913 = vunpack.c.h.b16 %v552
    %v914 = vunpack.c.l.b16 %v553
    %v915 = vunpack.c.h.b16 %v553
    %v916 = vunpack.c.l.b16 %v554
    %v917 = vunpack.c.h.b16 %v554
    %v918 = vunpack.c.l.b16 %v555
    %v919 = vunpack.c.h.b16 %v555
    %v920 = vunpack.c.l.b16 %v556
    %v921 = vunpack.c.h.b16 %v556
    %v922 = vunpack.c.l.b16 %v557
    %v923 = vunpack.c.h.b16 %v557
    %v924 = vunpack.c.l.b16 %v558
    %v925 = vunpack.c.h.b16 %v558
    %v926 = vunpack.c.l.b16 %v559
    %v927 = vunpack.c.h.b16 %v559
    %v928 = vunpack.c.l.b16 %v560
    %v929 = vunpack.c.h.b16 %v560
    %v930 = vunpack.c.l.b16 %v561
    %v931 = vunpack.c.h.b16 %v561
    %v932 = vunpack.c.l.b16 %v562
    %v933 = vunpack.c.h.b16 %v562
    %v934 = vunpack.c.l.b16 %v563
    %v935 = vunpack.c.h.b16 %v563
    %v936 = vunpack.c.l.b16 %v564
    %v937 = vunpack.c.h.b16 %v564
    %v938 = vunpack.c.l.b16 %v565
    %v939 = vunpack.c.h.b16 %v565
    %v940 = vunpack.c.l.b16 %v566
    %v941 = vunpack.c.h.b16 %v566
    %v942 = vunpack.c.l.b16 %v567
    %v943 = vunpack.c.h.b16 %v567
    %v944 = vunpack.c.l.b16 %v568
    %v945 = vunpack.c.h.b16 %v568
    %v946 = vunpack.c.l.b16 %v569
    %v947 = vunpack.c.h.b16 %v569
    %v948 = vunpack.c.l.b16 %v570
    %v949 = vunpack.c.h.b16 %v570
    %v950 = vunpack.c.l.b16 %v571
    %v951 = vunpack.c.h.b16 %v571
    %v952 = vunpack.c.l.b16 %v572
    %v953 = vunpack.c.h.b16 %v572
    %v954 = vunpack.c.l.b16 %v573
    %v955 = vunpack.c.h.b16 %v573
    %v956 = vunpack.c.l.b16 %v574
    %v957 = vunpack.c.h.b16 %v574
    %v958 = vunpack.c.l.b16 %v575
    %v959 = vunpack.c.h.b16 %v575
    %v960 = vunpack.c.l.b16 %v576
    %v961 = vunpack.c.h.b16 %v576
    %v962 = vunpack.c.l.b16 %v577
    %v963 = vunpack.c.h.b16 %v577
    %v964 = vunpack.c.l.b16 %v578
    %v965 = vunpack.c.h.b16 %v578
    %v966 = vunpack.c.l.b16 %v579
    %v967 = vunpack.c.h.b16 %v579
    %v968 = vunpack.c.l.b16 %v580
    %v969 = vunpack.c.h.b16 %v580
    %v970 = vunpack.c.l.b16 %v581
    %v971 = vunpack.c.h.b16 %v581
    %v972 = vunpack.c.l.b16 %v582
    %v973 = vunpack.c.h.b16 %v582
    %v974 = vunpack.c.l.b16 %v583
    %v975 = vunpack.c.h.b16 %v583
    %v976 = vunpack.c.l.b16 %v584
    %v977 = vunpack.c.h.b16 %v584
    %v978 = vunpack.c.l.b16 %v585
    %v979 = vunpack.c.h.b16 %v585
    %v980 = vunpack.c.l.b16 %v586
    %v981 = vunpack.c.h.b16 %v586
    %v982 = vunpack.c.l.b16 %v587
    %v983 = vunpack.c.h.b16 %v587
    %v984 = vunpack.c.l.b16 %v588
    %v985 = vunpack.c.h.b16 %v588
    %v986 = vunpack.c.l.b16 %v589
    %v987 = vunpack.c.h.b16 %v589
    %v988 = vunpack.c.l.b16 %v590
    %v989 = vunpack.c.h.b16 %v590
    %v990 = vunpack.c.l.b16 %v591
    %v991 = vunpack.c.h.b16 %v591
    %v992 = vunpack.c.l.b16 %v592
    %v993 = vunpack.c.h.b16 %v592
    %v994 = vunpack.c.l.b16 %v593
    %v995 = vunpack.c.h.b16 %v593
    %v996 = vunpack.c.l.b16 %v594
    %v997 = vunpack.c.h.b16 %v594
    %v998 = vunpack.c.l.b16 %v595
    %v999 = vunpack.c.h.b16 %v595
    %v1000 = vunpack.c.l.b16 %v596
    %v1001 = vunpack.c.h.b16 %v596
    %v1002 = vunpack.c.l.b16 %v597
    %v1003 = vunpack.c.h.b16 %v597
    %v1004 = vpack.c.b16 %v752, %v748
    %v1005 = vpack.c.b16 %v753, %v749
    %v1006 = vpack.c.b16 %v754, %v750
    %v1007 = vpack.c.b16 %v755, %v751
    %v1008 = vpack.c.b16 %v760, %v756
    %v1009 = vpack.c.b16 %v761, %v757
    %v1010 = vpack.c.b16 %v762, %v758
    %v1011 = vpack.c.b16 %v763, %v759
    %v1012 = vpack.c.b16 %v768, %v764
    %v1013 = vpack.c.b16 %v769, %v765
    %v1014 = vpack.c.b16 %v770, %v766
    %v1015 = vpack.c.b16 %v771, %v767
    %v1016 = vpack.c.b16 %v776, %v772
    %v1017 = vpack.c.b16 %v777, %v773
    %v1018 = vpack.c.b16 %v778, %v774
    %v1019 = vpack.c.b16 %v779, %v775
    %v1020 = vpack.c.b16 %v784, %v780
    %v1021 = vpack.c.b16 %v785, %v781
    %v1022 = vpack.c.b16 %v786, %v782
    %v1023 = vpack.c.b16 %v787, %v783
    %v1024 = vpack.c.b16 %v792, %v788
    %v1025 = vpack.c.b16 %v793, %v789
    %v1026 = vpack.c.b16 %v794, %v790
    %v1027 = vpack.c.b16 %v795, %v791
    %v1028 = vpack.c.b16 %v800, %v796
    %v1029 = vpack.c.b16 %v801, %v797
    %v1030 = vpack.c.b16 %v802, %v798
    %v1031 = vpack.c.b16 %v803, %v799
    %v1032 = vpack.c.b16 %v808, %v804
    %v1033 = vpack.c.b16 %v809, %v805
    %v1034 = vpack.c.b16 %v810, %v806
    %v1035 = vpack.c.b16 %v811, %v807
    %v1036 = vpack.c.b16 %v816, %v812
    %v1037 = vpack.c.b16 %v817, %v813
    %v1038 = vpack.c.b16 %v818, %v814
    %v1039 = vpack.c.b16 %v819, %v815
    %v1040 = vpack.c.b16 %v824, %v820
    %v1041 = vpack.c.b16 %v825, %v821
    %v1042 = vpack.c.b16 %v826, %v822
    %v1043 = vpack.c.b16 %v827, %v823
    %v1044 = vpack.c.b16 %v832, %v828
    %v1045 = vpack.c.b16 %v833, %v829
    %v1046 = vpack.c.b16 %v834, %v830
    %v1047 = vpack.c.b16 %v835, %v831
    %v1048 = vpack.c.b16 %v840, %v836
    %v1049 = vpack.c.b16 %v841, %v837
    %v1050 = vpack.c.b16 %v842, %v838
    %v1051 = vpack.c.b16 %v843, %v839
    %v1052 = vpack.c.b16 %v848, %v844
    %v1053 = vpack.c.b16 %v849, %v845
    %v1054 = vpack.c.b16 %v850, %v846
    %v1055 = vpack.c.b16 %v851, %v847
    %v1056 = vpack.c.b16 %v856, %v852
    %v1057 = vpack.c.b16 %v857, %v853
    %v1058 = vpack.c.b16 %v858, %v854
    %v1059 = vpack.c.b16 %v859, %v855
    %v1060 = vpack.c.b16 %v864, %v860
    %v1061 = vpack.c.b16 %v865, %v861
    %v1062 = vpack.c.b16 %v866, %v862
    %v1063 = vpack.c.b16 %v867, %v863
    %v1064 = vpack.c.b16 %v872, %v868
    %v1065 = vpack.c.b16 %v873, %v869
    %v1066 = vpack.c.b16 %v874, %v870
    %v1067 = vpack.c.b16 %v875, %v871
    %v1068 = vpack.c.b16 %v880, %v876
    %v1069 = vpack.c.b16 %v881, %v877
    %v1070 = vpack.c.b16 %v882, %v878
    %v1071 = vpack.c.b16 %v883, %v879
    %v1072 = vpack.c.b16 %v888, %v884
    %v1073 = vpack.c.b16 %v889, %v885
    %v1074 = vpack.c.b16 %v890, %v886
    %v1075 = vpack.c.b16 %v891, %v887
    %v1076 = vpack.c.b16 %v896, %v892
    %v1077 = vpack.c.b16 %v897, %v893
    %v1078 = vpack.c.b16 %v898, %v894
    %v1079 = vpack.c.b16 %v899, %v895
    %v1080 = vpack.c.b16 %v904, %v900
    %v1081 = vpack.c.b16 %v905, %v901
    %v1082 = vpack.c.b16 %v906, %v902
    %v1083 = vpack.c.b16 %v907, %v903
    %v1084 = vpack.c.b16 %v912, %v908
    %v1085 = vpack.c.b16 %v913, %v909
    %v1086 = vpack.c.b16 %v914, %v910
    %v1087 = vpack.c.b16 %v915, %v911
    %v1088 = vpack.c.b16 %v920, %v916
    %v1089 = vpack.c.b16 %v921, %v917
    %v1090 = vpack.c.b16 %v922, %v918
    %v1091 = vpack.c.b16 %v923, %v919
    %v1092 = vpack.c.b16 %v928, %v924
    %v1093 = vpack.c.b16 %v929, %v925
    %v1094 = vpack.c.b16 %v930, %v926
    %v1095 = vpack.c.b16 %v931, %v927
    %v1096 = vpack.c.b16 %v936, %v932
    %v1097 = vpack.c.b16 %v937, %v933
    %v1098 = vpack.c.b16 %v938, %v934
    %v1099 = vpack.c.b16 %v939, %v935
    %v1100 = vpack.c.b16 %v944, %v940
    %v1101 = vpack.c.b16 %v945, %v941
    %v1102 = vpack.c.b16 %v946, %v942
    %v1103 = vpack.c.b16 %v947, %v943
    %v1104 = vpack.c.b16 %v952, %v948
    %v1105 = vpack.c.b16 %v953, %v949
    %v1106 = vpack.c.b16 %v954, %v950
    %v1107 = vpack.c.b16 %v955, %v951
    %v1108 = vpack.c.b16 %v960, %v956
    %v1109 = vpack.c.b16 %v961, %v957
    %v1110 = vpack.c.b16 %v962, %v958
    %v1111 = vpack.c.b16 %v963, %v959
    %v1112 = vpack.c.b16 %v968, %v964
    %v1113 = vpack.c.b16 %v969, %v965
    %v1114 = vpack.c.b16 %v970, %v966
    %v1115 = vpack.c.b16 %v971, %v967
    %v1116 = vpack.c.b16 %v976, %v972
    %v1117 = vpack.c.b16 %v977, %v973
    %v1118 = vpack.c.b16 %v978, %v974
    %v1119 = vpack.c.b16 %v979, %v975
    %v1120 = vpack.c.b16 %v984, %v980
    %v1121 = vpack.c.b16 %v985, %v981
    %v1122 = vpack.c.b16 %v986, %v982
    %v1123 = vpack.c.b16 %v987, %v983
    %v1124 = vpack.c.b16 %v992, %v988
    %v1125 = vpack.c.b16 %v993, %v989
    %v1126 = vpack.c.b16 %v994, %v990
    %v1127 = vpack.c.b16 %v995, %v991
    %v1128 = vpack.c.b16 %v1000, %v996
    %v1129 = vpack.c.b16 %v1001, %v997
    %v1130 = vpack.c.b16 %v1002, %v998
    %v1131 = vpack.c.b16 %v1003, %v999
    %1260 = vmatprep.subr.bf16.mxu0 %v1033
    %1261 = vmatpush1.bf16.msra.mxu0 %v1032
    %1262 = vmatprep.subr.bf16.mxu0 %v1029
    %1263 = vmatpush1.bf16.msra.mxu0 %v1028
    %1264 = vmatprep.subr.bf16.mxu0 %v1025
    %1265 = vmatpush1.bf16.msra.mxu0 %v1024
    %1266 = vmatprep.subr.bf16.mxu0 %v1021
    %1267 = vmatpush1.bf16.msra.mxu0 %v1020
    %1268 = vmatprep.subr.bf16.mxu0 %v1017
    %1269 = vmatpush1.bf16.msra.mxu0 %v1016
    %1270 = vmatprep.subr.bf16.mxu0 %v1013
    %1271 = vmatpush1.bf16.msra.mxu0 %v1012
    %1272 = vmatprep.subr.bf16.mxu0 %v1009
    %1273 = vmatpush1.bf16.msra.mxu0 %v1008
    %1274 = vmatprep.subr.bf16.mxu0 %v1005
    %1275 = vmatpush1.bf16.msra.mxu0 %v1004
    %1276 = vmatprep.subr.bf16.mxu0 %v1065
    %1277 = vmatpush2.bf16.msra.mxu0 %v1064
    %1278 = vmatprep.subr.bf16.mxu0 %v1061
    %1279 = vmatpush2.bf16.msra.mxu0 %v1060
    %1280 = vmatprep.subr.bf16.mxu0 %v1057
    %1281 = vmatpush2.bf16.msra.mxu0 %v1056
    %1282 = vmatprep.subr.bf16.mxu0 %v1053
    %1283 = vmatpush2.bf16.msra.mxu0 %v1052
    %1284 = vmatprep.subr.bf16.mxu0 %v1049
    %1285 = vmatpush2.bf16.msra.mxu0 %v1048
    %1286 = vmatprep.subr.bf16.mxu0 %v1045
    %1287 = vmatpush2.bf16.msra.mxu0 %v1044
    %1288 = vmatprep.subr.bf16.mxu0 %v1041
    %1289 = vmatpush2.bf16.msra.mxu0 %v1040
    %1290 = vmatprep.subr.bf16.mxu0 %v1037
    %1291 = vmatpush2.bf16.msra.mxu0 %v1036
    %1292 = vmatprep.mubr.bf16.mxu0 %v467
    %1293 = vmatmul.mubr.bf16.gmra.mxu0 %v466
    %v1294 = vpop.f32.mrf.mxu0
    %v1295 = vadd.f32 %v603, %v1294
    %v1296 = vpop.f32.mrf.mxu0
    %v1297 = vadd.f32 %v607, %v1296
    %v1298 = vpop.f32.mrf.mxu0
    %v1299 = vpop.f32.mrf.mxu0
    %1300 = vdwg.mxu0
    %1301 = vmatprep.subr.bf16.mxu0 %v1097
    %1302 = vmatpush1.bf16.msra.mxu0 %v1096
    %1303 = vmatprep.subr.bf16.mxu0 %v1093
    %1304 = vmatpush1.bf16.msra.mxu0 %v1092
    %1305 = vmatprep.subr.bf16.mxu0 %v1089
    %1306 = vmatpush1.bf16.msra.mxu0 %v1088
    %1307 = vmatprep.subr.bf16.mxu0 %v1085
    %1308 = vmatpush1.bf16.msra.mxu0 %v1084
    %1309 = vmatprep.subr.bf16.mxu0 %v1081
    %1310 = vmatpush1.bf16.msra.mxu0 %v1080
    %1311 = vmatprep.subr.bf16.mxu0 %v1077
    %1312 = vmatpush1.bf16.msra.mxu0 %v1076
    %1313 = vmatprep.subr.bf16.mxu0 %v1073
    %1314 = vmatpush1.bf16.msra.mxu0 %v1072
    %1315 = vmatprep.subr.bf16.mxu0 %v1069
    %1316 = vmatpush1.bf16.msra.mxu0 %v1068
    %1317 = vmatprep.subr.bf16.mxu0 %v1129
    %1318 = vmatpush2.bf16.msra.mxu0 %v1128
    %1319 = vmatprep.subr.bf16.mxu0 %v1125
    %1320 = vmatpush2.bf16.msra.mxu0 %v1124
    %1321 = vmatprep.subr.bf16.mxu0 %v1121
    %1322 = vmatpush2.bf16.msra.mxu0 %v1120
    %1323 = vmatprep.subr.bf16.mxu0 %v1117
    %1324 = vmatpush2.bf16.msra.mxu0 %v1116
    %1325 = vmatprep.subr.bf16.mxu0 %v1113
    %1326 = vmatpush2.bf16.msra.mxu0 %v1112
    %1327 = vmatprep.subr.bf16.mxu0 %v1109
    %1328 = vmatpush2.bf16.msra.mxu0 %v1108
    %1329 = vmatprep.subr.bf16.mxu0 %v1105
    %1330 = vmatpush2.bf16.msra.mxu0 %v1104
    %1331 = vmatprep.subr.bf16.mxu0 %v1101
    %1332 = vmatpush2.bf16.msra.mxu0 %v1100
    %1333 = vmatprep.mubr.bf16.mxu0 %v469
    %1334 = vmatmul.mubr.bf16.gmra.mxu0 %v468
    %v1335 = vpop.f32.mrf.mxu0
    %v1336 = vadd.f32 %v1295, %v1335
    %v1337 = vpop.f32.mrf.mxu0
    %v1338 = vadd.f32 %v1297, %v1337
    %v1339 = vpop.f32.mrf.mxu0
    %v1340 = vpop.f32.mrf.mxu0
    %1341 = vdwg.mxu0
    %1342 = vmatprep.subr.bf16.mxu0 %v1035
    %1343 = vmatpush1.bf16.msra.mxu0 %v1034
    %1344 = vmatprep.subr.bf16.mxu0 %v1031
    %1345 = vmatpush1.bf16.msra.mxu0 %v1030
    %1346 = vmatprep.subr.bf16.mxu0 %v1027
    %1347 = vmatpush1.bf16.msra.mxu0 %v1026
    %1348 = vmatprep.subr.bf16.mxu0 %v1023
    %1349 = vmatpush1.bf16.msra.mxu0 %v1022
    %1350 = vmatprep.subr.bf16.mxu0 %v1019
    %1351 = vmatpush1.bf16.msra.mxu0 %v1018
    %1352 = vmatprep.subr.bf16.mxu0 %v1015
    %1353 = vmatpush1.bf16.msra.mxu0 %v1014
    %1354 = vmatprep.subr.bf16.mxu0 %v1011
    %1355 = vmatpush1.bf16.msra.mxu0 %v1010
    %1356 = vmatprep.subr.bf16.mxu0 %v1007
    %1357 = vmatpush1.bf16.msra.mxu0 %v1006
    %1358 = vmatprep.subr.bf16.mxu0 %v1067
    %1359 = vmatpush2.bf16.msra.mxu0 %v1066
    %1360 = vmatprep.subr.bf16.mxu0 %v1063
    %1361 = vmatpush2.bf16.msra.mxu0 %v1062
    %1362 = vmatprep.subr.bf16.mxu0 %v1059
    %1363 = vmatpush2.bf16.msra.mxu0 %v1058
    %1364 = vmatprep.subr.bf16.mxu0 %v1055
    %1365 = vmatpush2.bf16.msra.mxu0 %v1054
    %1366 = vmatprep.subr.bf16.mxu0 %v1051
    %1367 = vmatpush2.bf16.msra.mxu0 %v1050
    %1368 = vmatprep.subr.bf16.mxu0 %v1047
    %1369 = vmatpush2.bf16.msra.mxu0 %v1046
    %1370 = vmatprep.subr.bf16.mxu0 %v1043
    %1371 = vmatpush2.bf16.msra.mxu0 %v1042
    %1372 = vmatprep.subr.bf16.mxu0 %v1039
    %1373 = vmatpush2.bf16.msra.mxu0 %v1038
    %1374 = vmatprep.mubr.bf16.mxu0 %v467
    %1375 = vmatmul.mubr.bf16.gmra.mxu0 %v466
    %v1376 = vpop.f32.mrf.mxu0
    %v1377 = vadd.f32 %v611, %v1376
    %v1378 = vpop.f32.mrf.mxu0
    %v1379 = vadd.f32 %v615, %v1378
    %v1380 = vpop.f32.mrf.mxu0
    %v1381 = vpop.f32.mrf.mxu0
    %1382 = vdwg.mxu0
    %1383 = vmatprep.subr.bf16.mxu0 %v1099
    %1384 = vmatpush1.bf16.msra.mxu0 %v1098
    %1385 = vmatprep.subr.bf16.mxu0 %v1095
    %1386 = vmatpush1.bf16.msra.mxu0 %v1094
    %1387 = vmatprep.subr.bf16.mxu0 %v1091
    %1388 = vmatpush1.bf16.msra.mxu0 %v1090
    %1389 = vmatprep.subr.bf16.mxu0 %v1087
    %1390 = vmatpush1.bf16.msra.mxu0 %v1086
    %1391 = vmatprep.subr.bf16.mxu0 %v1083
    %1392 = vmatpush1.bf16.msra.mxu0 %v1082
    %1393 = vmatprep.subr.bf16.mxu0 %v1079
    %1394 = vmatpush1.bf16.msra.mxu0 %v1078
    %1395 = vmatprep.subr.bf16.mxu0 %v1075
    %1396 = vmatpush1.bf16.msra.mxu0 %v1074
    %1397 = vmatprep.subr.bf16.mxu0 %v1071
    %1398 = vmatpush1.bf16.msra.mxu0 %v1070
    %1399 = vmatprep.subr.bf16.mxu0 %v1131
    %1400 = vmatpush2.bf16.msra.mxu0 %v1130
    %1401 = vmatprep.subr.bf16.mxu0 %v1127
    %1402 = vmatpush2.bf16.msra.mxu0 %v1126
    %1403 = vmatprep.subr.bf16.mxu0 %v1123
    %1404 = vmatpush2.bf16.msra.mxu0 %v1122
    %1405 = vmatprep.subr.bf16.mxu0 %v1119
    %1406 = vmatpush2.bf16.msra.mxu0 %v1118
    %1407 = vmatprep.subr.bf16.mxu0 %v1115
    %1408 = vmatpush2.bf16.msra.mxu0 %v1114
    %1409 = vmatprep.subr.bf16.mxu0 %v1111
    %1410 = vmatpush2.bf16.msra.mxu0 %v1110
    %1411 = vmatprep.subr.bf16.mxu0 %v1107
    %1412 = vmatpush2.bf16.msra.mxu0 %v1106
    %1413 = vmatprep.subr.bf16.mxu0 %v1103
    %1414 = vmatpush2.bf16.msra.mxu0 %v1102
    %1415 = vmatprep.mubr.bf16.mxu0 %v469
    %1416 = vmatmul.mubr.bf16.gmra.mxu0 %v468
    %v1417 = vpop.f32.mrf.mxu0
    %v1418 = vadd.f32 %v1377, %v1417
    %v1419 = vpop.f32.mrf.mxu0
    %v1420 = vadd.f32 %v1379, %v1419
    %v1421 = vpop.f32.mrf.mxu0
    %v1422 = vpop.f32.mrf.mxu0
    %1423 = vdwg.mxu0
    %v1424 = vmax.f32 %v1336, 0.0
    %v1425 = vmax.f32 %v1338, 0.0
    %v1426 = vmax.f32 %v1418, 0.0
    %v1427 = vmax.f32 %v1420, 0.0
    %v1428 = vpack.c.bf16 %v1424, %v1424
    %v1429 = vpack.c.bf16 %v1425, %v1425
    %v1430 = vpack.c.bf16 %v1426, %v1426
    %v1431 = vpack.c.bf16 %v1427, %v1427
    %v1432 = vld [vmem:[#allocation9] sm:$0xff]
    %v1433 = vld [vmem:[#allocation9 + $0x8] sm:$0xff]
    %v1434 = vld [vmem:[#allocation9 + $0x10] sm:$0xff]
    %v1435 = vld [vmem:[#allocation9 + $0x18] sm:$0xff]
    %v1436 = vld [vmem:[#allocation9 + $0x20] sm:$0xff]
    %v1437 = vld [vmem:[#allocation9 + $0x28] sm:$0xff]
    %v1438 = vld [vmem:[#allocation9 + $0x30] sm:$0xff]
    %v1439 = vld [vmem:[#allocation9 + $0x38] sm:$0xff]
    %v1440 = vld [vmem:[#allocation9 + $0x40] sm:$0xff]
    %v1441 = vld [vmem:[#allocation9 + $0x48] sm:$0xff]
    %v1442 = vld [vmem:[#allocation9 + $0x50] sm:$0xff]
    %v1443 = vld [vmem:[#allocation9 + $0x58] sm:$0xff]
    %v1444 = vld [vmem:[#allocation9 + $0x60] sm:$0xff]
    %v1445 = vld [vmem:[#allocation9 + $0x68] sm:$0xff]
    %v1446 = vld [vmem:[#allocation9 + $0x70] sm:$0xff]
    %v1447 = vld [vmem:[#allocation9 + $0x78] sm:$0xff]
    %v1448 = vld [vmem:[#allocation9 + $0x80] sm:$0xff]
    %v1449 = vld [vmem:[#allocation9 + $0x88] sm:$0xff]
    %v1450 = vld [vmem:[#allocation9 + $0x90] sm:$0xff]
    %v1451 = vld [vmem:[#allocation9 + $0x98] sm:$0xff]
    %v1452 = vld [vmem:[#allocation9 + $0xa0] sm:$0xff]
    %v1453 = vld [vmem:[#allocation9 + $0xa8] sm:$0xff]
    %v1454 = vld [vmem:[#allocation9 + $0xb0] sm:$0xff]
    %v1455 = vld [vmem:[#allocation9 + $0xb8] sm:$0xff]
    %v1456 = vld [vmem:[#allocation9 + $0xc0] sm:$0xff]
    %v1457 = vld [vmem:[#allocation9 + $0xc8] sm:$0xff]
    %v1458 = vld [vmem:[#allocation9 + $0xd0] sm:$0xff]
    %v1459 = vld [vmem:[#allocation9 + $0xd8] sm:$0xff]
    %v1460 = vld [vmem:[#allocation9 + $0xe0] sm:$0xff]
    %v1461 = vld [vmem:[#allocation9 + $0xe8] sm:$0xff]
    %v1462 = vld [vmem:[#allocation9 + $0xf0] sm:$0xff]
    %v1463 = vld [vmem:[#allocation9 + $0xf8] sm:$0xff]
    %v1464 = vld [vmem:[#allocation9 + $0x100] sm:$0xff]
    %v1465 = vld [vmem:[#allocation9 + $0x108] sm:$0xff]
    %v1466 = vld [vmem:[#allocation9 + $0x110] sm:$0xff]
    %v1467 = vld [vmem:[#allocation9 + $0x118] sm:$0xff]
    %v1468 = vld [vmem:[#allocation9 + $0x120] sm:$0xff]
    %v1469 = vld [vmem:[#allocation9 + $0x128] sm:$0xff]
    %v1470 = vld [vmem:[#allocation9 + $0x130] sm:$0xff]
    %v1471 = vld [vmem:[#allocation9 + $0x138] sm:$0xff]
    %v1472 = vld [vmem:[#allocation9 + $0x140] sm:$0xff]
    %v1473 = vld [vmem:[#allocation9 + $0x148] sm:$0xff]
    %v1474 = vld [vmem:[#allocation9 + $0x150] sm:$0xff]
    %v1475 = vld [vmem:[#allocation9 + $0x158] sm:$0xff]
    %v1476 = vld [vmem:[#allocation9 + $0x160] sm:$0xff]
    %v1477 = vld [vmem:[#allocation9 + $0x168] sm:$0xff]
    %v1478 = vld [vmem:[#allocation9 + $0x170] sm:$0xff]
    %v1479 = vld [vmem:[#allocation9 + $0x178] sm:$0xff]
    %v1480 = vld [vmem:[#allocation9 + $0x180] sm:$0xff]
    %v1481 = vld [vmem:[#allocation9 + $0x188] sm:$0xff]
    %v1482 = vld [vmem:[#allocation9 + $0x190] sm:$0xff]
    %v1483 = vld [vmem:[#allocation9 + $0x198] sm:$0xff]
    %v1484 = vld [vmem:[#allocation9 + $0x1a0] sm:$0xff]
    %v1485 = vld [vmem:[#allocation9 + $0x1a8] sm:$0xff]
    %v1486 = vld [vmem:[#allocation9 + $0x1b0] sm:$0xff]
    %v1487 = vld [vmem:[#allocation9 + $0x1b8] sm:$0xff]
    %v1488 = vld [vmem:[#allocation9 + $0x1c0] sm:$0xff]
    %v1489 = vld [vmem:[#allocation9 + $0x1c8] sm:$0xff]
    %v1490 = vld [vmem:[#allocation9 + $0x1d0] sm:$0xff]
    %v1491 = vld [vmem:[#allocation9 + $0x1d8] sm:$0xff]
    %v1492 = vld [vmem:[#allocation9 + $0x1e0] sm:$0xff]
    %v1493 = vld [vmem:[#allocation9 + $0x1e8] sm:$0xff]
    %v1494 = vld [vmem:[#allocation9 + $0x1f0] sm:$0xff]
    %v1495 = vld [vmem:[#allocation9 + $0x1f8] sm:$0xff]
    %v1496 = vld [vmem:[#allocation9 + $0x200] sm:$0xff]
    %v1497 = vld [vmem:[#allocation9 + $0x208] sm:$0xff]
    %v1498 = vld [vmem:[#allocation9 + $0x210] sm:$0xff]
    %v1499 = vld [vmem:[#allocation9 + $0x218] sm:$0xff]
    %v1500 = vld [vmem:[#allocation9 + $0x220] sm:$0xff]
    %v1501 = vld [vmem:[#allocation9 + $0x228] sm:$0xff]
    %v1502 = vld [vmem:[#allocation9 + $0x230] sm:$0xff]
    %v1503 = vld [vmem:[#allocation9 + $0x238] sm:$0xff]
    %v1504 = vld [vmem:[#allocation9 + $0x240] sm:$0xff]
    %v1505 = vld [vmem:[#allocation9 + $0x248] sm:$0xff]
    %v1506 = vld [vmem:[#allocation9 + $0x250] sm:$0xff]
    %v1507 = vld [vmem:[#allocation9 + $0x258] sm:$0xff]
    %v1508 = vld [vmem:[#allocation9 + $0x260] sm:$0xff]
    %v1509 = vld [vmem:[#allocation9 + $0x268] sm:$0xff]
    %v1510 = vld [vmem:[#allocation9 + $0x270] sm:$0xff]
    %v1511 = vld [vmem:[#allocation9 + $0x278] sm:$0xff]
    %v1512 = vld [vmem:[#allocation9 + $0x280] sm:$0xff]
    %v1513 = vld [vmem:[#allocation9 + $0x288] sm:$0xff]
    %v1514 = vld [vmem:[#allocation9 + $0x290] sm:$0xff]
    %v1515 = vld [vmem:[#allocation9 + $0x298] sm:$0xff]
    %v1516 = vld [vmem:[#allocation9 + $0x2a0] sm:$0xff]
    %v1517 = vld [vmem:[#allocation9 + $0x2a8] sm:$0xff]
    %v1518 = vld [vmem:[#allocation9 + $0x2b0] sm:$0xff]
    %v1519 = vld [vmem:[#allocation9 + $0x2b8] sm:$0xff]
    %v1520 = vld [vmem:[#allocation9 + $0x2c0] sm:$0xff]
    %v1521 = vld [vmem:[#allocation9 + $0x2c8] sm:$0xff]
    %v1522 = vld [vmem:[#allocation9 + $0x2d0] sm:$0xff]
    %v1523 = vld [vmem:[#allocation9 + $0x2d8] sm:$0xff]
    %v1524 = vld [vmem:[#allocation9 + $0x2e0] sm:$0xff]
    %v1525 = vld [vmem:[#allocation9 + $0x2e8] sm:$0xff]
    %v1526 = vld [vmem:[#allocation9 + $0x2f0] sm:$0xff]
    %v1527 = vld [vmem:[#allocation9 + $0x2f8] sm:$0xff]
    %v1528 = vld [vmem:[#allocation9 + $0x300] sm:$0xff]
    %v1529 = vld [vmem:[#allocation9 + $0x308] sm:$0xff]
    %v1530 = vld [vmem:[#allocation9 + $0x310] sm:$0xff]
    %v1531 = vld [vmem:[#allocation9 + $0x318] sm:$0xff]
    %v1532 = vld [vmem:[#allocation9 + $0x320] sm:$0xff]
    %v1533 = vld [vmem:[#allocation9 + $0x328] sm:$0xff]
    %v1534 = vld [vmem:[#allocation9 + $0x330] sm:$0xff]
    %v1535 = vld [vmem:[#allocation9 + $0x338] sm:$0xff]
    %v1536 = vld [vmem:[#allocation9 + $0x340] sm:$0xff]
    %v1537 = vld [vmem:[#allocation9 + $0x348] sm:$0xff]
    %v1538 = vld [vmem:[#allocation9 + $0x350] sm:$0xff]
    %v1539 = vld [vmem:[#allocation9 + $0x358] sm:$0xff]
    %v1540 = vld [vmem:[#allocation9 + $0x360] sm:$0xff]
    %v1541 = vld [vmem:[#allocation9 + $0x368] sm:$0xff]
    %v1542 = vld [vmem:[#allocation9 + $0x370] sm:$0xff]
    %v1543 = vld [vmem:[#allocation9 + $0x378] sm:$0xff]
    %v1544 = vld [vmem:[#allocation9 + $0x380] sm:$0xff]
    %v1545 = vld [vmem:[#allocation9 + $0x388] sm:$0xff]
    %v1546 = vld [vmem:[#allocation9 + $0x390] sm:$0xff]
    %v1547 = vld [vmem:[#allocation9 + $0x398] sm:$0xff]
    %v1548 = vld [vmem:[#allocation9 + $0x3a0] sm:$0xff]
    %v1549 = vld [vmem:[#allocation9 + $0x3a8] sm:$0xff]
    %v1550 = vld [vmem:[#allocation9 + $0x3b0] sm:$0xff]
    %v1551 = vld [vmem:[#allocation9 + $0x3b8] sm:$0xff]
    %v1552 = vld [vmem:[#allocation9 + $0x3c0] sm:$0xff]
    %v1553 = vld [vmem:[#allocation9 + $0x3c8] sm:$0xff]
    %v1554 = vld [vmem:[#allocation9 + $0x3d0] sm:$0xff]
    %v1555 = vld [vmem:[#allocation9 + $0x3d8] sm:$0xff]
    %v1556 = vld [vmem:[#allocation9 + $0x3e0] sm:$0xff]
    %v1557 = vld [vmem:[#allocation9 + $0x3e8] sm:$0xff]
    %v1558 = vld [vmem:[#allocation9 + $0x3f0] sm:$0xff]
    %v1559 = vld [vmem:[#allocation9 + $0x3f8] sm:$0xff]
    %v1560 = vld [vmem:[#allocation9 + $0x400] sm:$0xff]
    %v1561 = vld [vmem:[#allocation9 + $0x408] sm:$0xff]
    %v1562 = vld [vmem:[#allocation9 + $0x410] sm:$0xff]
    %v1563 = vld [vmem:[#allocation9 + $0x418] sm:$0xff]
    %v1564 = vld [vmem:[#allocation9 + $0x420] sm:$0xff]
    %v1565 = vld [vmem:[#allocation9 + $0x428] sm:$0xff]
    %v1566 = vld [vmem:[#allocation9 + $0x430] sm:$0xff]
    %v1567 = vld [vmem:[#allocation9 + $0x438] sm:$0xff]
    %v1568 = vld [vmem:[#allocation9 + $0x440] sm:$0xff]
    %v1569 = vld [vmem:[#allocation9 + $0x448] sm:$0xff]
    %v1570 = vld [vmem:[#allocation9 + $0x450] sm:$0xff]
    %v1571 = vld [vmem:[#allocation9 + $0x458] sm:$0xff]
    %v1572 = vld [vmem:[#allocation9 + $0x460] sm:$0xff]
    %v1573 = vld [vmem:[#allocation9 + $0x468] sm:$0xff]
    %v1574 = vld [vmem:[#allocation9 + $0x470] sm:$0xff]
    %v1575 = vld [vmem:[#allocation9 + $0x478] sm:$0xff]
    %v1576 = vld [vmem:[#allocation9 + $0x480] sm:$0xff]
    %v1577 = vld [vmem:[#allocation9 + $0x488] sm:$0xff]
    %v1578 = vld [vmem:[#allocation9 + $0x490] sm:$0xff]
    %v1579 = vld [vmem:[#allocation9 + $0x498] sm:$0xff]
    %v1580 = vld [vmem:[#allocation9 + $0x4a0] sm:$0xff]
    %v1581 = vld [vmem:[#allocation9 + $0x4a8] sm:$0xff]
    %v1582 = vld [vmem:[#allocation9 + $0x4b0] sm:$0xff]
    %v1583 = vld [vmem:[#allocation9 + $0x4b8] sm:$0xff]
    %v1584 = vld [vmem:[#allocation9 + $0x4c0] sm:$0xff]
    %v1585 = vld [vmem:[#allocation9 + $0x4c8] sm:$0xff]
    %v1586 = vld [vmem:[#allocation9 + $0x4d0] sm:$0xff]
    %v1587 = vld [vmem:[#allocation9 + $0x4d8] sm:$0xff]
    %v1588 = vld [vmem:[#allocation9 + $0x4e0] sm:$0xff]
    %v1589 = vld [vmem:[#allocation9 + $0x4e8] sm:$0xff]
    %v1590 = vld [vmem:[#allocation9 + $0x4f0] sm:$0xff]
    %v1591 = vld [vmem:[#allocation9 + $0x4f8] sm:$0xff]
    %v1592 = vld [vmem:[#allocation9 + $0x500] sm:$0xff]
    %v1593 = vld [vmem:[#allocation9 + $0x508] sm:$0xff]
    %v1594 = vld [vmem:[#allocation9 + $0x510] sm:$0xff]
    %v1595 = vld [vmem:[#allocation9 + $0x518] sm:$0xff]
    %v1596 = vld [vmem:[#allocation9 + $0x520] sm:$0xff]
    %v1597 = vld [vmem:[#allocation9 + $0x528] sm:$0xff]
    %v1598 = vld [vmem:[#allocation9 + $0x530] sm:$0xff]
    %v1599 = vld [vmem:[#allocation9 + $0x538] sm:$0xff]
    %v1600 = vld [vmem:[#allocation9 + $0x540] sm:$0xff]
    %v1601 = vld [vmem:[#allocation9 + $0x548] sm:$0xff]
    %v1602 = vld [vmem:[#allocation9 + $0x550] sm:$0xff]
    %v1603 = vld [vmem:[#allocation9 + $0x558] sm:$0xff]
    %v1604 = vld [vmem:[#allocation9 + $0x560] sm:$0xff]
    %v1605 = vld [vmem:[#allocation9 + $0x568] sm:$0xff]
    %v1606 = vld [vmem:[#allocation9 + $0x570] sm:$0xff]
    %v1607 = vld [vmem:[#allocation9 + $0x578] sm:$0xff]
    %v1608 = vld [vmem:[#allocation9 + $0x580] sm:$0xff]
    %v1609 = vld [vmem:[#allocation9 + $0x588] sm:$0xff]
    %v1610 = vld [vmem:[#allocation9 + $0x590] sm:$0xff]
    %v1611 = vld [vmem:[#allocation9 + $0x598] sm:$0xff]
    %v1612 = vld [vmem:[#allocation9 + $0x5a0] sm:$0xff]
    %v1613 = vld [vmem:[#allocation9 + $0x5a8] sm:$0xff]
    %v1614 = vld [vmem:[#allocation9 + $0x5b0] sm:$0xff]
    %v1615 = vld [vmem:[#allocation9 + $0x5b8] sm:$0xff]
    %v1616 = vld [vmem:[#allocation9 + $0x5c0] sm:$0xff]
    %v1617 = vld [vmem:[#allocation9 + $0x5c8] sm:$0xff]
    %v1618 = vld [vmem:[#allocation9 + $0x5d0] sm:$0xff]
    %v1619 = vld [vmem:[#allocation9 + $0x5d8] sm:$0xff]
    %v1620 = vld [vmem:[#allocation9 + $0x5e0] sm:$0xff]
    %v1621 = vld [vmem:[#allocation9 + $0x5e8] sm:$0xff]
    %v1622 = vld [vmem:[#allocation9 + $0x5f0] sm:$0xff]
    %v1623 = vld [vmem:[#allocation9 + $0x5f8] sm:$0xff]
    %v1624 = vld [vmem:[#allocation9 + $0x600] sm:$0xff]
    %v1625 = vld [vmem:[#allocation9 + $0x608] sm:$0xff]
    %v1626 = vld [vmem:[#allocation9 + $0x610] sm:$0xff]
    %v1627 = vld [vmem:[#allocation9 + $0x618] sm:$0xff]
    %v1628 = vld [vmem:[#allocation9 + $0x620] sm:$0xff]
    %v1629 = vld [vmem:[#allocation9 + $0x628] sm:$0xff]
    %v1630 = vld [vmem:[#allocation9 + $0x630] sm:$0xff]
    %v1631 = vld [vmem:[#allocation9 + $0x638] sm:$0xff]
    %v1632 = vld [vmem:[#allocation9 + $0x640] sm:$0xff]
    %v1633 = vld [vmem:[#allocation9 + $0x648] sm:$0xff]
    %v1634 = vld [vmem:[#allocation9 + $0x650] sm:$0xff]
    %v1635 = vld [vmem:[#allocation9 + $0x658] sm:$0xff]
    %v1636 = vld [vmem:[#allocation9 + $0x660] sm:$0xff]
    %v1637 = vld [vmem:[#allocation9 + $0x668] sm:$0xff]
    %v1638 = vld [vmem:[#allocation9 + $0x670] sm:$0xff]
    %v1639 = vld [vmem:[#allocation9 + $0x678] sm:$0xff]
    %v1640 = vld [vmem:[#allocation9 + $0x680] sm:$0xff]
    %v1641 = vld [vmem:[#allocation9 + $0x688] sm:$0xff]
    %v1642 = vld [vmem:[#allocation9 + $0x690] sm:$0xff]
    %v1643 = vld [vmem:[#allocation9 + $0x698] sm:$0xff]
    %v1644 = vld [vmem:[#allocation9 + $0x6a0] sm:$0xff]
    %v1645 = vld [vmem:[#allocation9 + $0x6a8] sm:$0xff]
    %v1646 = vld [vmem:[#allocation9 + $0x6b0] sm:$0xff]
    %v1647 = vld [vmem:[#allocation9 + $0x6b8] sm:$0xff]
    %v1648 = vld [vmem:[#allocation9 + $0x6c0] sm:$0xff]
    %v1649 = vld [vmem:[#allocation9 + $0x6c8] sm:$0xff]
    %v1650 = vld [vmem:[#allocation9 + $0x6d0] sm:$0xff]
    %v1651 = vld [vmem:[#allocation9 + $0x6d8] sm:$0xff]
    %v1652 = vld [vmem:[#allocation9 + $0x6e0] sm:$0xff]
    %v1653 = vld [vmem:[#allocation9 + $0x6e8] sm:$0xff]
    %v1654 = vld [vmem:[#allocation9 + $0x6f0] sm:$0xff]
    %v1655 = vld [vmem:[#allocation9 + $0x6f8] sm:$0xff]
    %v1656 = vld [vmem:[#allocation9 + $0x700] sm:$0xff]
    %v1657 = vld [vmem:[#allocation9 + $0x708] sm:$0xff]
    %v1658 = vld [vmem:[#allocation9 + $0x710] sm:$0xff]
    %v1659 = vld [vmem:[#allocation9 + $0x718] sm:$0xff]
    %v1660 = vld [vmem:[#allocation9 + $0x720] sm:$0xff]
    %v1661 = vld [vmem:[#allocation9 + $0x728] sm:$0xff]
    %v1662 = vld [vmem:[#allocation9 + $0x730] sm:$0xff]
    %v1663 = vld [vmem:[#allocation9 + $0x738] sm:$0xff]
    %v1664 = vld [vmem:[#allocation9 + $0x740] sm:$0xff]
    %v1665 = vld [vmem:[#allocation9 + $0x748] sm:$0xff]
    %v1666 = vld [vmem:[#allocation9 + $0x750] sm:$0xff]
    %v1667 = vld [vmem:[#allocation9 + $0x758] sm:$0xff]
    %v1668 = vld [vmem:[#allocation9 + $0x760] sm:$0xff]
    %v1669 = vld [vmem:[#allocation9 + $0x768] sm:$0xff]
    %v1670 = vld [vmem:[#allocation9 + $0x770] sm:$0xff]
    %v1671 = vld [vmem:[#allocation9 + $0x778] sm:$0xff]
    %v1672 = vld [vmem:[#allocation9 + $0x780] sm:$0xff]
    %v1673 = vld [vmem:[#allocation9 + $0x788] sm:$0xff]
    %v1674 = vld [vmem:[#allocation9 + $0x790] sm:$0xff]
    %v1675 = vld [vmem:[#allocation9 + $0x798] sm:$0xff]
    %v1676 = vld [vmem:[#allocation9 + $0x7a0] sm:$0xff]
    %v1677 = vld [vmem:[#allocation9 + $0x7a8] sm:$0xff]
    %v1678 = vld [vmem:[#allocation9 + $0x7b0] sm:$0xff]
    %v1679 = vld [vmem:[#allocation9 + $0x7b8] sm:$0xff]
    %v1680 = vld [vmem:[#allocation9 + $0x7c0] sm:$0xff]
    %v1681 = vld [vmem:[#allocation9 + $0x7c8] sm:$0xff]
    %v1682 = vld [vmem:[#allocation9 + $0x7d0] sm:$0xff]
    %v1683 = vld [vmem:[#allocation9 + $0x7d8] sm:$0xff]
    %v1684 = vld [vmem:[#allocation9 + $0x7e0] sm:$0xff]
    %v1685 = vld [vmem:[#allocation9 + $0x7e8] sm:$0xff]
    %v1686 = vld [vmem:[#allocation9 + $0x7f0] sm:$0xff]
    %v1687 = vld [vmem:[#allocation9 + $0x7f8] sm:$0xff]
    %v1688 = vld [vmem:[#allocation10] sm:$0xff]
    %v1690 = vlaneseq
    %v1691 = vshrl.u32 %v1690, 7
    %v1692 = vsub.s32 0, %v1691
    %v1693 = vrot.slane %v1688, %v1692
    %v1694 = vlaneseq
    %v1695 = vshrl.u32 %v1694, 7
    %v1696 = vsub.s32 1, %v1695
    %v1697 = vrot.slane %v1688, %v1696
    %v1698 = vlaneseq
    %v1699 = vshrl.u32 %v1698, 7
    %v1700 = vsub.s32 2, %v1699
    %v1701 = vrot.slane %v1688, %v1700
    %v1702 = vlaneseq
    %v1703 = vshrl.u32 %v1702, 7
    %v1704 = vsub.s32 3, %v1703
    %v1705 = vrot.slane %v1688, %v1704
    %v1706 = vlaneseq
    %v1707 = vshrl.u32 %v1706, 7
    %v1708 = vsub.s32 4, %v1707
    %v1709 = vrot.slane %v1688, %v1708
    %v1710 = vlaneseq
    %v1711 = vshrl.u32 %v1710, 7
    %v1712 = vsub.s32 5, %v1711
    %v1713 = vrot.slane %v1688, %v1712
    %v1714 = vlaneseq
    %v1715 = vshrl.u32 %v1714, 7
    %v1716 = vsub.s32 6, %v1715
    %v1717 = vrot.slane %v1688, %v1716
    %v1718 = vlaneseq
    %v1719 = vshrl.u32 %v1718, 7
    %v1720 = vsub.s32 7, %v1719
    %v1721 = vrot.slane %v1688, %v1720
    %v1986 = vunpack.c.l.b16 %v1432
    %v1987 = vunpack.c.h.b16 %v1432
    %v1988 = vunpack.c.l.b16 %v1433
    %v1989 = vunpack.c.h.b16 %v1433
    %v1990 = vunpack.c.l.b16 %v1434
    %v1991 = vunpack.c.h.b16 %v1434
    %v1992 = vunpack.c.l.b16 %v1435
    %v1993 = vunpack.c.h.b16 %v1435
    %v1994 = vunpack.c.l.b16 %v1436
    %v1995 = vunpack.c.h.b16 %v1436
    %v1996 = vunpack.c.l.b16 %v1437
    %v1997 = vunpack.c.h.b16 %v1437
    %v1998 = vunpack.c.l.b16 %v1438
    %v1999 = vunpack.c.h.b16 %v1438
    %v2000 = vunpack.c.l.b16 %v1439
    %v2001 = vunpack.c.h.b16 %v1439
    %v2002 = vunpack.c.l.b16 %v1440
    %v2003 = vunpack.c.h.b16 %v1440
    %v2004 = vunpack.c.l.b16 %v1441
    %v2005 = vunpack.c.h.b16 %v1441
    %v2006 = vunpack.c.l.b16 %v1442
    %v2007 = vunpack.c.h.b16 %v1442
    %v2008 = vunpack.c.l.b16 %v1443
    %v2009 = vunpack.c.h.b16 %v1443
    %v2010 = vunpack.c.l.b16 %v1444
    %v2011 = vunpack.c.h.b16 %v1444
    %v2012 = vunpack.c.l.b16 %v1445
    %v2013 = vunpack.c.h.b16 %v1445
    %v2014 = vunpack.c.l.b16 %v1446
    %v2015 = vunpack.c.h.b16 %v1446
    %v2016 = vunpack.c.l.b16 %v1447
    %v2017 = vunpack.c.h.b16 %v1447
    %v2018 = vunpack.c.l.b16 %v1448
    %v2019 = vunpack.c.h.b16 %v1448
    %v2020 = vunpack.c.l.b16 %v1449
    %v2021 = vunpack.c.h.b16 %v1449
    %v2022 = vunpack.c.l.b16 %v1450
    %v2023 = vunpack.c.h.b16 %v1450
    %v2024 = vunpack.c.l.b16 %v1451
    %v2025 = vunpack.c.h.b16 %v1451
    %v2026 = vunpack.c.l.b16 %v1452
    %v2027 = vunpack.c.h.b16 %v1452
    %v2028 = vunpack.c.l.b16 %v1453
    %v2029 = vunpack.c.h.b16 %v1453
    %v2030 = vunpack.c.l.b16 %v1454
    %v2031 = vunpack.c.h.b16 %v1454
    %v2032 = vunpack.c.l.b16 %v1455
    %v2033 = vunpack.c.h.b16 %v1455
    %v2034 = vunpack.c.l.b16 %v1456
    %v2035 = vunpack.c.h.b16 %v1456
    %v2036 = vunpack.c.l.b16 %v1457
    %v2037 = vunpack.c.h.b16 %v1457
    %v2038 = vunpack.c.l.b16 %v1458
    %v2039 = vunpack.c.h.b16 %v1458
    %v2040 = vunpack.c.l.b16 %v1459
    %v2041 = vunpack.c.h.b16 %v1459
    %v2042 = vunpack.c.l.b16 %v1460
    %v2043 = vunpack.c.h.b16 %v1460
    %v2044 = vunpack.c.l.b16 %v1461
    %v2045 = vunpack.c.h.b16 %v1461
    %v2046 = vunpack.c.l.b16 %v1462
    %v2047 = vunpack.c.h.b16 %v1462
    %v2048 = vunpack.c.l.b16 %v1463
    %v2049 = vunpack.c.h.b16 %v1463
    %v2050 = vunpack.c.l.b16 %v1464
    %v2051 = vunpack.c.h.b16 %v1464
    %v2052 = vunpack.c.l.b16 %v1465
    %v2053 = vunpack.c.h.b16 %v1465
    %v2054 = vunpack.c.l.b16 %v1466
    %v2055 = vunpack.c.h.b16 %v1466
    %v2056 = vunpack.c.l.b16 %v1467
    %v2057 = vunpack.c.h.b16 %v1467
    %v2058 = vunpack.c.l.b16 %v1468
    %v2059 = vunpack.c.h.b16 %v1468
    %v2060 = vunpack.c.l.b16 %v1469
    %v2061 = vunpack.c.h.b16 %v1469
    %v2062 = vunpack.c.l.b16 %v1470
    %v2063 = vunpack.c.h.b16 %v1470
    %v2064 = vunpack.c.l.b16 %v1471
    %v2065 = vunpack.c.h.b16 %v1471
    %v2066 = vunpack.c.l.b16 %v1472
    %v2067 = vunpack.c.h.b16 %v1472
    %v2068 = vunpack.c.l.b16 %v1473
    %v2069 = vunpack.c.h.b16 %v1473
    %v2070 = vunpack.c.l.b16 %v1474
    %v2071 = vunpack.c.h.b16 %v1474
    %v2072 = vunpack.c.l.b16 %v1475
    %v2073 = vunpack.c.h.b16 %v1475
    %v2074 = vunpack.c.l.b16 %v1476
    %v2075 = vunpack.c.h.b16 %v1476
    %v2076 = vunpack.c.l.b16 %v1477
    %v2077 = vunpack.c.h.b16 %v1477
    %v2078 = vunpack.c.l.b16 %v1478
    %v2079 = vunpack.c.h.b16 %v1478
    %v2080 = vunpack.c.l.b16 %v1479
    %v2081 = vunpack.c.h.b16 %v1479
    %v2082 = vunpack.c.l.b16 %v1480
    %v2083 = vunpack.c.h.b16 %v1480
    %v2084 = vunpack.c.l.b16 %v1481
    %v2085 = vunpack.c.h.b16 %v1481
    %v2086 = vunpack.c.l.b16 %v1482
    %v2087 = vunpack.c.h.b16 %v1482
    %v2088 = vunpack.c.l.b16 %v1483
    %v2089 = vunpack.c.h.b16 %v1483
    %v2090 = vunpack.c.l.b16 %v1484
    %v2091 = vunpack.c.h.b16 %v1484
    %v2092 = vunpack.c.l.b16 %v1485
    %v2093 = vunpack.c.h.b16 %v1485
    %v2094 = vunpack.c.l.b16 %v1486
    %v2095 = vunpack.c.h.b16 %v1486
    %v2096 = vunpack.c.l.b16 %v1487
    %v2097 = vunpack.c.h.b16 %v1487
    %v2098 = vunpack.c.l.b16 %v1488
    %v2099 = vunpack.c.h.b16 %v1488
    %v2100 = vunpack.c.l.b16 %v1489
    %v2101 = vunpack.c.h.b16 %v1489
    %v2102 = vunpack.c.l.b16 %v1490
    %v2103 = vunpack.c.h.b16 %v1490
    %v2104 = vunpack.c.l.b16 %v1491
    %v2105 = vunpack.c.h.b16 %v1491
    %v2106 = vunpack.c.l.b16 %v1492
    %v2107 = vunpack.c.h.b16 %v1492
    %v2108 = vunpack.c.l.b16 %v1493
    %v2109 = vunpack.c.h.b16 %v1493
    %v2110 = vunpack.c.l.b16 %v1494
    %v2111 = vunpack.c.h.b16 %v1494
    %v2112 = vunpack.c.l.b16 %v1495
    %v2113 = vunpack.c.h.b16 %v1495
    %v2114 = vunpack.c.l.b16 %v1496
    %v2115 = vunpack.c.h.b16 %v1496
    %v2116 = vunpack.c.l.b16 %v1497
    %v2117 = vunpack.c.h.b16 %v1497
    %v2118 = vunpack.c.l.b16 %v1498
    %v2119 = vunpack.c.h.b16 %v1498
    %v2120 = vunpack.c.l.b16 %v1499
    %v2121 = vunpack.c.h.b16 %v1499
    %v2122 = vunpack.c.l.b16 %v1500
    %v2123 = vunpack.c.h.b16 %v1500
    %v2124 = vunpack.c.l.b16 %v1501
    %v2125 = vunpack.c.h.b16 %v1501
    %v2126 = vunpack.c.l.b16 %v1502
    %v2127 = vunpack.c.h.b16 %v1502
    %v2128 = vunpack.c.l.b16 %v1503
    %v2129 = vunpack.c.h.b16 %v1503
    %v2130 = vunpack.c.l.b16 %v1504
    %v2131 = vunpack.c.h.b16 %v1504
    %v2132 = vunpack.c.l.b16 %v1505
    %v2133 = vunpack.c.h.b16 %v1505
    %v2134 = vunpack.c.l.b16 %v1506
    %v2135 = vunpack.c.h.b16 %v1506
    %v2136 = vunpack.c.l.b16 %v1507
    %v2137 = vunpack.c.h.b16 %v1507
    %v2138 = vunpack.c.l.b16 %v1508
    %v2139 = vunpack.c.h.b16 %v1508
    %v2140 = vunpack.c.l.b16 %v1509
    %v2141 = vunpack.c.h.b16 %v1509
    %v2142 = vunpack.c.l.b16 %v1510
    %v2143 = vunpack.c.h.b16 %v1510
    %v2144 = vunpack.c.l.b16 %v1511
    %v2145 = vunpack.c.h.b16 %v1511
    %v2146 = vunpack.c.l.b16 %v1512
    %v2147 = vunpack.c.h.b16 %v1512
    %v2148 = vunpack.c.l.b16 %v1513
    %v2149 = vunpack.c.h.b16 %v1513
    %v2150 = vunpack.c.l.b16 %v1514
    %v2151 = vunpack.c.h.b16 %v1514
    %v2152 = vunpack.c.l.b16 %v1515
    %v2153 = vunpack.c.h.b16 %v1515
    %v2154 = vunpack.c.l.b16 %v1516
    %v2155 = vunpack.c.h.b16 %v1516
    %v2156 = vunpack.c.l.b16 %v1517
    %v2157 = vunpack.c.h.b16 %v1517
    %v2158 = vunpack.c.l.b16 %v1518
    %v2159 = vunpack.c.h.b16 %v1518
    %v2160 = vunpack.c.l.b16 %v1519
    %v2161 = vunpack.c.h.b16 %v1519
    %v2162 = vunpack.c.l.b16 %v1520
    %v2163 = vunpack.c.h.b16 %v1520
    %v2164 = vunpack.c.l.b16 %v1521
    %v2165 = vunpack.c.h.b16 %v1521
    %v2166 = vunpack.c.l.b16 %v1522
    %v2167 = vunpack.c.h.b16 %v1522
    %v2168 = vunpack.c.l.b16 %v1523
    %v2169 = vunpack.c.h.b16 %v1523
    %v2170 = vunpack.c.l.b16 %v1524
    %v2171 = vunpack.c.h.b16 %v1524
    %v2172 = vunpack.c.l.b16 %v1525
    %v2173 = vunpack.c.h.b16 %v1525
    %v2174 = vunpack.c.l.b16 %v1526
    %v2175 = vunpack.c.h.b16 %v1526
    %v2176 = vunpack.c.l.b16 %v1527
    %v2177 = vunpack.c.h.b16 %v1527
    %v2178 = vunpack.c.l.b16 %v1528
    %v2179 = vunpack.c.h.b16 %v1528
    %v2180 = vunpack.c.l.b16 %v1529
    %v2181 = vunpack.c.h.b16 %v1529
    %v2182 = vunpack.c.l.b16 %v1530
    %v2183 = vunpack.c.h.b16 %v1530
    %v2184 = vunpack.c.l.b16 %v1531
    %v2185 = vunpack.c.h.b16 %v1531
    %v2186 = vunpack.c.l.b16 %v1532
    %v2187 = vunpack.c.h.b16 %v1532
    %v2188 = vunpack.c.l.b16 %v1533
    %v2189 = vunpack.c.h.b16 %v1533
    %v2190 = vunpack.c.l.b16 %v1534
    %v2191 = vunpack.c.h.b16 %v1534
    %v2192 = vunpack.c.l.b16 %v1535
    %v2193 = vunpack.c.h.b16 %v1535
    %v2194 = vunpack.c.l.b16 %v1536
    %v2195 = vunpack.c.h.b16 %v1536
    %v2196 = vunpack.c.l.b16 %v1537
    %v2197 = vunpack.c.h.b16 %v1537
    %v2198 = vunpack.c.l.b16 %v1538
    %v2199 = vunpack.c.h.b16 %v1538
    %v2200 = vunpack.c.l.b16 %v1539
    %v2201 = vunpack.c.h.b16 %v1539
    %v2202 = vunpack.c.l.b16 %v1540
    %v2203 = vunpack.c.h.b16 %v1540
    %v2204 = vunpack.c.l.b16 %v1541
    %v2205 = vunpack.c.h.b16 %v1541
    %v2206 = vunpack.c.l.b16 %v1542
    %v2207 = vunpack.c.h.b16 %v1542
    %v2208 = vunpack.c.l.b16 %v1543
    %v2209 = vunpack.c.h.b16 %v1543
    %v2210 = vunpack.c.l.b16 %v1544
    %v2211 = vunpack.c.h.b16 %v1544
    %v2212 = vunpack.c.l.b16 %v1545
    %v2213 = vunpack.c.h.b16 %v1545
    %v2214 = vunpack.c.l.b16 %v1546
    %v2215 = vunpack.c.h.b16 %v1546
    %v2216 = vunpack.c.l.b16 %v1547
    %v2217 = vunpack.c.h.b16 %v1547
    %v2218 = vunpack.c.l.b16 %v1548
    %v2219 = vunpack.c.h.b16 %v1548
    %v2220 = vunpack.c.l.b16 %v1549
    %v2221 = vunpack.c.h.b16 %v1549
    %v2222 = vunpack.c.l.b16 %v1550
    %v2223 = vunpack.c.h.b16 %v1550
    %v2224 = vunpack.c.l.b16 %v1551
    %v2225 = vunpack.c.h.b16 %v1551
    %v2226 = vunpack.c.l.b16 %v1552
    %v2227 = vunpack.c.h.b16 %v1552
    %v2228 = vunpack.c.l.b16 %v1553
    %v2229 = vunpack.c.h.b16 %v1553
    %v2230 = vunpack.c.l.b16 %v1554
    %v2231 = vunpack.c.h.b16 %v1554
    %v2232 = vunpack.c.l.b16 %v1555
    %v2233 = vunpack.c.h.b16 %v1555
    %v2234 = vunpack.c.l.b16 %v1556
    %v2235 = vunpack.c.h.b16 %v1556
    %v2236 = vunpack.c.l.b16 %v1557
    %v2237 = vunpack.c.h.b16 %v1557
    %v2238 = vunpack.c.l.b16 %v1558
    %v2239 = vunpack.c.h.b16 %v1558
    %v2240 = vunpack.c.l.b16 %v1559
    %v2241 = vunpack.c.h.b16 %v1559
    %v2242 = vunpack.c.l.b16 %v1560
    %v2243 = vunpack.c.h.b16 %v1560
    %v2244 = vunpack.c.l.b16 %v1561
    %v2245 = vunpack.c.h.b16 %v1561
    %v2246 = vunpack.c.l.b16 %v1562
    %v2247 = vunpack.c.h.b16 %v1562
    %v2248 = vunpack.c.l.b16 %v1563
    %v2249 = vunpack.c.h.b16 %v1563
    %v2250 = vunpack.c.l.b16 %v1564
    %v2251 = vunpack.c.h.b16 %v1564
    %v2252 = vunpack.c.l.b16 %v1565
    %v2253 = vunpack.c.h.b16 %v1565
    %v2254 = vunpack.c.l.b16 %v1566
    %v2255 = vunpack.c.h.b16 %v1566
    %v2256 = vunpack.c.l.b16 %v1567
    %v2257 = vunpack.c.h.b16 %v1567
    %v2258 = vunpack.c.l.b16 %v1568
    %v2259 = vunpack.c.h.b16 %v1568
    %v2260 = vunpack.c.l.b16 %v1569
    %v2261 = vunpack.c.h.b16 %v1569
    %v2262 = vunpack.c.l.b16 %v1570
    %v2263 = vunpack.c.h.b16 %v1570
    %v2264 = vunpack.c.l.b16 %v1571
    %v2265 = vunpack.c.h.b16 %v1571
    %v2266 = vunpack.c.l.b16 %v1572
    %v2267 = vunpack.c.h.b16 %v1572
    %v2268 = vunpack.c.l.b16 %v1573
    %v2269 = vunpack.c.h.b16 %v1573
    %v2270 = vunpack.c.l.b16 %v1574
    %v2271 = vunpack.c.h.b16 %v1574
    %v2272 = vunpack.c.l.b16 %v1575
    %v2273 = vunpack.c.h.b16 %v1575
    %v2274 = vunpack.c.l.b16 %v1576
    %v2275 = vunpack.c.h.b16 %v1576
    %v2276 = vunpack.c.l.b16 %v1577
    %v2277 = vunpack.c.h.b16 %v1577
    %v2278 = vunpack.c.l.b16 %v1578
    %v2279 = vunpack.c.h.b16 %v1578
    %v2280 = vunpack.c.l.b16 %v1579
    %v2281 = vunpack.c.h.b16 %v1579
    %v2282 = vunpack.c.l.b16 %v1580
    %v2283 = vunpack.c.h.b16 %v1580
    %v2284 = vunpack.c.l.b16 %v1581
    %v2285 = vunpack.c.h.b16 %v1581
    %v2286 = vunpack.c.l.b16 %v1582
    %v2287 = vunpack.c.h.b16 %v1582
    %v2288 = vunpack.c.l.b16 %v1583
    %v2289 = vunpack.c.h.b16 %v1583
    %v2290 = vunpack.c.l.b16 %v1584
    %v2291 = vunpack.c.h.b16 %v1584
    %v2292 = vunpack.c.l.b16 %v1585
    %v2293 = vunpack.c.h.b16 %v1585
    %v2294 = vunpack.c.l.b16 %v1586
    %v2295 = vunpack.c.h.b16 %v1586
    %v2296 = vunpack.c.l.b16 %v1587
    %v2297 = vunpack.c.h.b16 %v1587
    %v2298 = vunpack.c.l.b16 %v1588
    %v2299 = vunpack.c.h.b16 %v1588
    %v2300 = vunpack.c.l.b16 %v1589
    %v2301 = vunpack.c.h.b16 %v1589
    %v2302 = vunpack.c.l.b16 %v1590
    %v2303 = vunpack.c.h.b16 %v1590
    %v2304 = vunpack.c.l.b16 %v1591
    %v2305 = vunpack.c.h.b16 %v1591
    %v2306 = vunpack.c.l.b16 %v1592
    %v2307 = vunpack.c.h.b16 %v1592
    %v2308 = vunpack.c.l.b16 %v1593
    %v2309 = vunpack.c.h.b16 %v1593
    %v2310 = vunpack.c.l.b16 %v1594
    %v2311 = vunpack.c.h.b16 %v1594
    %v2312 = vunpack.c.l.b16 %v1595
    %v2313 = vunpack.c.h.b16 %v1595
    %v2314 = vunpack.c.l.b16 %v1596
    %v2315 = vunpack.c.h.b16 %v1596
    %v2316 = vunpack.c.l.b16 %v1597
    %v2317 = vunpack.c.h.b16 %v1597
    %v2318 = vunpack.c.l.b16 %v1598
    %v2319 = vunpack.c.h.b16 %v1598
    %v2320 = vunpack.c.l.b16 %v1599
    %v2321 = vunpack.c.h.b16 %v1599
    %v2322 = vunpack.c.l.b16 %v1600
    %v2323 = vunpack.c.h.b16 %v1600
    %v2324 = vunpack.c.l.b16 %v1601
    %v2325 = vunpack.c.h.b16 %v1601
    %v2326 = vunpack.c.l.b16 %v1602
    %v2327 = vunpack.c.h.b16 %v1602
    %v2328 = vunpack.c.l.b16 %v1603
    %v2329 = vunpack.c.h.b16 %v1603
    %v2330 = vunpack.c.l.b16 %v1604
    %v2331 = vunpack.c.h.b16 %v1604
    %v2332 = vunpack.c.l.b16 %v1605
    %v2333 = vunpack.c.h.b16 %v1605
    %v2334 = vunpack.c.l.b16 %v1606
    %v2335 = vunpack.c.h.b16 %v1606
    %v2336 = vunpack.c.l.b16 %v1607
    %v2337 = vunpack.c.h.b16 %v1607
    %v2338 = vunpack.c.l.b16 %v1608
    %v2339 = vunpack.c.h.b16 %v1608
    %v2340 = vunpack.c.l.b16 %v1609
    %v2341 = vunpack.c.h.b16 %v1609
    %v2342 = vunpack.c.l.b16 %v1610
    %v2343 = vunpack.c.h.b16 %v1610
    %v2344 = vunpack.c.l.b16 %v1611
    %v2345 = vunpack.c.h.b16 %v1611
    %v2346 = vunpack.c.l.b16 %v1612
    %v2347 = vunpack.c.h.b16 %v1612
    %v2348 = vunpack.c.l.b16 %v1613
    %v2349 = vunpack.c.h.b16 %v1613
    %v2350 = vunpack.c.l.b16 %v1614
    %v2351 = vunpack.c.h.b16 %v1614
    %v2352 = vunpack.c.l.b16 %v1615
    %v2353 = vunpack.c.h.b16 %v1615
    %v2354 = vunpack.c.l.b16 %v1616
    %v2355 = vunpack.c.h.b16 %v1616
    %v2356 = vunpack.c.l.b16 %v1617
    %v2357 = vunpack.c.h.b16 %v1617
    %v2358 = vunpack.c.l.b16 %v1618
    %v2359 = vunpack.c.h.b16 %v1618
    %v2360 = vunpack.c.l.b16 %v1619
    %v2361 = vunpack.c.h.b16 %v1619
    %v2362 = vunpack.c.l.b16 %v1620
    %v2363 = vunpack.c.h.b16 %v1620
    %v2364 = vunpack.c.l.b16 %v1621
    %v2365 = vunpack.c.h.b16 %v1621
    %v2366 = vunpack.c.l.b16 %v1622
    %v2367 = vunpack.c.h.b16 %v1622
    %v2368 = vunpack.c.l.b16 %v1623
    %v2369 = vunpack.c.h.b16 %v1623
    %v2370 = vunpack.c.l.b16 %v1624
    %v2371 = vunpack.c.h.b16 %v1624
    %v2372 = vunpack.c.l.b16 %v1625
    %v2373 = vunpack.c.h.b16 %v1625
    %v2374 = vunpack.c.l.b16 %v1626
    %v2375 = vunpack.c.h.b16 %v1626
    %v2376 = vunpack.c.l.b16 %v1627
    %v2377 = vunpack.c.h.b16 %v1627
    %v2378 = vunpack.c.l.b16 %v1628
    %v2379 = vunpack.c.h.b16 %v1628
    %v2380 = vunpack.c.l.b16 %v1629
    %v2381 = vunpack.c.h.b16 %v1629
    %v2382 = vunpack.c.l.b16 %v1630
    %v2383 = vunpack.c.h.b16 %v1630
    %v2384 = vunpack.c.l.b16 %v1631
    %v2385 = vunpack.c.h.b16 %v1631
    %v2386 = vunpack.c.l.b16 %v1632
    %v2387 = vunpack.c.h.b16 %v1632
    %v2388 = vunpack.c.l.b16 %v1633
    %v2389 = vunpack.c.h.b16 %v1633
    %v2390 = vunpack.c.l.b16 %v1634
    %v2391 = vunpack.c.h.b16 %v1634
    %v2392 = vunpack.c.l.b16 %v1635
    %v2393 = vunpack.c.h.b16 %v1635
    %v2394 = vunpack.c.l.b16 %v1636
    %v2395 = vunpack.c.h.b16 %v1636
    %v2396 = vunpack.c.l.b16 %v1637
    %v2397 = vunpack.c.h.b16 %v1637
    %v2398 = vunpack.c.l.b16 %v1638
    %v2399 = vunpack.c.h.b16 %v1638
    %v2400 = vunpack.c.l.b16 %v1639
    %v2401 = vunpack.c.h.b16 %v1639
    %v2402 = vunpack.c.l.b16 %v1640
    %v2403 = vunpack.c.h.b16 %v1640
    %v2404 = vunpack.c.l.b16 %v1641
    %v2405 = vunpack.c.h.b16 %v1641
    %v2406 = vunpack.c.l.b16 %v1642
    %v2407 = vunpack.c.h.b16 %v1642
    %v2408 = vunpack.c.l.b16 %v1643
    %v2409 = vunpack.c.h.b16 %v1643
    %v2410 = vunpack.c.l.b16 %v1644
    %v2411 = vunpack.c.h.b16 %v1644
    %v2412 = vunpack.c.l.b16 %v1645
    %v2413 = vunpack.c.h.b16 %v1645
    %v2414 = vunpack.c.l.b16 %v1646
    %v2415 = vunpack.c.h.b16 %v1646
    %v2416 = vunpack.c.l.b16 %v1647
    %v2417 = vunpack.c.h.b16 %v1647
    %v2418 = vunpack.c.l.b16 %v1648
    %v2419 = vunpack.c.h.b16 %v1648
    %v2420 = vunpack.c.l.b16 %v1649
    %v2421 = vunpack.c.h.b16 %v1649
    %v2422 = vunpack.c.l.b16 %v1650
    %v2423 = vunpack.c.h.b16 %v1650
    %v2424 = vunpack.c.l.b16 %v1651
    %v2425 = vunpack.c.h.b16 %v1651
    %v2426 = vunpack.c.l.b16 %v1652
    %v2427 = vunpack.c.h.b16 %v1652
    %v2428 = vunpack.c.l.b16 %v1653
    %v2429 = vunpack.c.h.b16 %v1653
    %v2430 = vunpack.c.l.b16 %v1654
    %v2431 = vunpack.c.h.b16 %v1654
    %v2432 = vunpack.c.l.b16 %v1655
    %v2433 = vunpack.c.h.b16 %v1655
    %v2434 = vunpack.c.l.b16 %v1656
    %v2435 = vunpack.c.h.b16 %v1656
    %v2436 = vunpack.c.l.b16 %v1657
    %v2437 = vunpack.c.h.b16 %v1657
    %v2438 = vunpack.c.l.b16 %v1658
    %v2439 = vunpack.c.h.b16 %v1658
    %v2440 = vunpack.c.l.b16 %v1659
    %v2441 = vunpack.c.h.b16 %v1659
    %v2442 = vunpack.c.l.b16 %v1660
    %v2443 = vunpack.c.h.b16 %v1660
    %v2444 = vunpack.c.l.b16 %v1661
    %v2445 = vunpack.c.h.b16 %v1661
    %v2446 = vunpack.c.l.b16 %v1662
    %v2447 = vunpack.c.h.b16 %v1662
    %v2448 = vunpack.c.l.b16 %v1663
    %v2449 = vunpack.c.h.b16 %v1663
    %v2450 = vunpack.c.l.b16 %v1664
    %v2451 = vunpack.c.h.b16 %v1664
    %v2452 = vunpack.c.l.b16 %v1665
    %v2453 = vunpack.c.h.b16 %v1665
    %v2454 = vunpack.c.l.b16 %v1666
    %v2455 = vunpack.c.h.b16 %v1666
    %v2456 = vunpack.c.l.b16 %v1667
    %v2457 = vunpack.c.h.b16 %v1667
    %v2458 = vunpack.c.l.b16 %v1668
    %v2459 = vunpack.c.h.b16 %v1668
    %v2460 = vunpack.c.l.b16 %v1669
    %v2461 = vunpack.c.h.b16 %v1669
    %v2462 = vunpack.c.l.b16 %v1670
    %v2463 = vunpack.c.h.b16 %v1670
    %v2464 = vunpack.c.l.b16 %v1671
    %v2465 = vunpack.c.h.b16 %v1671
    %v2466 = vunpack.c.l.b16 %v1672
    %v2467 = vunpack.c.h.b16 %v1672
    %v2468 = vunpack.c.l.b16 %v1673
    %v2469 = vunpack.c.h.b16 %v1673
    %v2470 = vunpack.c.l.b16 %v1674
    %v2471 = vunpack.c.h.b16 %v1674
    %v2472 = vunpack.c.l.b16 %v1675
    %v2473 = vunpack.c.h.b16 %v1675
    %v2474 = vunpack.c.l.b16 %v1676
    %v2475 = vunpack.c.h.b16 %v1676
    %v2476 = vunpack.c.l.b16 %v1677
    %v2477 = vunpack.c.h.b16 %v1677
    %v2478 = vunpack.c.l.b16 %v1678
    %v2479 = vunpack.c.h.b16 %v1678
    %v2480 = vunpack.c.l.b16 %v1679
    %v2481 = vunpack.c.h.b16 %v1679
    %v2482 = vunpack.c.l.b16 %v1680
    %v2483 = vunpack.c.h.b16 %v1680
    %v2484 = vunpack.c.l.b16 %v1681
    %v2485 = vunpack.c.h.b16 %v1681
    %v2486 = vunpack.c.l.b16 %v1682
    %v2487 = vunpack.c.h.b16 %v1682
    %v2488 = vunpack.c.l.b16 %v1683
    %v2489 = vunpack.c.h.b16 %v1683
    %v2490 = vunpack.c.l.b16 %v1684
    %v2491 = vunpack.c.h.b16 %v1684
    %v2492 = vunpack.c.l.b16 %v1685
    %v2493 = vunpack.c.h.b16 %v1685
    %v2494 = vunpack.c.l.b16 %v1686
    %v2495 = vunpack.c.h.b16 %v1686
    %v2496 = vunpack.c.l.b16 %v1687
    %v2497 = vunpack.c.h.b16 %v1687
    %v2498 = vpack.c.b16 %v1994, %v1986
    %v2499 = vpack.c.b16 %v1995, %v1987
    %v2500 = vpack.c.b16 %v1996, %v1988
    %v2501 = vpack.c.b16 %v1997, %v1989
    %v2502 = vpack.c.b16 %v1998, %v1990
    %v2503 = vpack.c.b16 %v1999, %v1991
    %v2504 = vpack.c.b16 %v2000, %v1992
    %v2505 = vpack.c.b16 %v2001, %v1993
    %v2506 = vpack.c.b16 %v2010, %v2002
    %v2507 = vpack.c.b16 %v2011, %v2003
    %v2508 = vpack.c.b16 %v2012, %v2004
    %v2509 = vpack.c.b16 %v2013, %v2005
    %v2510 = vpack.c.b16 %v2014, %v2006
    %v2511 = vpack.c.b16 %v2015, %v2007
    %v2512 = vpack.c.b16 %v2016, %v2008
    %v2513 = vpack.c.b16 %v2017, %v2009
    %v2514 = vpack.c.b16 %v2026, %v2018
    %v2515 = vpack.c.b16 %v2027, %v2019
    %v2516 = vpack.c.b16 %v2028, %v2020
    %v2517 = vpack.c.b16 %v2029, %v2021
    %v2518 = vpack.c.b16 %v2030, %v2022
    %v2519 = vpack.c.b16 %v2031, %v2023
    %v2520 = vpack.c.b16 %v2032, %v2024
    %v2521 = vpack.c.b16 %v2033, %v2025
    %v2522 = vpack.c.b16 %v2042, %v2034
    %v2523 = vpack.c.b16 %v2043, %v2035
    %v2524 = vpack.c.b16 %v2044, %v2036
    %v2525 = vpack.c.b16 %v2045, %v2037
    %v2526 = vpack.c.b16 %v2046, %v2038
    %v2527 = vpack.c.b16 %v2047, %v2039
    %v2528 = vpack.c.b16 %v2048, %v2040
    %v2529 = vpack.c.b16 %v2049, %v2041
    %v2530 = vpack.c.b16 %v2058, %v2050
    %v2531 = vpack.c.b16 %v2059, %v2051
    %v2532 = vpack.c.b16 %v2060, %v2052
    %v2533 = vpack.c.b16 %v2061, %v2053
    %v2534 = vpack.c.b16 %v2062, %v2054
    %v2535 = vpack.c.b16 %v2063, %v2055
    %v2536 = vpack.c.b16 %v2064, %v2056
    %v2537 = vpack.c.b16 %v2065, %v2057
    %v2538 = vpack.c.b16 %v2074, %v2066
    %v2539 = vpack.c.b16 %v2075, %v2067
    %v2540 = vpack.c.b16 %v2076, %v2068
    %v2541 = vpack.c.b16 %v2077, %v2069
    %v2542 = vpack.c.b16 %v2078, %v2070
    %v2543 = vpack.c.b16 %v2079, %v2071
    %v2544 = vpack.c.b16 %v2080, %v2072
    %v2545 = vpack.c.b16 %v2081, %v2073
    %v2546 = vpack.c.b16 %v2090, %v2082
    %v2547 = vpack.c.b16 %v2091, %v2083
    %v2548 = vpack.c.b16 %v2092, %v2084
    %v2549 = vpack.c.b16 %v2093, %v2085
    %v2550 = vpack.c.b16 %v2094, %v2086
    %v2551 = vpack.c.b16 %v2095, %v2087
    %v2552 = vpack.c.b16 %v2096, %v2088
    %v2553 = vpack.c.b16 %v2097, %v2089
    %v2554 = vpack.c.b16 %v2106, %v2098
    %v2555 = vpack.c.b16 %v2107, %v2099
    %v2556 = vpack.c.b16 %v2108, %v2100
    %v2557 = vpack.c.b16 %v2109, %v2101
    %v2558 = vpack.c.b16 %v2110, %v2102
    %v2559 = vpack.c.b16 %v2111, %v2103
    %v2560 = vpack.c.b16 %v2112, %v2104
    %v2561 = vpack.c.b16 %v2113, %v2105
    %v2562 = vpack.c.b16 %v2122, %v2114
    %v2563 = vpack.c.b16 %v2123, %v2115
    %v2564 = vpack.c.b16 %v2124, %v2116
    %v2565 = vpack.c.b16 %v2125, %v2117
    %v2566 = vpack.c.b16 %v2126, %v2118
    %v2567 = vpack.c.b16 %v2127, %v2119
    %v2568 = vpack.c.b16 %v2128, %v2120
    %v2569 = vpack.c.b16 %v2129, %v2121
    %v2570 = vpack.c.b16 %v2138, %v2130
    %v2571 = vpack.c.b16 %v2139, %v2131
    %v2572 = vpack.c.b16 %v2140, %v2132
    %v2573 = vpack.c.b16 %v2141, %v2133
    %v2574 = vpack.c.b16 %v2142, %v2134
    %v2575 = vpack.c.b16 %v2143, %v2135
    %v2576 = vpack.c.b16 %v2144, %v2136
    %v2577 = vpack.c.b16 %v2145, %v2137
    %v2578 = vpack.c.b16 %v2154, %v2146
    %v2579 = vpack.c.b16 %v2155, %v2147
    %v2580 = vpack.c.b16 %v2156, %v2148
    %v2581 = vpack.c.b16 %v2157, %v2149
    %v2582 = vpack.c.b16 %v2158, %v2150
    %v2583 = vpack.c.b16 %v2159, %v2151
    %v2584 = vpack.c.b16 %v2160, %v2152
    %v2585 = vpack.c.b16 %v2161, %v2153
    %v2586 = vpack.c.b16 %v2170, %v2162
    %v2587 = vpack.c.b16 %v2171, %v2163
    %v2588 = vpack.c.b16 %v2172, %v2164
    %v2589 = vpack.c.b16 %v2173, %v2165
    %v2590 = vpack.c.b16 %v2174, %v2166
    %v2591 = vpack.c.b16 %v2175, %v2167
    %v2592 = vpack.c.b16 %v2176, %v2168
    %v2593 = vpack.c.b16 %v2177, %v2169
    %v2594 = vpack.c.b16 %v2186, %v2178
    %v2595 = vpack.c.b16 %v2187, %v2179
    %v2596 = vpack.c.b16 %v2188, %v2180
    %v2597 = vpack.c.b16 %v2189, %v2181
    %v2598 = vpack.c.b16 %v2190, %v2182
    %v2599 = vpack.c.b16 %v2191, %v2183
    %v2600 = vpack.c.b16 %v2192, %v2184
    %v2601 = vpack.c.b16 %v2193, %v2185
    %v2602 = vpack.c.b16 %v2202, %v2194
    %v2603 = vpack.c.b16 %v2203, %v2195
    %v2604 = vpack.c.b16 %v2204, %v2196
    %v2605 = vpack.c.b16 %v2205, %v2197
    %v2606 = vpack.c.b16 %v2206, %v2198
    %v2607 = vpack.c.b16 %v2207, %v2199
    %v2608 = vpack.c.b16 %v2208, %v2200
    %v2609 = vpack.c.b16 %v2209, %v2201
    %v2610 = vpack.c.b16 %v2218, %v2210
    %v2611 = vpack.c.b16 %v2219, %v2211
    %v2612 = vpack.c.b16 %v2220, %v2212
    %v2613 = vpack.c.b16 %v2221, %v2213
    %v2614 = vpack.c.b16 %v2222, %v2214
    %v2615 = vpack.c.b16 %v2223, %v2215
    %v2616 = vpack.c.b16 %v2224, %v2216
    %v2617 = vpack.c.b16 %v2225, %v2217
    %v2618 = vpack.c.b16 %v2234, %v2226
    %v2619 = vpack.c.b16 %v2235, %v2227
    %v2620 = vpack.c.b16 %v2236, %v2228
    %v2621 = vpack.c.b16 %v2237, %v2229
    %v2622 = vpack.c.b16 %v2238, %v2230
    %v2623 = vpack.c.b16 %v2239, %v2231
    %v2624 = vpack.c.b16 %v2240, %v2232
    %v2625 = vpack.c.b16 %v2241, %v2233
    %v2626 = vpack.c.b16 %v2250, %v2242
    %v2627 = vpack.c.b16 %v2251, %v2243
    %v2628 = vpack.c.b16 %v2252, %v2244
    %v2629 = vpack.c.b16 %v2253, %v2245
    %v2630 = vpack.c.b16 %v2254, %v2246
    %v2631 = vpack.c.b16 %v2255, %v2247
    %v2632 = vpack.c.b16 %v2256, %v2248
    %v2633 = vpack.c.b16 %v2257, %v2249
    %v2634 = vpack.c.b16 %v2266, %v2258
    %v2635 = vpack.c.b16 %v2267, %v2259
    %v2636 = vpack.c.b16 %v2268, %v2260
    %v2637 = vpack.c.b16 %v2269, %v2261
    %v2638 = vpack.c.b16 %v2270, %v2262
    %v2639 = vpack.c.b16 %v2271, %v2263
    %v2640 = vpack.c.b16 %v2272, %v2264
    %v2641 = vpack.c.b16 %v2273, %v2265
    %v2642 = vpack.c.b16 %v2282, %v2274
    %v2643 = vpack.c.b16 %v2283, %v2275
    %v2644 = vpack.c.b16 %v2284, %v2276
    %v2645 = vpack.c.b16 %v2285, %v2277
    %v2646 = vpack.c.b16 %v2286, %v2278
    %v2647 = vpack.c.b16 %v2287, %v2279
    %v2648 = vpack.c.b16 %v2288, %v2280
    %v2649 = vpack.c.b16 %v2289, %v2281
    %v2650 = vpack.c.b16 %v2298, %v2290
    %v2651 = vpack.c.b16 %v2299, %v2291
    %v2652 = vpack.c.b16 %v2300, %v2292
    %v2653 = vpack.c.b16 %v2301, %v2293
    %v2654 = vpack.c.b16 %v2302, %v2294
    %v2655 = vpack.c.b16 %v2303, %v2295
    %v2656 = vpack.c.b16 %v2304, %v2296
    %v2657 = vpack.c.b16 %v2305, %v2297
    %v2658 = vpack.c.b16 %v2314, %v2306
    %v2659 = vpack.c.b16 %v2315, %v2307
    %v2660 = vpack.c.b16 %v2316, %v2308
    %v2661 = vpack.c.b16 %v2317, %v2309
    %v2662 = vpack.c.b16 %v2318, %v2310
    %v2663 = vpack.c.b16 %v2319, %v2311
    %v2664 = vpack.c.b16 %v2320, %v2312
    %v2665 = vpack.c.b16 %v2321, %v2313
    %v2666 = vpack.c.b16 %v2330, %v2322
    %v2667 = vpack.c.b16 %v2331, %v2323
    %v2668 = vpack.c.b16 %v2332, %v2324
    %v2669 = vpack.c.b16 %v2333, %v2325
    %v2670 = vpack.c.b16 %v2334, %v2326
    %v2671 = vpack.c.b16 %v2335, %v2327
    %v2672 = vpack.c.b16 %v2336, %v2328
    %v2673 = vpack.c.b16 %v2337, %v2329
    %v2674 = vpack.c.b16 %v2346, %v2338
    %v2675 = vpack.c.b16 %v2347, %v2339
    %v2676 = vpack.c.b16 %v2348, %v2340
    %v2677 = vpack.c.b16 %v2349, %v2341
    %v2678 = vpack.c.b16 %v2350, %v2342
    %v2679 = vpack.c.b16 %v2351, %v2343
    %v2680 = vpack.c.b16 %v2352, %v2344
    %v2681 = vpack.c.b16 %v2353, %v2345
    %v2682 = vpack.c.b16 %v2362, %v2354
    %v2683 = vpack.c.b16 %v2363, %v2355
    %v2684 = vpack.c.b16 %v2364, %v2356
    %v2685 = vpack.c.b16 %v2365, %v2357
    %v2686 = vpack.c.b16 %v2366, %v2358
    %v2687 = vpack.c.b16 %v2367, %v2359
    %v2688 = vpack.c.b16 %v2368, %v2360
    %v2689 = vpack.c.b16 %v2369, %v2361
    %v2690 = vpack.c.b16 %v2378, %v2370
    %v2691 = vpack.c.b16 %v2379, %v2371
    %v2692 = vpack.c.b16 %v2380, %v2372
    %v2693 = vpack.c.b16 %v2381, %v2373
    %v2694 = vpack.c.b16 %v2382, %v2374
    %v2695 = vpack.c.b16 %v2383, %v2375
    %v2696 = vpack.c.b16 %v2384, %v2376
    %v2697 = vpack.c.b16 %v2385, %v2377
    %v2698 = vpack.c.b16 %v2394, %v2386
    %v2699 = vpack.c.b16 %v2395, %v2387
    %v2700 = vpack.c.b16 %v2396, %v2388
    %v2701 = vpack.c.b16 %v2397, %v2389
    %v2702 = vpack.c.b16 %v2398, %v2390
    %v2703 = vpack.c.b16 %v2399, %v2391
    %v2704 = vpack.c.b16 %v2400, %v2392
    %v2705 = vpack.c.b16 %v2401, %v2393
    %v2706 = vpack.c.b16 %v2410, %v2402
    %v2707 = vpack.c.b16 %v2411, %v2403
    %v2708 = vpack.c.b16 %v2412, %v2404
    %v2709 = vpack.c.b16 %v2413, %v2405
    %v2710 = vpack.c.b16 %v2414, %v2406
    %v2711 = vpack.c.b16 %v2415, %v2407
    %v2712 = vpack.c.b16 %v2416, %v2408
    %v2713 = vpack.c.b16 %v2417, %v2409
    %v2714 = vpack.c.b16 %v2426, %v2418
    %v2715 = vpack.c.b16 %v2427, %v2419
    %v2716 = vpack.c.b16 %v2428, %v2420
    %v2717 = vpack.c.b16 %v2429, %v2421
    %v2718 = vpack.c.b16 %v2430, %v2422
    %v2719 = vpack.c.b16 %v2431, %v2423
    %v2720 = vpack.c.b16 %v2432, %v2424
    %v2721 = vpack.c.b16 %v2433, %v2425
    %v2722 = vpack.c.b16 %v2442, %v2434
    %v2723 = vpack.c.b16 %v2443, %v2435
    %v2724 = vpack.c.b16 %v2444, %v2436
    %v2725 = vpack.c.b16 %v2445, %v2437
    %v2726 = vpack.c.b16 %v2446, %v2438
    %v2727 = vpack.c.b16 %v2447, %v2439
    %v2728 = vpack.c.b16 %v2448, %v2440
    %v2729 = vpack.c.b16 %v2449, %v2441
    %v2730 = vpack.c.b16 %v2458, %v2450
    %v2731 = vpack.c.b16 %v2459, %v2451
    %v2732 = vpack.c.b16 %v2460, %v2452
    %v2733 = vpack.c.b16 %v2461, %v2453
    %v2734 = vpack.c.b16 %v2462, %v2454
    %v2735 = vpack.c.b16 %v2463, %v2455
    %v2736 = vpack.c.b16 %v2464, %v2456
    %v2737 = vpack.c.b16 %v2465, %v2457
    %v2738 = vpack.c.b16 %v2474, %v2466
    %v2739 = vpack.c.b16 %v2475, %v2467
    %v2740 = vpack.c.b16 %v2476, %v2468
    %v2741 = vpack.c.b16 %v2477, %v2469
    %v2742 = vpack.c.b16 %v2478, %v2470
    %v2743 = vpack.c.b16 %v2479, %v2471
    %v2744 = vpack.c.b16 %v2480, %v2472
    %v2745 = vpack.c.b16 %v2481, %v2473
    %v2746 = vpack.c.b16 %v2490, %v2482
    %v2747 = vpack.c.b16 %v2491, %v2483
    %v2748 = vpack.c.b16 %v2492, %v2484
    %v2749 = vpack.c.b16 %v2493, %v2485
    %v2750 = vpack.c.b16 %v2494, %v2486
    %v2751 = vpack.c.b16 %v2495, %v2487
    %v2752 = vpack.c.b16 %v2496, %v2488
    %v2753 = vpack.c.b16 %v2497, %v2489
    %3010 = vmatprep.subr.bf16.mxu0 %v2555
    %3011 = vmatpush1.bf16.msra.mxu0 %v2554
    %3012 = vmatprep.subr.bf16.mxu0 %v2547
    %3013 = vmatpush1.bf16.msra.mxu0 %v2546
    %3014 = vmatprep.subr.bf16.mxu0 %v2539
    %3015 = vmatpush1.bf16.msra.mxu0 %v2538
    %3016 = vmatprep.subr.bf16.mxu0 %v2531
    %3017 = vmatpush1.bf16.msra.mxu0 %v2530
    %3018 = vmatprep.subr.bf16.mxu0 %v2523
    %3019 = vmatpush1.bf16.msra.mxu0 %v2522
    %3020 = vmatprep.subr.bf16.mxu0 %v2515
    %3021 = vmatpush1.bf16.msra.mxu0 %v2514
    %3022 = vmatprep.subr.bf16.mxu0 %v2507
    %3023 = vmatpush1.bf16.msra.mxu0 %v2506
    %3024 = vmatprep.subr.bf16.mxu0 %v2499
    %3025 = vmatpush1.bf16.msra.mxu0 %v2498
    %3026 = vmatprep.subr.bf16.mxu0 %v2619
    %3027 = vmatpush2.bf16.msra.mxu0 %v2618
    %3028 = vmatprep.subr.bf16.mxu0 %v2611
    %3029 = vmatpush2.bf16.msra.mxu0 %v2610
    %3030 = vmatprep.subr.bf16.mxu0 %v2603
    %3031 = vmatpush2.bf16.msra.mxu0 %v2602
    %3032 = vmatprep.subr.bf16.mxu0 %v2595
    %3033 = vmatpush2.bf16.msra.mxu0 %v2594
    %3034 = vmatprep.subr.bf16.mxu0 %v2587
    %3035 = vmatpush2.bf16.msra.mxu0 %v2586
    %3036 = vmatprep.subr.bf16.mxu0 %v2579
    %3037 = vmatpush2.bf16.msra.mxu0 %v2578
    %3038 = vmatprep.subr.bf16.mxu0 %v2571
    %3039 = vmatpush2.bf16.msra.mxu0 %v2570
    %3040 = vmatprep.subr.bf16.mxu0 %v2563
    %3041 = vmatpush2.bf16.msra.mxu0 %v2562
    %3042 = vmatprep.mubr.bf16.mxu0 %v1429
    %3043 = vmatmul.mubr.bf16.gmra.mxu0 %v1428
    %v3044 = vpop.f32.mrf.mxu0
    %v3045 = vadd.f32 %v1693, %v3044
    %v3046 = vpop.f32.mrf.mxu0
    %v3047 = vadd.f32 %v1697, %v3046
    %v3048 = vpop.f32.mrf.mxu0
    %v3049 = vpop.f32.mrf.mxu0
    %3050 = vdwg.mxu0
    %3051 = vmatprep.subr.bf16.mxu0 %v2683
    %3052 = vmatpush1.bf16.msra.mxu0 %v2682
    %3053 = vmatprep.subr.bf16.mxu0 %v2675
    %3054 = vmatpush1.bf16.msra.mxu0 %v2674
    %3055 = vmatprep.subr.bf16.mxu0 %v2667
    %3056 = vmatpush1.bf16.msra.mxu0 %v2666
    %3057 = vmatprep.subr.bf16.mxu0 %v2659
    %3058 = vmatpush1.bf16.msra.mxu0 %v2658
    %3059 = vmatprep.subr.bf16.mxu0 %v2651
    %3060 = vmatpush1.bf16.msra.mxu0 %v2650
    %3061 = vmatprep.subr.bf16.mxu0 %v2643
    %3062 = vmatpush1.bf16.msra.mxu0 %v2642
    %3063 = vmatprep.subr.bf16.mxu0 %v2635
    %3064 = vmatpush1.bf16.msra.mxu0 %v2634
    %3065 = vmatprep.subr.bf16.mxu0 %v2627
    %3066 = vmatpush1.bf16.msra.mxu0 %v2626
    %3067 = vmatprep.subr.bf16.mxu0 %v2747
    %3068 = vmatpush2.bf16.msra.mxu0 %v2746
    %3069 = vmatprep.subr.bf16.mxu0 %v2739
    %3070 = vmatpush2.bf16.msra.mxu0 %v2738
    %3071 = vmatprep.subr.bf16.mxu0 %v2731
    %3072 = vmatpush2.bf16.msra.mxu0 %v2730
    %3073 = vmatprep.subr.bf16.mxu0 %v2723
    %3074 = vmatpush2.bf16.msra.mxu0 %v2722
    %3075 = vmatprep.subr.bf16.mxu0 %v2715
    %3076 = vmatpush2.bf16.msra.mxu0 %v2714
    %3077 = vmatprep.subr.bf16.mxu0 %v2707
    %3078 = vmatpush2.bf16.msra.mxu0 %v2706
    %3079 = vmatprep.subr.bf16.mxu0 %v2699
    %3080 = vmatpush2.bf16.msra.mxu0 %v2698
    %3081 = vmatprep.subr.bf16.mxu0 %v2691
    %3082 = vmatpush2.bf16.msra.mxu0 %v2690
    %3083 = vmatprep.mubr.bf16.mxu0 %v1431
    %3084 = vmatmul.mubr.bf16.gmra.mxu0 %v1430
    %v3085 = vpop.f32.mrf.mxu0
    %v3086 = vadd.f32 %v3045, %v3085
    %v3087 = vpop.f32.mrf.mxu0
    %v3088 = vadd.f32 %v3047, %v3087
    %v3089 = vpop.f32.mrf.mxu0
    %v3090 = vpop.f32.mrf.mxu0
    %3091 = vdwg.mxu0
    %3092 = vmatprep.subr.bf16.mxu0 %v2557
    %3093 = vmatpush1.bf16.msra.mxu0 %v2556
    %3094 = vmatprep.subr.bf16.mxu0 %v2549
    %3095 = vmatpush1.bf16.msra.mxu0 %v2548
    %3096 = vmatprep.subr.bf16.mxu0 %v2541
    %3097 = vmatpush1.bf16.msra.mxu0 %v2540
    %3098 = vmatprep.subr.bf16.mxu0 %v2533
    %3099 = vmatpush1.bf16.msra.mxu0 %v2532
    %3100 = vmatprep.subr.bf16.mxu0 %v2525
    %3101 = vmatpush1.bf16.msra.mxu0 %v2524
    %3102 = vmatprep.subr.bf16.mxu0 %v2517
    %3103 = vmatpush1.bf16.msra.mxu0 %v2516
    %3104 = vmatprep.subr.bf16.mxu0 %v2509
    %3105 = vmatpush1.bf16.msra.mxu0 %v2508
    %3106 = vmatprep.subr.bf16.mxu0 %v2501
    %3107 = vmatpush1.bf16.msra.mxu0 %v2500
    %3108 = vmatprep.subr.bf16.mxu0 %v2621
    %3109 = vmatpush2.bf16.msra.mxu0 %v2620
    %3110 = vmatprep.subr.bf16.mxu0 %v2613
    %3111 = vmatpush2.bf16.msra.mxu0 %v2612
    %3112 = vmatprep.subr.bf16.mxu0 %v2605
    %3113 = vmatpush2.bf16.msra.mxu0 %v2604
    %3114 = vmatprep.subr.bf16.mxu0 %v2597
    %3115 = vmatpush2.bf16.msra.mxu0 %v2596
    %3116 = vmatprep.subr.bf16.mxu0 %v2589
    %3117 = vmatpush2.bf16.msra.mxu0 %v2588
    %3118 = vmatprep.subr.bf16.mxu0 %v2581
    %3119 = vmatpush2.bf16.msra.mxu0 %v2580
    %3120 = vmatprep.subr.bf16.mxu0 %v2573
    %3121 = vmatpush2.bf16.msra.mxu0 %v2572
    %3122 = vmatprep.subr.bf16.mxu0 %v2565
    %3123 = vmatpush2.bf16.msra.mxu0 %v2564
    %3124 = vmatprep.mubr.bf16.mxu0 %v1429
    %3125 = vmatmul.mubr.bf16.gmra.mxu0 %v1428
    %v3126 = vpop.f32.mrf.mxu0
    %v3127 = vadd.f32 %v1701, %v3126
    %v3128 = vpop.f32.mrf.mxu0
    %v3129 = vadd.f32 %v1705, %v3128
    %v3130 = vpop.f32.mrf.mxu0
    %v3131 = vpop.f32.mrf.mxu0
    %3132 = vdwg.mxu0
    %3133 = vmatprep.subr.bf16.mxu0 %v2685
    %3134 = vmatpush1.bf16.msra.mxu0 %v2684
    %3135 = vmatprep.subr.bf16.mxu0 %v2677
    %3136 = vmatpush1.bf16.msra.mxu0 %v2676
    %3137 = vmatprep.subr.bf16.mxu0 %v2669
    %3138 = vmatpush1.bf16.msra.mxu0 %v2668
    %3139 = vmatprep.subr.bf16.mxu0 %v2661
    %3140 = vmatpush1.bf16.msra.mxu0 %v2660
    %3141 = vmatprep.subr.bf16.mxu0 %v2653
    %3142 = vmatpush1.bf16.msra.mxu0 %v2652
    %3143 = vmatprep.subr.bf16.mxu0 %v2645
    %3144 = vmatpush1.bf16.msra.mxu0 %v2644
    %3145 = vmatprep.subr.bf16.mxu0 %v2637
    %3146 = vmatpush1.bf16.msra.mxu0 %v2636
    %3147 = vmatprep.subr.bf16.mxu0 %v2629
    %3148 = vmatpush1.bf16.msra.mxu0 %v2628
    %3149 = vmatprep.subr.bf16.mxu0 %v2749
    %3150 = vmatpush2.bf16.msra.mxu0 %v2748
    %3151 = vmatprep.subr.bf16.mxu0 %v2741
    %3152 = vmatpush2.bf16.msra.mxu0 %v2740
    %3153 = vmatprep.subr.bf16.mxu0 %v2733
    %3154 = vmatpush2.bf16.msra.mxu0 %v2732
    %3155 = vmatprep.subr.bf16.mxu0 %v2725
    %3156 = vmatpush2.bf16.msra.mxu0 %v2724
    %3157 = vmatprep.subr.bf16.mxu0 %v2717
    %3158 = vmatpush2.bf16.msra.mxu0 %v2716
    %3159 = vmatprep.subr.bf16.mxu0 %v2709
    %3160 = vmatpush2.bf16.msra.mxu0 %v2708
    %3161 = vmatprep.subr.bf16.mxu0 %v2701
    %3162 = vmatpush2.bf16.msra.mxu0 %v2700
    %3163 = vmatprep.subr.bf16.mxu0 %v2693
    %3164 = vmatpush2.bf16.msra.mxu0 %v2692
    %3165 = vmatprep.mubr.bf16.mxu0 %v1431
    %3166 = vmatmul.mubr.bf16.gmra.mxu0 %v1430
    %v3167 = vpop.f32.mrf.mxu0
    %v3168 = vadd.f32 %v3127, %v3167
    %v3169 = vpop.f32.mrf.mxu0
    %v3170 = vadd.f32 %v3129, %v3169
    %v3171 = vpop.f32.mrf.mxu0
    %v3172 = vpop.f32.mrf.mxu0
    %3173 = vdwg.mxu0
    %3174 = vmatprep.subr.bf16.mxu0 %v2559
    %3175 = vmatpush1.bf16.msra.mxu0 %v2558
    %3176 = vmatprep.subr.bf16.mxu0 %v2551
    %3177 = vmatpush1.bf16.msra.mxu0 %v2550
    %3178 = vmatprep.subr.bf16.mxu0 %v2543
    %3179 = vmatpush1.bf16.msra.mxu0 %v2542
    %3180 = vmatprep.subr.bf16.mxu0 %v2535
    %3181 = vmatpush1.bf16.msra.mxu0 %v2534
    %3182 = vmatprep.subr.bf16.mxu0 %v2527
    %3183 = vmatpush1.bf16.msra.mxu0 %v2526
    %3184 = vmatprep.subr.bf16.mxu0 %v2519
    %3185 = vmatpush1.bf16.msra.mxu0 %v2518
    %3186 = vmatprep.subr.bf16.mxu0 %v2511
    %3187 = vmatpush1.bf16.msra.mxu0 %v2510
    %3188 = vmatprep.subr.bf16.mxu0 %v2503
    %3189 = vmatpush1.bf16.msra.mxu0 %v2502
    %3190 = vmatprep.subr.bf16.mxu0 %v2623
    %3191 = vmatpush2.bf16.msra.mxu0 %v2622
    %3192 = vmatprep.subr.bf16.mxu0 %v2615
    %3193 = vmatpush2.bf16.msra.mxu0 %v2614
    %3194 = vmatprep.subr.bf16.mxu0 %v2607
    %3195 = vmatpush2.bf16.msra.mxu0 %v2606
    %3196 = vmatprep.subr.bf16.mxu0 %v2599
    %3197 = vmatpush2.bf16.msra.mxu0 %v2598
    %3198 = vmatprep.subr.bf16.mxu0 %v2591
    %3199 = vmatpush2.bf16.msra.mxu0 %v2590
    %3200 = vmatprep.subr.bf16.mxu0 %v2583
    %3201 = vmatpush2.bf16.msra.mxu0 %v2582
    %3202 = vmatprep.subr.bf16.mxu0 %v2575
    %3203 = vmatpush2.bf16.msra.mxu0 %v2574
    %3204 = vmatprep.subr.bf16.mxu0 %v2567
    %3205 = vmatpush2.bf16.msra.mxu0 %v2566
    %3206 = vmatprep.mubr.bf16.mxu0 %v1429
    %3207 = vmatmul.mubr.bf16.gmra.mxu0 %v1428
    %v3208 = vpop.f32.mrf.mxu0
    %v3209 = vadd.f32 %v1709, %v3208
    %v3210 = vpop.f32.mrf.mxu0
    %v3211 = vadd.f32 %v1713, %v3210
    %v3212 = vpop.f32.mrf.mxu0
    %v3213 = vpop.f32.mrf.mxu0
    %3214 = vdwg.mxu0
    %3215 = vmatprep.subr.bf16.mxu0 %v2687
    %3216 = vmatpush1.bf16.msra.mxu0 %v2686
    %3217 = vmatprep.subr.bf16.mxu0 %v2679
    %3218 = vmatpush1.bf16.msra.mxu0 %v2678
    %3219 = vmatprep.subr.bf16.mxu0 %v2671
    %3220 = vmatpush1.bf16.msra.mxu0 %v2670
    %3221 = vmatprep.subr.bf16.mxu0 %v2663
    %3222 = vmatpush1.bf16.msra.mxu0 %v2662
    %3223 = vmatprep.subr.bf16.mxu0 %v2655
    %3224 = vmatpush1.bf16.msra.mxu0 %v2654
    %3225 = vmatprep.subr.bf16.mxu0 %v2647
    %3226 = vmatpush1.bf16.msra.mxu0 %v2646
    %3227 = vmatprep.subr.bf16.mxu0 %v2639
    %3228 = vmatpush1.bf16.msra.mxu0 %v2638
    %3229 = vmatprep.subr.bf16.mxu0 %v2631
    %3230 = vmatpush1.bf16.msra.mxu0 %v2630
    %3231 = vmatprep.subr.bf16.mxu0 %v2751
    %3232 = vmatpush2.bf16.msra.mxu0 %v2750
    %3233 = vmatprep.subr.bf16.mxu0 %v2743
    %3234 = vmatpush2.bf16.msra.mxu0 %v2742
    %3235 = vmatprep.subr.bf16.mxu0 %v2735
    %3236 = vmatpush2.bf16.msra.mxu0 %v2734
    %3237 = vmatprep.subr.bf16.mxu0 %v2727
    %3238 = vmatpush2.bf16.msra.mxu0 %v2726
    %3239 = vmatprep.subr.bf16.mxu0 %v2719
    %3240 = vmatpush2.bf16.msra.mxu0 %v2718
    %3241 = vmatprep.subr.bf16.mxu0 %v2711
    %3242 = vmatpush2.bf16.msra.mxu0 %v2710
    %3243 = vmatprep.subr.bf16.mxu0 %v2703
    %3244 = vmatpush2.bf16.msra.mxu0 %v2702
    %3245 = vmatprep.subr.bf16.mxu0 %v2695
    %3246 = vmatpush2.bf16.msra.mxu0 %v2694
    %3247 = vmatprep.mubr.bf16.mxu0 %v1431
    %3248 = vmatmul.mubr.bf16.gmra.mxu0 %v1430
    %v3249 = vpop.f32.mrf.mxu0
    %v3250 = vadd.f32 %v3209, %v3249
    %v3251 = vpop.f32.mrf.mxu0
    %v3252 = vadd.f32 %v3211, %v3251
    %v3253 = vpop.f32.mrf.mxu0
    %v3254 = vpop.f32.mrf.mxu0
    %3255 = vdwg.mxu0
    %3256 = vmatprep.subr.bf16.mxu0 %v2561
    %3257 = vmatpush1.bf16.msra.mxu0 %v2560
    %3258 = vmatprep.subr.bf16.mxu0 %v2553
    %3259 = vmatpush1.bf16.msra.mxu0 %v2552
    %3260 = vmatprep.subr.bf16.mxu0 %v2545
    %3261 = vmatpush1.bf16.msra.mxu0 %v2544
    %3262 = vmatprep.subr.bf16.mxu0 %v2537
    %3263 = vmatpush1.bf16.msra.mxu0 %v2536
    %3264 = vmatprep.subr.bf16.mxu0 %v2529
    %3265 = vmatpush1.bf16.msra.mxu0 %v2528
    %3266 = vmatprep.subr.bf16.mxu0 %v2521
    %3267 = vmatpush1.bf16.msra.mxu0 %v2520
    %3268 = vmatprep.subr.bf16.mxu0 %v2513
    %3269 = vmatpush1.bf16.msra.mxu0 %v2512
    %3270 = vmatprep.subr.bf16.mxu0 %v2505
    %3271 = vmatpush1.bf16.msra.mxu0 %v2504
    %3272 = vmatprep.subr.bf16.mxu0 %v2625
    %3273 = vmatpush2.bf16.msra.mxu0 %v2624
    %3274 = vmatprep.subr.bf16.mxu0 %v2617
    %3275 = vmatpush2.bf16.msra.mxu0 %v2616
    %3276 = vmatprep.subr.bf16.mxu0 %v2609
    %3277 = vmatpush2.bf16.msra.mxu0 %v2608
    %3278 = vmatprep.subr.bf16.mxu0 %v2601
    %3279 = vmatpush2.bf16.msra.mxu0 %v2600
    %3280 = vmatprep.subr.bf16.mxu0 %v2593
    %3281 = vmatpush2.bf16.msra.mxu0 %v2592
    %3282 = vmatprep.subr.bf16.mxu0 %v2585
    %3283 = vmatpush2.bf16.msra.mxu0 %v2584
    %3284 = vmatprep.subr.bf16.mxu0 %v2577
    %3285 = vmatpush2.bf16.msra.mxu0 %v2576
    %3286 = vmatprep.subr.bf16.mxu0 %v2569
    %3287 = vmatpush2.bf16.msra.mxu0 %v2568
    %3288 = vmatprep.mubr.bf16.mxu0 %v1429
    %3289 = vmatmul.mubr.bf16.gmra.mxu0 %v1428
    %v3290 = vpop.f32.mrf.mxu0
    %v3291 = vadd.f32 %v1717, %v3290
    %v3292 = vpop.f32.mrf.mxu0
    %v3293 = vadd.f32 %v1721, %v3292
    %v3294 = vpop.f32.mrf.mxu0
    %v3295 = vpop.f32.mrf.mxu0
    %3296 = vdwg.mxu0
    %3297 = vmatprep.subr.bf16.mxu0 %v2689
    %3298 = vmatpush1.bf16.msra.mxu0 %v2688
    %3299 = vmatprep.subr.bf16.mxu0 %v2681
    %3300 = vmatpush1.bf16.msra.mxu0 %v2680
    %3301 = vmatprep.subr.bf16.mxu0 %v2673
    %3302 = vmatpush1.bf16.msra.mxu0 %v2672
    %3303 = vmatprep.subr.bf16.mxu0 %v2665
    %3304 = vmatpush1.bf16.msra.mxu0 %v2664
    %3305 = vmatprep.subr.bf16.mxu0 %v2657
    %3306 = vmatpush1.bf16.msra.mxu0 %v2656
    %3307 = vmatprep.subr.bf16.mxu0 %v2649
    %3308 = vmatpush1.bf16.msra.mxu0 %v2648
    %3309 = vmatprep.subr.bf16.mxu0 %v2641
    %3310 = vmatpush1.bf16.msra.mxu0 %v2640
    %3311 = vmatprep.subr.bf16.mxu0 %v2633
    %3312 = vmatpush1.bf16.msra.mxu0 %v2632
    %3313 = vmatprep.subr.bf16.mxu0 %v2753
    %3314 = vmatpush2.bf16.msra.mxu0 %v2752
    %3315 = vmatprep.subr.bf16.mxu0 %v2745
    %3316 = vmatpush2.bf16.msra.mxu0 %v2744
    %3317 = vmatprep.subr.bf16.mxu0 %v2737
    %3318 = vmatpush2.bf16.msra.mxu0 %v2736
    %3319 = vmatprep.subr.bf16.mxu0 %v2729
    %3320 = vmatpush2.bf16.msra.mxu0 %v2728
    %3321 = vmatprep.subr.bf16.mxu0 %v2721
    %3322 = vmatpush2.bf16.msra.mxu0 %v2720
    %3323 = vmatprep.subr.bf16.mxu0 %v2713
    %3324 = vmatpush2.bf16.msra.mxu0 %v2712
    %3325 = vmatprep.subr.bf16.mxu0 %v2705
    %3326 = vmatpush2.bf16.msra.mxu0 %v2704
    %3327 = vmatprep.subr.bf16.mxu0 %v2697
    %3328 = vmatpush2.bf16.msra.mxu0 %v2696
    %3329 = vmatprep.mubr.bf16.mxu0 %v1431
    %3330 = vmatmul.mubr.bf16.gmra.mxu0 %v1430
    %v3331 = vpop.f32.mrf.mxu0
    %v3332 = vadd.f32 %v3291, %v3331
    %v3333 = vpop.f32.mrf.mxu0
    %v3334 = vadd.f32 %v3293, %v3333
    %v3335 = vpop.f32.mrf.mxu0
    %v3336 = vpop.f32.mrf.mxu0
    %3337 = vdwg.mxu0
    %v3338 = vmax.f32 %v3086, 0.0
    %v3339 = vmax.f32 %v3088, 0.0
    %v3340 = vmax.f32 %v3168, 0.0
    %v3341 = vmax.f32 %v3170, 0.0
    %v3342 = vmax.f32 %v3250, 0.0
    %v3343 = vmax.f32 %v3252, 0.0
    %v3344 = vmax.f32 %v3332, 0.0
    %v3345 = vmax.f32 %v3334, 0.0
    %v3346 = vpack.c.bf16 %v3338, %v3338
    %v3347 = vpack.c.bf16 %v3339, %v3339
    %v3348 = vpack.c.bf16 %v3340, %v3340
    %v3349 = vpack.c.bf16 %v3341, %v3341
    %v3350 = vpack.c.bf16 %v3342, %v3342
    %v3351 = vpack.c.bf16 %v3343, %v3343
    %v3352 = vpack.c.bf16 %v3344, %v3344
    %v3353 = vpack.c.bf16 %v3345, %v3345
    %v3354 = vld [vmem:[#allocation12] sm:$0xff]
    %v3355 = vld [vmem:[#allocation12 + $0x8] sm:$0xff]
    %v3356 = vld [vmem:[#allocation12 + $0x10] sm:$0xff]
    %v3357 = vld [vmem:[#allocation12 + $0x18] sm:$0xff]
    %v3358 = vld [vmem:[#allocation12 + $0x20] sm:$0xff]
    %v3359 = vld [vmem:[#allocation12 + $0x28] sm:$0xff]
    %v3360 = vld [vmem:[#allocation12 + $0x30] sm:$0xff]
    %v3361 = vld [vmem:[#allocation12 + $0x38] sm:$0xff]
    %v3362 = vld [vmem:[#allocation12 + $0x40] sm:$0xff]
    %v3363 = vld [vmem:[#allocation12 + $0x48] sm:$0xff]
    %v3364 = vld [vmem:[#allocation12 + $0x50] sm:$0xff]
    %v3365 = vld [vmem:[#allocation12 + $0x58] sm:$0xff]
    %v3366 = vld [vmem:[#allocation12 + $0x60] sm:$0xff]
    %v3367 = vld [vmem:[#allocation12 + $0x68] sm:$0xff]
    %v3368 = vld [vmem:[#allocation12 + $0x70] sm:$0xff]
    %v3369 = vld [vmem:[#allocation12 + $0x78] sm:$0xff]
    %v3370 = vld [vmem:[#allocation12 + $0x80] sm:$0xff]
    %v3371 = vld [vmem:[#allocation12 + $0x88] sm:$0xff]
    %v3372 = vld [vmem:[#allocation12 + $0x90] sm:$0xff]
    %v3373 = vld [vmem:[#allocation12 + $0x98] sm:$0xff]
    %v3374 = vld [vmem:[#allocation12 + $0xa0] sm:$0xff]
    %v3375 = vld [vmem:[#allocation12 + $0xa8] sm:$0xff]
    %v3376 = vld [vmem:[#allocation12 + $0xb0] sm:$0xff]
    %v3377 = vld [vmem:[#allocation12 + $0xb8] sm:$0xff]
    %v3378 = vld [vmem:[#allocation12 + $0xc0] sm:$0xff]
    %v3379 = vld [vmem:[#allocation12 + $0xc8] sm:$0xff]
    %v3380 = vld [vmem:[#allocation12 + $0xd0] sm:$0xff]
    %v3381 = vld [vmem:[#allocation12 + $0xd8] sm:$0xff]
    %v3382 = vld [vmem:[#allocation12 + $0xe0] sm:$0xff]
    %v3383 = vld [vmem:[#allocation12 + $0xe8] sm:$0xff]
    %v3384 = vld [vmem:[#allocation12 + $0xf0] sm:$0xff]
    %v3385 = vld [vmem:[#allocation12 + $0xf8] sm:$0xff]
    %v3386 = vld [vmem:[#allocation12 + $0x100] sm:$0xff]
    %v3387 = vld [vmem:[#allocation12 + $0x108] sm:$0xff]
    %v3388 = vld [vmem:[#allocation12 + $0x110] sm:$0xff]
    %v3389 = vld [vmem:[#allocation12 + $0x118] sm:$0xff]
    %v3390 = vld [vmem:[#allocation12 + $0x120] sm:$0xff]
    %v3391 = vld [vmem:[#allocation12 + $0x128] sm:$0xff]
    %v3392 = vld [vmem:[#allocation12 + $0x130] sm:$0xff]
    %v3393 = vld [vmem:[#allocation12 + $0x138] sm:$0xff]
    %v3394 = vld [vmem:[#allocation12 + $0x140] sm:$0xff]
    %v3395 = vld [vmem:[#allocation12 + $0x148] sm:$0xff]
    %v3396 = vld [vmem:[#allocation12 + $0x150] sm:$0xff]
    %v3397 = vld [vmem:[#allocation12 + $0x158] sm:$0xff]
    %v3398 = vld [vmem:[#allocation12 + $0x160] sm:$0xff]
    %v3399 = vld [vmem:[#allocation12 + $0x168] sm:$0xff]
    %v3400 = vld [vmem:[#allocation12 + $0x170] sm:$0xff]
    %v3401 = vld [vmem:[#allocation12 + $0x178] sm:$0xff]
    %v3402 = vld [vmem:[#allocation12 + $0x180] sm:$0xff]
    %v3403 = vld [vmem:[#allocation12 + $0x188] sm:$0xff]
    %v3404 = vld [vmem:[#allocation12 + $0x190] sm:$0xff]
    %v3405 = vld [vmem:[#allocation12 + $0x198] sm:$0xff]
    %v3406 = vld [vmem:[#allocation12 + $0x1a0] sm:$0xff]
    %v3407 = vld [vmem:[#allocation12 + $0x1a8] sm:$0xff]
    %v3408 = vld [vmem:[#allocation12 + $0x1b0] sm:$0xff]
    %v3409 = vld [vmem:[#allocation12 + $0x1b8] sm:$0xff]
    %v3410 = vld [vmem:[#allocation12 + $0x1c0] sm:$0xff]
    %v3411 = vld [vmem:[#allocation12 + $0x1c8] sm:$0xff]
    %v3412 = vld [vmem:[#allocation12 + $0x1d0] sm:$0xff]
    %v3413 = vld [vmem:[#allocation12 + $0x1d8] sm:$0xff]
    %v3414 = vld [vmem:[#allocation12 + $0x1e0] sm:$0xff]
    %v3415 = vld [vmem:[#allocation12 + $0x1e8] sm:$0xff]
    %v3416 = vld [vmem:[#allocation12 + $0x1f0] sm:$0xff]
    %v3417 = vld [vmem:[#allocation12 + $0x1f8] sm:$0xff]
    %v3418 = vld [vmem:[#allocation12 + $0x200] sm:$0xff]
    %v3419 = vld [vmem:[#allocation12 + $0x208] sm:$0xff]
    %v3420 = vld [vmem:[#allocation12 + $0x210] sm:$0xff]
    %v3421 = vld [vmem:[#allocation12 + $0x218] sm:$0xff]
    %v3422 = vld [vmem:[#allocation12 + $0x220] sm:$0xff]
    %v3423 = vld [vmem:[#allocation12 + $0x228] sm:$0xff]
    %v3424 = vld [vmem:[#allocation12 + $0x230] sm:$0xff]
    %v3425 = vld [vmem:[#allocation12 + $0x238] sm:$0xff]
    %v3426 = vld [vmem:[#allocation12 + $0x240] sm:$0xff]
    %v3427 = vld [vmem:[#allocation12 + $0x248] sm:$0xff]
    %v3428 = vld [vmem:[#allocation12 + $0x250] sm:$0xff]
    %v3429 = vld [vmem:[#allocation12 + $0x258] sm:$0xff]
    %v3430 = vld [vmem:[#allocation12 + $0x260] sm:$0xff]
    %v3431 = vld [vmem:[#allocation12 + $0x268] sm:$0xff]
    %v3432 = vld [vmem:[#allocation12 + $0x270] sm:$0xff]
    %v3433 = vld [vmem:[#allocation12 + $0x278] sm:$0xff]
    %v3434 = vld [vmem:[#allocation12 + $0x280] sm:$0xff]
    %v3435 = vld [vmem:[#allocation12 + $0x288] sm:$0xff]
    %v3436 = vld [vmem:[#allocation12 + $0x290] sm:$0xff]
    %v3437 = vld [vmem:[#allocation12 + $0x298] sm:$0xff]
    %v3438 = vld [vmem:[#allocation12 + $0x2a0] sm:$0xff]
    %v3439 = vld [vmem:[#allocation12 + $0x2a8] sm:$0xff]
    %v3440 = vld [vmem:[#allocation12 + $0x2b0] sm:$0xff]
    %v3441 = vld [vmem:[#allocation12 + $0x2b8] sm:$0xff]
    %v3442 = vld [vmem:[#allocation12 + $0x2c0] sm:$0xff]
    %v3443 = vld [vmem:[#allocation12 + $0x2c8] sm:$0xff]
    %v3444 = vld [vmem:[#allocation12 + $0x2d0] sm:$0xff]
    %v3445 = vld [vmem:[#allocation12 + $0x2d8] sm:$0xff]
    %v3446 = vld [vmem:[#allocation12 + $0x2e0] sm:$0xff]
    %v3447 = vld [vmem:[#allocation12 + $0x2e8] sm:$0xff]
    %v3448 = vld [vmem:[#allocation12 + $0x2f0] sm:$0xff]
    %v3449 = vld [vmem:[#allocation12 + $0x2f8] sm:$0xff]
    %v3450 = vld [vmem:[#allocation12 + $0x300] sm:$0xff]
    %v3451 = vld [vmem:[#allocation12 + $0x308] sm:$0xff]
    %v3452 = vld [vmem:[#allocation12 + $0x310] sm:$0xff]
    %v3453 = vld [vmem:[#allocation12 + $0x318] sm:$0xff]
    %v3454 = vld [vmem:[#allocation12 + $0x320] sm:$0xff]
    %v3455 = vld [vmem:[#allocation12 + $0x328] sm:$0xff]
    %v3456 = vld [vmem:[#allocation12 + $0x330] sm:$0xff]
    %v3457 = vld [vmem:[#allocation12 + $0x338] sm:$0xff]
    %v3458 = vld [vmem:[#allocation12 + $0x340] sm:$0xff]
    %v3459 = vld [vmem:[#allocation12 + $0x348] sm:$0xff]
    %v3460 = vld [vmem:[#allocation12 + $0x350] sm:$0xff]
    %v3461 = vld [vmem:[#allocation12 + $0x358] sm:$0xff]
    %v3462 = vld [vmem:[#allocation12 + $0x360] sm:$0xff]
    %v3463 = vld [vmem:[#allocation12 + $0x368] sm:$0xff]
    %v3464 = vld [vmem:[#allocation12 + $0x370] sm:$0xff]
    %v3465 = vld [vmem:[#allocation12 + $0x378] sm:$0xff]
    %v3466 = vld [vmem:[#allocation12 + $0x380] sm:$0xff]
    %v3467 = vld [vmem:[#allocation12 + $0x388] sm:$0xff]
    %v3468 = vld [vmem:[#allocation12 + $0x390] sm:$0xff]
    %v3469 = vld [vmem:[#allocation12 + $0x398] sm:$0xff]
    %v3470 = vld [vmem:[#allocation12 + $0x3a0] sm:$0xff]
    %v3471 = vld [vmem:[#allocation12 + $0x3a8] sm:$0xff]
    %v3472 = vld [vmem:[#allocation12 + $0x3b0] sm:$0xff]
    %v3473 = vld [vmem:[#allocation12 + $0x3b8] sm:$0xff]
    %v3474 = vld [vmem:[#allocation12 + $0x3c0] sm:$0xff]
    %v3475 = vld [vmem:[#allocation12 + $0x3c8] sm:$0xff]
    %v3476 = vld [vmem:[#allocation12 + $0x3d0] sm:$0xff]
    %v3477 = vld [vmem:[#allocation12 + $0x3d8] sm:$0xff]
    %v3478 = vld [vmem:[#allocation12 + $0x3e0] sm:$0xff]
    %v3479 = vld [vmem:[#allocation12 + $0x3e8] sm:$0xff]
    %v3480 = vld [vmem:[#allocation12 + $0x3f0] sm:$0xff]
    %v3481 = vld [vmem:[#allocation12 + $0x3f8] sm:$0xff]
    %v3482 = vld [vmem:[#allocation12 + $0x400] sm:$0xff]
    %v3483 = vld [vmem:[#allocation12 + $0x408] sm:$0xff]
    %v3484 = vld [vmem:[#allocation12 + $0x410] sm:$0xff]
    %v3485 = vld [vmem:[#allocation12 + $0x418] sm:$0xff]
    %v3486 = vld [vmem:[#allocation12 + $0x420] sm:$0xff]
    %v3487 = vld [vmem:[#allocation12 + $0x428] sm:$0xff]
    %v3488 = vld [vmem:[#allocation12 + $0x430] sm:$0xff]
    %v3489 = vld [vmem:[#allocation12 + $0x438] sm:$0xff]
    %v3490 = vld [vmem:[#allocation12 + $0x440] sm:$0xff]
    %v3491 = vld [vmem:[#allocation12 + $0x448] sm:$0xff]
    %v3492 = vld [vmem:[#allocation12 + $0x450] sm:$0xff]
    %v3493 = vld [vmem:[#allocation12 + $0x458] sm:$0xff]
    %v3494 = vld [vmem:[#allocation12 + $0x460] sm:$0xff]
    %v3495 = vld [vmem:[#allocation12 + $0x468] sm:$0xff]
    %v3496 = vld [vmem:[#allocation12 + $0x470] sm:$0xff]
    %v3497 = vld [vmem:[#allocation12 + $0x478] sm:$0xff]
    %v3498 = vld [vmem:[#allocation12 + $0x480] sm:$0xff]
    %v3499 = vld [vmem:[#allocation12 + $0x488] sm:$0xff]
    %v3500 = vld [vmem:[#allocation12 + $0x490] sm:$0xff]
    %v3501 = vld [vmem:[#allocation12 + $0x498] sm:$0xff]
    %v3502 = vld [vmem:[#allocation12 + $0x4a0] sm:$0xff]
    %v3503 = vld [vmem:[#allocation12 + $0x4a8] sm:$0xff]
    %v3504 = vld [vmem:[#allocation12 + $0x4b0] sm:$0xff]
    %v3505 = vld [vmem:[#allocation12 + $0x4b8] sm:$0xff]
    %v3506 = vld [vmem:[#allocation12 + $0x4c0] sm:$0xff]
    %v3507 = vld [vmem:[#allocation12 + $0x4c8] sm:$0xff]
    %v3508 = vld [vmem:[#allocation12 + $0x4d0] sm:$0xff]
    %v3509 = vld [vmem:[#allocation12 + $0x4d8] sm:$0xff]
    %v3510 = vld [vmem:[#allocation12 + $0x4e0] sm:$0xff]
    %v3511 = vld [vmem:[#allocation12 + $0x4e8] sm:$0xff]
    %v3512 = vld [vmem:[#allocation12 + $0x4f0] sm:$0xff]
    %v3513 = vld [vmem:[#allocation12 + $0x4f8] sm:$0xff]
    %v3514 = vld [vmem:[#allocation12 + $0x500] sm:$0xff]
    %v3515 = vld [vmem:[#allocation12 + $0x508] sm:$0xff]
    %v3516 = vld [vmem:[#allocation12 + $0x510] sm:$0xff]
    %v3517 = vld [vmem:[#allocation12 + $0x518] sm:$0xff]
    %v3518 = vld [vmem:[#allocation12 + $0x520] sm:$0xff]
    %v3519 = vld [vmem:[#allocation12 + $0x528] sm:$0xff]
    %v3520 = vld [vmem:[#allocation12 + $0x530] sm:$0xff]
    %v3521 = vld [vmem:[#allocation12 + $0x538] sm:$0xff]
    %v3522 = vld [vmem:[#allocation12 + $0x540] sm:$0xff]
    %v3523 = vld [vmem:[#allocation12 + $0x548] sm:$0xff]
    %v3524 = vld [vmem:[#allocation12 + $0x550] sm:$0xff]
    %v3525 = vld [vmem:[#allocation12 + $0x558] sm:$0xff]
    %v3526 = vld [vmem:[#allocation12 + $0x560] sm:$0xff]
    %v3527 = vld [vmem:[#allocation12 + $0x568] sm:$0xff]
    %v3528 = vld [vmem:[#allocation12 + $0x570] sm:$0xff]
    %v3529 = vld [vmem:[#allocation12 + $0x578] sm:$0xff]
    %v3530 = vld [vmem:[#allocation12 + $0x580] sm:$0xff]
    %v3531 = vld [vmem:[#allocation12 + $0x588] sm:$0xff]
    %v3532 = vld [vmem:[#allocation12 + $0x590] sm:$0xff]
    %v3533 = vld [vmem:[#allocation12 + $0x598] sm:$0xff]
    %v3534 = vld [vmem:[#allocation12 + $0x5a0] sm:$0xff]
    %v3535 = vld [vmem:[#allocation12 + $0x5a8] sm:$0xff]
    %v3536 = vld [vmem:[#allocation12 + $0x5b0] sm:$0xff]
    %v3537 = vld [vmem:[#allocation12 + $0x5b8] sm:$0xff]
    %v3538 = vld [vmem:[#allocation12 + $0x5c0] sm:$0xff]
    %v3539 = vld [vmem:[#allocation12 + $0x5c8] sm:$0xff]
    %v3540 = vld [vmem:[#allocation12 + $0x5d0] sm:$0xff]
    %v3541 = vld [vmem:[#allocation12 + $0x5d8] sm:$0xff]
    %v3542 = vld [vmem:[#allocation12 + $0x5e0] sm:$0xff]
    %v3543 = vld [vmem:[#allocation12 + $0x5e8] sm:$0xff]
    %v3544 = vld [vmem:[#allocation12 + $0x5f0] sm:$0xff]
    %v3545 = vld [vmem:[#allocation12 + $0x5f8] sm:$0xff]
    %v3546 = vld [vmem:[#allocation12 + $0x600] sm:$0xff]
    %v3547 = vld [vmem:[#allocation12 + $0x608] sm:$0xff]
    %v3548 = vld [vmem:[#allocation12 + $0x610] sm:$0xff]
    %v3549 = vld [vmem:[#allocation12 + $0x618] sm:$0xff]
    %v3550 = vld [vmem:[#allocation12 + $0x620] sm:$0xff]
    %v3551 = vld [vmem:[#allocation12 + $0x628] sm:$0xff]
    %v3552 = vld [vmem:[#allocation12 + $0x630] sm:$0xff]
    %v3553 = vld [vmem:[#allocation12 + $0x638] sm:$0xff]
    %v3554 = vld [vmem:[#allocation12 + $0x640] sm:$0xff]
    %v3555 = vld [vmem:[#allocation12 + $0x648] sm:$0xff]
    %v3556 = vld [vmem:[#allocation12 + $0x650] sm:$0xff]
    %v3557 = vld [vmem:[#allocation12 + $0x658] sm:$0xff]
    %v3558 = vld [vmem:[#allocation12 + $0x660] sm:$0xff]
    %v3559 = vld [vmem:[#allocation12 + $0x668] sm:$0xff]
    %v3560 = vld [vmem:[#allocation12 + $0x670] sm:$0xff]
    %v3561 = vld [vmem:[#allocation12 + $0x678] sm:$0xff]
    %v3562 = vld [vmem:[#allocation12 + $0x680] sm:$0xff]
    %v3563 = vld [vmem:[#allocation12 + $0x688] sm:$0xff]
    %v3564 = vld [vmem:[#allocation12 + $0x690] sm:$0xff]
    %v3565 = vld [vmem:[#allocation12 + $0x698] sm:$0xff]
    %v3566 = vld [vmem:[#allocation12 + $0x6a0] sm:$0xff]
    %v3567 = vld [vmem:[#allocation12 + $0x6a8] sm:$0xff]
    %v3568 = vld [vmem:[#allocation12 + $0x6b0] sm:$0xff]
    %v3569 = vld [vmem:[#allocation12 + $0x6b8] sm:$0xff]
    %v3570 = vld [vmem:[#allocation12 + $0x6c0] sm:$0xff]
    %v3571 = vld [vmem:[#allocation12 + $0x6c8] sm:$0xff]
    %v3572 = vld [vmem:[#allocation12 + $0x6d0] sm:$0xff]
    %v3573 = vld [vmem:[#allocation12 + $0x6d8] sm:$0xff]
    %v3574 = vld [vmem:[#allocation12 + $0x6e0] sm:$0xff]
    %v3575 = vld [vmem:[#allocation12 + $0x6e8] sm:$0xff]
    %v3576 = vld [vmem:[#allocation12 + $0x6f0] sm:$0xff]
    %v3577 = vld [vmem:[#allocation12 + $0x6f8] sm:$0xff]
    %v3578 = vld [vmem:[#allocation12 + $0x700] sm:$0xff]
    %v3579 = vld [vmem:[#allocation12 + $0x708] sm:$0xff]
    %v3580 = vld [vmem:[#allocation12 + $0x710] sm:$0xff]
    %v3581 = vld [vmem:[#allocation12 + $0x718] sm:$0xff]
    %v3582 = vld [vmem:[#allocation12 + $0x720] sm:$0xff]
    %v3583 = vld [vmem:[#allocation12 + $0x728] sm:$0xff]
    %v3584 = vld [vmem:[#allocation12 + $0x730] sm:$0xff]
    %v3585 = vld [vmem:[#allocation12 + $0x738] sm:$0xff]
    %v3586 = vld [vmem:[#allocation12 + $0x740] sm:$0xff]
    %v3587 = vld [vmem:[#allocation12 + $0x748] sm:$0xff]
    %v3588 = vld [vmem:[#allocation12 + $0x750] sm:$0xff]
    %v3589 = vld [vmem:[#allocation12 + $0x758] sm:$0xff]
    %v3590 = vld [vmem:[#allocation12 + $0x760] sm:$0xff]
    %v3591 = vld [vmem:[#allocation12 + $0x768] sm:$0xff]
    %v3592 = vld [vmem:[#allocation12 + $0x770] sm:$0xff]
    %v3593 = vld [vmem:[#allocation12 + $0x778] sm:$0xff]
    %v3594 = vld [vmem:[#allocation12 + $0x780] sm:$0xff]
    %v3595 = vld [vmem:[#allocation12 + $0x788] sm:$0xff]
    %v3596 = vld [vmem:[#allocation12 + $0x790] sm:$0xff]
    %v3597 = vld [vmem:[#allocation12 + $0x798] sm:$0xff]
    %v3598 = vld [vmem:[#allocation12 + $0x7a0] sm:$0xff]
    %v3599 = vld [vmem:[#allocation12 + $0x7a8] sm:$0xff]
    %v3600 = vld [vmem:[#allocation12 + $0x7b0] sm:$0xff]
    %v3601 = vld [vmem:[#allocation12 + $0x7b8] sm:$0xff]
    %v3602 = vld [vmem:[#allocation12 + $0x7c0] sm:$0xff]
    %v3603 = vld [vmem:[#allocation12 + $0x7c8] sm:$0xff]
    %v3604 = vld [vmem:[#allocation12 + $0x7d0] sm:$0xff]
    %v3605 = vld [vmem:[#allocation12 + $0x7d8] sm:$0xff]
    %v3606 = vld [vmem:[#allocation12 + $0x7e0] sm:$0xff]
    %v3607 = vld [vmem:[#allocation12 + $0x7e8] sm:$0xff]
    %v3608 = vld [vmem:[#allocation12 + $0x7f0] sm:$0xff]
    %v3609 = vld [vmem:[#allocation12 + $0x7f8] sm:$0xff]
    %v3610 = vld [vmem:[#allocation12 + $0x800] sm:$0xff]
    %v3611 = vld [vmem:[#allocation12 + $0x808] sm:$0xff]
    %v3612 = vld [vmem:[#allocation12 + $0x810] sm:$0xff]
    %v3613 = vld [vmem:[#allocation12 + $0x818] sm:$0xff]
    %v3614 = vld [vmem:[#allocation12 + $0x820] sm:$0xff]
    %v3615 = vld [vmem:[#allocation12 + $0x828] sm:$0xff]
    %v3616 = vld [vmem:[#allocation12 + $0x830] sm:$0xff]
    %v3617 = vld [vmem:[#allocation12 + $0x838] sm:$0xff]
    %v3618 = vld [vmem:[#allocation12 + $0x840] sm:$0xff]
    %v3619 = vld [vmem:[#allocation12 + $0x848] sm:$0xff]
    %v3620 = vld [vmem:[#allocation12 + $0x850] sm:$0xff]
    %v3621 = vld [vmem:[#allocation12 + $0x858] sm:$0xff]
    %v3622 = vld [vmem:[#allocation12 + $0x860] sm:$0xff]
    %v3623 = vld [vmem:[#allocation12 + $0x868] sm:$0xff]
    %v3624 = vld [vmem:[#allocation12 + $0x870] sm:$0xff]
    %v3625 = vld [vmem:[#allocation12 + $0x878] sm:$0xff]
    %v3626 = vld [vmem:[#allocation12 + $0x880] sm:$0xff]
    %v3627 = vld [vmem:[#allocation12 + $0x888] sm:$0xff]
    %v3628 = vld [vmem:[#allocation12 + $0x890] sm:$0xff]
    %v3629 = vld [vmem:[#allocation12 + $0x898] sm:$0xff]
    %v3630 = vld [vmem:[#allocation12 + $0x8a0] sm:$0xff]
    %v3631 = vld [vmem:[#allocation12 + $0x8a8] sm:$0xff]
    %v3632 = vld [vmem:[#allocation12 + $0x8b0] sm:$0xff]
    %v3633 = vld [vmem:[#allocation12 + $0x8b8] sm:$0xff]
    %v3634 = vld [vmem:[#allocation12 + $0x8c0] sm:$0xff]
    %v3635 = vld [vmem:[#allocation12 + $0x8c8] sm:$0xff]
    %v3636 = vld [vmem:[#allocation12 + $0x8d0] sm:$0xff]
    %v3637 = vld [vmem:[#allocation12 + $0x8d8] sm:$0xff]
    %v3638 = vld [vmem:[#allocation12 + $0x8e0] sm:$0xff]
    %v3639 = vld [vmem:[#allocation12 + $0x8e8] sm:$0xff]
    %v3640 = vld [vmem:[#allocation12 + $0x8f0] sm:$0xff]
    %v3641 = vld [vmem:[#allocation12 + $0x8f8] sm:$0xff]
    %v3642 = vld [vmem:[#allocation12 + $0x900] sm:$0xff]
    %v3643 = vld [vmem:[#allocation12 + $0x908] sm:$0xff]
    %v3644 = vld [vmem:[#allocation12 + $0x910] sm:$0xff]
    %v3645 = vld [vmem:[#allocation12 + $0x918] sm:$0xff]
    %v3646 = vld [vmem:[#allocation12 + $0x920] sm:$0xff]
    %v3647 = vld [vmem:[#allocation12 + $0x928] sm:$0xff]
    %v3648 = vld [vmem:[#allocation12 + $0x930] sm:$0xff]
    %v3649 = vld [vmem:[#allocation12 + $0x938] sm:$0xff]
    %v3650 = vld [vmem:[#allocation12 + $0x940] sm:$0xff]
    %v3651 = vld [vmem:[#allocation12 + $0x948] sm:$0xff]
    %v3652 = vld [vmem:[#allocation12 + $0x950] sm:$0xff]
    %v3653 = vld [vmem:[#allocation12 + $0x958] sm:$0xff]
    %v3654 = vld [vmem:[#allocation12 + $0x960] sm:$0xff]
    %v3655 = vld [vmem:[#allocation12 + $0x968] sm:$0xff]
    %v3656 = vld [vmem:[#allocation12 + $0x970] sm:$0xff]
    %v3657 = vld [vmem:[#allocation12 + $0x978] sm:$0xff]
    %v3658 = vld [vmem:[#allocation12 + $0x980] sm:$0xff]
    %v3659 = vld [vmem:[#allocation12 + $0x988] sm:$0xff]
    %v3660 = vld [vmem:[#allocation12 + $0x990] sm:$0xff]
    %v3661 = vld [vmem:[#allocation12 + $0x998] sm:$0xff]
    %v3662 = vld [vmem:[#allocation12 + $0x9a0] sm:$0xff]
    %v3663 = vld [vmem:[#allocation12 + $0x9a8] sm:$0xff]
    %v3664 = vld [vmem:[#allocation12 + $0x9b0] sm:$0xff]
    %v3665 = vld [vmem:[#allocation12 + $0x9b8] sm:$0xff]
    %v3666 = vld [vmem:[#allocation12 + $0x9c0] sm:$0xff]
    %v3667 = vld [vmem:[#allocation12 + $0x9c8] sm:$0xff]
    %v3668 = vld [vmem:[#allocation12 + $0x9d0] sm:$0xff]
    %v3669 = vld [vmem:[#allocation12 + $0x9d8] sm:$0xff]
    %v3670 = vld [vmem:[#allocation12 + $0x9e0] sm:$0xff]
    %v3671 = vld [vmem:[#allocation12 + $0x9e8] sm:$0xff]
    %v3672 = vld [vmem:[#allocation12 + $0x9f0] sm:$0xff]
    %v3673 = vld [vmem:[#allocation12 + $0x9f8] sm:$0xff]
    %v3674 = vld [vmem:[#allocation12 + $0xa00] sm:$0xff]
    %v3675 = vld [vmem:[#allocation12 + $0xa08] sm:$0xff]
    %v3676 = vld [vmem:[#allocation12 + $0xa10] sm:$0xff]
    %v3677 = vld [vmem:[#allocation12 + $0xa18] sm:$0xff]
    %v3678 = vld [vmem:[#allocation12 + $0xa20] sm:$0xff]
    %v3679 = vld [vmem:[#allocation12 + $0xa28] sm:$0xff]
    %v3680 = vld [vmem:[#allocation12 + $0xa30] sm:$0xff]
    %v3681 = vld [vmem:[#allocation12 + $0xa38] sm:$0xff]
    %v3682 = vld [vmem:[#allocation12 + $0xa40] sm:$0xff]
    %v3683 = vld [vmem:[#allocation12 + $0xa48] sm:$0xff]
    %v3684 = vld [vmem:[#allocation12 + $0xa50] sm:$0xff]
    %v3685 = vld [vmem:[#allocation12 + $0xa58] sm:$0xff]
    %v3686 = vld [vmem:[#allocation12 + $0xa60] sm:$0xff]
    %v3687 = vld [vmem:[#allocation12 + $0xa68] sm:$0xff]
    %v3688 = vld [vmem:[#allocation12 + $0xa70] sm:$0xff]
    %v3689 = vld [vmem:[#allocation12 + $0xa78] sm:$0xff]
    %v3690 = vld [vmem:[#allocation12 + $0xa80] sm:$0xff]
    %v3691 = vld [vmem:[#allocation12 + $0xa88] sm:$0xff]
    %v3692 = vld [vmem:[#allocation12 + $0xa90] sm:$0xff]
    %v3693 = vld [vmem:[#allocation12 + $0xa98] sm:$0xff]
    %v3694 = vld [vmem:[#allocation12 + $0xaa0] sm:$0xff]
    %v3695 = vld [vmem:[#allocation12 + $0xaa8] sm:$0xff]
    %v3696 = vld [vmem:[#allocation12 + $0xab0] sm:$0xff]
    %v3697 = vld [vmem:[#allocation12 + $0xab8] sm:$0xff]
    %v3698 = vld [vmem:[#allocation12 + $0xac0] sm:$0xff]
    %v3699 = vld [vmem:[#allocation12 + $0xac8] sm:$0xff]
    %v3700 = vld [vmem:[#allocation12 + $0xad0] sm:$0xff]
    %v3701 = vld [vmem:[#allocation12 + $0xad8] sm:$0xff]
    %v3702 = vld [vmem:[#allocation12 + $0xae0] sm:$0xff]
    %v3703 = vld [vmem:[#allocation12 + $0xae8] sm:$0xff]
    %v3704 = vld [vmem:[#allocation12 + $0xaf0] sm:$0xff]
    %v3705 = vld [vmem:[#allocation12 + $0xaf8] sm:$0xff]
    %v3706 = vld [vmem:[#allocation12 + $0xb00] sm:$0xff]
    %v3707 = vld [vmem:[#allocation12 + $0xb08] sm:$0xff]
    %v3708 = vld [vmem:[#allocation12 + $0xb10] sm:$0xff]
    %v3709 = vld [vmem:[#allocation12 + $0xb18] sm:$0xff]
    %v3710 = vld [vmem:[#allocation12 + $0xb20] sm:$0xff]
    %v3711 = vld [vmem:[#allocation12 + $0xb28] sm:$0xff]
    %v3712 = vld [vmem:[#allocation12 + $0xb30] sm:$0xff]
    %v3713 = vld [vmem:[#allocation12 + $0xb38] sm:$0xff]
    %v3714 = vld [vmem:[#allocation12 + $0xb40] sm:$0xff]
    %v3715 = vld [vmem:[#allocation12 + $0xb48] sm:$0xff]
    %v3716 = vld [vmem:[#allocation12 + $0xb50] sm:$0xff]
    %v3717 = vld [vmem:[#allocation12 + $0xb58] sm:$0xff]
    %v3718 = vld [vmem:[#allocation12 + $0xb60] sm:$0xff]
    %v3719 = vld [vmem:[#allocation12 + $0xb68] sm:$0xff]
    %v3720 = vld [vmem:[#allocation12 + $0xb70] sm:$0xff]
    %v3721 = vld [vmem:[#allocation12 + $0xb78] sm:$0xff]
    %v3722 = vld [vmem:[#allocation12 + $0xb80] sm:$0xff]
    %v3723 = vld [vmem:[#allocation12 + $0xb88] sm:$0xff]
    %v3724 = vld [vmem:[#allocation12 + $0xb90] sm:$0xff]
    %v3725 = vld [vmem:[#allocation12 + $0xb98] sm:$0xff]
    %v3726 = vld [vmem:[#allocation12 + $0xba0] sm:$0xff]
    %v3727 = vld [vmem:[#allocation12 + $0xba8] sm:$0xff]
    %v3728 = vld [vmem:[#allocation12 + $0xbb0] sm:$0xff]
    %v3729 = vld [vmem:[#allocation12 + $0xbb8] sm:$0xff]
    %v3730 = vld [vmem:[#allocation12 + $0xbc0] sm:$0xff]
    %v3731 = vld [vmem:[#allocation12 + $0xbc8] sm:$0xff]
    %v3732 = vld [vmem:[#allocation12 + $0xbd0] sm:$0xff]
    %v3733 = vld [vmem:[#allocation12 + $0xbd8] sm:$0xff]
    %v3734 = vld [vmem:[#allocation12 + $0xbe0] sm:$0xff]
    %v3735 = vld [vmem:[#allocation12 + $0xbe8] sm:$0xff]
    %v3736 = vld [vmem:[#allocation12 + $0xbf0] sm:$0xff]
    %v3737 = vld [vmem:[#allocation12 + $0xbf8] sm:$0xff]
    %v3738 = vld [vmem:[#allocation12 + $0xc00] sm:$0xff]
    %v3739 = vld [vmem:[#allocation12 + $0xc08] sm:$0xff]
    %v3740 = vld [vmem:[#allocation12 + $0xc10] sm:$0xff]
    %v3741 = vld [vmem:[#allocation12 + $0xc18] sm:$0xff]
    %v3742 = vld [vmem:[#allocation12 + $0xc20] sm:$0xff]
    %v3743 = vld [vmem:[#allocation12 + $0xc28] sm:$0xff]
    %v3744 = vld [vmem:[#allocation12 + $0xc30] sm:$0xff]
    %v3745 = vld [vmem:[#allocation12 + $0xc38] sm:$0xff]
    %v3746 = vld [vmem:[#allocation12 + $0xc40] sm:$0xff]
    %v3747 = vld [vmem:[#allocation12 + $0xc48] sm:$0xff]
    %v3748 = vld [vmem:[#allocation12 + $0xc50] sm:$0xff]
    %v3749 = vld [vmem:[#allocation12 + $0xc58] sm:$0xff]
    %v3750 = vld [vmem:[#allocation12 + $0xc60] sm:$0xff]
    %v3751 = vld [vmem:[#allocation12 + $0xc68] sm:$0xff]
    %v3752 = vld [vmem:[#allocation12 + $0xc70] sm:$0xff]
    %v3753 = vld [vmem:[#allocation12 + $0xc78] sm:$0xff]
    %v3754 = vld [vmem:[#allocation12 + $0xc80] sm:$0xff]
    %v3755 = vld [vmem:[#allocation12 + $0xc88] sm:$0xff]
    %v3756 = vld [vmem:[#allocation12 + $0xc90] sm:$0xff]
    %v3757 = vld [vmem:[#allocation12 + $0xc98] sm:$0xff]
    %v3758 = vld [vmem:[#allocation12 + $0xca0] sm:$0xff]
    %v3759 = vld [vmem:[#allocation12 + $0xca8] sm:$0xff]
    %v3760 = vld [vmem:[#allocation12 + $0xcb0] sm:$0xff]
    %v3761 = vld [vmem:[#allocation12 + $0xcb8] sm:$0xff]
    %v3762 = vld [vmem:[#allocation12 + $0xcc0] sm:$0xff]
    %v3763 = vld [vmem:[#allocation12 + $0xcc8] sm:$0xff]
    %v3764 = vld [vmem:[#allocation12 + $0xcd0] sm:$0xff]
    %v3765 = vld [vmem:[#allocation12 + $0xcd8] sm:$0xff]
    %v3766 = vld [vmem:[#allocation12 + $0xce0] sm:$0xff]
    %v3767 = vld [vmem:[#allocation12 + $0xce8] sm:$0xff]
    %v3768 = vld [vmem:[#allocation12 + $0xcf0] sm:$0xff]
    %v3769 = vld [vmem:[#allocation12 + $0xcf8] sm:$0xff]
    %v3770 = vld [vmem:[#allocation12 + $0xd00] sm:$0xff]
    %v3771 = vld [vmem:[#allocation12 + $0xd08] sm:$0xff]
    %v3772 = vld [vmem:[#allocation12 + $0xd10] sm:$0xff]
    %v3773 = vld [vmem:[#allocation12 + $0xd18] sm:$0xff]
    %v3774 = vld [vmem:[#allocation12 + $0xd20] sm:$0xff]
    %v3775 = vld [vmem:[#allocation12 + $0xd28] sm:$0xff]
    %v3776 = vld [vmem:[#allocation12 + $0xd30] sm:$0xff]
    %v3777 = vld [vmem:[#allocation12 + $0xd38] sm:$0xff]
    %v3778 = vld [vmem:[#allocation12 + $0xd40] sm:$0xff]
    %v3779 = vld [vmem:[#allocation12 + $0xd48] sm:$0xff]
    %v3780 = vld [vmem:[#allocation12 + $0xd50] sm:$0xff]
    %v3781 = vld [vmem:[#allocation12 + $0xd58] sm:$0xff]
    %v3782 = vld [vmem:[#allocation12 + $0xd60] sm:$0xff]
    %v3783 = vld [vmem:[#allocation12 + $0xd68] sm:$0xff]
    %v3784 = vld [vmem:[#allocation12 + $0xd70] sm:$0xff]
    %v3785 = vld [vmem:[#allocation12 + $0xd78] sm:$0xff]
    %v3786 = vld [vmem:[#allocation12 + $0xd80] sm:$0xff]
    %v3787 = vld [vmem:[#allocation12 + $0xd88] sm:$0xff]
    %v3788 = vld [vmem:[#allocation12 + $0xd90] sm:$0xff]
    %v3789 = vld [vmem:[#allocation12 + $0xd98] sm:$0xff]
    %v3790 = vld [vmem:[#allocation12 + $0xda0] sm:$0xff]
    %v3791 = vld [vmem:[#allocation12 + $0xda8] sm:$0xff]
    %v3792 = vld [vmem:[#allocation12 + $0xdb0] sm:$0xff]
    %v3793 = vld [vmem:[#allocation12 + $0xdb8] sm:$0xff]
    %v3794 = vld [vmem:[#allocation12 + $0xdc0] sm:$0xff]
    %v3795 = vld [vmem:[#allocation12 + $0xdc8] sm:$0xff]
    %v3796 = vld [vmem:[#allocation12 + $0xdd0] sm:$0xff]
    %v3797 = vld [vmem:[#allocation12 + $0xdd8] sm:$0xff]
    %v3798 = vld [vmem:[#allocation12 + $0xde0] sm:$0xff]
    %v3799 = vld [vmem:[#allocation12 + $0xde8] sm:$0xff]
    %v3800 = vld [vmem:[#allocation12 + $0xdf0] sm:$0xff]
    %v3801 = vld [vmem:[#allocation12 + $0xdf8] sm:$0xff]
    %v3802 = vld [vmem:[#allocation12 + $0xe00] sm:$0xff]
    %v3803 = vld [vmem:[#allocation12 + $0xe08] sm:$0xff]
    %v3804 = vld [vmem:[#allocation12 + $0xe10] sm:$0xff]
    %v3805 = vld [vmem:[#allocation12 + $0xe18] sm:$0xff]
    %v3806 = vld [vmem:[#allocation12 + $0xe20] sm:$0xff]
    %v3807 = vld [vmem:[#allocation12 + $0xe28] sm:$0xff]
    %v3808 = vld [vmem:[#allocation12 + $0xe30] sm:$0xff]
    %v3809 = vld [vmem:[#allocation12 + $0xe38] sm:$0xff]
    %v3810 = vld [vmem:[#allocation12 + $0xe40] sm:$0xff]
    %v3811 = vld [vmem:[#allocation12 + $0xe48] sm:$0xff]
    %v3812 = vld [vmem:[#allocation12 + $0xe50] sm:$0xff]
    %v3813 = vld [vmem:[#allocation12 + $0xe58] sm:$0xff]
    %v3814 = vld [vmem:[#allocation12 + $0xe60] sm:$0xff]
    %v3815 = vld [vmem:[#allocation12 + $0xe68] sm:$0xff]
    %v3816 = vld [vmem:[#allocation12 + $0xe70] sm:$0xff]
    %v3817 = vld [vmem:[#allocation12 + $0xe78] sm:$0xff]
    %v3818 = vld [vmem:[#allocation12 + $0xe80] sm:$0xff]
    %v3819 = vld [vmem:[#allocation12 + $0xe88] sm:$0xff]
    %v3820 = vld [vmem:[#allocation12 + $0xe90] sm:$0xff]
    %v3821 = vld [vmem:[#allocation12 + $0xe98] sm:$0xff]
    %v3822 = vld [vmem:[#allocation12 + $0xea0] sm:$0xff]
    %v3823 = vld [vmem:[#allocation12 + $0xea8] sm:$0xff]
    %v3824 = vld [vmem:[#allocation12 + $0xeb0] sm:$0xff]
    %v3825 = vld [vmem:[#allocation12 + $0xeb8] sm:$0xff]
    %v3826 = vld [vmem:[#allocation12 + $0xec0] sm:$0xff]
    %v3827 = vld [vmem:[#allocation12 + $0xec8] sm:$0xff]
    %v3828 = vld [vmem:[#allocation12 + $0xed0] sm:$0xff]
    %v3829 = vld [vmem:[#allocation12 + $0xed8] sm:$0xff]
    %v3830 = vld [vmem:[#allocation12 + $0xee0] sm:$0xff]
    %v3831 = vld [vmem:[#allocation12 + $0xee8] sm:$0xff]
    %v3832 = vld [vmem:[#allocation12 + $0xef0] sm:$0xff]
    %v3833 = vld [vmem:[#allocation12 + $0xef8] sm:$0xff]
    %v3834 = vld [vmem:[#allocation12 + $0xf00] sm:$0xff]
    %v3835 = vld [vmem:[#allocation12 + $0xf08] sm:$0xff]
    %v3836 = vld [vmem:[#allocation12 + $0xf10] sm:$0xff]
    %v3837 = vld [vmem:[#allocation12 + $0xf18] sm:$0xff]
    %v3838 = vld [vmem:[#allocation12 + $0xf20] sm:$0xff]
    %v3839 = vld [vmem:[#allocation12 + $0xf28] sm:$0xff]
    %v3840 = vld [vmem:[#allocation12 + $0xf30] sm:$0xff]
    %v3841 = vld [vmem:[#allocation12 + $0xf38] sm:$0xff]
    %v3842 = vld [vmem:[#allocation12 + $0xf40] sm:$0xff]
    %v3843 = vld [vmem:[#allocation12 + $0xf48] sm:$0xff]
    %v3844 = vld [vmem:[#allocation12 + $0xf50] sm:$0xff]
    %v3845 = vld [vmem:[#allocation12 + $0xf58] sm:$0xff]
    %v3846 = vld [vmem:[#allocation12 + $0xf60] sm:$0xff]
    %v3847 = vld [vmem:[#allocation12 + $0xf68] sm:$0xff]
    %v3848 = vld [vmem:[#allocation12 + $0xf70] sm:$0xff]
    %v3849 = vld [vmem:[#allocation12 + $0xf78] sm:$0xff]
    %v3850 = vld [vmem:[#allocation12 + $0xf80] sm:$0xff]
    %v3851 = vld [vmem:[#allocation12 + $0xf88] sm:$0xff]
    %v3852 = vld [vmem:[#allocation12 + $0xf90] sm:$0xff]
    %v3853 = vld [vmem:[#allocation12 + $0xf98] sm:$0xff]
    %v3854 = vld [vmem:[#allocation12 + $0xfa0] sm:$0xff]
    %v3855 = vld [vmem:[#allocation12 + $0xfa8] sm:$0xff]
    %v3856 = vld [vmem:[#allocation12 + $0xfb0] sm:$0xff]
    %v3857 = vld [vmem:[#allocation12 + $0xfb8] sm:$0xff]
    %v3858 = vld [vmem:[#allocation12 + $0xfc0] sm:$0xff]
    %v3859 = vld [vmem:[#allocation12 + $0xfc8] sm:$0xff]
    %v3860 = vld [vmem:[#allocation12 + $0xfd0] sm:$0xff]
    %v3861 = vld [vmem:[#allocation12 + $0xfd8] sm:$0xff]
    %v3862 = vld [vmem:[#allocation12 + $0xfe0] sm:$0xff]
    %v3863 = vld [vmem:[#allocation12 + $0xfe8] sm:$0xff]
    %v3864 = vld [vmem:[#allocation12 + $0xff0] sm:$0xff]
    %v3865 = vld [vmem:[#allocation12 + $0xff8] sm:$0xff]
    %v3866 = vld [vmem:[#allocation13] sm:$0xff]
    %v3868 = vlaneseq
    %v3869 = vshrl.u32 %v3868, 7
    %v3870 = vsub.s32 0, %v3869
    %v3871 = vrot.slane %v3866, %v3870
    %v3872 = vlaneseq
    %v3873 = vshrl.u32 %v3872, 7
    %v3874 = vsub.s32 1, %v3873
    %v3875 = vrot.slane %v3866, %v3874
    %v3876 = vlaneseq
    %v3877 = vshrl.u32 %v3876, 7
    %v3878 = vsub.s32 2, %v3877
    %v3879 = vrot.slane %v3866, %v3878
    %v3880 = vlaneseq
    %v3881 = vshrl.u32 %v3880, 7
    %v3882 = vsub.s32 3, %v3881
    %v3883 = vrot.slane %v3866, %v3882
    %v3884 = vlaneseq
    %v3885 = vshrl.u32 %v3884, 7
    %v3886 = vsub.s32 4, %v3885
    %v3887 = vrot.slane %v3866, %v3886
    %v3888 = vlaneseq
    %v3889 = vshrl.u32 %v3888, 7
    %v3890 = vsub.s32 5, %v3889
    %v3891 = vrot.slane %v3866, %v3890
    %v3892 = vlaneseq
    %v3893 = vshrl.u32 %v3892, 7
    %v3894 = vsub.s32 6, %v3893
    %v3895 = vrot.slane %v3866, %v3894
    %v3896 = vlaneseq
    %v3897 = vshrl.u32 %v3896, 7
    %v3898 = vsub.s32 7, %v3897
    %v3899 = vrot.slane %v3866, %v3898
    %v4420 = vunpack.c.l.b16 %v3354
    %v4421 = vunpack.c.h.b16 %v3354
    %v4422 = vunpack.c.l.b16 %v3355
    %v4423 = vunpack.c.h.b16 %v3355
    %v4424 = vunpack.c.l.b16 %v3356
    %v4425 = vunpack.c.h.b16 %v3356
    %v4426 = vunpack.c.l.b16 %v3357
    %v4427 = vunpack.c.h.b16 %v3357
    %v4428 = vunpack.c.l.b16 %v3358
    %v4429 = vunpack.c.h.b16 %v3358
    %v4430 = vunpack.c.l.b16 %v3359
    %v4431 = vunpack.c.h.b16 %v3359
    %v4432 = vunpack.c.l.b16 %v3360
    %v4433 = vunpack.c.h.b16 %v3360
    %v4434 = vunpack.c.l.b16 %v3361
    %v4435 = vunpack.c.h.b16 %v3361
    %v4436 = vunpack.c.l.b16 %v3362
    %v4437 = vunpack.c.h.b16 %v3362
    %v4438 = vunpack.c.l.b16 %v3363
    %v4439 = vunpack.c.h.b16 %v3363
    %v4440 = vunpack.c.l.b16 %v3364
    %v4441 = vunpack.c.h.b16 %v3364
    %v4442 = vunpack.c.l.b16 %v3365
    %v4443 = vunpack.c.h.b16 %v3365
    %v4444 = vunpack.c.l.b16 %v3366
    %v4445 = vunpack.c.h.b16 %v3366
    %v4446 = vunpack.c.l.b16 %v3367
    %v4447 = vunpack.c.h.b16 %v3367
    %v4448 = vunpack.c.l.b16 %v3368
    %v4449 = vunpack.c.h.b16 %v3368
    %v4450 = vunpack.c.l.b16 %v3369
    %v4451 = vunpack.c.h.b16 %v3369
    %v4452 = vunpack.c.l.b16 %v3370
    %v4453 = vunpack.c.h.b16 %v3370
    %v4454 = vunpack.c.l.b16 %v3371
    %v4455 = vunpack.c.h.b16 %v3371
    %v4456 = vunpack.c.l.b16 %v3372
    %v4457 = vunpack.c.h.b16 %v3372
    %v4458 = vunpack.c.l.b16 %v3373
    %v4459 = vunpack.c.h.b16 %v3373
    %v4460 = vunpack.c.l.b16 %v3374
    %v4461 = vunpack.c.h.b16 %v3374
    %v4462 = vunpack.c.l.b16 %v3375
    %v4463 = vunpack.c.h.b16 %v3375
    %v4464 = vunpack.c.l.b16 %v3376
    %v4465 = vunpack.c.h.b16 %v3376
    %v4466 = vunpack.c.l.b16 %v3377
    %v4467 = vunpack.c.h.b16 %v3377
    %v4468 = vunpack.c.l.b16 %v3378
    %v4469 = vunpack.c.h.b16 %v3378
    %v4470 = vunpack.c.l.b16 %v3379
    %v4471 = vunpack.c.h.b16 %v3379
    %v4472 = vunpack.c.l.b16 %v3380
    %v4473 = vunpack.c.h.b16 %v3380
    %v4474 = vunpack.c.l.b16 %v3381
    %v4475 = vunpack.c.h.b16 %v3381
    %v4476 = vunpack.c.l.b16 %v3382
    %v4477 = vunpack.c.h.b16 %v3382
    %v4478 = vunpack.c.l.b16 %v3383
    %v4479 = vunpack.c.h.b16 %v3383
    %v4480 = vunpack.c.l.b16 %v3384
    %v4481 = vunpack.c.h.b16 %v3384
    %v4482 = vunpack.c.l.b16 %v3385
    %v4483 = vunpack.c.h.b16 %v3385
    %v4484 = vunpack.c.l.b16 %v3386
    %v4485 = vunpack.c.h.b16 %v3386
    %v4486 = vunpack.c.l.b16 %v3387
    %v4487 = vunpack.c.h.b16 %v3387
    %v4488 = vunpack.c.l.b16 %v3388
    %v4489 = vunpack.c.h.b16 %v3388
    %v4490 = vunpack.c.l.b16 %v3389
    %v4491 = vunpack.c.h.b16 %v3389
    %v4492 = vunpack.c.l.b16 %v3390
    %v4493 = vunpack.c.h.b16 %v3390
    %v4494 = vunpack.c.l.b16 %v3391
    %v4495 = vunpack.c.h.b16 %v3391
    %v4496 = vunpack.c.l.b16 %v3392
    %v4497 = vunpack.c.h.b16 %v3392
    %v4498 = vunpack.c.l.b16 %v3393
    %v4499 = vunpack.c.h.b16 %v3393
    %v4500 = vunpack.c.l.b16 %v3394
    %v4501 = vunpack.c.h.b16 %v3394
    %v4502 = vunpack.c.l.b16 %v3395
    %v4503 = vunpack.c.h.b16 %v3395
    %v4504 = vunpack.c.l.b16 %v3396
    %v4505 = vunpack.c.h.b16 %v3396
    %v4506 = vunpack.c.l.b16 %v3397
    %v4507 = vunpack.c.h.b16 %v3397
    %v4508 = vunpack.c.l.b16 %v3398
    %v4509 = vunpack.c.h.b16 %v3398
    %v4510 = vunpack.c.l.b16 %v3399
    %v4511 = vunpack.c.h.b16 %v3399
    %v4512 = vunpack.c.l.b16 %v3400
    %v4513 = vunpack.c.h.b16 %v3400
    %v4514 = vunpack.c.l.b16 %v3401
    %v4515 = vunpack.c.h.b16 %v3401
    %v4516 = vunpack.c.l.b16 %v3402
    %v4517 = vunpack.c.h.b16 %v3402
    %v4518 = vunpack.c.l.b16 %v3403
    %v4519 = vunpack.c.h.b16 %v3403
    %v4520 = vunpack.c.l.b16 %v3404
    %v4521 = vunpack.c.h.b16 %v3404
    %v4522 = vunpack.c.l.b16 %v3405
    %v4523 = vunpack.c.h.b16 %v3405
    %v4524 = vunpack.c.l.b16 %v3406
    %v4525 = vunpack.c.h.b16 %v3406
    %v4526 = vunpack.c.l.b16 %v3407
    %v4527 = vunpack.c.h.b16 %v3407
    %v4528 = vunpack.c.l.b16 %v3408
    %v4529 = vunpack.c.h.b16 %v3408
    %v4530 = vunpack.c.l.b16 %v3409
    %v4531 = vunpack.c.h.b16 %v3409
    %v4532 = vunpack.c.l.b16 %v3410
    %v4533 = vunpack.c.h.b16 %v3410
    %v4534 = vunpack.c.l.b16 %v3411
    %v4535 = vunpack.c.h.b16 %v3411
    %v4536 = vunpack.c.l.b16 %v3412
    %v4537 = vunpack.c.h.b16 %v3412
    %v4538 = vunpack.c.l.b16 %v3413
    %v4539 = vunpack.c.h.b16 %v3413
    %v4540 = vunpack.c.l.b16 %v3414
    %v4541 = vunpack.c.h.b16 %v3414
    %v4542 = vunpack.c.l.b16 %v3415
    %v4543 = vunpack.c.h.b16 %v3415
    %v4544 = vunpack.c.l.b16 %v3416
    %v4545 = vunpack.c.h.b16 %v3416
    %v4546 = vunpack.c.l.b16 %v3417
    %v4547 = vunpack.c.h.b16 %v3417
    %v4548 = vunpack.c.l.b16 %v3418
    %v4549 = vunpack.c.h.b16 %v3418
    %v4550 = vunpack.c.l.b16 %v3419
    %v4551 = vunpack.c.h.b16 %v3419
    %v4552 = vunpack.c.l.b16 %v3420
    %v4553 = vunpack.c.h.b16 %v3420
    %v4554 = vunpack.c.l.b16 %v3421
    %v4555 = vunpack.c.h.b16 %v3421
    %v4556 = vunpack.c.l.b16 %v3422
    %v4557 = vunpack.c.h.b16 %v3422
    %v4558 = vunpack.c.l.b16 %v3423
    %v4559 = vunpack.c.h.b16 %v3423
    %v4560 = vunpack.c.l.b16 %v3424
    %v4561 = vunpack.c.h.b16 %v3424
    %v4562 = vunpack.c.l.b16 %v3425
    %v4563 = vunpack.c.h.b16 %v3425
    %v4564 = vunpack.c.l.b16 %v3426
    %v4565 = vunpack.c.h.b16 %v3426
    %v4566 = vunpack.c.l.b16 %v3427
    %v4567 = vunpack.c.h.b16 %v3427
    %v4568 = vunpack.c.l.b16 %v3428
    %v4569 = vunpack.c.h.b16 %v3428
    %v4570 = vunpack.c.l.b16 %v3429
    %v4571 = vunpack.c.h.b16 %v3429
    %v4572 = vunpack.c.l.b16 %v3430
    %v4573 = vunpack.c.h.b16 %v3430
    %v4574 = vunpack.c.l.b16 %v3431
    %v4575 = vunpack.c.h.b16 %v3431
    %v4576 = vunpack.c.l.b16 %v3432
    %v4577 = vunpack.c.h.b16 %v3432
    %v4578 = vunpack.c.l.b16 %v3433
    %v4579 = vunpack.c.h.b16 %v3433
    %v4580 = vunpack.c.l.b16 %v3434
    %v4581 = vunpack.c.h.b16 %v3434
    %v4582 = vunpack.c.l.b16 %v3435
    %v4583 = vunpack.c.h.b16 %v3435
    %v4584 = vunpack.c.l.b16 %v3436
    %v4585 = vunpack.c.h.b16 %v3436
    %v4586 = vunpack.c.l.b16 %v3437
    %v4587 = vunpack.c.h.b16 %v3437
    %v4588 = vunpack.c.l.b16 %v3438
    %v4589 = vunpack.c.h.b16 %v3438
    %v4590 = vunpack.c.l.b16 %v3439
    %v4591 = vunpack.c.h.b16 %v3439
    %v4592 = vunpack.c.l.b16 %v3440
    %v4593 = vunpack.c.h.b16 %v3440
    %v4594 = vunpack.c.l.b16 %v3441
    %v4595 = vunpack.c.h.b16 %v3441
    %v4596 = vunpack.c.l.b16 %v3442
    %v4597 = vunpack.c.h.b16 %v3442
    %v4598 = vunpack.c.l.b16 %v3443
    %v4599 = vunpack.c.h.b16 %v3443
    %v4600 = vunpack.c.l.b16 %v3444
    %v4601 = vunpack.c.h.b16 %v3444
    %v4602 = vunpack.c.l.b16 %v3445
    %v4603 = vunpack.c.h.b16 %v3445
    %v4604 = vunpack.c.l.b16 %v3446
    %v4605 = vunpack.c.h.b16 %v3446
    %v4606 = vunpack.c.l.b16 %v3447
    %v4607 = vunpack.c.h.b16 %v3447
    %v4608 = vunpack.c.l.b16 %v3448
    %v4609 = vunpack.c.h.b16 %v3448
    %v4610 = vunpack.c.l.b16 %v3449
    %v4611 = vunpack.c.h.b16 %v3449
    %v4612 = vunpack.c.l.b16 %v3450
    %v4613 = vunpack.c.h.b16 %v3450
    %v4614 = vunpack.c.l.b16 %v3451
    %v4615 = vunpack.c.h.b16 %v3451
    %v4616 = vunpack.c.l.b16 %v3452
    %v4617 = vunpack.c.h.b16 %v3452
    %v4618 = vunpack.c.l.b16 %v3453
    %v4619 = vunpack.c.h.b16 %v3453
    %v4620 = vunpack.c.l.b16 %v3454
    %v4621 = vunpack.c.h.b16 %v3454
    %v4622 = vunpack.c.l.b16 %v3455
    %v4623 = vunpack.c.h.b16 %v3455
    %v4624 = vunpack.c.l.b16 %v3456
    %v4625 = vunpack.c.h.b16 %v3456
    %v4626 = vunpack.c.l.b16 %v3457
    %v4627 = vunpack.c.h.b16 %v3457
    %v4628 = vunpack.c.l.b16 %v3458
    %v4629 = vunpack.c.h.b16 %v3458
    %v4630 = vunpack.c.l.b16 %v3459
    %v4631 = vunpack.c.h.b16 %v3459
    %v4632 = vunpack.c.l.b16 %v3460
    %v4633 = vunpack.c.h.b16 %v3460
    %v4634 = vunpack.c.l.b16 %v3461
    %v4635 = vunpack.c.h.b16 %v3461
    %v4636 = vunpack.c.l.b16 %v3462
    %v4637 = vunpack.c.h.b16 %v3462
    %v4638 = vunpack.c.l.b16 %v3463
    %v4639 = vunpack.c.h.b16 %v3463
    %v4640 = vunpack.c.l.b16 %v3464
    %v4641 = vunpack.c.h.b16 %v3464
    %v4642 = vunpack.c.l.b16 %v3465
    %v4643 = vunpack.c.h.b16 %v3465
    %v4644 = vunpack.c.l.b16 %v3466
    %v4645 = vunpack.c.h.b16 %v3466
    %v4646 = vunpack.c.l.b16 %v3467
    %v4647 = vunpack.c.h.b16 %v3467
    %v4648 = vunpack.c.l.b16 %v3468
    %v4649 = vunpack.c.h.b16 %v3468
    %v4650 = vunpack.c.l.b16 %v3469
    %v4651 = vunpack.c.h.b16 %v3469
    %v4652 = vunpack.c.l.b16 %v3470
    %v4653 = vunpack.c.h.b16 %v3470
    %v4654 = vunpack.c.l.b16 %v3471
    %v4655 = vunpack.c.h.b16 %v3471
    %v4656 = vunpack.c.l.b16 %v3472
    %v4657 = vunpack.c.h.b16 %v3472
    %v4658 = vunpack.c.l.b16 %v3473
    %v4659 = vunpack.c.h.b16 %v3473
    %v4660 = vunpack.c.l.b16 %v3474
    %v4661 = vunpack.c.h.b16 %v3474
    %v4662 = vunpack.c.l.b16 %v3475
    %v4663 = vunpack.c.h.b16 %v3475
    %v4664 = vunpack.c.l.b16 %v3476
    %v4665 = vunpack.c.h.b16 %v3476
    %v4666 = vunpack.c.l.b16 %v3477
    %v4667 = vunpack.c.h.b16 %v3477
    %v4668 = vunpack.c.l.b16 %v3478
    %v4669 = vunpack.c.h.b16 %v3478
    %v4670 = vunpack.c.l.b16 %v3479
    %v4671 = vunpack.c.h.b16 %v3479
    %v4672 = vunpack.c.l.b16 %v3480
    %v4673 = vunpack.c.h.b16 %v3480
    %v4674 = vunpack.c.l.b16 %v3481
    %v4675 = vunpack.c.h.b16 %v3481
    %v4676 = vunpack.c.l.b16 %v3482
    %v4677 = vunpack.c.h.b16 %v3482
    %v4678 = vunpack.c.l.b16 %v3483
    %v4679 = vunpack.c.h.b16 %v3483
    %v4680 = vunpack.c.l.b16 %v3484
    %v4681 = vunpack.c.h.b16 %v3484
    %v4682 = vunpack.c.l.b16 %v3485
    %v4683 = vunpack.c.h.b16 %v3485
    %v4684 = vunpack.c.l.b16 %v3486
    %v4685 = vunpack.c.h.b16 %v3486
    %v4686 = vunpack.c.l.b16 %v3487
    %v4687 = vunpack.c.h.b16 %v3487
    %v4688 = vunpack.c.l.b16 %v3488
    %v4689 = vunpack.c.h.b16 %v3488
    %v4690 = vunpack.c.l.b16 %v3489
    %v4691 = vunpack.c.h.b16 %v3489
    %v4692 = vunpack.c.l.b16 %v3490
    %v4693 = vunpack.c.h.b16 %v3490
    %v4694 = vunpack.c.l.b16 %v3491
    %v4695 = vunpack.c.h.b16 %v3491
    %v4696 = vunpack.c.l.b16 %v3492
    %v4697 = vunpack.c.h.b16 %v3492
    %v4698 = vunpack.c.l.b16 %v3493
    %v4699 = vunpack.c.h.b16 %v3493
    %v4700 = vunpack.c.l.b16 %v3494
    %v4701 = vunpack.c.h.b16 %v3494
    %v4702 = vunpack.c.l.b16 %v3495
    %v4703 = vunpack.c.h.b16 %v3495
    %v4704 = vunpack.c.l.b16 %v3496
    %v4705 = vunpack.c.h.b16 %v3496
    %v4706 = vunpack.c.l.b16 %v3497
    %v4707 = vunpack.c.h.b16 %v3497
    %v4708 = vunpack.c.l.b16 %v3498
    %v4709 = vunpack.c.h.b16 %v3498
    %v4710 = vunpack.c.l.b16 %v3499
    %v4711 = vunpack.c.h.b16 %v3499
    %v4712 = vunpack.c.l.b16 %v3500
    %v4713 = vunpack.c.h.b16 %v3500
    %v4714 = vunpack.c.l.b16 %v3501
    %v4715 = vunpack.c.h.b16 %v3501
    %v4716 = vunpack.c.l.b16 %v3502
    %v4717 = vunpack.c.h.b16 %v3502
    %v4718 = vunpack.c.l.b16 %v3503
    %v4719 = vunpack.c.h.b16 %v3503
    %v4720 = vunpack.c.l.b16 %v3504
    %v4721 = vunpack.c.h.b16 %v3504
    %v4722 = vunpack.c.l.b16 %v3505
    %v4723 = vunpack.c.h.b16 %v3505
    %v4724 = vunpack.c.l.b16 %v3506
    %v4725 = vunpack.c.h.b16 %v3506
    %v4726 = vunpack.c.l.b16 %v3507
    %v4727 = vunpack.c.h.b16 %v3507
    %v4728 = vunpack.c.l.b16 %v3508
    %v4729 = vunpack.c.h.b16 %v3508
    %v4730 = vunpack.c.l.b16 %v3509
    %v4731 = vunpack.c.h.b16 %v3509
    %v4732 = vunpack.c.l.b16 %v3510
    %v4733 = vunpack.c.h.b16 %v3510
    %v4734 = vunpack.c.l.b16 %v3511
    %v4735 = vunpack.c.h.b16 %v3511
    %v4736 = vunpack.c.l.b16 %v3512
    %v4737 = vunpack.c.h.b16 %v3512
    %v4738 = vunpack.c.l.b16 %v3513
    %v4739 = vunpack.c.h.b16 %v3513
    %v4740 = vunpack.c.l.b16 %v3514
    %v4741 = vunpack.c.h.b16 %v3514
    %v4742 = vunpack.c.l.b16 %v3515
    %v4743 = vunpack.c.h.b16 %v3515
    %v4744 = vunpack.c.l.b16 %v3516
    %v4745 = vunpack.c.h.b16 %v3516
    %v4746 = vunpack.c.l.b16 %v3517
    %v4747 = vunpack.c.h.b16 %v3517
    %v4748 = vunpack.c.l.b16 %v3518
    %v4749 = vunpack.c.h.b16 %v3518
    %v4750 = vunpack.c.l.b16 %v3519
    %v4751 = vunpack.c.h.b16 %v3519
    %v4752 = vunpack.c.l.b16 %v3520
    %v4753 = vunpack.c.h.b16 %v3520
    %v4754 = vunpack.c.l.b16 %v3521
    %v4755 = vunpack.c.h.b16 %v3521
    %v4756 = vunpack.c.l.b16 %v3522
    %v4757 = vunpack.c.h.b16 %v3522
    %v4758 = vunpack.c.l.b16 %v3523
    %v4759 = vunpack.c.h.b16 %v3523
    %v4760 = vunpack.c.l.b16 %v3524
    %v4761 = vunpack.c.h.b16 %v3524
    %v4762 = vunpack.c.l.b16 %v3525
    %v4763 = vunpack.c.h.b16 %v3525
    %v4764 = vunpack.c.l.b16 %v3526
    %v4765 = vunpack.c.h.b16 %v3526
    %v4766 = vunpack.c.l.b16 %v3527
    %v4767 = vunpack.c.h.b16 %v3527
    %v4768 = vunpack.c.l.b16 %v3528
    %v4769 = vunpack.c.h.b16 %v3528
    %v4770 = vunpack.c.l.b16 %v3529
    %v4771 = vunpack.c.h.b16 %v3529
    %v4772 = vunpack.c.l.b16 %v3530
    %v4773 = vunpack.c.h.b16 %v3530
    %v4774 = vunpack.c.l.b16 %v3531
    %v4775 = vunpack.c.h.b16 %v3531
    %v4776 = vunpack.c.l.b16 %v3532
    %v4777 = vunpack.c.h.b16 %v3532
    %v4778 = vunpack.c.l.b16 %v3533
    %v4779 = vunpack.c.h.b16 %v3533
    %v4780 = vunpack.c.l.b16 %v3534
    %v4781 = vunpack.c.h.b16 %v3534
    %v4782 = vunpack.c.l.b16 %v3535
    %v4783 = vunpack.c.h.b16 %v3535
    %v4784 = vunpack.c.l.b16 %v3536
    %v4785 = vunpack.c.h.b16 %v3536
    %v4786 = vunpack.c.l.b16 %v3537
    %v4787 = vunpack.c.h.b16 %v3537
    %v4788 = vunpack.c.l.b16 %v3538
    %v4789 = vunpack.c.h.b16 %v3538
    %v4790 = vunpack.c.l.b16 %v3539
    %v4791 = vunpack.c.h.b16 %v3539
    %v4792 = vunpack.c.l.b16 %v3540
    %v4793 = vunpack.c.h.b16 %v3540
    %v4794 = vunpack.c.l.b16 %v3541
    %v4795 = vunpack.c.h.b16 %v3541
    %v4796 = vunpack.c.l.b16 %v3542
    %v4797 = vunpack.c.h.b16 %v3542
    %v4798 = vunpack.c.l.b16 %v3543
    %v4799 = vunpack.c.h.b16 %v3543
    %v4800 = vunpack.c.l.b16 %v3544
    %v4801 = vunpack.c.h.b16 %v3544
    %v4802 = vunpack.c.l.b16 %v3545
    %v4803 = vunpack.c.h.b16 %v3545
    %v4804 = vunpack.c.l.b16 %v3546
    %v4805 = vunpack.c.h.b16 %v3546
    %v4806 = vunpack.c.l.b16 %v3547
    %v4807 = vunpack.c.h.b16 %v3547
    %v4808 = vunpack.c.l.b16 %v3548
    %v4809 = vunpack.c.h.b16 %v3548
    %v4810 = vunpack.c.l.b16 %v3549
    %v4811 = vunpack.c.h.b16 %v3549
    %v4812 = vunpack.c.l.b16 %v3550
    %v4813 = vunpack.c.h.b16 %v3550
    %v4814 = vunpack.c.l.b16 %v3551
    %v4815 = vunpack.c.h.b16 %v3551
    %v4816 = vunpack.c.l.b16 %v3552
    %v4817 = vunpack.c.h.b16 %v3552
    %v4818 = vunpack.c.l.b16 %v3553
    %v4819 = vunpack.c.h.b16 %v3553
    %v4820 = vunpack.c.l.b16 %v3554
    %v4821 = vunpack.c.h.b16 %v3554
    %v4822 = vunpack.c.l.b16 %v3555
    %v4823 = vunpack.c.h.b16 %v3555
    %v4824 = vunpack.c.l.b16 %v3556
    %v4825 = vunpack.c.h.b16 %v3556
    %v4826 = vunpack.c.l.b16 %v3557
    %v4827 = vunpack.c.h.b16 %v3557
    %v4828 = vunpack.c.l.b16 %v3558
    %v4829 = vunpack.c.h.b16 %v3558
    %v4830 = vunpack.c.l.b16 %v3559
    %v4831 = vunpack.c.h.b16 %v3559
    %v4832 = vunpack.c.l.b16 %v3560
    %v4833 = vunpack.c.h.b16 %v3560
    %v4834 = vunpack.c.l.b16 %v3561
    %v4835 = vunpack.c.h.b16 %v3561
    %v4836 = vunpack.c.l.b16 %v3562
    %v4837 = vunpack.c.h.b16 %v3562
    %v4838 = vunpack.c.l.b16 %v3563
    %v4839 = vunpack.c.h.b16 %v3563
    %v4840 = vunpack.c.l.b16 %v3564
    %v4841 = vunpack.c.h.b16 %v3564
    %v4842 = vunpack.c.l.b16 %v3565
    %v4843 = vunpack.c.h.b16 %v3565
    %v4844 = vunpack.c.l.b16 %v3566
    %v4845 = vunpack.c.h.b16 %v3566
    %v4846 = vunpack.c.l.b16 %v3567
    %v4847 = vunpack.c.h.b16 %v3567
    %v4848 = vunpack.c.l.b16 %v3568
    %v4849 = vunpack.c.h.b16 %v3568
    %v4850 = vunpack.c.l.b16 %v3569
    %v4851 = vunpack.c.h.b16 %v3569
    %v4852 = vunpack.c.l.b16 %v3570
    %v4853 = vunpack.c.h.b16 %v3570
    %v4854 = vunpack.c.l.b16 %v3571
    %v4855 = vunpack.c.h.b16 %v3571
    %v4856 = vunpack.c.l.b16 %v3572
    %v4857 = vunpack.c.h.b16 %v3572
    %v4858 = vunpack.c.l.b16 %v3573
    %v4859 = vunpack.c.h.b16 %v3573
    %v4860 = vunpack.c.l.b16 %v3574
    %v4861 = vunpack.c.h.b16 %v3574
    %v4862 = vunpack.c.l.b16 %v3575
    %v4863 = vunpack.c.h.b16 %v3575
    %v4864 = vunpack.c.l.b16 %v3576
    %v4865 = vunpack.c.h.b16 %v3576
    %v4866 = vunpack.c.l.b16 %v3577
    %v4867 = vunpack.c.h.b16 %v3577
    %v4868 = vunpack.c.l.b16 %v3578
    %v4869 = vunpack.c.h.b16 %v3578
    %v4870 = vunpack.c.l.b16 %v3579
    %v4871 = vunpack.c.h.b16 %v3579
    %v4872 = vunpack.c.l.b16 %v3580
    %v4873 = vunpack.c.h.b16 %v3580
    %v4874 = vunpack.c.l.b16 %v3581
    %v4875 = vunpack.c.h.b16 %v3581
    %v4876 = vunpack.c.l.b16 %v3582
    %v4877 = vunpack.c.h.b16 %v3582
    %v4878 = vunpack.c.l.b16 %v3583
    %v4879 = vunpack.c.h.b16 %v3583
    %v4880 = vunpack.c.l.b16 %v3584
    %v4881 = vunpack.c.h.b16 %v3584
    %v4882 = vunpack.c.l.b16 %v3585
    %v4883 = vunpack.c.h.b16 %v3585
    %v4884 = vunpack.c.l.b16 %v3586
    %v4885 = vunpack.c.h.b16 %v3586
    %v4886 = vunpack.c.l.b16 %v3587
    %v4887 = vunpack.c.h.b16 %v3587
    %v4888 = vunpack.c.l.b16 %v3588
    %v4889 = vunpack.c.h.b16 %v3588
    %v4890 = vunpack.c.l.b16 %v3589
    %v4891 = vunpack.c.h.b16 %v3589
    %v4892 = vunpack.c.l.b16 %v3590
    %v4893 = vunpack.c.h.b16 %v3590
    %v4894 = vunpack.c.l.b16 %v3591
    %v4895 = vunpack.c.h.b16 %v3591
    %v4896 = vunpack.c.l.b16 %v3592
    %v4897 = vunpack.c.h.b16 %v3592
    %v4898 = vunpack.c.l.b16 %v3593
    %v4899 = vunpack.c.h.b16 %v3593
    %v4900 = vunpack.c.l.b16 %v3594
    %v4901 = vunpack.c.h.b16 %v3594
    %v4902 = vunpack.c.l.b16 %v3595
    %v4903 = vunpack.c.h.b16 %v3595
    %v4904 = vunpack.c.l.b16 %v3596
    %v4905 = vunpack.c.h.b16 %v3596
    %v4906 = vunpack.c.l.b16 %v3597
    %v4907 = vunpack.c.h.b16 %v3597
    %v4908 = vunpack.c.l.b16 %v3598
    %v4909 = vunpack.c.h.b16 %v3598
    %v4910 = vunpack.c.l.b16 %v3599
    %v4911 = vunpack.c.h.b16 %v3599
    %v4912 = vunpack.c.l.b16 %v3600
    %v4913 = vunpack.c.h.b16 %v3600
    %v4914 = vunpack.c.l.b16 %v3601
    %v4915 = vunpack.c.h.b16 %v3601
    %v4916 = vunpack.c.l.b16 %v3602
    %v4917 = vunpack.c.h.b16 %v3602
    %v4918 = vunpack.c.l.b16 %v3603
    %v4919 = vunpack.c.h.b16 %v3603
    %v4920 = vunpack.c.l.b16 %v3604
    %v4921 = vunpack.c.h.b16 %v3604
    %v4922 = vunpack.c.l.b16 %v3605
    %v4923 = vunpack.c.h.b16 %v3605
    %v4924 = vunpack.c.l.b16 %v3606
    %v4925 = vunpack.c.h.b16 %v3606
    %v4926 = vunpack.c.l.b16 %v3607
    %v4927 = vunpack.c.h.b16 %v3607
    %v4928 = vunpack.c.l.b16 %v3608
    %v4929 = vunpack.c.h.b16 %v3608
    %v4930 = vunpack.c.l.b16 %v3609
    %v4931 = vunpack.c.h.b16 %v3609
    %v4932 = vunpack.c.l.b16 %v3610
    %v4933 = vunpack.c.h.b16 %v3610
    %v4934 = vunpack.c.l.b16 %v3611
    %v4935 = vunpack.c.h.b16 %v3611
    %v4936 = vunpack.c.l.b16 %v3612
    %v4937 = vunpack.c.h.b16 %v3612
    %v4938 = vunpack.c.l.b16 %v3613
    %v4939 = vunpack.c.h.b16 %v3613
    %v4940 = vunpack.c.l.b16 %v3614
    %v4941 = vunpack.c.h.b16 %v3614
    %v4942 = vunpack.c.l.b16 %v3615
    %v4943 = vunpack.c.h.b16 %v3615
    %v4944 = vunpack.c.l.b16 %v3616
    %v4945 = vunpack.c.h.b16 %v3616
    %v4946 = vunpack.c.l.b16 %v3617
    %v4947 = vunpack.c.h.b16 %v3617
    %v4948 = vunpack.c.l.b16 %v3618
    %v4949 = vunpack.c.h.b16 %v3618
    %v4950 = vunpack.c.l.b16 %v3619
    %v4951 = vunpack.c.h.b16 %v3619
    %v4952 = vunpack.c.l.b16 %v3620
    %v4953 = vunpack.c.h.b16 %v3620
    %v4954 = vunpack.c.l.b16 %v3621
    %v4955 = vunpack.c.h.b16 %v3621
    %v4956 = vunpack.c.l.b16 %v3622
    %v4957 = vunpack.c.h.b16 %v3622
    %v4958 = vunpack.c.l.b16 %v3623
    %v4959 = vunpack.c.h.b16 %v3623
    %v4960 = vunpack.c.l.b16 %v3624
    %v4961 = vunpack.c.h.b16 %v3624
    %v4962 = vunpack.c.l.b16 %v3625
    %v4963 = vunpack.c.h.b16 %v3625
    %v4964 = vunpack.c.l.b16 %v3626
    %v4965 = vunpack.c.h.b16 %v3626
    %v4966 = vunpack.c.l.b16 %v3627
    %v4967 = vunpack.c.h.b16 %v3627
    %v4968 = vunpack.c.l.b16 %v3628
    %v4969 = vunpack.c.h.b16 %v3628
    %v4970 = vunpack.c.l.b16 %v3629
    %v4971 = vunpack.c.h.b16 %v3629
    %v4972 = vunpack.c.l.b16 %v3630
    %v4973 = vunpack.c.h.b16 %v3630
    %v4974 = vunpack.c.l.b16 %v3631
    %v4975 = vunpack.c.h.b16 %v3631
    %v4976 = vunpack.c.l.b16 %v3632
    %v4977 = vunpack.c.h.b16 %v3632
    %v4978 = vunpack.c.l.b16 %v3633
    %v4979 = vunpack.c.h.b16 %v3633
    %v4980 = vunpack.c.l.b16 %v3634
    %v4981 = vunpack.c.h.b16 %v3634
    %v4982 = vunpack.c.l.b16 %v3635
    %v4983 = vunpack.c.h.b16 %v3635
    %v4984 = vunpack.c.l.b16 %v3636
    %v4985 = vunpack.c.h.b16 %v3636
    %v4986 = vunpack.c.l.b16 %v3637
    %v4987 = vunpack.c.h.b16 %v3637
    %v4988 = vunpack.c.l.b16 %v3638
    %v4989 = vunpack.c.h.b16 %v3638
    %v4990 = vunpack.c.l.b16 %v3639
    %v4991 = vunpack.c.h.b16 %v3639
    %v4992 = vunpack.c.l.b16 %v3640
    %v4993 = vunpack.c.h.b16 %v3640
    %v4994 = vunpack.c.l.b16 %v3641
    %v4995 = vunpack.c.h.b16 %v3641
    %v4996 = vunpack.c.l.b16 %v3642
    %v4997 = vunpack.c.h.b16 %v3642
    %v4998 = vunpack.c.l.b16 %v3643
    %v4999 = vunpack.c.h.b16 %v3643
    %v5000 = vunpack.c.l.b16 %v3644
    %v5001 = vunpack.c.h.b16 %v3644
    %v5002 = vunpack.c.l.b16 %v3645
    %v5003 = vunpack.c.h.b16 %v3645
    %v5004 = vunpack.c.l.b16 %v3646
    %v5005 = vunpack.c.h.b16 %v3646
    %v5006 = vunpack.c.l.b16 %v3647
    %v5007 = vunpack.c.h.b16 %v3647
    %v5008 = vunpack.c.l.b16 %v3648
    %v5009 = vunpack.c.h.b16 %v3648
    %v5010 = vunpack.c.l.b16 %v3649
    %v5011 = vunpack.c.h.b16 %v3649
    %v5012 = vunpack.c.l.b16 %v3650
    %v5013 = vunpack.c.h.b16 %v3650
    %v5014 = vunpack.c.l.b16 %v3651
    %v5015 = vunpack.c.h.b16 %v3651
    %v5016 = vunpack.c.l.b16 %v3652
    %v5017 = vunpack.c.h.b16 %v3652
    %v5018 = vunpack.c.l.b16 %v3653
    %v5019 = vunpack.c.h.b16 %v3653
    %v5020 = vunpack.c.l.b16 %v3654
    %v5021 = vunpack.c.h.b16 %v3654
    %v5022 = vunpack.c.l.b16 %v3655
    %v5023 = vunpack.c.h.b16 %v3655
    %v5024 = vunpack.c.l.b16 %v3656
    %v5025 = vunpack.c.h.b16 %v3656
    %v5026 = vunpack.c.l.b16 %v3657
    %v5027 = vunpack.c.h.b16 %v3657
    %v5028 = vunpack.c.l.b16 %v3658
    %v5029 = vunpack.c.h.b16 %v3658
    %v5030 = vunpack.c.l.b16 %v3659
    %v5031 = vunpack.c.h.b16 %v3659
    %v5032 = vunpack.c.l.b16 %v3660
    %v5033 = vunpack.c.h.b16 %v3660
    %v5034 = vunpack.c.l.b16 %v3661
    %v5035 = vunpack.c.h.b16 %v3661
    %v5036 = vunpack.c.l.b16 %v3662
    %v5037 = vunpack.c.h.b16 %v3662
    %v5038 = vunpack.c.l.b16 %v3663
    %v5039 = vunpack.c.h.b16 %v3663
    %v5040 = vunpack.c.l.b16 %v3664
    %v5041 = vunpack.c.h.b16 %v3664
    %v5042 = vunpack.c.l.b16 %v3665
    %v5043 = vunpack.c.h.b16 %v3665
    %v5044 = vunpack.c.l.b16 %v3666
    %v5045 = vunpack.c.h.b16 %v3666
    %v5046 = vunpack.c.l.b16 %v3667
    %v5047 = vunpack.c.h.b16 %v3667
    %v5048 = vunpack.c.l.b16 %v3668
    %v5049 = vunpack.c.h.b16 %v3668
    %v5050 = vunpack.c.l.b16 %v3669
    %v5051 = vunpack.c.h.b16 %v3669
    %v5052 = vunpack.c.l.b16 %v3670
    %v5053 = vunpack.c.h.b16 %v3670
    %v5054 = vunpack.c.l.b16 %v3671
    %v5055 = vunpack.c.h.b16 %v3671
    %v5056 = vunpack.c.l.b16 %v3672
    %v5057 = vunpack.c.h.b16 %v3672
    %v5058 = vunpack.c.l.b16 %v3673
    %v5059 = vunpack.c.h.b16 %v3673
    %v5060 = vunpack.c.l.b16 %v3674
    %v5061 = vunpack.c.h.b16 %v3674
    %v5062 = vunpack.c.l.b16 %v3675
    %v5063 = vunpack.c.h.b16 %v3675
    %v5064 = vunpack.c.l.b16 %v3676
    %v5065 = vunpack.c.h.b16 %v3676
    %v5066 = vunpack.c.l.b16 %v3677
    %v5067 = vunpack.c.h.b16 %v3677
    %v5068 = vunpack.c.l.b16 %v3678
    %v5069 = vunpack.c.h.b16 %v3678
    %v5070 = vunpack.c.l.b16 %v3679
    %v5071 = vunpack.c.h.b16 %v3679
    %v5072 = vunpack.c.l.b16 %v3680
    %v5073 = vunpack.c.h.b16 %v3680
    %v5074 = vunpack.c.l.b16 %v3681
    %v5075 = vunpack.c.h.b16 %v3681
    %v5076 = vunpack.c.l.b16 %v3682
    %v5077 = vunpack.c.h.b16 %v3682
    %v5078 = vunpack.c.l.b16 %v3683
    %v5079 = vunpack.c.h.b16 %v3683
    %v5080 = vunpack.c.l.b16 %v3684
    %v5081 = vunpack.c.h.b16 %v3684
    %v5082 = vunpack.c.l.b16 %v3685
    %v5083 = vunpack.c.h.b16 %v3685
    %v5084 = vunpack.c.l.b16 %v3686
    %v5085 = vunpack.c.h.b16 %v3686
    %v5086 = vunpack.c.l.b16 %v3687
    %v5087 = vunpack.c.h.b16 %v3687
    %v5088 = vunpack.c.l.b16 %v3688
    %v5089 = vunpack.c.h.b16 %v3688
    %v5090 = vunpack.c.l.b16 %v3689
    %v5091 = vunpack.c.h.b16 %v3689
    %v5092 = vunpack.c.l.b16 %v3690
    %v5093 = vunpack.c.h.b16 %v3690
    %v5094 = vunpack.c.l.b16 %v3691
    %v5095 = vunpack.c.h.b16 %v3691
    %v5096 = vunpack.c.l.b16 %v3692
    %v5097 = vunpack.c.h.b16 %v3692
    %v5098 = vunpack.c.l.b16 %v3693
    %v5099 = vunpack.c.h.b16 %v3693
    %v5100 = vunpack.c.l.b16 %v3694
    %v5101 = vunpack.c.h.b16 %v3694
    %v5102 = vunpack.c.l.b16 %v3695
    %v5103 = vunpack.c.h.b16 %v3695
    %v5104 = vunpack.c.l.b16 %v3696
    %v5105 = vunpack.c.h.b16 %v3696
    %v5106 = vunpack.c.l.b16 %v3697
    %v5107 = vunpack.c.h.b16 %v3697
    %v5108 = vunpack.c.l.b16 %v3698
    %v5109 = vunpack.c.h.b16 %v3698
    %v5110 = vunpack.c.l.b16 %v3699
    %v5111 = vunpack.c.h.b16 %v3699
    %v5112 = vunpack.c.l.b16 %v3700
    %v5113 = vunpack.c.h.b16 %v3700
    %v5114 = vunpack.c.l.b16 %v3701
    %v5115 = vunpack.c.h.b16 %v3701
    %v5116 = vunpack.c.l.b16 %v3702
    %v5117 = vunpack.c.h.b16 %v3702
    %v5118 = vunpack.c.l.b16 %v3703
    %v5119 = vunpack.c.h.b16 %v3703
    %v5120 = vunpack.c.l.b16 %v3704
    %v5121 = vunpack.c.h.b16 %v3704
    %v5122 = vunpack.c.l.b16 %v3705
    %v5123 = vunpack.c.h.b16 %v3705
    %v5124 = vunpack.c.l.b16 %v3706
    %v5125 = vunpack.c.h.b16 %v3706
    %v5126 = vunpack.c.l.b16 %v3707
    %v5127 = vunpack.c.h.b16 %v3707
    %v5128 = vunpack.c.l.b16 %v3708
    %v5129 = vunpack.c.h.b16 %v3708
    %v5130 = vunpack.c.l.b16 %v3709
    %v5131 = vunpack.c.h.b16 %v3709
    %v5132 = vunpack.c.l.b16 %v3710
    %v5133 = vunpack.c.h.b16 %v3710
    %v5134 = vunpack.c.l.b16 %v3711
    %v5135 = vunpack.c.h.b16 %v3711
    %v5136 = vunpack.c.l.b16 %v3712
    %v5137 = vunpack.c.h.b16 %v3712
    %v5138 = vunpack.c.l.b16 %v3713
    %v5139 = vunpack.c.h.b16 %v3713
    %v5140 = vunpack.c.l.b16 %v3714
    %v5141 = vunpack.c.h.b16 %v3714
    %v5142 = vunpack.c.l.b16 %v3715
    %v5143 = vunpack.c.h.b16 %v3715
    %v5144 = vunpack.c.l.b16 %v3716
    %v5145 = vunpack.c.h.b16 %v3716
    %v5146 = vunpack.c.l.b16 %v3717
    %v5147 = vunpack.c.h.b16 %v3717
    %v5148 = vunpack.c.l.b16 %v3718
    %v5149 = vunpack.c.h.b16 %v3718
    %v5150 = vunpack.c.l.b16 %v3719
    %v5151 = vunpack.c.h.b16 %v3719
    %v5152 = vunpack.c.l.b16 %v3720
    %v5153 = vunpack.c.h.b16 %v3720
    %v5154 = vunpack.c.l.b16 %v3721
    %v5155 = vunpack.c.h.b16 %v3721
    %v5156 = vunpack.c.l.b16 %v3722
    %v5157 = vunpack.c.h.b16 %v3722
    %v5158 = vunpack.c.l.b16 %v3723
    %v5159 = vunpack.c.h.b16 %v3723
    %v5160 = vunpack.c.l.b16 %v3724
    %v5161 = vunpack.c.h.b16 %v3724
    %v5162 = vunpack.c.l.b16 %v3725
    %v5163 = vunpack.c.h.b16 %v3725
    %v5164 = vunpack.c.l.b16 %v3726
    %v5165 = vunpack.c.h.b16 %v3726
    %v5166 = vunpack.c.l.b16 %v3727
    %v5167 = vunpack.c.h.b16 %v3727
    %v5168 = vunpack.c.l.b16 %v3728
    %v5169 = vunpack.c.h.b16 %v3728
    %v5170 = vunpack.c.l.b16 %v3729
    %v5171 = vunpack.c.h.b16 %v3729
    %v5172 = vunpack.c.l.b16 %v3730
    %v5173 = vunpack.c.h.b16 %v3730
    %v5174 = vunpack.c.l.b16 %v3731
    %v5175 = vunpack.c.h.b16 %v3731
    %v5176 = vunpack.c.l.b16 %v3732
    %v5177 = vunpack.c.h.b16 %v3732
    %v5178 = vunpack.c.l.b16 %v3733
    %v5179 = vunpack.c.h.b16 %v3733
    %v5180 = vunpack.c.l.b16 %v3734
    %v5181 = vunpack.c.h.b16 %v3734
    %v5182 = vunpack.c.l.b16 %v3735
    %v5183 = vunpack.c.h.b16 %v3735
    %v5184 = vunpack.c.l.b16 %v3736
    %v5185 = vunpack.c.h.b16 %v3736
    %v5186 = vunpack.c.l.b16 %v3737
    %v5187 = vunpack.c.h.b16 %v3737
    %v5188 = vunpack.c.l.b16 %v3738
    %v5189 = vunpack.c.h.b16 %v3738
    %v5190 = vunpack.c.l.b16 %v3739
    %v5191 = vunpack.c.h.b16 %v3739
    %v5192 = vunpack.c.l.b16 %v3740
    %v5193 = vunpack.c.h.b16 %v3740
    %v5194 = vunpack.c.l.b16 %v3741
    %v5195 = vunpack.c.h.b16 %v3741
    %v5196 = vunpack.c.l.b16 %v3742
    %v5197 = vunpack.c.h.b16 %v3742
    %v5198 = vunpack.c.l.b16 %v3743
    %v5199 = vunpack.c.h.b16 %v3743
    %v5200 = vunpack.c.l.b16 %v3744
    %v5201 = vunpack.c.h.b16 %v3744
    %v5202 = vunpack.c.l.b16 %v3745
    %v5203 = vunpack.c.h.b16 %v3745
    %v5204 = vunpack.c.l.b16 %v3746
    %v5205 = vunpack.c.h.b16 %v3746
    %v5206 = vunpack.c.l.b16 %v3747
    %v5207 = vunpack.c.h.b16 %v3747
    %v5208 = vunpack.c.l.b16 %v3748
    %v5209 = vunpack.c.h.b16 %v3748
    %v5210 = vunpack.c.l.b16 %v3749
    %v5211 = vunpack.c.h.b16 %v3749
    %v5212 = vunpack.c.l.b16 %v3750
    %v5213 = vunpack.c.h.b16 %v3750
    %v5214 = vunpack.c.l.b16 %v3751
    %v5215 = vunpack.c.h.b16 %v3751
    %v5216 = vunpack.c.l.b16 %v3752
    %v5217 = vunpack.c.h.b16 %v3752
    %v5218 = vunpack.c.l.b16 %v3753
    %v5219 = vunpack.c.h.b16 %v3753
    %v5220 = vunpack.c.l.b16 %v3754
    %v5221 = vunpack.c.h.b16 %v3754
    %v5222 = vunpack.c.l.b16 %v3755
    %v5223 = vunpack.c.h.b16 %v3755
    %v5224 = vunpack.c.l.b16 %v3756
    %v5225 = vunpack.c.h.b16 %v3756
    %v5226 = vunpack.c.l.b16 %v3757
    %v5227 = vunpack.c.h.b16 %v3757
    %v5228 = vunpack.c.l.b16 %v3758
    %v5229 = vunpack.c.h.b16 %v3758
    %v5230 = vunpack.c.l.b16 %v3759
    %v5231 = vunpack.c.h.b16 %v3759
    %v5232 = vunpack.c.l.b16 %v3760
    %v5233 = vunpack.c.h.b16 %v3760
    %v5234 = vunpack.c.l.b16 %v3761
    %v5235 = vunpack.c.h.b16 %v3761
    %v5236 = vunpack.c.l.b16 %v3762
    %v5237 = vunpack.c.h.b16 %v3762
    %v5238 = vunpack.c.l.b16 %v3763
    %v5239 = vunpack.c.h.b16 %v3763
    %v5240 = vunpack.c.l.b16 %v3764
    %v5241 = vunpack.c.h.b16 %v3764
    %v5242 = vunpack.c.l.b16 %v3765
    %v5243 = vunpack.c.h.b16 %v3765
    %v5244 = vunpack.c.l.b16 %v3766
    %v5245 = vunpack.c.h.b16 %v3766
    %v5246 = vunpack.c.l.b16 %v3767
    %v5247 = vunpack.c.h.b16 %v3767
    %v5248 = vunpack.c.l.b16 %v3768
    %v5249 = vunpack.c.h.b16 %v3768
    %v5250 = vunpack.c.l.b16 %v3769
    %v5251 = vunpack.c.h.b16 %v3769
    %v5252 = vunpack.c.l.b16 %v3770
    %v5253 = vunpack.c.h.b16 %v3770
    %v5254 = vunpack.c.l.b16 %v3771
    %v5255 = vunpack.c.h.b16 %v3771
    %v5256 = vunpack.c.l.b16 %v3772
    %v5257 = vunpack.c.h.b16 %v3772
    %v5258 = vunpack.c.l.b16 %v3773
    %v5259 = vunpack.c.h.b16 %v3773
    %v5260 = vunpack.c.l.b16 %v3774
    %v5261 = vunpack.c.h.b16 %v3774
    %v5262 = vunpack.c.l.b16 %v3775
    %v5263 = vunpack.c.h.b16 %v3775
    %v5264 = vunpack.c.l.b16 %v3776
    %v5265 = vunpack.c.h.b16 %v3776
    %v5266 = vunpack.c.l.b16 %v3777
    %v5267 = vunpack.c.h.b16 %v3777
    %v5268 = vunpack.c.l.b16 %v3778
    %v5269 = vunpack.c.h.b16 %v3778
    %v5270 = vunpack.c.l.b16 %v3779
    %v5271 = vunpack.c.h.b16 %v3779
    %v5272 = vunpack.c.l.b16 %v3780
    %v5273 = vunpack.c.h.b16 %v3780
    %v5274 = vunpack.c.l.b16 %v3781
    %v5275 = vunpack.c.h.b16 %v3781
    %v5276 = vunpack.c.l.b16 %v3782
    %v5277 = vunpack.c.h.b16 %v3782
    %v5278 = vunpack.c.l.b16 %v3783
    %v5279 = vunpack.c.h.b16 %v3783
    %v5280 = vunpack.c.l.b16 %v3784
    %v5281 = vunpack.c.h.b16 %v3784
    %v5282 = vunpack.c.l.b16 %v3785
    %v5283 = vunpack.c.h.b16 %v3785
    %v5284 = vunpack.c.l.b16 %v3786
    %v5285 = vunpack.c.h.b16 %v3786
    %v5286 = vunpack.c.l.b16 %v3787
    %v5287 = vunpack.c.h.b16 %v3787
    %v5288 = vunpack.c.l.b16 %v3788
    %v5289 = vunpack.c.h.b16 %v3788
    %v5290 = vunpack.c.l.b16 %v3789
    %v5291 = vunpack.c.h.b16 %v3789
    %v5292 = vunpack.c.l.b16 %v3790
    %v5293 = vunpack.c.h.b16 %v3790
    %v5294 = vunpack.c.l.b16 %v3791
    %v5295 = vunpack.c.h.b16 %v3791
    %v5296 = vunpack.c.l.b16 %v3792
    %v5297 = vunpack.c.h.b16 %v3792
    %v5298 = vunpack.c.l.b16 %v3793
    %v5299 = vunpack.c.h.b16 %v3793
    %v5300 = vunpack.c.l.b16 %v3794
    %v5301 = vunpack.c.h.b16 %v3794
    %v5302 = vunpack.c.l.b16 %v3795
    %v5303 = vunpack.c.h.b16 %v3795
    %v5304 = vunpack.c.l.b16 %v3796
    %v5305 = vunpack.c.h.b16 %v3796
    %v5306 = vunpack.c.l.b16 %v3797
    %v5307 = vunpack.c.h.b16 %v3797
    %v5308 = vunpack.c.l.b16 %v3798
    %v5309 = vunpack.c.h.b16 %v3798
    %v5310 = vunpack.c.l.b16 %v3799
    %v5311 = vunpack.c.h.b16 %v3799
    %v5312 = vunpack.c.l.b16 %v3800
    %v5313 = vunpack.c.h.b16 %v3800
    %v5314 = vunpack.c.l.b16 %v3801
    %v5315 = vunpack.c.h.b16 %v3801
    %v5316 = vunpack.c.l.b16 %v3802
    %v5317 = vunpack.c.h.b16 %v3802
    %v5318 = vunpack.c.l.b16 %v3803
    %v5319 = vunpack.c.h.b16 %v3803
    %v5320 = vunpack.c.l.b16 %v3804
    %v5321 = vunpack.c.h.b16 %v3804
    %v5322 = vunpack.c.l.b16 %v3805
    %v5323 = vunpack.c.h.b16 %v3805
    %v5324 = vunpack.c.l.b16 %v3806
    %v5325 = vunpack.c.h.b16 %v3806
    %v5326 = vunpack.c.l.b16 %v3807
    %v5327 = vunpack.c.h.b16 %v3807
    %v5328 = vunpack.c.l.b16 %v3808
    %v5329 = vunpack.c.h.b16 %v3808
    %v5330 = vunpack.c.l.b16 %v3809
    %v5331 = vunpack.c.h.b16 %v3809
    %v5332 = vunpack.c.l.b16 %v3810
    %v5333 = vunpack.c.h.b16 %v3810
    %v5334 = vunpack.c.l.b16 %v3811
    %v5335 = vunpack.c.h.b16 %v3811
    %v5336 = vunpack.c.l.b16 %v3812
    %v5337 = vunpack.c.h.b16 %v3812
    %v5338 = vunpack.c.l.b16 %v3813
    %v5339 = vunpack.c.h.b16 %v3813
    %v5340 = vunpack.c.l.b16 %v3814
    %v5341 = vunpack.c.h.b16 %v3814
    %v5342 = vunpack.c.l.b16 %v3815
    %v5343 = vunpack.c.h.b16 %v3815
    %v5344 = vunpack.c.l.b16 %v3816
    %v5345 = vunpack.c.h.b16 %v3816
    %v5346 = vunpack.c.l.b16 %v3817
    %v5347 = vunpack.c.h.b16 %v3817
    %v5348 = vunpack.c.l.b16 %v3818
    %v5349 = vunpack.c.h.b16 %v3818
    %v5350 = vunpack.c.l.b16 %v3819
    %v5351 = vunpack.c.h.b16 %v3819
    %v5352 = vunpack.c.l.b16 %v3820
    %v5353 = vunpack.c.h.b16 %v3820
    %v5354 = vunpack.c.l.b16 %v3821
    %v5355 = vunpack.c.h.b16 %v3821
    %v5356 = vunpack.c.l.b16 %v3822
    %v5357 = vunpack.c.h.b16 %v3822
    %v5358 = vunpack.c.l.b16 %v3823
    %v5359 = vunpack.c.h.b16 %v3823
    %v5360 = vunpack.c.l.b16 %v3824
    %v5361 = vunpack.c.h.b16 %v3824
    %v5362 = vunpack.c.l.b16 %v3825
    %v5363 = vunpack.c.h.b16 %v3825
    %v5364 = vunpack.c.l.b16 %v3826
    %v5365 = vunpack.c.h.b16 %v3826
    %v5366 = vunpack.c.l.b16 %v3827
    %v5367 = vunpack.c.h.b16 %v3827
    %v5368 = vunpack.c.l.b16 %v3828
    %v5369 = vunpack.c.h.b16 %v3828
    %v5370 = vunpack.c.l.b16 %v3829
    %v5371 = vunpack.c.h.b16 %v3829
    %v5372 = vunpack.c.l.b16 %v3830
    %v5373 = vunpack.c.h.b16 %v3830
    %v5374 = vunpack.c.l.b16 %v3831
    %v5375 = vunpack.c.h.b16 %v3831
    %v5376 = vunpack.c.l.b16 %v3832
    %v5377 = vunpack.c.h.b16 %v3832
    %v5378 = vunpack.c.l.b16 %v3833
    %v5379 = vunpack.c.h.b16 %v3833
    %v5380 = vunpack.c.l.b16 %v3834
    %v5381 = vunpack.c.h.b16 %v3834
    %v5382 = vunpack.c.l.b16 %v3835
    %v5383 = vunpack.c.h.b16 %v3835
    %v5384 = vunpack.c.l.b16 %v3836
    %v5385 = vunpack.c.h.b16 %v3836
    %v5386 = vunpack.c.l.b16 %v3837
    %v5387 = vunpack.c.h.b16 %v3837
    %v5388 = vunpack.c.l.b16 %v3838
    %v5389 = vunpack.c.h.b16 %v3838
    %v5390 = vunpack.c.l.b16 %v3839
    %v5391 = vunpack.c.h.b16 %v3839
    %v5392 = vunpack.c.l.b16 %v3840
    %v5393 = vunpack.c.h.b16 %v3840
    %v5394 = vunpack.c.l.b16 %v3841
    %v5395 = vunpack.c.h.b16 %v3841
    %v5396 = vunpack.c.l.b16 %v3842
    %v5397 = vunpack.c.h.b16 %v3842
    %v5398 = vunpack.c.l.b16 %v3843
    %v5399 = vunpack.c.h.b16 %v3843
    %v5400 = vunpack.c.l.b16 %v3844
    %v5401 = vunpack.c.h.b16 %v3844
    %v5402 = vunpack.c.l.b16 %v3845
    %v5403 = vunpack.c.h.b16 %v3845
    %v5404 = vunpack.c.l.b16 %v3846
    %v5405 = vunpack.c.h.b16 %v3846
    %v5406 = vunpack.c.l.b16 %v3847
    %v5407 = vunpack.c.h.b16 %v3847
    %v5408 = vunpack.c.l.b16 %v3848
    %v5409 = vunpack.c.h.b16 %v3848
    %v5410 = vunpack.c.l.b16 %v3849
    %v5411 = vunpack.c.h.b16 %v3849
    %v5412 = vunpack.c.l.b16 %v3850
    %v5413 = vunpack.c.h.b16 %v3850
    %v5414 = vunpack.c.l.b16 %v3851
    %v5415 = vunpack.c.h.b16 %v3851
    %v5416 = vunpack.c.l.b16 %v3852
    %v5417 = vunpack.c.h.b16 %v3852
    %v5418 = vunpack.c.l.b16 %v3853
    %v5419 = vunpack.c.h.b16 %v3853
    %v5420 = vunpack.c.l.b16 %v3854
    %v5421 = vunpack.c.h.b16 %v3854
    %v5422 = vunpack.c.l.b16 %v3855
    %v5423 = vunpack.c.h.b16 %v3855
    %v5424 = vunpack.c.l.b16 %v3856
    %v5425 = vunpack.c.h.b16 %v3856
    %v5426 = vunpack.c.l.b16 %v3857
    %v5427 = vunpack.c.h.b16 %v3857
    %v5428 = vunpack.c.l.b16 %v3858
    %v5429 = vunpack.c.h.b16 %v3858
    %v5430 = vunpack.c.l.b16 %v3859
    %v5431 = vunpack.c.h.b16 %v3859
    %v5432 = vunpack.c.l.b16 %v3860
    %v5433 = vunpack.c.h.b16 %v3860
    %v5434 = vunpack.c.l.b16 %v3861
    %v5435 = vunpack.c.h.b16 %v3861
    %v5436 = vunpack.c.l.b16 %v3862
    %v5437 = vunpack.c.h.b16 %v3862
    %v5438 = vunpack.c.l.b16 %v3863
    %v5439 = vunpack.c.h.b16 %v3863
    %v5440 = vunpack.c.l.b16 %v3864
    %v5441 = vunpack.c.h.b16 %v3864
    %v5442 = vunpack.c.l.b16 %v3865
    %v5443 = vunpack.c.h.b16 %v3865
    %v5444 = vpack.c.b16 %v4428, %v4420
    %v5445 = vpack.c.b16 %v4429, %v4421
    %v5446 = vpack.c.b16 %v4430, %v4422
    %v5447 = vpack.c.b16 %v4431, %v4423
    %v5448 = vpack.c.b16 %v4432, %v4424
    %v5449 = vpack.c.b16 %v4433, %v4425
    %v5450 = vpack.c.b16 %v4434, %v4426
    %v5451 = vpack.c.b16 %v4435, %v4427
    %v5452 = vpack.c.b16 %v4444, %v4436
    %v5453 = vpack.c.b16 %v4445, %v4437
    %v5454 = vpack.c.b16 %v4446, %v4438
    %v5455 = vpack.c.b16 %v4447, %v4439
    %v5456 = vpack.c.b16 %v4448, %v4440
    %v5457 = vpack.c.b16 %v4449, %v4441
    %v5458 = vpack.c.b16 %v4450, %v4442
    %v5459 = vpack.c.b16 %v4451, %v4443
    %v5460 = vpack.c.b16 %v4460, %v4452
    %v5461 = vpack.c.b16 %v4461, %v4453
    %v5462 = vpack.c.b16 %v4462, %v4454
    %v5463 = vpack.c.b16 %v4463, %v4455
    %v5464 = vpack.c.b16 %v4464, %v4456
    %v5465 = vpack.c.b16 %v4465, %v4457
    %v5466 = vpack.c.b16 %v4466, %v4458
    %v5467 = vpack.c.b16 %v4467, %v4459
    %v5468 = vpack.c.b16 %v4476, %v4468
    %v5469 = vpack.c.b16 %v4477, %v4469
    %v5470 = vpack.c.b16 %v4478, %v4470
    %v5471 = vpack.c.b16 %v4479, %v4471
    %v5472 = vpack.c.b16 %v4480, %v4472
    %v5473 = vpack.c.b16 %v4481, %v4473
    %v5474 = vpack.c.b16 %v4482, %v4474
    %v5475 = vpack.c.b16 %v4483, %v4475
    %v5476 = vpack.c.b16 %v4492, %v4484
    %v5477 = vpack.c.b16 %v4493, %v4485
    %v5478 = vpack.c.b16 %v4494, %v4486
    %v5479 = vpack.c.b16 %v4495, %v4487
    %v5480 = vpack.c.b16 %v4496, %v4488
    %v5481 = vpack.c.b16 %v4497, %v4489
    %v5482 = vpack.c.b16 %v4498, %v4490
    %v5483 = vpack.c.b16 %v4499, %v4491
    %v5484 = vpack.c.b16 %v4508, %v4500
    %v5485 = vpack.c.b16 %v4509, %v4501
    %v5486 = vpack.c.b16 %v4510, %v4502
    %v5487 = vpack.c.b16 %v4511, %v4503
    %v5488 = vpack.c.b16 %v4512, %v4504
    %v5489 = vpack.c.b16 %v4513, %v4505
    %v5490 = vpack.c.b16 %v4514, %v4506
    %v5491 = vpack.c.b16 %v4515, %v4507
    %v5492 = vpack.c.b16 %v4524, %v4516
    %v5493 = vpack.c.b16 %v4525, %v4517
    %v5494 = vpack.c.b16 %v4526, %v4518
    %v5495 = vpack.c.b16 %v4527, %v4519
    %v5496 = vpack.c.b16 %v4528, %v4520
    %v5497 = vpack.c.b16 %v4529, %v4521
    %v5498 = vpack.c.b16 %v4530, %v4522
    %v5499 = vpack.c.b16 %v4531, %v4523
    %v5500 = vpack.c.b16 %v4540, %v4532
    %v5501 = vpack.c.b16 %v4541, %v4533
    %v5502 = vpack.c.b16 %v4542, %v4534
    %v5503 = vpack.c.b16 %v4543, %v4535
    %v5504 = vpack.c.b16 %v4544, %v4536
    %v5505 = vpack.c.b16 %v4545, %v4537
    %v5506 = vpack.c.b16 %v4546, %v4538
    %v5507 = vpack.c.b16 %v4547, %v4539
    %v5508 = vpack.c.b16 %v4556, %v4548
    %v5509 = vpack.c.b16 %v4557, %v4549
    %v5510 = vpack.c.b16 %v4558, %v4550
    %v5511 = vpack.c.b16 %v4559, %v4551
    %v5512 = vpack.c.b16 %v4560, %v4552
    %v5513 = vpack.c.b16 %v4561, %v4553
    %v5514 = vpack.c.b16 %v4562, %v4554
    %v5515 = vpack.c.b16 %v4563, %v4555
    %v5516 = vpack.c.b16 %v4572, %v4564
    %v5517 = vpack.c.b16 %v4573, %v4565
    %v5518 = vpack.c.b16 %v4574, %v4566
    %v5519 = vpack.c.b16 %v4575, %v4567
    %v5520 = vpack.c.b16 %v4576, %v4568
    %v5521 = vpack.c.b16 %v4577, %v4569
    %v5522 = vpack.c.b16 %v4578, %v4570
    %v5523 = vpack.c.b16 %v4579, %v4571
    %v5524 = vpack.c.b16 %v4588, %v4580
    %v5525 = vpack.c.b16 %v4589, %v4581
    %v5526 = vpack.c.b16 %v4590, %v4582
    %v5527 = vpack.c.b16 %v4591, %v4583
    %v5528 = vpack.c.b16 %v4592, %v4584
    %v5529 = vpack.c.b16 %v4593, %v4585
    %v5530 = vpack.c.b16 %v4594, %v4586
    %v5531 = vpack.c.b16 %v4595, %v4587
    %v5532 = vpack.c.b16 %v4604, %v4596
    %v5533 = vpack.c.b16 %v4605, %v4597
    %v5534 = vpack.c.b16 %v4606, %v4598
    %v5535 = vpack.c.b16 %v4607, %v4599
    %v5536 = vpack.c.b16 %v4608, %v4600
    %v5537 = vpack.c.b16 %v4609, %v4601
    %v5538 = vpack.c.b16 %v4610, %v4602
    %v5539 = vpack.c.b16 %v4611, %v4603
    %v5540 = vpack.c.b16 %v4620, %v4612
    %v5541 = vpack.c.b16 %v4621, %v4613
    %v5542 = vpack.c.b16 %v4622, %v4614
    %v5543 = vpack.c.b16 %v4623, %v4615
    %v5544 = vpack.c.b16 %v4624, %v4616
    %v5545 = vpack.c.b16 %v4625, %v4617
    %v5546 = vpack.c.b16 %v4626, %v4618
    %v5547 = vpack.c.b16 %v4627, %v4619
    %v5548 = vpack.c.b16 %v4636, %v4628
    %v5549 = vpack.c.b16 %v4637, %v4629
    %v5550 = vpack.c.b16 %v4638, %v4630
    %v5551 = vpack.c.b16 %v4639, %v4631
    %v5552 = vpack.c.b16 %v4640, %v4632
    %v5553 = vpack.c.b16 %v4641, %v4633
    %v5554 = vpack.c.b16 %v4642, %v4634
    %v5555 = vpack.c.b16 %v4643, %v4635
    %v5556 = vpack.c.b16 %v4652, %v4644
    %v5557 = vpack.c.b16 %v4653, %v4645
    %v5558 = vpack.c.b16 %v4654, %v4646
    %v5559 = vpack.c.b16 %v4655, %v4647
    %v5560 = vpack.c.b16 %v4656, %v4648
    %v5561 = vpack.c.b16 %v4657, %v4649
    %v5562 = vpack.c.b16 %v4658, %v4650
    %v5563 = vpack.c.b16 %v4659, %v4651
    %v5564 = vpack.c.b16 %v4668, %v4660
    %v5565 = vpack.c.b16 %v4669, %v4661
    %v5566 = vpack.c.b16 %v4670, %v4662
    %v5567 = vpack.c.b16 %v4671, %v4663
    %v5568 = vpack.c.b16 %v4672, %v4664
    %v5569 = vpack.c.b16 %v4673, %v4665
    %v5570 = vpack.c.b16 %v4674, %v4666
    %v5571 = vpack.c.b16 %v4675, %v4667
    %v5572 = vpack.c.b16 %v4684, %v4676
    %v5573 = vpack.c.b16 %v4685, %v4677
    %v5574 = vpack.c.b16 %v4686, %v4678
    %v5575 = vpack.c.b16 %v4687, %v4679
    %v5576 = vpack.c.b16 %v4688, %v4680
    %v5577 = vpack.c.b16 %v4689, %v4681
    %v5578 = vpack.c.b16 %v4690, %v4682
    %v5579 = vpack.c.b16 %v4691, %v4683
    %v5580 = vpack.c.b16 %v4700, %v4692
    %v5581 = vpack.c.b16 %v4701, %v4693
    %v5582 = vpack.c.b16 %v4702, %v4694
    %v5583 = vpack.c.b16 %v4703, %v4695
    %v5584 = vpack.c.b16 %v4704, %v4696
    %v5585 = vpack.c.b16 %v4705, %v4697
    %v5586 = vpack.c.b16 %v4706, %v4698
    %v5587 = vpack.c.b16 %v4707, %v4699
    %v5588 = vpack.c.b16 %v4716, %v4708
    %v5589 = vpack.c.b16 %v4717, %v4709
    %v5590 = vpack.c.b16 %v4718, %v4710
    %v5591 = vpack.c.b16 %v4719, %v4711
    %v5592 = vpack.c.b16 %v4720, %v4712
    %v5593 = vpack.c.b16 %v4721, %v4713
    %v5594 = vpack.c.b16 %v4722, %v4714
    %v5595 = vpack.c.b16 %v4723, %v4715
    %v5596 = vpack.c.b16 %v4732, %v4724
    %v5597 = vpack.c.b16 %v4733, %v4725
    %v5598 = vpack.c.b16 %v4734, %v4726
    %v5599 = vpack.c.b16 %v4735, %v4727
    %v5600 = vpack.c.b16 %v4736, %v4728
    %v5601 = vpack.c.b16 %v4737, %v4729
    %v5602 = vpack.c.b16 %v4738, %v4730
    %v5603 = vpack.c.b16 %v4739, %v4731
    %v5604 = vpack.c.b16 %v4748, %v4740
    %v5605 = vpack.c.b16 %v4749, %v4741
    %v5606 = vpack.c.b16 %v4750, %v4742
    %v5607 = vpack.c.b16 %v4751, %v4743
    %v5608 = vpack.c.b16 %v4752, %v4744
    %v5609 = vpack.c.b16 %v4753, %v4745
    %v5610 = vpack.c.b16 %v4754, %v4746
    %v5611 = vpack.c.b16 %v4755, %v4747
    %v5612 = vpack.c.b16 %v4764, %v4756
    %v5613 = vpack.c.b16 %v4765, %v4757
    %v5614 = vpack.c.b16 %v4766, %v4758
    %v5615 = vpack.c.b16 %v4767, %v4759
    %v5616 = vpack.c.b16 %v4768, %v4760
    %v5617 = vpack.c.b16 %v4769, %v4761
    %v5618 = vpack.c.b16 %v4770, %v4762
    %v5619 = vpack.c.b16 %v4771, %v4763
    %v5620 = vpack.c.b16 %v4780, %v4772
    %v5621 = vpack.c.b16 %v4781, %v4773
    %v5622 = vpack.c.b16 %v4782, %v4774
    %v5623 = vpack.c.b16 %v4783, %v4775
    %v5624 = vpack.c.b16 %v4784, %v4776
    %v5625 = vpack.c.b16 %v4785, %v4777
    %v5626 = vpack.c.b16 %v4786, %v4778
    %v5627 = vpack.c.b16 %v4787, %v4779
    %v5628 = vpack.c.b16 %v4796, %v4788
    %v5629 = vpack.c.b16 %v4797, %v4789
    %v5630 = vpack.c.b16 %v4798, %v4790
    %v5631 = vpack.c.b16 %v4799, %v4791
    %v5632 = vpack.c.b16 %v4800, %v4792
    %v5633 = vpack.c.b16 %v4801, %v4793
    %v5634 = vpack.c.b16 %v4802, %v4794
    %v5635 = vpack.c.b16 %v4803, %v4795
    %v5636 = vpack.c.b16 %v4812, %v4804
    %v5637 = vpack.c.b16 %v4813, %v4805
    %v5638 = vpack.c.b16 %v4814, %v4806
    %v5639 = vpack.c.b16 %v4815, %v4807
    %v5640 = vpack.c.b16 %v4816, %v4808
    %v5641 = vpack.c.b16 %v4817, %v4809
    %v5642 = vpack.c.b16 %v4818, %v4810
    %v5643 = vpack.c.b16 %v4819, %v4811
    %v5644 = vpack.c.b16 %v4828, %v4820
    %v5645 = vpack.c.b16 %v4829, %v4821
    %v5646 = vpack.c.b16 %v4830, %v4822
    %v5647 = vpack.c.b16 %v4831, %v4823
    %v5648 = vpack.c.b16 %v4832, %v4824
    %v5649 = vpack.c.b16 %v4833, %v4825
    %v5650 = vpack.c.b16 %v4834, %v4826
    %v5651 = vpack.c.b16 %v4835, %v4827
    %v5652 = vpack.c.b16 %v4844, %v4836
    %v5653 = vpack.c.b16 %v4845, %v4837
    %v5654 = vpack.c.b16 %v4846, %v4838
    %v5655 = vpack.c.b16 %v4847, %v4839
    %v5656 = vpack.c.b16 %v4848, %v4840
    %v5657 = vpack.c.b16 %v4849, %v4841
    %v5658 = vpack.c.b16 %v4850, %v4842
    %v5659 = vpack.c.b16 %v4851, %v4843
    %v5660 = vpack.c.b16 %v4860, %v4852
    %v5661 = vpack.c.b16 %v4861, %v4853
    %v5662 = vpack.c.b16 %v4862, %v4854
    %v5663 = vpack.c.b16 %v4863, %v4855
    %v5664 = vpack.c.b16 %v4864, %v4856
    %v5665 = vpack.c.b16 %v4865, %v4857
    %v5666 = vpack.c.b16 %v4866, %v4858
    %v5667 = vpack.c.b16 %v4867, %v4859
    %v5668 = vpack.c.b16 %v4876, %v4868
    %v5669 = vpack.c.b16 %v4877, %v4869
    %v5670 = vpack.c.b16 %v4878, %v4870
    %v5671 = vpack.c.b16 %v4879, %v4871
    %v5672 = vpack.c.b16 %v4880, %v4872
    %v5673 = vpack.c.b16 %v4881, %v4873
    %v5674 = vpack.c.b16 %v4882, %v4874
    %v5675 = vpack.c.b16 %v4883, %v4875
    %v5676 = vpack.c.b16 %v4892, %v4884
    %v5677 = vpack.c.b16 %v4893, %v4885
    %v5678 = vpack.c.b16 %v4894, %v4886
    %v5679 = vpack.c.b16 %v4895, %v4887
    %v5680 = vpack.c.b16 %v4896, %v4888
    %v5681 = vpack.c.b16 %v4897, %v4889
    %v5682 = vpack.c.b16 %v4898, %v4890
    %v5683 = vpack.c.b16 %v4899, %v4891
    %v5684 = vpack.c.b16 %v4908, %v4900
    %v5685 = vpack.c.b16 %v4909, %v4901
    %v5686 = vpack.c.b16 %v4910, %v4902
    %v5687 = vpack.c.b16 %v4911, %v4903
    %v5688 = vpack.c.b16 %v4912, %v4904
    %v5689 = vpack.c.b16 %v4913, %v4905
    %v5690 = vpack.c.b16 %v4914, %v4906
    %v5691 = vpack.c.b16 %v4915, %v4907
    %v5692 = vpack.c.b16 %v4924, %v4916
    %v5693 = vpack.c.b16 %v4925, %v4917
    %v5694 = vpack.c.b16 %v4926, %v4918
    %v5695 = vpack.c.b16 %v4927, %v4919
    %v5696 = vpack.c.b16 %v4928, %v4920
    %v5697 = vpack.c.b16 %v4929, %v4921
    %v5698 = vpack.c.b16 %v4930, %v4922
    %v5699 = vpack.c.b16 %v4931, %v4923
    %v5700 = vpack.c.b16 %v4940, %v4932
    %v5701 = vpack.c.b16 %v4941, %v4933
    %v5702 = vpack.c.b16 %v4942, %v4934
    %v5703 = vpack.c.b16 %v4943, %v4935
    %v5704 = vpack.c.b16 %v4944, %v4936
    %v5705 = vpack.c.b16 %v4945, %v4937
    %v5706 = vpack.c.b16 %v4946, %v4938
    %v5707 = vpack.c.b16 %v4947, %v4939
    %v5708 = vpack.c.b16 %v4956, %v4948
    %v5709 = vpack.c.b16 %v4957, %v4949
    %v5710 = vpack.c.b16 %v4958, %v4950
    %v5711 = vpack.c.b16 %v4959, %v4951
    %v5712 = vpack.c.b16 %v4960, %v4952
    %v5713 = vpack.c.b16 %v4961, %v4953
    %v5714 = vpack.c.b16 %v4962, %v4954
    %v5715 = vpack.c.b16 %v4963, %v4955
    %v5716 = vpack.c.b16 %v4972, %v4964
    %v5717 = vpack.c.b16 %v4973, %v4965
    %v5718 = vpack.c.b16 %v4974, %v4966
    %v5719 = vpack.c.b16 %v4975, %v4967
    %v5720 = vpack.c.b16 %v4976, %v4968
    %v5721 = vpack.c.b16 %v4977, %v4969
    %v5722 = vpack.c.b16 %v4978, %v4970
    %v5723 = vpack.c.b16 %v4979, %v4971
    %v5724 = vpack.c.b16 %v4988, %v4980
    %v5725 = vpack.c.b16 %v4989, %v4981
    %v5726 = vpack.c.b16 %v4990, %v4982
    %v5727 = vpack.c.b16 %v4991, %v4983
    %v5728 = vpack.c.b16 %v4992, %v4984
    %v5729 = vpack.c.b16 %v4993, %v4985
    %v5730 = vpack.c.b16 %v4994, %v4986
    %v5731 = vpack.c.b16 %v4995, %v4987
    %v5732 = vpack.c.b16 %v5004, %v4996
    %v5733 = vpack.c.b16 %v5005, %v4997
    %v5734 = vpack.c.b16 %v5006, %v4998
    %v5735 = vpack.c.b16 %v5007, %v4999
    %v5736 = vpack.c.b16 %v5008, %v5000
    %v5737 = vpack.c.b16 %v5009, %v5001
    %v5738 = vpack.c.b16 %v5010, %v5002
    %v5739 = vpack.c.b16 %v5011, %v5003
    %v5740 = vpack.c.b16 %v5020, %v5012
    %v5741 = vpack.c.b16 %v5021, %v5013
    %v5742 = vpack.c.b16 %v5022, %v5014
    %v5743 = vpack.c.b16 %v5023, %v5015
    %v5744 = vpack.c.b16 %v5024, %v5016
    %v5745 = vpack.c.b16 %v5025, %v5017
    %v5746 = vpack.c.b16 %v5026, %v5018
    %v5747 = vpack.c.b16 %v5027, %v5019
    %v5748 = vpack.c.b16 %v5036, %v5028
    %v5749 = vpack.c.b16 %v5037, %v5029
    %v5750 = vpack.c.b16 %v5038, %v5030
    %v5751 = vpack.c.b16 %v5039, %v5031
    %v5752 = vpack.c.b16 %v5040, %v5032
    %v5753 = vpack.c.b16 %v5041, %v5033
    %v5754 = vpack.c.b16 %v5042, %v5034
    %v5755 = vpack.c.b16 %v5043, %v5035
    %v5756 = vpack.c.b16 %v5052, %v5044
    %v5757 = vpack.c.b16 %v5053, %v5045
    %v5758 = vpack.c.b16 %v5054, %v5046
    %v5759 = vpack.c.b16 %v5055, %v5047
    %v5760 = vpack.c.b16 %v5056, %v5048
    %v5761 = vpack.c.b16 %v5057, %v5049
    %v5762 = vpack.c.b16 %v5058, %v5050
    %v5763 = vpack.c.b16 %v5059, %v5051
    %v5764 = vpack.c.b16 %v5068, %v5060
    %v5765 = vpack.c.b16 %v5069, %v5061
    %v5766 = vpack.c.b16 %v5070, %v5062
    %v5767 = vpack.c.b16 %v5071, %v5063
    %v5768 = vpack.c.b16 %v5072, %v5064
    %v5769 = vpack.c.b16 %v5073, %v5065
    %v5770 = vpack.c.b16 %v5074, %v5066
    %v5771 = vpack.c.b16 %v5075, %v5067
    %v5772 = vpack.c.b16 %v5084, %v5076
    %v5773 = vpack.c.b16 %v5085, %v5077
    %v5774 = vpack.c.b16 %v5086, %v5078
    %v5775 = vpack.c.b16 %v5087, %v5079
    %v5776 = vpack.c.b16 %v5088, %v5080
    %v5777 = vpack.c.b16 %v5089, %v5081
    %v5778 = vpack.c.b16 %v5090, %v5082
    %v5779 = vpack.c.b16 %v5091, %v5083
    %v5780 = vpack.c.b16 %v5100, %v5092
    %v5781 = vpack.c.b16 %v5101, %v5093
    %v5782 = vpack.c.b16 %v5102, %v5094
    %v5783 = vpack.c.b16 %v5103, %v5095
    %v5784 = vpack.c.b16 %v5104, %v5096
    %v5785 = vpack.c.b16 %v5105, %v5097
    %v5786 = vpack.c.b16 %v5106, %v5098
    %v5787 = vpack.c.b16 %v5107, %v5099
    %v5788 = vpack.c.b16 %v5116, %v5108
    %v5789 = vpack.c.b16 %v5117, %v5109
    %v5790 = vpack.c.b16 %v5118, %v5110
    %v5791 = vpack.c.b16 %v5119, %v5111
    %v5792 = vpack.c.b16 %v5120, %v5112
    %v5793 = vpack.c.b16 %v5121, %v5113
    %v5794 = vpack.c.b16 %v5122, %v5114
    %v5795 = vpack.c.b16 %v5123, %v5115
    %v5796 = vpack.c.b16 %v5132, %v5124
    %v5797 = vpack.c.b16 %v5133, %v5125
    %v5798 = vpack.c.b16 %v5134, %v5126
    %v5799 = vpack.c.b16 %v5135, %v5127
    %v5800 = vpack.c.b16 %v5136, %v5128
    %v5801 = vpack.c.b16 %v5137, %v5129
    %v5802 = vpack.c.b16 %v5138, %v5130
    %v5803 = vpack.c.b16 %v5139, %v5131
    %v5804 = vpack.c.b16 %v5148, %v5140
    %v5805 = vpack.c.b16 %v5149, %v5141
    %v5806 = vpack.c.b16 %v5150, %v5142
    %v5807 = vpack.c.b16 %v5151, %v5143
    %v5808 = vpack.c.b16 %v5152, %v5144
    %v5809 = vpack.c.b16 %v5153, %v5145
    %v5810 = vpack.c.b16 %v5154, %v5146
    %v5811 = vpack.c.b16 %v5155, %v5147
    %v5812 = vpack.c.b16 %v5164, %v5156
    %v5813 = vpack.c.b16 %v5165, %v5157
    %v5814 = vpack.c.b16 %v5166, %v5158
    %v5815 = vpack.c.b16 %v5167, %v5159
    %v5816 = vpack.c.b16 %v5168, %v5160
    %v5817 = vpack.c.b16 %v5169, %v5161
    %v5818 = vpack.c.b16 %v5170, %v5162
    %v5819 = vpack.c.b16 %v5171, %v5163
    %v5820 = vpack.c.b16 %v5180, %v5172
    %v5821 = vpack.c.b16 %v5181, %v5173
    %v5822 = vpack.c.b16 %v5182, %v5174
    %v5823 = vpack.c.b16 %v5183, %v5175
    %v5824 = vpack.c.b16 %v5184, %v5176
    %v5825 = vpack.c.b16 %v5185, %v5177
    %v5826 = vpack.c.b16 %v5186, %v5178
    %v5827 = vpack.c.b16 %v5187, %v5179
    %v5828 = vpack.c.b16 %v5196, %v5188
    %v5829 = vpack.c.b16 %v5197, %v5189
    %v5830 = vpack.c.b16 %v5198, %v5190
    %v5831 = vpack.c.b16 %v5199, %v5191
    %v5832 = vpack.c.b16 %v5200, %v5192
    %v5833 = vpack.c.b16 %v5201, %v5193
    %v5834 = vpack.c.b16 %v5202, %v5194
    %v5835 = vpack.c.b16 %v5203, %v5195
    %v5836 = vpack.c.b16 %v5212, %v5204
    %v5837 = vpack.c.b16 %v5213, %v5205
    %v5838 = vpack.c.b16 %v5214, %v5206
    %v5839 = vpack.c.b16 %v5215, %v5207
    %v5840 = vpack.c.b16 %v5216, %v5208
    %v5841 = vpack.c.b16 %v5217, %v5209
    %v5842 = vpack.c.b16 %v5218, %v5210
    %v5843 = vpack.c.b16 %v5219, %v5211
    %v5844 = vpack.c.b16 %v5228, %v5220
    %v5845 = vpack.c.b16 %v5229, %v5221
    %v5846 = vpack.c.b16 %v5230, %v5222
    %v5847 = vpack.c.b16 %v5231, %v5223
    %v5848 = vpack.c.b16 %v5232, %v5224
    %v5849 = vpack.c.b16 %v5233, %v5225
    %v5850 = vpack.c.b16 %v5234, %v5226
    %v5851 = vpack.c.b16 %v5235, %v5227
    %v5852 = vpack.c.b16 %v5244, %v5236
    %v5853 = vpack.c.b16 %v5245, %v5237
    %v5854 = vpack.c.b16 %v5246, %v5238
    %v5855 = vpack.c.b16 %v5247, %v5239
    %v5856 = vpack.c.b16 %v5248, %v5240
    %v5857 = vpack.c.b16 %v5249, %v5241
    %v5858 = vpack.c.b16 %v5250, %v5242
    %v5859 = vpack.c.b16 %v5251, %v5243
    %v5860 = vpack.c.b16 %v5260, %v5252
    %v5861 = vpack.c.b16 %v5261, %v5253
    %v5862 = vpack.c.b16 %v5262, %v5254
    %v5863 = vpack.c.b16 %v5263, %v5255
    %v5864 = vpack.c.b16 %v5264, %v5256
    %v5865 = vpack.c.b16 %v5265, %v5257
    %v5866 = vpack.c.b16 %v5266, %v5258
    %v5867 = vpack.c.b16 %v5267, %v5259
    %v5868 = vpack.c.b16 %v5276, %v5268
    %v5869 = vpack.c.b16 %v5277, %v5269
    %v5870 = vpack.c.b16 %v5278, %v5270
    %v5871 = vpack.c.b16 %v5279, %v5271
    %v5872 = vpack.c.b16 %v5280, %v5272
    %v5873 = vpack.c.b16 %v5281, %v5273
    %v5874 = vpack.c.b16 %v5282, %v5274
    %v5875 = vpack.c.b16 %v5283, %v5275
    %v5876 = vpack.c.b16 %v5292, %v5284
    %v5877 = vpack.c.b16 %v5293, %v5285
    %v5878 = vpack.c.b16 %v5294, %v5286
    %v5879 = vpack.c.b16 %v5295, %v5287
    %v5880 = vpack.c.b16 %v5296, %v5288
    %v5881 = vpack.c.b16 %v5297, %v5289
    %v5882 = vpack.c.b16 %v5298, %v5290
    %v5883 = vpack.c.b16 %v5299, %v5291
    %v5884 = vpack.c.b16 %v5308, %v5300
    %v5885 = vpack.c.b16 %v5309, %v5301
    %v5886 = vpack.c.b16 %v5310, %v5302
    %v5887 = vpack.c.b16 %v5311, %v5303
    %v5888 = vpack.c.b16 %v5312, %v5304
    %v5889 = vpack.c.b16 %v5313, %v5305
    %v5890 = vpack.c.b16 %v5314, %v5306
    %v5891 = vpack.c.b16 %v5315, %v5307
    %v5892 = vpack.c.b16 %v5324, %v5316
    %v5893 = vpack.c.b16 %v5325, %v5317
    %v5894 = vpack.c.b16 %v5326, %v5318
    %v5895 = vpack.c.b16 %v5327, %v5319
    %v5896 = vpack.c.b16 %v5328, %v5320
    %v5897 = vpack.c.b16 %v5329, %v5321
    %v5898 = vpack.c.b16 %v5330, %v5322
    %v5899 = vpack.c.b16 %v5331, %v5323
    %v5900 = vpack.c.b16 %v5340, %v5332
    %v5901 = vpack.c.b16 %v5341, %v5333
    %v5902 = vpack.c.b16 %v5342, %v5334
    %v5903 = vpack.c.b16 %v5343, %v5335
    %v5904 = vpack.c.b16 %v5344, %v5336
    %v5905 = vpack.c.b16 %v5345, %v5337
    %v5906 = vpack.c.b16 %v5346, %v5338
    %v5907 = vpack.c.b16 %v5347, %v5339
    %v5908 = vpack.c.b16 %v5356, %v5348
    %v5909 = vpack.c.b16 %v5357, %v5349
    %v5910 = vpack.c.b16 %v5358, %v5350
    %v5911 = vpack.c.b16 %v5359, %v5351
    %v5912 = vpack.c.b16 %v5360, %v5352
    %v5913 = vpack.c.b16 %v5361, %v5353
    %v5914 = vpack.c.b16 %v5362, %v5354
    %v5915 = vpack.c.b16 %v5363, %v5355
    %v5916 = vpack.c.b16 %v5372, %v5364
    %v5917 = vpack.c.b16 %v5373, %v5365
    %v5918 = vpack.c.b16 %v5374, %v5366
    %v5919 = vpack.c.b16 %v5375, %v5367
    %v5920 = vpack.c.b16 %v5376, %v5368
    %v5921 = vpack.c.b16 %v5377, %v5369
    %v5922 = vpack.c.b16 %v5378, %v5370
    %v5923 = vpack.c.b16 %v5379, %v5371
    %v5924 = vpack.c.b16 %v5388, %v5380
    %v5925 = vpack.c.b16 %v5389, %v5381
    %v5926 = vpack.c.b16 %v5390, %v5382
    %v5927 = vpack.c.b16 %v5391, %v5383
    %v5928 = vpack.c.b16 %v5392, %v5384
    %v5929 = vpack.c.b16 %v5393, %v5385
    %v5930 = vpack.c.b16 %v5394, %v5386
    %v5931 = vpack.c.b16 %v5395, %v5387
    %v5932 = vpack.c.b16 %v5404, %v5396
    %v5933 = vpack.c.b16 %v5405, %v5397
    %v5934 = vpack.c.b16 %v5406, %v5398
    %v5935 = vpack.c.b16 %v5407, %v5399
    %v5936 = vpack.c.b16 %v5408, %v5400
    %v5937 = vpack.c.b16 %v5409, %v5401
    %v5938 = vpack.c.b16 %v5410, %v5402
    %v5939 = vpack.c.b16 %v5411, %v5403
    %v5940 = vpack.c.b16 %v5420, %v5412
    %v5941 = vpack.c.b16 %v5421, %v5413
    %v5942 = vpack.c.b16 %v5422, %v5414
    %v5943 = vpack.c.b16 %v5423, %v5415
    %v5944 = vpack.c.b16 %v5424, %v5416
    %v5945 = vpack.c.b16 %v5425, %v5417
    %v5946 = vpack.c.b16 %v5426, %v5418
    %v5947 = vpack.c.b16 %v5427, %v5419
    %v5948 = vpack.c.b16 %v5436, %v5428
    %v5949 = vpack.c.b16 %v5437, %v5429
    %v5950 = vpack.c.b16 %v5438, %v5430
    %v5951 = vpack.c.b16 %v5439, %v5431
    %v5952 = vpack.c.b16 %v5440, %v5432
    %v5953 = vpack.c.b16 %v5441, %v5433
    %v5954 = vpack.c.b16 %v5442, %v5434
    %v5955 = vpack.c.b16 %v5443, %v5435
    %6468 = vmatprep.subr.bf16.mxu0 %v5501
    %6469 = vmatpush1.bf16.msra.mxu0 %v5500
    %6470 = vmatprep.subr.bf16.mxu0 %v5493
    %6471 = vmatpush1.bf16.msra.mxu0 %v5492
    %6472 = vmatprep.subr.bf16.mxu0 %v5485
    %6473 = vmatpush1.bf16.msra.mxu0 %v5484
    %6474 = vmatprep.subr.bf16.mxu0 %v5477
    %6475 = vmatpush1.bf16.msra.mxu0 %v5476
    %6476 = vmatprep.subr.bf16.mxu0 %v5469
    %6477 = vmatpush1.bf16.msra.mxu0 %v5468
    %6478 = vmatprep.subr.bf16.mxu0 %v5461
    %6479 = vmatpush1.bf16.msra.mxu0 %v5460
    %6480 = vmatprep.subr.bf16.mxu0 %v5453
    %6481 = vmatpush1.bf16.msra.mxu0 %v5452
    %6482 = vmatprep.subr.bf16.mxu0 %v5445
    %6483 = vmatpush1.bf16.msra.mxu0 %v5444
    %6484 = vmatprep.subr.bf16.mxu0 %v5565
    %6485 = vmatpush2.bf16.msra.mxu0 %v5564
    %6486 = vmatprep.subr.bf16.mxu0 %v5557
    %6487 = vmatpush2.bf16.msra.mxu0 %v5556
    %6488 = vmatprep.subr.bf16.mxu0 %v5549
    %6489 = vmatpush2.bf16.msra.mxu0 %v5548
    %6490 = vmatprep.subr.bf16.mxu0 %v5541
    %6491 = vmatpush2.bf16.msra.mxu0 %v5540
    %6492 = vmatprep.subr.bf16.mxu0 %v5533
    %6493 = vmatpush2.bf16.msra.mxu0 %v5532
    %6494 = vmatprep.subr.bf16.mxu0 %v5525
    %6495 = vmatpush2.bf16.msra.mxu0 %v5524
    %6496 = vmatprep.subr.bf16.mxu0 %v5517
    %6497 = vmatpush2.bf16.msra.mxu0 %v5516
    %6498 = vmatprep.subr.bf16.mxu0 %v5509
    %6499 = vmatpush2.bf16.msra.mxu0 %v5508
    %6500 = vmatprep.mubr.bf16.mxu0 %v3347
    %6501 = vmatmul.mubr.bf16.gmra.mxu0 %v3346
    %v6502 = vpop.f32.mrf.mxu0
    %v6503 = vadd.f32 %v3871, %v6502
    %v6504 = vpop.f32.mrf.mxu0
    %v6505 = vadd.f32 %v3875, %v6504
    %v6506 = vpop.f32.mrf.mxu0
    %v6507 = vpop.f32.mrf.mxu0
    %6508 = vdwg.mxu0
    %6509 = vmatprep.subr.bf16.mxu0 %v5629
    %6510 = vmatpush1.bf16.msra.mxu0 %v5628
    %6511 = vmatprep.subr.bf16.mxu0 %v5621
    %6512 = vmatpush1.bf16.msra.mxu0 %v5620
    %6513 = vmatprep.subr.bf16.mxu0 %v5613
    %6514 = vmatpush1.bf16.msra.mxu0 %v5612
    %6515 = vmatprep.subr.bf16.mxu0 %v5605
    %6516 = vmatpush1.bf16.msra.mxu0 %v5604
    %6517 = vmatprep.subr.bf16.mxu0 %v5597
    %6518 = vmatpush1.bf16.msra.mxu0 %v5596
    %6519 = vmatprep.subr.bf16.mxu0 %v5589
    %6520 = vmatpush1.bf16.msra.mxu0 %v5588
    %6521 = vmatprep.subr.bf16.mxu0 %v5581
    %6522 = vmatpush1.bf16.msra.mxu0 %v5580
    %6523 = vmatprep.subr.bf16.mxu0 %v5573
    %6524 = vmatpush1.bf16.msra.mxu0 %v5572
    %6525 = vmatprep.subr.bf16.mxu0 %v5693
    %6526 = vmatpush2.bf16.msra.mxu0 %v5692
    %6527 = vmatprep.subr.bf16.mxu0 %v5685
    %6528 = vmatpush2.bf16.msra.mxu0 %v5684
    %6529 = vmatprep.subr.bf16.mxu0 %v5677
    %6530 = vmatpush2.bf16.msra.mxu0 %v5676
    %6531 = vmatprep.subr.bf16.mxu0 %v5669
    %6532 = vmatpush2.bf16.msra.mxu0 %v5668
    %6533 = vmatprep.subr.bf16.mxu0 %v5661
    %6534 = vmatpush2.bf16.msra.mxu0 %v5660
    %6535 = vmatprep.subr.bf16.mxu0 %v5653
    %6536 = vmatpush2.bf16.msra.mxu0 %v5652
    %6537 = vmatprep.subr.bf16.mxu0 %v5645
    %6538 = vmatpush2.bf16.msra.mxu0 %v5644
    %6539 = vmatprep.subr.bf16.mxu0 %v5637
    %6540 = vmatpush2.bf16.msra.mxu0 %v5636
    %6541 = vmatprep.mubr.bf16.mxu0 %v3349
    %6542 = vmatmul.mubr.bf16.gmra.mxu0 %v3348
    %v6543 = vpop.f32.mrf.mxu0
    %v6544 = vadd.f32 %v6503, %v6543
    %v6545 = vpop.f32.mrf.mxu0
    %v6546 = vadd.f32 %v6505, %v6545
    %v6547 = vpop.f32.mrf.mxu0
    %v6548 = vpop.f32.mrf.mxu0
    %6549 = vdwg.mxu0
    %6550 = vmatprep.subr.bf16.mxu0 %v5757
    %6551 = vmatpush1.bf16.msra.mxu0 %v5756
    %6552 = vmatprep.subr.bf16.mxu0 %v5749
    %6553 = vmatpush1.bf16.msra.mxu0 %v5748
    %6554 = vmatprep.subr.bf16.mxu0 %v5741
    %6555 = vmatpush1.bf16.msra.mxu0 %v5740
    %6556 = vmatprep.subr.bf16.mxu0 %v5733
    %6557 = vmatpush1.bf16.msra.mxu0 %v5732
    %6558 = vmatprep.subr.bf16.mxu0 %v5725
    %6559 = vmatpush1.bf16.msra.mxu0 %v5724
    %6560 = vmatprep.subr.bf16.mxu0 %v5717
    %6561 = vmatpush1.bf16.msra.mxu0 %v5716
    %6562 = vmatprep.subr.bf16.mxu0 %v5709
    %6563 = vmatpush1.bf16.msra.mxu0 %v5708
    %6564 = vmatprep.subr.bf16.mxu0 %v5701
    %6565 = vmatpush1.bf16.msra.mxu0 %v5700
    %6566 = vmatprep.subr.bf16.mxu0 %v5821
    %6567 = vmatpush2.bf16.msra.mxu0 %v5820
    %6568 = vmatprep.subr.bf16.mxu0 %v5813
    %6569 = vmatpush2.bf16.msra.mxu0 %v5812
    %6570 = vmatprep.subr.bf16.mxu0 %v5805
    %6571 = vmatpush2.bf16.msra.mxu0 %v5804
    %6572 = vmatprep.subr.bf16.mxu0 %v5797
    %6573 = vmatpush2.bf16.msra.mxu0 %v5796
    %6574 = vmatprep.subr.bf16.mxu0 %v5789
    %6575 = vmatpush2.bf16.msra.mxu0 %v5788
    %6576 = vmatprep.subr.bf16.mxu0 %v5781
    %6577 = vmatpush2.bf16.msra.mxu0 %v5780
    %6578 = vmatprep.subr.bf16.mxu0 %v5773
    %6579 = vmatpush2.bf16.msra.mxu0 %v5772
    %6580 = vmatprep.subr.bf16.mxu0 %v5765
    %6581 = vmatpush2.bf16.msra.mxu0 %v5764
    %6582 = vmatprep.mubr.bf16.mxu0 %v3351
    %6583 = vmatmul.mubr.bf16.gmra.mxu0 %v3350
    %v6584 = vpop.f32.mrf.mxu0
    %v6585 = vadd.f32 %v6544, %v6584
    %v6586 = vpop.f32.mrf.mxu0
    %v6587 = vadd.f32 %v6546, %v6586
    %v6588 = vpop.f32.mrf.mxu0
    %v6589 = vpop.f32.mrf.mxu0
    %6590 = vdwg.mxu0
    %6591 = vmatprep.subr.bf16.mxu0 %v5885
    %6592 = vmatpush1.bf16.msra.mxu0 %v5884
    %6593 = vmatprep.subr.bf16.mxu0 %v5877
    %6594 = vmatpush1.bf16.msra.mxu0 %v5876
    %6595 = vmatprep.subr.bf16.mxu0 %v5869
    %6596 = vmatpush1.bf16.msra.mxu0 %v5868
    %6597 = vmatprep.subr.bf16.mxu0 %v5861
    %6598 = vmatpush1.bf16.msra.mxu0 %v5860
    %6599 = vmatprep.subr.bf16.mxu0 %v5853
    %6600 = vmatpush1.bf16.msra.mxu0 %v5852
    %6601 = vmatprep.subr.bf16.mxu0 %v5845
    %6602 = vmatpush1.bf16.msra.mxu0 %v5844
    %6603 = vmatprep.subr.bf16.mxu0 %v5837
    %6604 = vmatpush1.bf16.msra.mxu0 %v5836
    %6605 = vmatprep.subr.bf16.mxu0 %v5829
    %6606 = vmatpush1.bf16.msra.mxu0 %v5828
    %6607 = vmatprep.subr.bf16.mxu0 %v5949
    %6608 = vmatpush2.bf16.msra.mxu0 %v5948
    %6609 = vmatprep.subr.bf16.mxu0 %v5941
    %6610 = vmatpush2.bf16.msra.mxu0 %v5940
    %6611 = vmatprep.subr.bf16.mxu0 %v5933
    %6612 = vmatpush2.bf16.msra.mxu0 %v5932
    %6613 = vmatprep.subr.bf16.mxu0 %v5925
    %6614 = vmatpush2.bf16.msra.mxu0 %v5924
    %6615 = vmatprep.subr.bf16.mxu0 %v5917
    %6616 = vmatpush2.bf16.msra.mxu0 %v5916
    %6617 = vmatprep.subr.bf16.mxu0 %v5909
    %6618 = vmatpush2.bf16.msra.mxu0 %v5908
    %6619 = vmatprep.subr.bf16.mxu0 %v5901
    %6620 = vmatpush2.bf16.msra.mxu0 %v5900
    %6621 = vmatprep.subr.bf16.mxu0 %v5893
    %6622 = vmatpush2.bf16.msra.mxu0 %v5892
    %6623 = vmatprep.mubr.bf16.mxu0 %v3353
    %6624 = vmatmul.mubr.bf16.gmra.mxu0 %v3352
    %v6625 = vpop.f32.mrf.mxu0
    %v6626 = vadd.f32 %v6585, %v6625
    %v6627 = vpop.f32.mrf.mxu0
    %v6628 = vadd.f32 %v6587, %v6627
    %v6629 = vpop.f32.mrf.mxu0
    %v6630 = vpop.f32.mrf.mxu0
    %6631 = vdwg.mxu0
    %6632 = vmatprep.subr.bf16.mxu0 %v5503
    %6633 = vmatpush1.bf16.msra.mxu0 %v5502
    %6634 = vmatprep.subr.bf16.mxu0 %v5495
    %6635 = vmatpush1.bf16.msra.mxu0 %v5494
    %6636 = vmatprep.subr.bf16.mxu0 %v5487
    %6637 = vmatpush1.bf16.msra.mxu0 %v5486
    %6638 = vmatprep.subr.bf16.mxu0 %v5479
    %6639 = vmatpush1.bf16.msra.mxu0 %v5478
    %6640 = vmatprep.subr.bf16.mxu0 %v5471
    %6641 = vmatpush1.bf16.msra.mxu0 %v5470
    %6642 = vmatprep.subr.bf16.mxu0 %v5463
    %6643 = vmatpush1.bf16.msra.mxu0 %v5462
    %6644 = vmatprep.subr.bf16.mxu0 %v5455
    %6645 = vmatpush1.bf16.msra.mxu0 %v5454
    %6646 = vmatprep.subr.bf16.mxu0 %v5447
    %6647 = vmatpush1.bf16.msra.mxu0 %v5446
    %6648 = vmatprep.subr.bf16.mxu0 %v5567
    %6649 = vmatpush2.bf16.msra.mxu0 %v5566
    %6650 = vmatprep.subr.bf16.mxu0 %v5559
    %6651 = vmatpush2.bf16.msra.mxu0 %v5558
    %6652 = vmatprep.subr.bf16.mxu0 %v5551
    %6653 = vmatpush2.bf16.msra.mxu0 %v5550
    %6654 = vmatprep.subr.bf16.mxu0 %v5543
    %6655 = vmatpush2.bf16.msra.mxu0 %v5542
    %6656 = vmatprep.subr.bf16.mxu0 %v5535
    %6657 = vmatpush2.bf16.msra.mxu0 %v5534
    %6658 = vmatprep.subr.bf16.mxu0 %v5527
    %6659 = vmatpush2.bf16.msra.mxu0 %v5526
    %6660 = vmatprep.subr.bf16.mxu0 %v5519
    %6661 = vmatpush2.bf16.msra.mxu0 %v5518
    %6662 = vmatprep.subr.bf16.mxu0 %v5511
    %6663 = vmatpush2.bf16.msra.mxu0 %v5510
    %6664 = vmatprep.mubr.bf16.mxu0 %v3347
    %6665 = vmatmul.mubr.bf16.gmra.mxu0 %v3346
    %v6666 = vpop.f32.mrf.mxu0
    %v6667 = vadd.f32 %v3879, %v6666
    %v6668 = vpop.f32.mrf.mxu0
    %v6669 = vadd.f32 %v3883, %v6668
    %v6670 = vpop.f32.mrf.mxu0
    %v6671 = vpop.f32.mrf.mxu0
    %6672 = vdwg.mxu0
    %6673 = vmatprep.subr.bf16.mxu0 %v5631
    %6674 = vmatpush1.bf16.msra.mxu0 %v5630
    %6675 = vmatprep.subr.bf16.mxu0 %v5623
    %6676 = vmatpush1.bf16.msra.mxu0 %v5622
    %6677 = vmatprep.subr.bf16.mxu0 %v5615
    %6678 = vmatpush1.bf16.msra.mxu0 %v5614
    %6679 = vmatprep.subr.bf16.mxu0 %v5607
    %6680 = vmatpush1.bf16.msra.mxu0 %v5606
    %6681 = vmatprep.subr.bf16.mxu0 %v5599
    %6682 = vmatpush1.bf16.msra.mxu0 %v5598
    %6683 = vmatprep.subr.bf16.mxu0 %v5591
    %6684 = vmatpush1.bf16.msra.mxu0 %v5590
    %6685 = vmatprep.subr.bf16.mxu0 %v5583
    %6686 = vmatpush1.bf16.msra.mxu0 %v5582
    %6687 = vmatprep.subr.bf16.mxu0 %v5575
    %6688 = vmatpush1.bf16.msra.mxu0 %v5574
    %6689 = vmatprep.subr.bf16.mxu0 %v5695
    %6690 = vmatpush2.bf16.msra.mxu0 %v5694
    %6691 = vmatprep.subr.bf16.mxu0 %v5687
    %6692 = vmatpush2.bf16.msra.mxu0 %v5686
    %6693 = vmatprep.subr.bf16.mxu0 %v5679
    %6694 = vmatpush2.bf16.msra.mxu0 %v5678
    %6695 = vmatprep.subr.bf16.mxu0 %v5671
    %6696 = vmatpush2.bf16.msra.mxu0 %v5670
    %6697 = vmatprep.subr.bf16.mxu0 %v5663
    %6698 = vmatpush2.bf16.msra.mxu0 %v5662
    %6699 = vmatprep.subr.bf16.mxu0 %v5655
    %6700 = vmatpush2.bf16.msra.mxu0 %v5654
    %6701 = vmatprep.subr.bf16.mxu0 %v5647
    %6702 = vmatpush2.bf16.msra.mxu0 %v5646
    %6703 = vmatprep.subr.bf16.mxu0 %v5639
    %6704 = vmatpush2.bf16.msra.mxu0 %v5638
    %6705 = vmatprep.mubr.bf16.mxu0 %v3349
    %6706 = vmatmul.mubr.bf16.gmra.mxu0 %v3348
    %v6707 = vpop.f32.mrf.mxu0
    %v6708 = vadd.f32 %v6667, %v6707
    %v6709 = vpop.f32.mrf.mxu0
    %v6710 = vadd.f32 %v6669, %v6709
    %v6711 = vpop.f32.mrf.mxu0
    %v6712 = vpop.f32.mrf.mxu0
    %6713 = vdwg.mxu0
    %6714 = vmatprep.subr.bf16.mxu0 %v5759
    %6715 = vmatpush1.bf16.msra.mxu0 %v5758
    %6716 = vmatprep.subr.bf16.mxu0 %v5751
    %6717 = vmatpush1.bf16.msra.mxu0 %v5750
    %6718 = vmatprep.subr.bf16.mxu0 %v5743
    %6719 = vmatpush1.bf16.msra.mxu0 %v5742
    %6720 = vmatprep.subr.bf16.mxu0 %v5735
    %6721 = vmatpush1.bf16.msra.mxu0 %v5734
    %6722 = vmatprep.subr.bf16.mxu0 %v5727
    %6723 = vmatpush1.bf16.msra.mxu0 %v5726
    %6724 = vmatprep.subr.bf16.mxu0 %v5719
    %6725 = vmatpush1.bf16.msra.mxu0 %v5718
    %6726 = vmatprep.subr.bf16.mxu0 %v5711
    %6727 = vmatpush1.bf16.msra.mxu0 %v5710
    %6728 = vmatprep.subr.bf16.mxu0 %v5703
    %6729 = vmatpush1.bf16.msra.mxu0 %v5702
    %6730 = vmatprep.subr.bf16.mxu0 %v5823
    %6731 = vmatpush2.bf16.msra.mxu0 %v5822
    %6732 = vmatprep.subr.bf16.mxu0 %v5815
    %6733 = vmatpush2.bf16.msra.mxu0 %v5814
    %6734 = vmatprep.subr.bf16.mxu0 %v5807
    %6735 = vmatpush2.bf16.msra.mxu0 %v5806
    %6736 = vmatprep.subr.bf16.mxu0 %v5799
    %6737 = vmatpush2.bf16.msra.mxu0 %v5798
    %6738 = vmatprep.subr.bf16.mxu0 %v5791
    %6739 = vmatpush2.bf16.msra.mxu0 %v5790
    %6740 = vmatprep.subr.bf16.mxu0 %v5783
    %6741 = vmatpush2.bf16.msra.mxu0 %v5782
    %6742 = vmatprep.subr.bf16.mxu0 %v5775
    %6743 = vmatpush2.bf16.msra.mxu0 %v5774
    %6744 = vmatprep.subr.bf16.mxu0 %v5767
    %6745 = vmatpush2.bf16.msra.mxu0 %v5766
    %6746 = vmatprep.mubr.bf16.mxu0 %v3351
    %6747 = vmatmul.mubr.bf16.gmra.mxu0 %v3350
    %v6748 = vpop.f32.mrf.mxu0
    %v6749 = vadd.f32 %v6708, %v6748
    %v6750 = vpop.f32.mrf.mxu0
    %v6751 = vadd.f32 %v6710, %v6750
    %v6752 = vpop.f32.mrf.mxu0
    %v6753 = vpop.f32.mrf.mxu0
    %6754 = vdwg.mxu0
    %6755 = vmatprep.subr.bf16.mxu0 %v5887
    %6756 = vmatpush1.bf16.msra.mxu0 %v5886
    %6757 = vmatprep.subr.bf16.mxu0 %v5879
    %6758 = vmatpush1.bf16.msra.mxu0 %v5878
    %6759 = vmatprep.subr.bf16.mxu0 %v5871
    %6760 = vmatpush1.bf16.msra.mxu0 %v5870
    %6761 = vmatprep.subr.bf16.mxu0 %v5863
    %6762 = vmatpush1.bf16.msra.mxu0 %v5862
    %6763 = vmatprep.subr.bf16.mxu0 %v5855
    %6764 = vmatpush1.bf16.msra.mxu0 %v5854
    %6765 = vmatprep.subr.bf16.mxu0 %v5847
    %6766 = vmatpush1.bf16.msra.mxu0 %v5846
    %6767 = vmatprep.subr.bf16.mxu0 %v5839
    %6768 = vmatpush1.bf16.msra.mxu0 %v5838
    %6769 = vmatprep.subr.bf16.mxu0 %v5831
    %6770 = vmatpush1.bf16.msra.mxu0 %v5830
    %6771 = vmatprep.subr.bf16.mxu0 %v5951
    %6772 = vmatpush2.bf16.msra.mxu0 %v5950
    %6773 = vmatprep.subr.bf16.mxu0 %v5943
    %6774 = vmatpush2.bf16.msra.mxu0 %v5942
    %6775 = vmatprep.subr.bf16.mxu0 %v5935
    %6776 = vmatpush2.bf16.msra.mxu0 %v5934
    %6777 = vmatprep.subr.bf16.mxu0 %v5927
    %6778 = vmatpush2.bf16.msra.mxu0 %v5926
    %6779 = vmatprep.subr.bf16.mxu0 %v5919
    %6780 = vmatpush2.bf16.msra.mxu0 %v5918
    %6781 = vmatprep.subr.bf16.mxu0 %v5911
    %6782 = vmatpush2.bf16.msra.mxu0 %v5910
    %6783 = vmatprep.subr.bf16.mxu0 %v5903
    %6784 = vmatpush2.bf16.msra.mxu0 %v5902
    %6785 = vmatprep.subr.bf16.mxu0 %v5895
    %6786 = vmatpush2.bf16.msra.mxu0 %v5894
    %6787 = vmatprep.mubr.bf16.mxu0 %v3353
    %6788 = vmatmul.mubr.bf16.gmra.mxu0 %v3352
    %v6789 = vpop.f32.mrf.mxu0
    %v6790 = vadd.f32 %v6749, %v6789
    %v6791 = vpop.f32.mrf.mxu0
    %v6792 = vadd.f32 %v6751, %v6791
    %v6793 = vpop.f32.mrf.mxu0
    %v6794 = vpop.f32.mrf.mxu0
    %6795 = vdwg.mxu0
    %6796 = vmatprep.subr.bf16.mxu0 %v5505
    %6797 = vmatpush1.bf16.msra.mxu0 %v5504
    %6798 = vmatprep.subr.bf16.mxu0 %v5497
    %6799 = vmatpush1.bf16.msra.mxu0 %v5496
    %6800 = vmatprep.subr.bf16.mxu0 %v5489
    %6801 = vmatpush1.bf16.msra.mxu0 %v5488
    %6802 = vmatprep.subr.bf16.mxu0 %v5481
    %6803 = vmatpush1.bf16.msra.mxu0 %v5480
    %6804 = vmatprep.subr.bf16.mxu0 %v5473
    %6805 = vmatpush1.bf16.msra.mxu0 %v5472
    %6806 = vmatprep.subr.bf16.mxu0 %v5465
    %6807 = vmatpush1.bf16.msra.mxu0 %v5464
    %6808 = vmatprep.subr.bf16.mxu0 %v5457
    %6809 = vmatpush1.bf16.msra.mxu0 %v5456
    %6810 = vmatprep.subr.bf16.mxu0 %v5449
    %6811 = vmatpush1.bf16.msra.mxu0 %v5448
    %6812 = vmatprep.subr.bf16.mxu0 %v5569
    %6813 = vmatpush2.bf16.msra.mxu0 %v5568
    %6814 = vmatprep.subr.bf16.mxu0 %v5561
    %6815 = vmatpush2.bf16.msra.mxu0 %v5560
    %6816 = vmatprep.subr.bf16.mxu0 %v5553
    %6817 = vmatpush2.bf16.msra.mxu0 %v5552
    %6818 = vmatprep.subr.bf16.mxu0 %v5545
    %6819 = vmatpush2.bf16.msra.mxu0 %v5544
    %6820 = vmatprep.subr.bf16.mxu0 %v5537
    %6821 = vmatpush2.bf16.msra.mxu0 %v5536
    %6822 = vmatprep.subr.bf16.mxu0 %v5529
    %6823 = vmatpush2.bf16.msra.mxu0 %v5528
    %6824 = vmatprep.subr.bf16.mxu0 %v5521
    %6825 = vmatpush2.bf16.msra.mxu0 %v5520
    %6826 = vmatprep.subr.bf16.mxu0 %v5513
    %6827 = vmatpush2.bf16.msra.mxu0 %v5512
    %6828 = vmatprep.mubr.bf16.mxu0 %v3347
    %6829 = vmatmul.mubr.bf16.gmra.mxu0 %v3346
    %v6830 = vpop.f32.mrf.mxu0
    %v6831 = vadd.f32 %v3887, %v6830
    %v6832 = vpop.f32.mrf.mxu0
    %v6833 = vadd.f32 %v3891, %v6832
    %v6834 = vpop.f32.mrf.mxu0
    %v6835 = vpop.f32.mrf.mxu0
    %6836 = vdwg.mxu0
    %6837 = vmatprep.subr.bf16.mxu0 %v5633
    %6838 = vmatpush1.bf16.msra.mxu0 %v5632
    %6839 = vmatprep.subr.bf16.mxu0 %v5625
    %6840 = vmatpush1.bf16.msra.mxu0 %v5624
    %6841 = vmatprep.subr.bf16.mxu0 %v5617
    %6842 = vmatpush1.bf16.msra.mxu0 %v5616
    %6843 = vmatprep.subr.bf16.mxu0 %v5609
    %6844 = vmatpush1.bf16.msra.mxu0 %v5608
    %6845 = vmatprep.subr.bf16.mxu0 %v5601
    %6846 = vmatpush1.bf16.msra.mxu0 %v5600
    %6847 = vmatprep.subr.bf16.mxu0 %v5593
    %6848 = vmatpush1.bf16.msra.mxu0 %v5592
    %6849 = vmatprep.subr.bf16.mxu0 %v5585
    %6850 = vmatpush1.bf16.msra.mxu0 %v5584
    %6851 = vmatprep.subr.bf16.mxu0 %v5577
    %6852 = vmatpush1.bf16.msra.mxu0 %v5576
    %6853 = vmatprep.subr.bf16.mxu0 %v5697
    %6854 = vmatpush2.bf16.msra.mxu0 %v5696
    %6855 = vmatprep.subr.bf16.mxu0 %v5689
    %6856 = vmatpush2.bf16.msra.mxu0 %v5688
    %6857 = vmatprep.subr.bf16.mxu0 %v5681
    %6858 = vmatpush2.bf16.msra.mxu0 %v5680
    %6859 = vmatprep.subr.bf16.mxu0 %v5673
    %6860 = vmatpush2.bf16.msra.mxu0 %v5672
    %6861 = vmatprep.subr.bf16.mxu0 %v5665
    %6862 = vmatpush2.bf16.msra.mxu0 %v5664
    %6863 = vmatprep.subr.bf16.mxu0 %v5657
    %6864 = vmatpush2.bf16.msra.mxu0 %v5656
    %6865 = vmatprep.subr.bf16.mxu0 %v5649
    %6866 = vmatpush2.bf16.msra.mxu0 %v5648
    %6867 = vmatprep.subr.bf16.mxu0 %v5641
    %6868 = vmatpush2.bf16.msra.mxu0 %v5640
    %6869 = vmatprep.mubr.bf16.mxu0 %v3349
    %6870 = vmatmul.mubr.bf16.gmra.mxu0 %v3348
    %v6871 = vpop.f32.mrf.mxu0
    %v6872 = vadd.f32 %v6831, %v6871
    %v6873 = vpop.f32.mrf.mxu0
    %v6874 = vadd.f32 %v6833, %v6873
    %v6875 = vpop.f32.mrf.mxu0
    %v6876 = vpop.f32.mrf.mxu0
    %6877 = vdwg.mxu0
    %6878 = vmatprep.subr.bf16.mxu0 %v5761
    %6879 = vmatpush1.bf16.msra.mxu0 %v5760
    %6880 = vmatprep.subr.bf16.mxu0 %v5753
    %6881 = vmatpush1.bf16.msra.mxu0 %v5752
    %6882 = vmatprep.subr.bf16.mxu0 %v5745
    %6883 = vmatpush1.bf16.msra.mxu0 %v5744
    %6884 = vmatprep.subr.bf16.mxu0 %v5737
    %6885 = vmatpush1.bf16.msra.mxu0 %v5736
    %6886 = vmatprep.subr.bf16.mxu0 %v5729
    %6887 = vmatpush1.bf16.msra.mxu0 %v5728
    %6888 = vmatprep.subr.bf16.mxu0 %v5721
    %6889 = vmatpush1.bf16.msra.mxu0 %v5720
    %6890 = vmatprep.subr.bf16.mxu0 %v5713
    %6891 = vmatpush1.bf16.msra.mxu0 %v5712
    %6892 = vmatprep.subr.bf16.mxu0 %v5705
    %6893 = vmatpush1.bf16.msra.mxu0 %v5704
    %6894 = vmatprep.subr.bf16.mxu0 %v5825
    %6895 = vmatpush2.bf16.msra.mxu0 %v5824
    %6896 = vmatprep.subr.bf16.mxu0 %v5817
    %6897 = vmatpush2.bf16.msra.mxu0 %v5816
    %6898 = vmatprep.subr.bf16.mxu0 %v5809
    %6899 = vmatpush2.bf16.msra.mxu0 %v5808
    %6900 = vmatprep.subr.bf16.mxu0 %v5801
    %6901 = vmatpush2.bf16.msra.mxu0 %v5800
    %6902 = vmatprep.subr.bf16.mxu0 %v5793
    %6903 = vmatpush2.bf16.msra.mxu0 %v5792
    %6904 = vmatprep.subr.bf16.mxu0 %v5785
    %6905 = vmatpush2.bf16.msra.mxu0 %v5784
    %6906 = vmatprep.subr.bf16.mxu0 %v5777
    %6907 = vmatpush2.bf16.msra.mxu0 %v5776
    %6908 = vmatprep.subr.bf16.mxu0 %v5769
    %6909 = vmatpush2.bf16.msra.mxu0 %v5768
    %6910 = vmatprep.mubr.bf16.mxu0 %v3351
    %6911 = vmatmul.mubr.bf16.gmra.mxu0 %v3350
    %v6912 = vpop.f32.mrf.mxu0
    %v6913 = vadd.f32 %v6872, %v6912
    %v6914 = vpop.f32.mrf.mxu0
    %v6915 = vadd.f32 %v6874, %v6914
    %v6916 = vpop.f32.mrf.mxu0
    %v6917 = vpop.f32.mrf.mxu0
    %6918 = vdwg.mxu0
    %6919 = vmatprep.subr.bf16.mxu0 %v5889
    %6920 = vmatpush1.bf16.msra.mxu0 %v5888
    %6921 = vmatprep.subr.bf16.mxu0 %v5881
    %6922 = vmatpush1.bf16.msra.mxu0 %v5880
    %6923 = vmatprep.subr.bf16.mxu0 %v5873
    %6924 = vmatpush1.bf16.msra.mxu0 %v5872
    %6925 = vmatprep.subr.bf16.mxu0 %v5865
    %6926 = vmatpush1.bf16.msra.mxu0 %v5864
    %6927 = vmatprep.subr.bf16.mxu0 %v5857
    %6928 = vmatpush1.bf16.msra.mxu0 %v5856
    %6929 = vmatprep.subr.bf16.mxu0 %v5849
    %6930 = vmatpush1.bf16.msra.mxu0 %v5848
    %6931 = vmatprep.subr.bf16.mxu0 %v5841
    %6932 = vmatpush1.bf16.msra.mxu0 %v5840
    %6933 = vmatprep.subr.bf16.mxu0 %v5833
    %6934 = vmatpush1.bf16.msra.mxu0 %v5832
    %6935 = vmatprep.subr.bf16.mxu0 %v5953
    %6936 = vmatpush2.bf16.msra.mxu0 %v5952
    %6937 = vmatprep.subr.bf16.mxu0 %v5945
    %6938 = vmatpush2.bf16.msra.mxu0 %v5944
    %6939 = vmatprep.subr.bf16.mxu0 %v5937
    %6940 = vmatpush2.bf16.msra.mxu0 %v5936
    %6941 = vmatprep.subr.bf16.mxu0 %v5929
    %6942 = vmatpush2.bf16.msra.mxu0 %v5928
    %6943 = vmatprep.subr.bf16.mxu0 %v5921
    %6944 = vmatpush2.bf16.msra.mxu0 %v5920
    %6945 = vmatprep.subr.bf16.mxu0 %v5913
    %6946 = vmatpush2.bf16.msra.mxu0 %v5912
    %6947 = vmatprep.subr.bf16.mxu0 %v5905
    %6948 = vmatpush2.bf16.msra.mxu0 %v5904
    %6949 = vmatprep.subr.bf16.mxu0 %v5897
    %6950 = vmatpush2.bf16.msra.mxu0 %v5896
    %6951 = vmatprep.mubr.bf16.mxu0 %v3353
    %6952 = vmatmul.mubr.bf16.gmra.mxu0 %v3352
    %v6953 = vpop.f32.mrf.mxu0
    %v6954 = vadd.f32 %v6913, %v6953
    %v6955 = vpop.f32.mrf.mxu0
    %v6956 = vadd.f32 %v6915, %v6955
    %v6957 = vpop.f32.mrf.mxu0
    %v6958 = vpop.f32.mrf.mxu0
    %6959 = vdwg.mxu0
    %6960 = vmatprep.subr.bf16.mxu0 %v5507
    %6961 = vmatpush1.bf16.msra.mxu0 %v5506
    %6962 = vmatprep.subr.bf16.mxu0 %v5499
    %6963 = vmatpush1.bf16.msra.mxu0 %v5498
    %6964 = vmatprep.subr.bf16.mxu0 %v5491
    %6965 = vmatpush1.bf16.msra.mxu0 %v5490
    %6966 = vmatprep.subr.bf16.mxu0 %v5483
    %6967 = vmatpush1.bf16.msra.mxu0 %v5482
    %6968 = vmatprep.subr.bf16.mxu0 %v5475
    %6969 = vmatpush1.bf16.msra.mxu0 %v5474
    %6970 = vmatprep.subr.bf16.mxu0 %v5467
    %6971 = vmatpush1.bf16.msra.mxu0 %v5466
    %6972 = vmatprep.subr.bf16.mxu0 %v5459
    %6973 = vmatpush1.bf16.msra.mxu0 %v5458
    %6974 = vmatprep.subr.bf16.mxu0 %v5451
    %6975 = vmatpush1.bf16.msra.mxu0 %v5450
    %6976 = vmatprep.subr.bf16.mxu0 %v5571
    %6977 = vmatpush2.bf16.msra.mxu0 %v5570
    %6978 = vmatprep.subr.bf16.mxu0 %v5563
    %6979 = vmatpush2.bf16.msra.mxu0 %v5562
    %6980 = vmatprep.subr.bf16.mxu0 %v5555
    %6981 = vmatpush2.bf16.msra.mxu0 %v5554
    %6982 = vmatprep.subr.bf16.mxu0 %v5547
    %6983 = vmatpush2.bf16.msra.mxu0 %v5546
    %6984 = vmatprep.subr.bf16.mxu0 %v5539
    %6985 = vmatpush2.bf16.msra.mxu0 %v5538
    %6986 = vmatprep.subr.bf16.mxu0 %v5531
    %6987 = vmatpush2.bf16.msra.mxu0 %v5530
    %6988 = vmatprep.subr.bf16.mxu0 %v5523
    %6989 = vmatpush2.bf16.msra.mxu0 %v5522
    %6990 = vmatprep.subr.bf16.mxu0 %v5515
    %6991 = vmatpush2.bf16.msra.mxu0 %v5514
    %6992 = vmatprep.mubr.bf16.mxu0 %v3347
    %6993 = vmatmul.mubr.bf16.gmra.mxu0 %v3346
    %v6994 = vpop.f32.mrf.mxu0
    %v6995 = vadd.f32 %v3895, %v6994
    %v6996 = vpop.f32.mrf.mxu0
    %v6997 = vadd.f32 %v3899, %v6996
    %v6998 = vpop.f32.mrf.mxu0
    %v6999 = vpop.f32.mrf.mxu0
    %7000 = vdwg.mxu0
    %7001 = vmatprep.subr.bf16.mxu0 %v5635
    %7002 = vmatpush1.bf16.msra.mxu0 %v5634
    %7003 = vmatprep.subr.bf16.mxu0 %v5627
    %7004 = vmatpush1.bf16.msra.mxu0 %v5626
    %7005 = vmatprep.subr.bf16.mxu0 %v5619
    %7006 = vmatpush1.bf16.msra.mxu0 %v5618
    %7007 = vmatprep.subr.bf16.mxu0 %v5611
    %7008 = vmatpush1.bf16.msra.mxu0 %v5610
    %7009 = vmatprep.subr.bf16.mxu0 %v5603
    %7010 = vmatpush1.bf16.msra.mxu0 %v5602
    %7011 = vmatprep.subr.bf16.mxu0 %v5595
    %7012 = vmatpush1.bf16.msra.mxu0 %v5594
    %7013 = vmatprep.subr.bf16.mxu0 %v5587
    %7014 = vmatpush1.bf16.msra.mxu0 %v5586
    %7015 = vmatprep.subr.bf16.mxu0 %v5579
    %7016 = vmatpush1.bf16.msra.mxu0 %v5578
    %7017 = vmatprep.subr.bf16.mxu0 %v5699
    %7018 = vmatpush2.bf16.msra.mxu0 %v5698
    %7019 = vmatprep.subr.bf16.mxu0 %v5691
    %7020 = vmatpush2.bf16.msra.mxu0 %v5690
    %7021 = vmatprep.subr.bf16.mxu0 %v5683
    %7022 = vmatpush2.bf16.msra.mxu0 %v5682
    %7023 = vmatprep.subr.bf16.mxu0 %v5675
    %7024 = vmatpush2.bf16.msra.mxu0 %v5674
    %7025 = vmatprep.subr.bf16.mxu0 %v5667
    %7026 = vmatpush2.bf16.msra.mxu0 %v5666
    %7027 = vmatprep.subr.bf16.mxu0 %v5659
    %7028 = vmatpush2.bf16.msra.mxu0 %v5658
    %7029 = vmatprep.subr.bf16.mxu0 %v5651
    %7030 = vmatpush2.bf16.msra.mxu0 %v5650
    %7031 = vmatprep.subr.bf16.mxu0 %v5643
    %7032 = vmatpush2.bf16.msra.mxu0 %v5642
    %7033 = vmatprep.mubr.bf16.mxu0 %v3349
    %7034 = vmatmul.mubr.bf16.gmra.mxu0 %v3348
    %v7035 = vpop.f32.mrf.mxu0
    %v7036 = vadd.f32 %v6995, %v7035
    %v7037 = vpop.f32.mrf.mxu0
    %v7038 = vadd.f32 %v6997, %v7037
    %v7039 = vpop.f32.mrf.mxu0
    %v7040 = vpop.f32.mrf.mxu0
    %7041 = vdwg.mxu0
    %7042 = vmatprep.subr.bf16.mxu0 %v5763
    %7043 = vmatpush1.bf16.msra.mxu0 %v5762
    %7044 = vmatprep.subr.bf16.mxu0 %v5755
    %7045 = vmatpush1.bf16.msra.mxu0 %v5754
    %7046 = vmatprep.subr.bf16.mxu0 %v5747
    %7047 = vmatpush1.bf16.msra.mxu0 %v5746
    %7048 = vmatprep.subr.bf16.mxu0 %v5739
    %7049 = vmatpush1.bf16.msra.mxu0 %v5738
    %7050 = vmatprep.subr.bf16.mxu0 %v5731
    %7051 = vmatpush1.bf16.msra.mxu0 %v5730
    %7052 = vmatprep.subr.bf16.mxu0 %v5723
    %7053 = vmatpush1.bf16.msra.mxu0 %v5722
    %7054 = vmatprep.subr.bf16.mxu0 %v5715
    %7055 = vmatpush1.bf16.msra.mxu0 %v5714
    %7056 = vmatprep.subr.bf16.mxu0 %v5707
    %7057 = vmatpush1.bf16.msra.mxu0 %v5706
    %7058 = vmatprep.subr.bf16.mxu0 %v5827
    %7059 = vmatpush2.bf16.msra.mxu0 %v5826
    %7060 = vmatprep.subr.bf16.mxu0 %v5819
    %7061 = vmatpush2.bf16.msra.mxu0 %v5818
    %7062 = vmatprep.subr.bf16.mxu0 %v5811
    %7063 = vmatpush2.bf16.msra.mxu0 %v5810
    %7064 = vmatprep.subr.bf16.mxu0 %v5803
    %7065 = vmatpush2.bf16.msra.mxu0 %v5802
    %7066 = vmatprep.subr.bf16.mxu0 %v5795
    %7067 = vmatpush2.bf16.msra.mxu0 %v5794
    %7068 = vmatprep.subr.bf16.mxu0 %v5787
    %7069 = vmatpush2.bf16.msra.mxu0 %v5786
    %7070 = vmatprep.subr.bf16.mxu0 %v5779
    %7071 = vmatpush2.bf16.msra.mxu0 %v5778
    %7072 = vmatprep.subr.bf16.mxu0 %v5771
    %7073 = vmatpush2.bf16.msra.mxu0 %v5770
    %7074 = vmatprep.mubr.bf16.mxu0 %v3351
    %7075 = vmatmul.mubr.bf16.gmra.mxu0 %v3350
    %v7076 = vpop.f32.mrf.mxu0
    %v7077 = vadd.f32 %v7036, %v7076
    %v7078 = vpop.f32.mrf.mxu0
    %v7079 = vadd.f32 %v7038, %v7078
    %v7080 = vpop.f32.mrf.mxu0
    %v7081 = vpop.f32.mrf.mxu0
    %7082 = vdwg.mxu0
    %7083 = vmatprep.subr.bf16.mxu0 %v5891
    %7084 = vmatpush1.bf16.msra.mxu0 %v5890
    %7085 = vmatprep.subr.bf16.mxu0 %v5883
    %7086 = vmatpush1.bf16.msra.mxu0 %v5882
    %7087 = vmatprep.subr.bf16.mxu0 %v5875
    %7088 = vmatpush1.bf16.msra.mxu0 %v5874
    %7089 = vmatprep.subr.bf16.mxu0 %v5867
    %7090 = vmatpush1.bf16.msra.mxu0 %v5866
    %7091 = vmatprep.subr.bf16.mxu0 %v5859
    %7092 = vmatpush1.bf16.msra.mxu0 %v5858
    %7093 = vmatprep.subr.bf16.mxu0 %v5851
    %7094 = vmatpush1.bf16.msra.mxu0 %v5850
    %7095 = vmatprep.subr.bf16.mxu0 %v5843
    %7096 = vmatpush1.bf16.msra.mxu0 %v5842
    %7097 = vmatprep.subr.bf16.mxu0 %v5835
    %7098 = vmatpush1.bf16.msra.mxu0 %v5834
    %7099 = vmatprep.subr.bf16.mxu0 %v5955
    %7100 = vmatpush2.bf16.msra.mxu0 %v5954
    %7101 = vmatprep.subr.bf16.mxu0 %v5947
    %7102 = vmatpush2.bf16.msra.mxu0 %v5946
    %7103 = vmatprep.subr.bf16.mxu0 %v5939
    %7104 = vmatpush2.bf16.msra.mxu0 %v5938
    %7105 = vmatprep.subr.bf16.mxu0 %v5931
    %7106 = vmatpush2.bf16.msra.mxu0 %v5930
    %7107 = vmatprep.subr.bf16.mxu0 %v5923
    %7108 = vmatpush2.bf16.msra.mxu0 %v5922
    %7109 = vmatprep.subr.bf16.mxu0 %v5915
    %7110 = vmatpush2.bf16.msra.mxu0 %v5914
    %7111 = vmatprep.subr.bf16.mxu0 %v5907
    %7112 = vmatpush2.bf16.msra.mxu0 %v5906
    %7113 = vmatprep.subr.bf16.mxu0 %v5899
    %7114 = vmatpush2.bf16.msra.mxu0 %v5898
    %7115 = vmatprep.mubr.bf16.mxu0 %v3353
    %7116 = vmatmul.mubr.bf16.gmra.mxu0 %v3352
    %v7117 = vpop.f32.mrf.mxu0
    %v7118 = vadd.f32 %v7077, %v7117
    %v7119 = vpop.f32.mrf.mxu0
    %v7120 = vadd.f32 %v7079, %v7119
    %v7121 = vpop.f32.mrf.mxu0
    %v7122 = vpop.f32.mrf.mxu0
    %7123 = vdwg.mxu0
    %v7124 = vmax.f32 %v6626, 0.0
    %v7125 = vmax.f32 %v6628, 0.0
    %v7126 = vmax.f32 %v6790, 0.0
    %v7127 = vmax.f32 %v6792, 0.0
    %v7128 = vmax.f32 %v6954, 0.0
    %v7129 = vmax.f32 %v6956, 0.0
    %v7130 = vmax.f32 %v7118, 0.0
    %v7131 = vmax.f32 %v7120, 0.0
    %v7132 = vpack.c.bf16 %v7124, %v7124
    %v7133 = vpack.c.bf16 %v7125, %v7125
    %v7134 = vpack.c.bf16 %v7126, %v7126
    %v7135 = vpack.c.bf16 %v7127, %v7127
    %v7136 = vpack.c.bf16 %v7128, %v7128
    %v7137 = vpack.c.bf16 %v7129, %v7129
    %v7138 = vpack.c.bf16 %v7130, %v7130
    %v7139 = vpack.c.bf16 %v7131, %v7131
    %v7140 = vld [vmem:[#allocation15] sm:$0xff]
    %v7141 = vld [vmem:[#allocation15 + $0x8] sm:$0xff]
    %v7142 = vld [vmem:[#allocation15 + $0x10] sm:$0xff]
    %v7143 = vld [vmem:[#allocation15 + $0x18] sm:$0xff]
    %v7144 = vld [vmem:[#allocation15 + $0x20] sm:$0xff]
    %v7145 = vld [vmem:[#allocation15 + $0x28] sm:$0xff]
    %v7146 = vld [vmem:[#allocation15 + $0x30] sm:$0xff]
    %v7147 = vld [vmem:[#allocation15 + $0x38] sm:$0xff]
    %v7148 = vld [vmem:[#allocation15 + $0x40] sm:$0xff]
    %v7149 = vld [vmem:[#allocation15 + $0x48] sm:$0xff]
    %v7150 = vld [vmem:[#allocation15 + $0x50] sm:$0xff]
    %v7151 = vld [vmem:[#allocation15 + $0x58] sm:$0xff]
    %v7152 = vld [vmem:[#allocation15 + $0x60] sm:$0xff]
    %v7153 = vld [vmem:[#allocation15 + $0x68] sm:$0xff]
    %v7154 = vld [vmem:[#allocation15 + $0x70] sm:$0xff]
    %v7155 = vld [vmem:[#allocation15 + $0x78] sm:$0xff]
    %v7156 = vld [vmem:[#allocation15 + $0x80] sm:$0xff]
    %v7157 = vld [vmem:[#allocation15 + $0x88] sm:$0xff]
    %v7158 = vld [vmem:[#allocation15 + $0x90] sm:$0xff]
    %v7159 = vld [vmem:[#allocation15 + $0x98] sm:$0xff]
    %v7160 = vld [vmem:[#allocation15 + $0xa0] sm:$0xff]
    %v7161 = vld [vmem:[#allocation15 + $0xa8] sm:$0xff]
    %v7162 = vld [vmem:[#allocation15 + $0xb0] sm:$0xff]
    %v7163 = vld [vmem:[#allocation15 + $0xb8] sm:$0xff]
    %v7164 = vld [vmem:[#allocation15 + $0xc0] sm:$0xff]
    %v7165 = vld [vmem:[#allocation15 + $0xc8] sm:$0xff]
    %v7166 = vld [vmem:[#allocation15 + $0xd0] sm:$0xff]
    %v7167 = vld [vmem:[#allocation15 + $0xd8] sm:$0xff]
    %v7168 = vld [vmem:[#allocation15 + $0xe0] sm:$0xff]
    %v7169 = vld [vmem:[#allocation15 + $0xe8] sm:$0xff]
    %v7170 = vld [vmem:[#allocation15 + $0xf0] sm:$0xff]
    %v7171 = vld [vmem:[#allocation15 + $0xf8] sm:$0xff]
    %v7172 = vld [vmem:[#allocation15 + $0x100] sm:$0xff]
    %v7173 = vld [vmem:[#allocation15 + $0x108] sm:$0xff]
    %v7174 = vld [vmem:[#allocation15 + $0x110] sm:$0xff]
    %v7175 = vld [vmem:[#allocation15 + $0x118] sm:$0xff]
    %v7176 = vld [vmem:[#allocation15 + $0x120] sm:$0xff]
    %v7177 = vld [vmem:[#allocation15 + $0x128] sm:$0xff]
    %v7178 = vld [vmem:[#allocation15 + $0x130] sm:$0xff]
    %v7179 = vld [vmem:[#allocation15 + $0x138] sm:$0xff]
    %v7180 = vld [vmem:[#allocation15 + $0x140] sm:$0xff]
    %v7181 = vld [vmem:[#allocation15 + $0x148] sm:$0xff]
    %v7182 = vld [vmem:[#allocation15 + $0x150] sm:$0xff]
    %v7183 = vld [vmem:[#allocation15 + $0x158] sm:$0xff]
    %v7184 = vld [vmem:[#allocation15 + $0x160] sm:$0xff]
    %v7185 = vld [vmem:[#allocation15 + $0x168] sm:$0xff]
    %v7186 = vld [vmem:[#allocation15 + $0x170] sm:$0xff]
    %v7187 = vld [vmem:[#allocation15 + $0x178] sm:$0xff]
    %v7188 = vld [vmem:[#allocation15 + $0x180] sm:$0xff]
    %v7189 = vld [vmem:[#allocation15 + $0x188] sm:$0xff]
    %v7190 = vld [vmem:[#allocation15 + $0x190] sm:$0xff]
    %v7191 = vld [vmem:[#allocation15 + $0x198] sm:$0xff]
    %v7192 = vld [vmem:[#allocation15 + $0x1a0] sm:$0xff]
    %v7193 = vld [vmem:[#allocation15 + $0x1a8] sm:$0xff]
    %v7194 = vld [vmem:[#allocation15 + $0x1b0] sm:$0xff]
    %v7195 = vld [vmem:[#allocation15 + $0x1b8] sm:$0xff]
    %v7196 = vld [vmem:[#allocation15 + $0x1c0] sm:$0xff]
    %v7197 = vld [vmem:[#allocation15 + $0x1c8] sm:$0xff]
    %v7198 = vld [vmem:[#allocation15 + $0x1d0] sm:$0xff]
    %v7199 = vld [vmem:[#allocation15 + $0x1d8] sm:$0xff]
    %v7200 = vld [vmem:[#allocation15 + $0x1e0] sm:$0xff]
    %v7201 = vld [vmem:[#allocation15 + $0x1e8] sm:$0xff]
    %v7202 = vld [vmem:[#allocation15 + $0x1f0] sm:$0xff]
    %v7203 = vld [vmem:[#allocation15 + $0x1f8] sm:$0xff]
    %v7204 = vld [vmem:[#allocation15 + $0x200] sm:$0xff]
    %v7205 = vld [vmem:[#allocation15 + $0x208] sm:$0xff]
    %v7206 = vld [vmem:[#allocation15 + $0x210] sm:$0xff]
    %v7207 = vld [vmem:[#allocation15 + $0x218] sm:$0xff]
    %v7208 = vld [vmem:[#allocation15 + $0x220] sm:$0xff]
    %v7209 = vld [vmem:[#allocation15 + $0x228] sm:$0xff]
    %v7210 = vld [vmem:[#allocation15 + $0x230] sm:$0xff]
    %v7211 = vld [vmem:[#allocation15 + $0x238] sm:$0xff]
    %v7212 = vld [vmem:[#allocation15 + $0x240] sm:$0xff]
    %v7213 = vld [vmem:[#allocation15 + $0x248] sm:$0xff]
    %v7214 = vld [vmem:[#allocation15 + $0x250] sm:$0xff]
    %v7215 = vld [vmem:[#allocation15 + $0x258] sm:$0xff]
    %v7216 = vld [vmem:[#allocation15 + $0x260] sm:$0xff]
    %v7217 = vld [vmem:[#allocation15 + $0x268] sm:$0xff]
    %v7218 = vld [vmem:[#allocation15 + $0x270] sm:$0xff]
    %v7219 = vld [vmem:[#allocation15 + $0x278] sm:$0xff]
    %v7220 = vld [vmem:[#allocation15 + $0x280] sm:$0xff]
    %v7221 = vld [vmem:[#allocation15 + $0x288] sm:$0xff]
    %v7222 = vld [vmem:[#allocation15 + $0x290] sm:$0xff]
    %v7223 = vld [vmem:[#allocation15 + $0x298] sm:$0xff]
    %v7224 = vld [vmem:[#allocation15 + $0x2a0] sm:$0xff]
    %v7225 = vld [vmem:[#allocation15 + $0x2a8] sm:$0xff]
    %v7226 = vld [vmem:[#allocation15 + $0x2b0] sm:$0xff]
    %v7227 = vld [vmem:[#allocation15 + $0x2b8] sm:$0xff]
    %v7228 = vld [vmem:[#allocation15 + $0x2c0] sm:$0xff]
    %v7229 = vld [vmem:[#allocation15 + $0x2c8] sm:$0xff]
    %v7230 = vld [vmem:[#allocation15 + $0x2d0] sm:$0xff]
    %v7231 = vld [vmem:[#allocation15 + $0x2d8] sm:$0xff]
    %v7232 = vld [vmem:[#allocation15 + $0x2e0] sm:$0xff]
    %v7233 = vld [vmem:[#allocation15 + $0x2e8] sm:$0xff]
    %v7234 = vld [vmem:[#allocation15 + $0x2f0] sm:$0xff]
    %v7235 = vld [vmem:[#allocation15 + $0x2f8] sm:$0xff]
    %v7236 = vld [vmem:[#allocation15 + $0x300] sm:$0xff]
    %v7237 = vld [vmem:[#allocation15 + $0x308] sm:$0xff]
    %v7238 = vld [vmem:[#allocation15 + $0x310] sm:$0xff]
    %v7239 = vld [vmem:[#allocation15 + $0x318] sm:$0xff]
    %v7240 = vld [vmem:[#allocation15 + $0x320] sm:$0xff]
    %v7241 = vld [vmem:[#allocation15 + $0x328] sm:$0xff]
    %v7242 = vld [vmem:[#allocation15 + $0x330] sm:$0xff]
    %v7243 = vld [vmem:[#allocation15 + $0x338] sm:$0xff]
    %v7244 = vld [vmem:[#allocation15 + $0x340] sm:$0xff]
    %v7245 = vld [vmem:[#allocation15 + $0x348] sm:$0xff]
    %v7246 = vld [vmem:[#allocation15 + $0x350] sm:$0xff]
    %v7247 = vld [vmem:[#allocation15 + $0x358] sm:$0xff]
    %v7248 = vld [vmem:[#allocation15 + $0x360] sm:$0xff]
    %v7249 = vld [vmem:[#allocation15 + $0x368] sm:$0xff]
    %v7250 = vld [vmem:[#allocation15 + $0x370] sm:$0xff]
    %v7251 = vld [vmem:[#allocation15 + $0x378] sm:$0xff]
    %v7252 = vld [vmem:[#allocation15 + $0x380] sm:$0xff]
    %v7253 = vld [vmem:[#allocation15 + $0x388] sm:$0xff]
    %v7254 = vld [vmem:[#allocation15 + $0x390] sm:$0xff]
    %v7255 = vld [vmem:[#allocation15 + $0x398] sm:$0xff]
    %v7256 = vld [vmem:[#allocation15 + $0x3a0] sm:$0xff]
    %v7257 = vld [vmem:[#allocation15 + $0x3a8] sm:$0xff]
    %v7258 = vld [vmem:[#allocation15 + $0x3b0] sm:$0xff]
    %v7259 = vld [vmem:[#allocation15 + $0x3b8] sm:$0xff]
    %v7260 = vld [vmem:[#allocation15 + $0x3c0] sm:$0xff]
    %v7261 = vld [vmem:[#allocation15 + $0x3c8] sm:$0xff]
    %v7262 = vld [vmem:[#allocation15 + $0x3d0] sm:$0xff]
    %v7263 = vld [vmem:[#allocation15 + $0x3d8] sm:$0xff]
    %v7264 = vld [vmem:[#allocation15 + $0x3e0] sm:$0xff]
    %v7265 = vld [vmem:[#allocation15 + $0x3e8] sm:$0xff]
    %v7266 = vld [vmem:[#allocation15 + $0x3f0] sm:$0xff]
    %v7267 = vld [vmem:[#allocation15 + $0x3f8] sm:$0xff]
    %v7268 = vld [vmem:[#allocation16] sm:$0x3]
    %v7270 = vlaneseq
    %v7271 = vshrl.u32 %v7270, 7
    %v7272 = vsub.s32 0, %v7271
    %v7273 = vrot.slane %v7268, %v7272
    %v7274 = vlaneseq
    %v7275 = vshrl.u32 %v7274, 7
    %v7276 = vsub.s32 1, %v7275
    %v7277 = vrot.slane %v7268, %v7276
    %v7408 = vunpack.c.l.b16 %v7140
    %v7409 = vunpack.c.h.b16 %v7140
    %v7410 = vunpack.c.l.b16 %v7141
    %v7411 = vunpack.c.h.b16 %v7141
    %v7412 = vunpack.c.l.b16 %v7142
    %v7413 = vunpack.c.h.b16 %v7142
    %v7414 = vunpack.c.l.b16 %v7143
    %v7415 = vunpack.c.h.b16 %v7143
    %v7416 = vunpack.c.l.b16 %v7144
    %v7417 = vunpack.c.h.b16 %v7144
    %v7418 = vunpack.c.l.b16 %v7145
    %v7419 = vunpack.c.h.b16 %v7145
    %v7420 = vunpack.c.l.b16 %v7146
    %v7421 = vunpack.c.h.b16 %v7146
    %v7422 = vunpack.c.l.b16 %v7147
    %v7423 = vunpack.c.h.b16 %v7147
    %v7424 = vunpack.c.l.b16 %v7148
    %v7425 = vunpack.c.h.b16 %v7148
    %v7426 = vunpack.c.l.b16 %v7149
    %v7427 = vunpack.c.h.b16 %v7149
    %v7428 = vunpack.c.l.b16 %v7150
    %v7429 = vunpack.c.h.b16 %v7150
    %v7430 = vunpack.c.l.b16 %v7151
    %v7431 = vunpack.c.h.b16 %v7151
    %v7432 = vunpack.c.l.b16 %v7152
    %v7433 = vunpack.c.h.b16 %v7152
    %v7434 = vunpack.c.l.b16 %v7153
    %v7435 = vunpack.c.h.b16 %v7153
    %v7436 = vunpack.c.l.b16 %v7154
    %v7437 = vunpack.c.h.b16 %v7154
    %v7438 = vunpack.c.l.b16 %v7155
    %v7439 = vunpack.c.h.b16 %v7155
    %v7440 = vunpack.c.l.b16 %v7156
    %v7441 = vunpack.c.h.b16 %v7156
    %v7442 = vunpack.c.l.b16 %v7157
    %v7443 = vunpack.c.h.b16 %v7157
    %v7444 = vunpack.c.l.b16 %v7158
    %v7445 = vunpack.c.h.b16 %v7158
    %v7446 = vunpack.c.l.b16 %v7159
    %v7447 = vunpack.c.h.b16 %v7159
    %v7448 = vunpack.c.l.b16 %v7160
    %v7449 = vunpack.c.h.b16 %v7160
    %v7450 = vunpack.c.l.b16 %v7161
    %v7451 = vunpack.c.h.b16 %v7161
    %v7452 = vunpack.c.l.b16 %v7162
    %v7453 = vunpack.c.h.b16 %v7162
    %v7454 = vunpack.c.l.b16 %v7163
    %v7455 = vunpack.c.h.b16 %v7163
    %v7456 = vunpack.c.l.b16 %v7164
    %v7457 = vunpack.c.h.b16 %v7164
    %v7458 = vunpack.c.l.b16 %v7165
    %v7459 = vunpack.c.h.b16 %v7165
    %v7460 = vunpack.c.l.b16 %v7166
    %v7461 = vunpack.c.h.b16 %v7166
    %v7462 = vunpack.c.l.b16 %v7167
    %v7463 = vunpack.c.h.b16 %v7167
    %v7464 = vunpack.c.l.b16 %v7168
    %v7465 = vunpack.c.h.b16 %v7168
    %v7466 = vunpack.c.l.b16 %v7169
    %v7467 = vunpack.c.h.b16 %v7169
    %v7468 = vunpack.c.l.b16 %v7170
    %v7469 = vunpack.c.h.b16 %v7170
    %v7470 = vunpack.c.l.b16 %v7171
    %v7471 = vunpack.c.h.b16 %v7171
    %v7472 = vunpack.c.l.b16 %v7172
    %v7473 = vunpack.c.h.b16 %v7172
    %v7474 = vunpack.c.l.b16 %v7173
    %v7475 = vunpack.c.h.b16 %v7173
    %v7476 = vunpack.c.l.b16 %v7174
    %v7477 = vunpack.c.h.b16 %v7174
    %v7478 = vunpack.c.l.b16 %v7175
    %v7479 = vunpack.c.h.b16 %v7175
    %v7480 = vunpack.c.l.b16 %v7176
    %v7481 = vunpack.c.h.b16 %v7176
    %v7482 = vunpack.c.l.b16 %v7177
    %v7483 = vunpack.c.h.b16 %v7177
    %v7484 = vunpack.c.l.b16 %v7178
    %v7485 = vunpack.c.h.b16 %v7178
    %v7486 = vunpack.c.l.b16 %v7179
    %v7487 = vunpack.c.h.b16 %v7179
    %v7488 = vunpack.c.l.b16 %v7180
    %v7489 = vunpack.c.h.b16 %v7180
    %v7490 = vunpack.c.l.b16 %v7181
    %v7491 = vunpack.c.h.b16 %v7181
    %v7492 = vunpack.c.l.b16 %v7182
    %v7493 = vunpack.c.h.b16 %v7182
    %v7494 = vunpack.c.l.b16 %v7183
    %v7495 = vunpack.c.h.b16 %v7183
    %v7496 = vunpack.c.l.b16 %v7184
    %v7497 = vunpack.c.h.b16 %v7184
    %v7498 = vunpack.c.l.b16 %v7185
    %v7499 = vunpack.c.h.b16 %v7185
    %v7500 = vunpack.c.l.b16 %v7186
    %v7501 = vunpack.c.h.b16 %v7186
    %v7502 = vunpack.c.l.b16 %v7187
    %v7503 = vunpack.c.h.b16 %v7187
    %v7504 = vunpack.c.l.b16 %v7188
    %v7505 = vunpack.c.h.b16 %v7188
    %v7506 = vunpack.c.l.b16 %v7189
    %v7507 = vunpack.c.h.b16 %v7189
    %v7508 = vunpack.c.l.b16 %v7190
    %v7509 = vunpack.c.h.b16 %v7190
    %v7510 = vunpack.c.l.b16 %v7191
    %v7511 = vunpack.c.h.b16 %v7191
    %v7512 = vunpack.c.l.b16 %v7192
    %v7513 = vunpack.c.h.b16 %v7192
    %v7514 = vunpack.c.l.b16 %v7193
    %v7515 = vunpack.c.h.b16 %v7193
    %v7516 = vunpack.c.l.b16 %v7194
    %v7517 = vunpack.c.h.b16 %v7194
    %v7518 = vunpack.c.l.b16 %v7195
    %v7519 = vunpack.c.h.b16 %v7195
    %v7520 = vunpack.c.l.b16 %v7196
    %v7521 = vunpack.c.h.b16 %v7196
    %v7522 = vunpack.c.l.b16 %v7197
    %v7523 = vunpack.c.h.b16 %v7197
    %v7524 = vunpack.c.l.b16 %v7198
    %v7525 = vunpack.c.h.b16 %v7198
    %v7526 = vunpack.c.l.b16 %v7199
    %v7527 = vunpack.c.h.b16 %v7199
    %v7528 = vunpack.c.l.b16 %v7200
    %v7529 = vunpack.c.h.b16 %v7200
    %v7530 = vunpack.c.l.b16 %v7201
    %v7531 = vunpack.c.h.b16 %v7201
    %v7532 = vunpack.c.l.b16 %v7202
    %v7533 = vunpack.c.h.b16 %v7202
    %v7534 = vunpack.c.l.b16 %v7203
    %v7535 = vunpack.c.h.b16 %v7203
    %v7536 = vunpack.c.l.b16 %v7204
    %v7537 = vunpack.c.h.b16 %v7204
    %v7538 = vunpack.c.l.b16 %v7205
    %v7539 = vunpack.c.h.b16 %v7205
    %v7540 = vunpack.c.l.b16 %v7206
    %v7541 = vunpack.c.h.b16 %v7206
    %v7542 = vunpack.c.l.b16 %v7207
    %v7543 = vunpack.c.h.b16 %v7207
    %v7544 = vunpack.c.l.b16 %v7208
    %v7545 = vunpack.c.h.b16 %v7208
    %v7546 = vunpack.c.l.b16 %v7209
    %v7547 = vunpack.c.h.b16 %v7209
    %v7548 = vunpack.c.l.b16 %v7210
    %v7549 = vunpack.c.h.b16 %v7210
    %v7550 = vunpack.c.l.b16 %v7211
    %v7551 = vunpack.c.h.b16 %v7211
    %v7552 = vunpack.c.l.b16 %v7212
    %v7553 = vunpack.c.h.b16 %v7212
    %v7554 = vunpack.c.l.b16 %v7213
    %v7555 = vunpack.c.h.b16 %v7213
    %v7556 = vunpack.c.l.b16 %v7214
    %v7557 = vunpack.c.h.b16 %v7214
    %v7558 = vunpack.c.l.b16 %v7215
    %v7559 = vunpack.c.h.b16 %v7215
    %v7560 = vunpack.c.l.b16 %v7216
    %v7561 = vunpack.c.h.b16 %v7216
    %v7562 = vunpack.c.l.b16 %v7217
    %v7563 = vunpack.c.h.b16 %v7217
    %v7564 = vunpack.c.l.b16 %v7218
    %v7565 = vunpack.c.h.b16 %v7218
    %v7566 = vunpack.c.l.b16 %v7219
    %v7567 = vunpack.c.h.b16 %v7219
    %v7568 = vunpack.c.l.b16 %v7220
    %v7569 = vunpack.c.h.b16 %v7220
    %v7570 = vunpack.c.l.b16 %v7221
    %v7571 = vunpack.c.h.b16 %v7221
    %v7572 = vunpack.c.l.b16 %v7222
    %v7573 = vunpack.c.h.b16 %v7222
    %v7574 = vunpack.c.l.b16 %v7223
    %v7575 = vunpack.c.h.b16 %v7223
    %v7576 = vunpack.c.l.b16 %v7224
    %v7577 = vunpack.c.h.b16 %v7224
    %v7578 = vunpack.c.l.b16 %v7225
    %v7579 = vunpack.c.h.b16 %v7225
    %v7580 = vunpack.c.l.b16 %v7226
    %v7581 = vunpack.c.h.b16 %v7226
    %v7582 = vunpack.c.l.b16 %v7227
    %v7583 = vunpack.c.h.b16 %v7227
    %v7584 = vunpack.c.l.b16 %v7228
    %v7585 = vunpack.c.h.b16 %v7228
    %v7586 = vunpack.c.l.b16 %v7229
    %v7587 = vunpack.c.h.b16 %v7229
    %v7588 = vunpack.c.l.b16 %v7230
    %v7589 = vunpack.c.h.b16 %v7230
    %v7590 = vunpack.c.l.b16 %v7231
    %v7591 = vunpack.c.h.b16 %v7231
    %v7592 = vunpack.c.l.b16 %v7232
    %v7593 = vunpack.c.h.b16 %v7232
    %v7594 = vunpack.c.l.b16 %v7233
    %v7595 = vunpack.c.h.b16 %v7233
    %v7596 = vunpack.c.l.b16 %v7234
    %v7597 = vunpack.c.h.b16 %v7234
    %v7598 = vunpack.c.l.b16 %v7235
    %v7599 = vunpack.c.h.b16 %v7235
    %v7600 = vunpack.c.l.b16 %v7236
    %v7601 = vunpack.c.h.b16 %v7236
    %v7602 = vunpack.c.l.b16 %v7237
    %v7603 = vunpack.c.h.b16 %v7237
    %v7604 = vunpack.c.l.b16 %v7238
    %v7605 = vunpack.c.h.b16 %v7238
    %v7606 = vunpack.c.l.b16 %v7239
    %v7607 = vunpack.c.h.b16 %v7239
    %v7608 = vunpack.c.l.b16 %v7240
    %v7609 = vunpack.c.h.b16 %v7240
    %v7610 = vunpack.c.l.b16 %v7241
    %v7611 = vunpack.c.h.b16 %v7241
    %v7612 = vunpack.c.l.b16 %v7242
    %v7613 = vunpack.c.h.b16 %v7242
    %v7614 = vunpack.c.l.b16 %v7243
    %v7615 = vunpack.c.h.b16 %v7243
    %v7616 = vunpack.c.l.b16 %v7244
    %v7617 = vunpack.c.h.b16 %v7244
    %v7618 = vunpack.c.l.b16 %v7245
    %v7619 = vunpack.c.h.b16 %v7245
    %v7620 = vunpack.c.l.b16 %v7246
    %v7621 = vunpack.c.h.b16 %v7246
    %v7622 = vunpack.c.l.b16 %v7247
    %v7623 = vunpack.c.h.b16 %v7247
    %v7624 = vunpack.c.l.b16 %v7248
    %v7625 = vunpack.c.h.b16 %v7248
    %v7626 = vunpack.c.l.b16 %v7249
    %v7627 = vunpack.c.h.b16 %v7249
    %v7628 = vunpack.c.l.b16 %v7250
    %v7629 = vunpack.c.h.b16 %v7250
    %v7630 = vunpack.c.l.b16 %v7251
    %v7631 = vunpack.c.h.b16 %v7251
    %v7632 = vunpack.c.l.b16 %v7252
    %v7633 = vunpack.c.h.b16 %v7252
    %v7634 = vunpack.c.l.b16 %v7253
    %v7635 = vunpack.c.h.b16 %v7253
    %v7636 = vunpack.c.l.b16 %v7254
    %v7637 = vunpack.c.h.b16 %v7254
    %v7638 = vunpack.c.l.b16 %v7255
    %v7639 = vunpack.c.h.b16 %v7255
    %v7640 = vunpack.c.l.b16 %v7256
    %v7641 = vunpack.c.h.b16 %v7256
    %v7642 = vunpack.c.l.b16 %v7257
    %v7643 = vunpack.c.h.b16 %v7257
    %v7644 = vunpack.c.l.b16 %v7258
    %v7645 = vunpack.c.h.b16 %v7258
    %v7646 = vunpack.c.l.b16 %v7259
    %v7647 = vunpack.c.h.b16 %v7259
    %v7648 = vunpack.c.l.b16 %v7260
    %v7649 = vunpack.c.h.b16 %v7260
    %v7650 = vunpack.c.l.b16 %v7261
    %v7651 = vunpack.c.h.b16 %v7261
    %v7652 = vunpack.c.l.b16 %v7262
    %v7653 = vunpack.c.h.b16 %v7262
    %v7654 = vunpack.c.l.b16 %v7263
    %v7655 = vunpack.c.h.b16 %v7263
    %v7656 = vunpack.c.l.b16 %v7264
    %v7657 = vunpack.c.h.b16 %v7264
    %v7658 = vunpack.c.l.b16 %v7265
    %v7659 = vunpack.c.h.b16 %v7265
    %v7660 = vunpack.c.l.b16 %v7266
    %v7661 = vunpack.c.h.b16 %v7266
    %v7662 = vunpack.c.l.b16 %v7267
    %v7663 = vunpack.c.h.b16 %v7267
    %v7664 = vpack.c.b16 %v7410, %v7408
    %v7665 = vpack.c.b16 %v7411, %v7409
    %v7666 = vpack.c.b16 %v7414, %v7412
    %v7667 = vpack.c.b16 %v7415, %v7413
    %v7668 = vpack.c.b16 %v7418, %v7416
    %v7669 = vpack.c.b16 %v7419, %v7417
    %v7670 = vpack.c.b16 %v7422, %v7420
    %v7671 = vpack.c.b16 %v7423, %v7421
    %v7672 = vpack.c.b16 %v7426, %v7424
    %v7673 = vpack.c.b16 %v7427, %v7425
    %v7674 = vpack.c.b16 %v7430, %v7428
    %v7675 = vpack.c.b16 %v7431, %v7429
    %v7676 = vpack.c.b16 %v7434, %v7432
    %v7677 = vpack.c.b16 %v7435, %v7433
    %v7678 = vpack.c.b16 %v7438, %v7436
    %v7679 = vpack.c.b16 %v7439, %v7437
    %v7680 = vpack.c.b16 %v7442, %v7440
    %v7681 = vpack.c.b16 %v7443, %v7441
    %v7682 = vpack.c.b16 %v7446, %v7444
    %v7683 = vpack.c.b16 %v7447, %v7445
    %v7684 = vpack.c.b16 %v7450, %v7448
    %v7685 = vpack.c.b16 %v7451, %v7449
    %v7686 = vpack.c.b16 %v7454, %v7452
    %v7687 = vpack.c.b16 %v7455, %v7453
    %v7688 = vpack.c.b16 %v7458, %v7456
    %v7689 = vpack.c.b16 %v7459, %v7457
    %v7690 = vpack.c.b16 %v7462, %v7460
    %v7691 = vpack.c.b16 %v7463, %v7461
    %v7692 = vpack.c.b16 %v7466, %v7464
    %v7693 = vpack.c.b16 %v7467, %v7465
    %v7694 = vpack.c.b16 %v7470, %v7468
    %v7695 = vpack.c.b16 %v7471, %v7469
    %v7696 = vpack.c.b16 %v7474, %v7472
    %v7697 = vpack.c.b16 %v7475, %v7473
    %v7698 = vpack.c.b16 %v7478, %v7476
    %v7699 = vpack.c.b16 %v7479, %v7477
    %v7700 = vpack.c.b16 %v7482, %v7480
    %v7701 = vpack.c.b16 %v7483, %v7481
    %v7702 = vpack.c.b16 %v7486, %v7484
    %v7703 = vpack.c.b16 %v7487, %v7485
    %v7704 = vpack.c.b16 %v7490, %v7488
    %v7705 = vpack.c.b16 %v7491, %v7489
    %v7706 = vpack.c.b16 %v7494, %v7492
    %v7707 = vpack.c.b16 %v7495, %v7493
    %v7708 = vpack.c.b16 %v7498, %v7496
    %v7709 = vpack.c.b16 %v7499, %v7497
    %v7710 = vpack.c.b16 %v7502, %v7500
    %v7711 = vpack.c.b16 %v7503, %v7501
    %v7712 = vpack.c.b16 %v7506, %v7504
    %v7713 = vpack.c.b16 %v7507, %v7505
    %v7714 = vpack.c.b16 %v7510, %v7508
    %v7715 = vpack.c.b16 %v7511, %v7509
    %v7716 = vpack.c.b16 %v7514, %v7512
    %v7717 = vpack.c.b16 %v7515, %v7513
    %v7718 = vpack.c.b16 %v7518, %v7516
    %v7719 = vpack.c.b16 %v7519, %v7517
    %v7720 = vpack.c.b16 %v7522, %v7520
    %v7721 = vpack.c.b16 %v7523, %v7521
    %v7722 = vpack.c.b16 %v7526, %v7524
    %v7723 = vpack.c.b16 %v7527, %v7525
    %v7724 = vpack.c.b16 %v7530, %v7528
    %v7725 = vpack.c.b16 %v7531, %v7529
    %v7726 = vpack.c.b16 %v7534, %v7532
    %v7727 = vpack.c.b16 %v7535, %v7533
    %v7728 = vpack.c.b16 %v7538, %v7536
    %v7729 = vpack.c.b16 %v7539, %v7537
    %v7730 = vpack.c.b16 %v7542, %v7540
    %v7731 = vpack.c.b16 %v7543, %v7541
    %v7732 = vpack.c.b16 %v7546, %v7544
    %v7733 = vpack.c.b16 %v7547, %v7545
    %v7734 = vpack.c.b16 %v7550, %v7548
    %v7735 = vpack.c.b16 %v7551, %v7549
    %v7736 = vpack.c.b16 %v7554, %v7552
    %v7737 = vpack.c.b16 %v7555, %v7553
    %v7738 = vpack.c.b16 %v7558, %v7556
    %v7739 = vpack.c.b16 %v7559, %v7557
    %v7740 = vpack.c.b16 %v7562, %v7560
    %v7741 = vpack.c.b16 %v7563, %v7561
    %v7742 = vpack.c.b16 %v7566, %v7564
    %v7743 = vpack.c.b16 %v7567, %v7565
    %v7744 = vpack.c.b16 %v7570, %v7568
    %v7745 = vpack.c.b16 %v7571, %v7569
    %v7746 = vpack.c.b16 %v7574, %v7572
    %v7747 = vpack.c.b16 %v7575, %v7573
    %v7748 = vpack.c.b16 %v7578, %v7576
    %v7749 = vpack.c.b16 %v7579, %v7577
    %v7750 = vpack.c.b16 %v7582, %v7580
    %v7751 = vpack.c.b16 %v7583, %v7581
    %v7752 = vpack.c.b16 %v7586, %v7584
    %v7753 = vpack.c.b16 %v7587, %v7585
    %v7754 = vpack.c.b16 %v7590, %v7588
    %v7755 = vpack.c.b16 %v7591, %v7589
    %v7756 = vpack.c.b16 %v7594, %v7592
    %v7757 = vpack.c.b16 %v7595, %v7593
    %v7758 = vpack.c.b16 %v7598, %v7596
    %v7759 = vpack.c.b16 %v7599, %v7597
    %v7760 = vpack.c.b16 %v7602, %v7600
    %v7761 = vpack.c.b16 %v7603, %v7601
    %v7762 = vpack.c.b16 %v7606, %v7604
    %v7763 = vpack.c.b16 %v7607, %v7605
    %v7764 = vpack.c.b16 %v7610, %v7608
    %v7765 = vpack.c.b16 %v7611, %v7609
    %v7766 = vpack.c.b16 %v7614, %v7612
    %v7767 = vpack.c.b16 %v7615, %v7613
    %v7768 = vpack.c.b16 %v7618, %v7616
    %v7769 = vpack.c.b16 %v7619, %v7617
    %v7770 = vpack.c.b16 %v7622, %v7620
    %v7771 = vpack.c.b16 %v7623, %v7621
    %v7772 = vpack.c.b16 %v7626, %v7624
    %v7773 = vpack.c.b16 %v7627, %v7625
    %v7774 = vpack.c.b16 %v7630, %v7628
    %v7775 = vpack.c.b16 %v7631, %v7629
    %v7776 = vpack.c.b16 %v7634, %v7632
    %v7777 = vpack.c.b16 %v7635, %v7633
    %v7778 = vpack.c.b16 %v7638, %v7636
    %v7779 = vpack.c.b16 %v7639, %v7637
    %v7780 = vpack.c.b16 %v7642, %v7640
    %v7781 = vpack.c.b16 %v7643, %v7641
    %v7782 = vpack.c.b16 %v7646, %v7644
    %v7783 = vpack.c.b16 %v7647, %v7645
    %v7784 = vpack.c.b16 %v7650, %v7648
    %v7785 = vpack.c.b16 %v7651, %v7649
    %v7786 = vpack.c.b16 %v7654, %v7652
    %v7787 = vpack.c.b16 %v7655, %v7653
    %v7788 = vpack.c.b16 %v7658, %v7656
    %v7789 = vpack.c.b16 %v7659, %v7657
    %v7790 = vpack.c.b16 %v7662, %v7660
    %v7791 = vpack.c.b16 %v7663, %v7661
    %7920 = vmatprep.subr.bf16.mxu0 %v7679
    %7921 = vmatpush1.bf16.msra.mxu0 %v7678
    %7922 = vmatprep.subr.bf16.mxu0 %v7677
    %7923 = vmatpush1.bf16.msra.mxu0 %v7676
    %7924 = vmatprep.subr.bf16.mxu0 %v7675
    %7925 = vmatpush1.bf16.msra.mxu0 %v7674
    %7926 = vmatprep.subr.bf16.mxu0 %v7673
    %7927 = vmatpush1.bf16.msra.mxu0 %v7672
    %7928 = vmatprep.subr.bf16.mxu0 %v7671
    %7929 = vmatpush1.bf16.msra.mxu0 %v7670
    %7930 = vmatprep.subr.bf16.mxu0 %v7669
    %7931 = vmatpush1.bf16.msra.mxu0 %v7668
    %7932 = vmatprep.subr.bf16.mxu0 %v7667
    %7933 = vmatpush1.bf16.msra.mxu0 %v7666
    %7934 = vmatprep.subr.bf16.mxu0 %v7665
    %7935 = vmatpush1.bf16.msra.mxu0 %v7664
    %7936 = vmatprep.subr.bf16.mxu0 %v7695
    %7937 = vmatpush2.bf16.msra.mxu0 %v7694
    %7938 = vmatprep.subr.bf16.mxu0 %v7693
    %7939 = vmatpush2.bf16.msra.mxu0 %v7692
    %7940 = vmatprep.subr.bf16.mxu0 %v7691
    %7941 = vmatpush2.bf16.msra.mxu0 %v7690
    %7942 = vmatprep.subr.bf16.mxu0 %v7689
    %7943 = vmatpush2.bf16.msra.mxu0 %v7688
    %7944 = vmatprep.subr.bf16.mxu0 %v7687
    %7945 = vmatpush2.bf16.msra.mxu0 %v7686
    %7946 = vmatprep.subr.bf16.mxu0 %v7685
    %7947 = vmatpush2.bf16.msra.mxu0 %v7684
    %7948 = vmatprep.subr.bf16.mxu0 %v7683
    %7949 = vmatpush2.bf16.msra.mxu0 %v7682
    %7950 = vmatprep.subr.bf16.mxu0 %v7681
    %7951 = vmatpush2.bf16.msra.mxu0 %v7680
    %7952 = vmatprep.mubr.bf16.mxu0 %v7133
    %7953 = vmatmul.mubr.bf16.gmra.mxu0 %v7132
    %v7954 = vpop.f32.mrf.mxu0
    %v7955 = vadd.f32 %v7273, %v7954
    %v7956 = vpop.f32.mrf.mxu0
    %v7957 = vadd.f32 %v7277, %v7956
    %v7958 = vpop.f32.mrf.mxu0
    %v7959 = vpop.f32.mrf.mxu0
    %7960 = vdwg.mxu0
    %7961 = vmatprep.subr.bf16.mxu0 %v7711
    %7962 = vmatpush1.bf16.msra.mxu0 %v7710
    %7963 = vmatprep.subr.bf16.mxu0 %v7709
    %7964 = vmatpush1.bf16.msra.mxu0 %v7708
    %7965 = vmatprep.subr.bf16.mxu0 %v7707
    %7966 = vmatpush1.bf16.msra.mxu0 %v7706
    %7967 = vmatprep.subr.bf16.mxu0 %v7705
    %7968 = vmatpush1.bf16.msra.mxu0 %v7704
    %7969 = vmatprep.subr.bf16.mxu0 %v7703
    %7970 = vmatpush1.bf16.msra.mxu0 %v7702
    %7971 = vmatprep.subr.bf16.mxu0 %v7701
    %7972 = vmatpush1.bf16.msra.mxu0 %v7700
    %7973 = vmatprep.subr.bf16.mxu0 %v7699
    %7974 = vmatpush1.bf16.msra.mxu0 %v7698
    %7975 = vmatprep.subr.bf16.mxu0 %v7697
    %7976 = vmatpush1.bf16.msra.mxu0 %v7696
    %7977 = vmatprep.subr.bf16.mxu0 %v7727
    %7978 = vmatpush2.bf16.msra.mxu0 %v7726
    %7979 = vmatprep.subr.bf16.mxu0 %v7725
    %7980 = vmatpush2.bf16.msra.mxu0 %v7724
    %7981 = vmatprep.subr.bf16.mxu0 %v7723
    %7982 = vmatpush2.bf16.msra.mxu0 %v7722
    %7983 = vmatprep.subr.bf16.mxu0 %v7721
    %7984 = vmatpush2.bf16.msra.mxu0 %v7720
    %7985 = vmatprep.subr.bf16.mxu0 %v7719
    %7986 = vmatpush2.bf16.msra.mxu0 %v7718
    %7987 = vmatprep.subr.bf16.mxu0 %v7717
    %7988 = vmatpush2.bf16.msra.mxu0 %v7716
    %7989 = vmatprep.subr.bf16.mxu0 %v7715
    %7990 = vmatpush2.bf16.msra.mxu0 %v7714
    %7991 = vmatprep.subr.bf16.mxu0 %v7713
    %7992 = vmatpush2.bf16.msra.mxu0 %v7712
    %7993 = vmatprep.mubr.bf16.mxu0 %v7135
    %7994 = vmatmul.mubr.bf16.gmra.mxu0 %v7134
    %v7995 = vpop.f32.mrf.mxu0
    %v7996 = vadd.f32 %v7955, %v7995
    %v7997 = vpop.f32.mrf.mxu0
    %v7998 = vadd.f32 %v7957, %v7997
    %v7999 = vpop.f32.mrf.mxu0
    %v8000 = vpop.f32.mrf.mxu0
    %8001 = vdwg.mxu0
    %8002 = vmatprep.subr.bf16.mxu0 %v7743
    %8003 = vmatpush1.bf16.msra.mxu0 %v7742
    %8004 = vmatprep.subr.bf16.mxu0 %v7741
    %8005 = vmatpush1.bf16.msra.mxu0 %v7740
    %8006 = vmatprep.subr.bf16.mxu0 %v7739
    %8007 = vmatpush1.bf16.msra.mxu0 %v7738
    %8008 = vmatprep.subr.bf16.mxu0 %v7737
    %8009 = vmatpush1.bf16.msra.mxu0 %v7736
    %8010 = vmatprep.subr.bf16.mxu0 %v7735
    %8011 = vmatpush1.bf16.msra.mxu0 %v7734
    %8012 = vmatprep.subr.bf16.mxu0 %v7733
    %8013 = vmatpush1.bf16.msra.mxu0 %v7732
    %8014 = vmatprep.subr.bf16.mxu0 %v7731
    %8015 = vmatpush1.bf16.msra.mxu0 %v7730
    %8016 = vmatprep.subr.bf16.mxu0 %v7729
    %8017 = vmatpush1.bf16.msra.mxu0 %v7728
    %8018 = vmatprep.subr.bf16.mxu0 %v7759
    %8019 = vmatpush2.bf16.msra.mxu0 %v7758
    %8020 = vmatprep.subr.bf16.mxu0 %v7757
    %8021 = vmatpush2.bf16.msra.mxu0 %v7756
    %8022 = vmatprep.subr.bf16.mxu0 %v7755
    %8023 = vmatpush2.bf16.msra.mxu0 %v7754
    %8024 = vmatprep.subr.bf16.mxu0 %v7753
    %8025 = vmatpush2.bf16.msra.mxu0 %v7752
    %8026 = vmatprep.subr.bf16.mxu0 %v7751
    %8027 = vmatpush2.bf16.msra.mxu0 %v7750
    %8028 = vmatprep.subr.bf16.mxu0 %v7749
    %8029 = vmatpush2.bf16.msra.mxu0 %v7748
    %8030 = vmatprep.subr.bf16.mxu0 %v7747
    %8031 = vmatpush2.bf16.msra.mxu0 %v7746
    %8032 = vmatprep.subr.bf16.mxu0 %v7745
    %8033 = vmatpush2.bf16.msra.mxu0 %v7744
    %8034 = vmatprep.mubr.bf16.mxu0 %v7137
    %8035 = vmatmul.mubr.bf16.gmra.mxu0 %v7136
    %v8036 = vpop.f32.mrf.mxu0
    %v8037 = vadd.f32 %v7996, %v8036
    %v8038 = vpop.f32.mrf.mxu0
    %v8039 = vadd.f32 %v7998, %v8038
    %v8040 = vpop.f32.mrf.mxu0
    %v8041 = vpop.f32.mrf.mxu0
    %8042 = vdwg.mxu0
    %8043 = vmatprep.subr.bf16.mxu0 %v7775
    %8044 = vmatpush1.bf16.msra.mxu0 %v7774
    %8045 = vmatprep.subr.bf16.mxu0 %v7773
    %8046 = vmatpush1.bf16.msra.mxu0 %v7772
    %8047 = vmatprep.subr.bf16.mxu0 %v7771
    %8048 = vmatpush1.bf16.msra.mxu0 %v7770
    %8049 = vmatprep.subr.bf16.mxu0 %v7769
    %8050 = vmatpush1.bf16.msra.mxu0 %v7768
    %8051 = vmatprep.subr.bf16.mxu0 %v7767
    %8052 = vmatpush1.bf16.msra.mxu0 %v7766
    %8053 = vmatprep.subr.bf16.mxu0 %v7765
    %8054 = vmatpush1.bf16.msra.mxu0 %v7764
    %8055 = vmatprep.subr.bf16.mxu0 %v7763
    %8056 = vmatpush1.bf16.msra.mxu0 %v7762
    %8057 = vmatprep.subr.bf16.mxu0 %v7761
    %8058 = vmatpush1.bf16.msra.mxu0 %v7760
    %8059 = vmatprep.subr.bf16.mxu0 %v7791
    %8060 = vmatpush2.bf16.msra.mxu0 %v7790
    %8061 = vmatprep.subr.bf16.mxu0 %v7789
    %8062 = vmatpush2.bf16.msra.mxu0 %v7788
    %8063 = vmatprep.subr.bf16.mxu0 %v7787
    %8064 = vmatpush2.bf16.msra.mxu0 %v7786
    %8065 = vmatprep.subr.bf16.mxu0 %v7785
    %8066 = vmatpush2.bf16.msra.mxu0 %v7784
    %8067 = vmatprep.subr.bf16.mxu0 %v7783
    %8068 = vmatpush2.bf16.msra.mxu0 %v7782
    %8069 = vmatprep.subr.bf16.mxu0 %v7781
    %8070 = vmatpush2.bf16.msra.mxu0 %v7780
    %8071 = vmatprep.subr.bf16.mxu0 %v7779
    %8072 = vmatpush2.bf16.msra.mxu0 %v7778
    %8073 = vmatprep.subr.bf16.mxu0 %v7777
    %8074 = vmatpush2.bf16.msra.mxu0 %v7776
    %8075 = vmatprep.mubr.bf16.mxu0 %v7139
    %8076 = vmatmul.mubr.bf16.gmra.mxu0 %v7138
    %v8077 = vpop.f32.mrf.mxu0
    %v8078 = vadd.f32 %v8037, %v8077
    %v8079 = vpop.f32.mrf.mxu0
    %v8080 = vadd.f32 %v8039, %v8079
    %v8081 = vpop.f32.mrf.mxu0
    %v8082 = vpop.f32.mrf.mxu0
    %8083 = vdwg.mxu0
    %v8084 = vtanh.pop %v8078
    %v8085 = vtanh.pop %v8080
    %8086 = vst [vmem:[%s11] sm:$0xff] %v8084
    %8087 = vst [vmem:[%s11 + $0x8] sm:$0xff] %v8085
    // Predicated region
    $region86: #{decoder_forward.1} parent=1 // pred_check
      _
    $region87: #{decoder_forward.1} parent=1 // pred_check_branch
      %8089 = sbr.rel (0) target = $region89
    $region88: #{decoder_forward.1} parent=1 // pred_region
      _
    $region89: #{decoder_forward.1} parent=1 // pred_fallthru
      _
    // Predicated region
    $region90: #{decoder_forward.1} parent=1 // pred_check
      _
    $region91: #{decoder_forward.1} parent=1 // pred_check_branch
      %8091 = sbr.rel (0) target = $region93
    $region92: #{decoder_forward.1} parent=1 // pred_region
      _
    $region93: #{decoder_forward.1} parent=1 // pred_fallthru
      _
    %8092 = vsyncpa [#allocation3], 1
    %8093 = vsyncpa [#allocation5], 1
    %8094 = vsyncpa [#allocation8], 1
    %8095 = vsyncpa [#allocation11], 1
    %8096 = vsyncpa [#allocation14], 1
    %8097 = vsyncpa [#allocation17], 1

</llo_original>
